<compile_context>
chip_gen: v6e
topology: v6e:2x2x1
jax: 0.10.0
libtpu: 0.0.40
codegen_flags: <defaults>
</compile_context>

<pallas_src>
import jax
import jax.numpy as jnp
from jax.experimental import pallas as pl
from jax.experimental.pallas import tpu as pltpu

CONV_CHANNELS = [(1, 16), (16, 32), (32, 64), (64, 128), (128, 256), (256, 512)]
DECONV_CHANNELS = [(512, 256), (256, 128), (128, 64), (64, 32), (32, 16), (16, 1)]

_SUBLANE_MULT = 16  # multiple that keeps both f32 (8) and bf16 (16) tilings trivial


def _round_up(n, m):
    return ((n + m - 1) // m) * m


# ---------------------------------------------------------------------------
# in-kernel helpers (traced inside the kernel)
# ---------------------------------------------------------------------------
def _prelu(x, alpha):
    # nn.PReLU() with a single shared scalar parameter `alpha`
    return jnp.where(x > 0, x, alpha * x)


def _conv_block(x, w_ref, b_ref, *, pad):
    """One stride-1, kernel-3 (transposed-)conv layer over the whole batch.

    x:     (b, Lin, Cin) f32 activations.
    w_ref: (3, Cin, Cout) bf16 per-tap weight slabs (decoder weights are
           pre-flipped in the wrapper so pad=True + correlation ==
           ConvTranspose1d(kernel=3, stride=1)).
    b_ref: (1, Cout) f32 bias.
    Returns (b, Lout, Cout) f32 with Lout = Lin - 2 (conv) / Lin + 2 (deconv).
    """
    b, lin, cin = x.shape
    cout = w_ref.shape[-1]
    left = 2 if pad else 0
    lo = lin + 2 * left - 2                    # true output length
    lo_pad = _round_up(lo, _SUBLANE_MULT)      # padded length -> trivial reshapes
    right = (lo_pad + 2) - (left + lin)        # >= 2 for the deconv right zeros

    xb = x.astype(jnp.bfloat16)                # cast once, BEFORE the shifted copies
    pieces = []
    if left:
        pieces.append(jnp.zeros((b, left, cin), xb.dtype))
    pieces.append(xb)
    if right:
        pieces.append(jnp.zeros((b, right, cin), xb.dtype))
    if len(pieces) > 1:
        xb = jnp.concatenate(pieces, axis=1)   # (b, lo_pad + 2, cin)

    acc = b_ref[...]                           # (1, Cout) f32, broadcasts over rows
    for k in range(3):
        tap = xb[:, k:k + lo_pad, :].reshape(b * lo_pad, cin)   # trivial merge
        acc = acc + jnp.dot(tap, w_ref[k], preferred_element_type=jnp.float32)
    y = acc.reshape(b, lo_pad, cout)           # trivial split
    return y[:, :lo, :]                        # drop the length padding


# ---------------------------------------------------------------------------
# Pallas kernel: full forward pass for the whole (small) batch, grid-less
# ---------------------------------------------------------------------------
def generator_kernel(x_ref, a_ref, *refs):
    # refs layout: 6x(conv_w, conv_b), 6x(deconv_w, deconv_b), out
    out_ref = refs[24]
    alpha = a_ref[0, 0]                        # shared PReLU slope, SMEM scalar

    h = x_ref[...]                             # (b, L, 1) f32

    # encoder: conv1..conv6, PReLU after each; keep res1..res5 for the skips
    res = []
    for i in range(6):
        h = _prelu(_conv_block(h, refs[2 * i], refs[2 * i + 1], pad=False), alpha)
        if i < 5:
            res.append(h)

    # decoder: deconv6..deconv2 -> PReLU -> +skip ; deconv1 -> Tanh
    for i in range(6):
        h = _conv_block(h, refs[12 + 2 * i], refs[13 + 2 * i], pad=True)
        if i < 5:
            h = _prelu(h, alpha) + res[4 - i]
        else:
            h = jnp.tanh(h)

    # single store of the full (b, L, 1) output block
    out_ref[...] = h.astype(out_ref.dtype)


# ---------------------------------------------------------------------------
# wrapper / parameter setup (plain JAX glue)
# ---------------------------------------------------------------------------
def init_params(key):
    """PyTorch-default-style init, pre-converted to the kernel layout:
    conv weights (Cout, Cin, 3) -> (3, Cin, Cout) bf16;
    transposed-conv weights (Cin, Cout, 3) -> flip kernel dim -> (3, Cin, Cout) bf16.
    """
    params = []
    k = key
    for (ci, co) in CONV_CHANNELS:
        k, kw, kb = jax.random.split(k, 3)
        bound = 1.0 / (ci * 3) ** 0.5
        w = jax.random.uniform(kw, (co, ci, 3), jnp.float32, -bound, bound)
        bias = jax.random.uniform(kb, (1, co), jnp.float32, -bound, bound)
        w_taps = jnp.transpose(w, (2, 1, 0)).astype(jnp.bfloat16)   # (3, Cin, Cout)
        params.extend([w_taps, bias])
    for (ci, co) in DECONV_CHANNELS:
        k, kw, kb = jax.random.split(k, 3)
        bound = 1.0 / (co * 3) ** 0.5
        w = jax.random.uniform(kw, (ci, co, 3), jnp.float32, -bound, bound)
        bias = jax.random.uniform(kb, (1, co), jnp.float32, -bound, bound)
        # y[t] = sum_k x_pad[t+k] @ W[:, :, 2-k]  ->  flip kernel dim first
        w_taps = jnp.transpose(w[:, :, ::-1], (2, 0, 1)).astype(jnp.bfloat16)
        params.extend([w_taps, bias])
    prelu_a = jnp.full((1, 1), 0.25, jnp.float32)   # nn.PReLU() default init
    return [prelu_a] + params


@jax.jit
def generator_forward(x_ncl, params):
    xi = jnp.transpose(x_ncl, (0, 2, 1)).astype(jnp.float32)      # NCL -> NLC
    args = [xi] + list(params)
    in_specs = [pl.BlockSpec(memory_space=pltpu.MemorySpace.VMEM),   # x
                pl.BlockSpec(memory_space=pltpu.MemorySpace.SMEM)]   # PReLU slope
    in_specs += [pl.BlockSpec(memory_space=pltpu.MemorySpace.VMEM)] * (len(args) - 2)
    out = pl.pallas_call(
        generator_kernel,
        out_shape=jax.ShapeDtypeStruct(xi.shape, jnp.float32),       # (b, L, 1)
        in_specs=in_specs,
        out_specs=pl.BlockSpec(memory_space=pltpu.MemorySpace.VMEM),
        compiler_params=pltpu.CompilerParams(vmem_limit_bytes=8 * 1024 * 1024),
    )(*args)
    return jnp.transpose(out, (0, 2, 1))                             # back to NCL


if __name__ == "__main__":
    key = jax.random.PRNGKey(0)
    kx, kp = jax.random.split(key)
    batch, seq_len = 2, 24        # encoder shrinks L by 12, decoder restores it
    X = jax.random.normal(kx, (batch, 1, seq_len), jnp.float32)
    params = init_params(kp)

    out = generator_forward(X, params)
    jax.block_until_ready(out)
    assert out.shape == (batch, 1, seq_len)
    assert bool(jnp.all(jnp.isfinite(out)))
    assert bool(jnp.all(jnp.abs(out) <= 1.0))      # Tanh output range
    print("KERNEL_OK")
</pallas_src>

<mosaic_0001>
module attributes {stable_mosaic.version = 11 : i64} {
  func.func @generator_kernel(%arg0: memref<2x24x1xf32, #tpu.memory_space<vmem>>, %arg1: memref<1x1xf32, #tpu.memory_space<smem>>, %arg2: memref<3x1x16xbf16, #tpu.memory_space<vmem>>, %arg3: memref<1x16xf32, #tpu.memory_space<vmem>>, %arg4: memref<3x16x32xbf16, #tpu.memory_space<vmem>>, %arg5: memref<1x32xf32, #tpu.memory_space<vmem>>, %arg6: memref<3x32x64xbf16, #tpu.memory_space<vmem>>, %arg7: memref<1x64xf32, #tpu.memory_space<vmem>>, %arg8: memref<3x64x128xbf16, #tpu.memory_space<vmem>>, %arg9: memref<1x128xf32, #tpu.memory_space<vmem>>, %arg10: memref<3x128x256xbf16, #tpu.memory_space<vmem>>, %arg11: memref<1x256xf32, #tpu.memory_space<vmem>>, %arg12: memref<3x256x512xbf16, #tpu.memory_space<vmem>>, %arg13: memref<1x512xf32, #tpu.memory_space<vmem>>, %arg14: memref<3x512x256xbf16, #tpu.memory_space<vmem>>, %arg15: memref<1x256xf32, #tpu.memory_space<vmem>>, %arg16: memref<3x256x128xbf16, #tpu.memory_space<vmem>>, %arg17: memref<1x128xf32, #tpu.memory_space<vmem>>, %arg18: memref<3x128x64xbf16, #tpu.memory_space<vmem>>, %arg19: memref<1x64xf32, #tpu.memory_space<vmem>>, %arg20: memref<3x64x32xbf16, #tpu.memory_space<vmem>>, %arg21: memref<1x32xf32, #tpu.memory_space<vmem>>, %arg22: memref<3x32x16xbf16, #tpu.memory_space<vmem>>, %arg23: memref<1x16xf32, #tpu.memory_space<vmem>>, %arg24: memref<3x16x1xbf16, #tpu.memory_space<vmem>>, %arg25: memref<1x1xf32, #tpu.memory_space<vmem>>, %arg26: memref<2x24x1xf32, #tpu.memory_space<vmem>>) attributes {dimension_semantics = [], scalar_prefetch = 0 : i64, scratch_operands = 0 : i64, tpu.core_type = #tpu.core_type<tc>} {
    %c0 = arith.constant 0 : index
    %c0_0 = arith.constant 0 : index
    %0 = memref.load %arg1[%c0, %c0_0] : memref<1x1xf32, #tpu.memory_space<smem>>
    %c0_1 = arith.constant 0 : index
    %c0_2 = arith.constant 0 : index
    %c0_3 = arith.constant 0 : index
    %1 = vector.load %arg0[%c0_1, %c0_2, %c0_3] : memref<2x24x1xf32, #tpu.memory_space<vmem>>, vector<2x24x1xf32>
    %2 = arith.truncf %1 : vector<2x24x1xf32> to vector<2x24x1xbf16>
    %cst = arith.constant 0.000000e+00 : bf16
    %3 = vector.broadcast %cst : bf16 to vector<2x10x1xbf16>
    %4 = tpu.concatenate %2, %3 in 1 : vector<2x24x1xbf16>, vector<2x10x1xbf16> -> vector<2x34x1xbf16>
    %c0_4 = arith.constant 0 : index
    %c0_5 = arith.constant 0 : index
    %5 = vector.load %arg3[%c0_4, %c0_5] : memref<1x16xf32, #tpu.memory_space<vmem>>, vector<1x16xf32>
    %6 = vector.extract_strided_slice %4 {offsets = [0, 0, 0], sizes = [2, 32, 1], strides = [1, 1, 1]} : vector<2x34x1xbf16> to vector<2x32x1xbf16>
    %7 = vector.shape_cast %6 : vector<2x32x1xbf16> to vector<64x1xbf16>
    %c0_6 = arith.constant 0 : index
    %c0_7 = arith.constant 0 : index
    %c0_8 = arith.constant 0 : index
    %8 = vector.load %arg2[%c0_6, %c0_7, %c0_8] : memref<3x1x16xbf16, #tpu.memory_space<vmem>>, vector<1x1x16xbf16>
    %9 = vector.shape_cast %8 : vector<1x1x16xbf16> to vector<1x16xbf16>
    %cst_9 = arith.constant dense<0.000000e+00> : vector<64x16xf32>
    %10 = tpu.matmul %7, %9, %cst_9 {dimension_numbers = #tpu.dot_dimension_numbers<[1], [0], [0], [1], [0, 0, 1, 1], [], []>} : vector<64x1xbf16>, vector<1x16xbf16>, vector<64x16xf32> -> vector<64x16xf32>
    %11 = vector.broadcast %5 : vector<1x16xf32> to vector<64x16xf32>
    %12 = arith.addf %11, %10 : vector<64x16xf32>
    %13 = vector.extract_strided_slice %4 {offsets = [0, 1, 0], sizes = [2, 32, 1], strides = [1, 1, 1]} : vector<2x34x1xbf16> to vector<2x32x1xbf16>
    %14 = vector.shape_cast %13 : vector<2x32x1xbf16> to vector<64x1xbf16>
    %c1 = arith.constant 1 : index
    %c0_10 = arith.constant 0 : index
    %c0_11 = arith.constant 0 : index
    %15 = vector.load %arg2[%c1, %c0_10, %c0_11] : memref<3x1x16xbf16, #tpu.memory_space<vmem>>, vector<1x1x16xbf16>
    %16 = vector.shape_cast %15 : vector<1x1x16xbf16> to vector<1x16xbf16>
    %cst_12 = arith.constant dense<0.000000e+00> : vector<64x16xf32>
    %17 = tpu.matmul %14, %16, %cst_12 {dimension_numbers = #tpu.dot_dimension_numbers<[1], [0], [0], [1], [0, 0, 1, 1], [], []>} : vector<64x1xbf16>, vector<1x16xbf16>, vector<64x16xf32> -> vector<64x16xf32>
    %18 = arith.addf %12, %17 : vector<64x16xf32>
    %19 = vector.extract_strided_slice %4 {offsets = [0, 2, 0], sizes = [2, 32, 1], strides = [1, 1, 1]} : vector<2x34x1xbf16> to vector<2x32x1xbf16>
    %20 = vector.shape_cast %19 : vector<2x32x1xbf16> to vector<64x1xbf16>
    %c2 = arith.constant 2 : index
    %c0_13 = arith.constant 0 : index
    %c0_14 = arith.constant 0 : index
    %21 = vector.load %arg2[%c2, %c0_13, %c0_14] : memref<3x1x16xbf16, #tpu.memory_space<vmem>>, vector<1x1x16xbf16>
    %22 = vector.shape_cast %21 : vector<1x1x16xbf16> to vector<1x16xbf16>
    %cst_15 = arith.constant dense<0.000000e+00> : vector<64x16xf32>
    %23 = tpu.matmul %20, %22, %cst_15 {dimension_numbers = #tpu.dot_dimension_numbers<[1], [0], [0], [1], [0, 0, 1, 1], [], []>} : vector<64x1xbf16>, vector<1x16xbf16>, vector<64x16xf32> -> vector<64x16xf32>
    %24 = arith.addf %18, %23 : vector<64x16xf32>
    %25 = vector.shape_cast %24 : vector<64x16xf32> to vector<2x32x16xf32>
    %26 = vector.extract_strided_slice %25 {offsets = [0, 0, 0], sizes = [2, 22, 16], strides = [1, 1, 1]} : vector<2x32x16xf32> to vector<2x22x16xf32>
    %cst_16 = arith.constant 0.000000e+00 : f32
    %27 = vector.broadcast %cst_16 : f32 to vector<2x22x16xf32>
    %28 = arith.cmpf ogt, %26, %27 : vector<2x22x16xf32>
    %29 = vector.broadcast %0 : f32 to vector<2x22x16xf32>
    %30 = arith.mulf %29, %26 : vector<2x22x16xf32>
    %31 = arith.select %28, %26, %30 : vector<2x22x16xi1>, vector<2x22x16xf32>
    %32 = arith.truncf %31 : vector<2x22x16xf32> to vector<2x22x16xbf16>
    %cst_17 = arith.constant 0.000000e+00 : bf16
    %33 = vector.broadcast %cst_17 : bf16 to vector<2x12x16xbf16>
    %34 = tpu.concatenate %32, %33 in 1 : vector<2x22x16xbf16>, vector<2x12x16xbf16> -> vector<2x34x16xbf16>
    %c0_18 = arith.constant 0 : index
    %c0_19 = arith.constant 0 : index
    %35 = vector.load %arg5[%c0_18, %c0_19] : memref<1x32xf32, #tpu.memory_space<vmem>>, vector<1x32xf32>
    %36 = vector.extract_strided_slice %34 {offsets = [0, 0, 0], sizes = [2, 32, 16], strides = [1, 1, 1]} : vector<2x34x16xbf16> to vector<2x32x16xbf16>
    %37 = vector.shape_cast %36 : vector<2x32x16xbf16> to vector<64x16xbf16>
    %c0_20 = arith.constant 0 : index
    %c0_21 = arith.constant 0 : index
    %c0_22 = arith.constant 0 : index
    %38 = vector.load %arg4[%c0_20, %c0_21, %c0_22] : memref<3x16x32xbf16, #tpu.memory_space<vmem>>, vector<1x16x32xbf16>
    %39 = vector.shape_cast %38 : vector<1x16x32xbf16> to vector<16x32xbf16>
    %cst_23 = arith.constant dense<0.000000e+00> : vector<64x32xf32>
    %40 = tpu.matmul %37, %39, %cst_23 {dimension_numbers = #tpu.dot_dimension_numbers<[1], [0], [0], [1], [0, 0, 1, 1], [], []>} : vector<64x16xbf16>, vector<16x32xbf16>, vector<64x32xf32> -> vector<64x32xf32>
    %41 = vector.broadcast %35 : vector<1x32xf32> to vector<64x32xf32>
    %42 = arith.addf %41, %40 : vector<64x32xf32>
    %43 = vector.extract_strided_slice %34 {offsets = [0, 1, 0], sizes = [2, 32, 16], strides = [1, 1, 1]} : vector<2x34x16xbf16> to vector<2x32x16xbf16>
    %44 = vector.shape_cast %43 : vector<2x32x16xbf16> to vector<64x16xbf16>
    %c1_24 = arith.constant 1 : index
    %c0_25 = arith.constant 0 : index
    %c0_26 = arith.constant 0 : index
    %45 = vector.load %arg4[%c1_24, %c0_25, %c0_26] : memref<3x16x32xbf16, #tpu.memory_space<vmem>>, vector<1x16x32xbf16>
    %46 = vector.shape_cast %45 : vector<1x16x32xbf16> to vector<16x32xbf16>
    %cst_27 = arith.constant dense<0.000000e+00> : vector<64x32xf32>
    %47 = tpu.matmul %44, %46, %cst_27 {dimension_numbers = #tpu.dot_dimension_numbers<[1], [0], [0], [1], [0, 0, 1, 1], [], []>} : vector<64x16xbf16>, vector<16x32xbf16>, vector<64x32xf32> -> vector<64x32xf32>
    %48 = arith.addf %42, %47 : vector<64x32xf32>
    %49 = vector.extract_strided_slice %34 {offsets = [0, 2, 0], sizes = [2, 32, 16], strides = [1, 1, 1]} : vector<2x34x16xbf16> to vector<2x32x16xbf16>
    %50 = vector.shape_cast %49 : vector<2x32x16xbf16> to vector<64x16xbf16>
    %c2_28 = arith.constant 2 : index
    %c0_29 = arith.constant 0 : index
    %c0_30 = arith.constant 0 : index
    %51 = vector.load %arg4[%c2_28, %c0_29, %c0_30] : memref<3x16x32xbf16, #tpu.memory_space<vmem>>, vector<1x16x32xbf16>
    %52 = vector.shape_cast %51 : vector<1x16x32xbf16> to vector<16x32xbf16>
    %cst_31 = arith.constant dense<0.000000e+00> : vector<64x32xf32>
    %53 = tpu.matmul %50, %52, %cst_31 {dimension_numbers = #tpu.dot_dimension_numbers<[1], [0], [0], [1], [0, 0, 1, 1], [], []>} : vector<64x16xbf16>, vector<16x32xbf16>, vector<64x32xf32> -> vector<64x32xf32>
    %54 = arith.addf %48, %53 : vector<64x32xf32>
    %55 = vector.shape_cast %54 : vector<64x32xf32> to vector<2x32x32xf32>
    %56 = vector.extract_strided_slice %55 {offsets = [0, 0, 0], sizes = [2, 20, 32], strides = [1, 1, 1]} : vector<2x32x32xf32> to vector<2x20x32xf32>
    %cst_32 = arith.constant 0.000000e+00 : f32
    %57 = vector.broadcast %cst_32 : f32 to vector<2x20x32xf32>
    %58 = arith.cmpf ogt, %56, %57 : vector<2x20x32xf32>
    %59 = vector.broadcast %0 : f32 to vector<2x20x32xf32>
    %60 = arith.mulf %59, %56 : vector<2x20x32xf32>
    %61 = arith.select %58, %56, %60 : vector<2x20x32xi1>, vector<2x20x32xf32>
    %62 = arith.truncf %61 : vector<2x20x32xf32> to vector<2x20x32xbf16>
    %cst_33 = arith.constant 0.000000e+00 : bf16
    %63 = vector.broadcast %cst_33 : bf16 to vector<2x14x32xbf16>
    %64 = tpu.concatenate %62, %63 in 1 : vector<2x20x32xbf16>, vector<2x14x32xbf16> -> vector<2x34x32xbf16>
    %c0_34 = arith.constant 0 : index
    %c0_35 = arith.constant 0 : index
    %65 = vector.load %arg7[%c0_34, %c0_35] : memref<1x64xf32, #tpu.memory_space<vmem>>, vector<1x64xf32>
    %66 = vector.extract_strided_slice %64 {offsets = [0, 0, 0], sizes = [2, 32, 32], strides = [1, 1, 1]} : vector<2x34x32xbf16> to vector<2x32x32xbf16>
    %67 = vector.shape_cast %66 : vector<2x32x32xbf16> to vector<64x32xbf16>
    %c0_36 = arith.constant 0 : index
    %c0_37 = arith.constant 0 : index
    %c0_38 = arith.constant 0 : index
    %68 = vector.load %arg6[%c0_36, %c0_37, %c0_38] : memref<3x32x64xbf16, #tpu.memory_space<vmem>>, vector<1x32x64xbf16>
    %69 = vector.shape_cast %68 : vector<1x32x64xbf16> to vector<32x64xbf16>
    %cst_39 = arith.constant dense<0.000000e+00> : vector<64x64xf32>
    %70 = tpu.matmul %67, %69, %cst_39 {dimension_numbers = #tpu.dot_dimension_numbers<[1], [0], [0], [1], [0, 0, 1, 1], [], []>} : vector<64x32xbf16>, vector<32x64xbf16>, vector<64x64xf32> -> vector<64x64xf32>
    %71 = vector.broadcast %65 : vector<1x64xf32> to vector<64x64xf32>
    %72 = arith.addf %71, %70 : vector<64x64xf32>
    %73 = vector.extract_strided_slice %64 {offsets = [0, 1, 0], sizes = [2, 32, 32], strides = [1, 1, 1]} : vector<2x34x32xbf16> to vector<2x32x32xbf16>
    %74 = vector.shape_cast %73 : vector<2x32x32xbf16> to vector<64x32xbf16>
    %c1_40 = arith.constant 1 : index
    %c0_41 = arith.constant 0 : index
    %c0_42 = arith.constant 0 : index
    %75 = vector.load %arg6[%c1_40, %c0_41, %c0_42] : memref<3x32x64xbf16, #tpu.memory_space<vmem>>, vector<1x32x64xbf16>
    %76 = vector.shape_cast %75 : vector<1x32x64xbf16> to vector<32x64xbf16>
    %cst_43 = arith.constant dense<0.000000e+00> : vector<64x64xf32>
    %77 = tpu.matmul %74, %76, %cst_43 {dimension_numbers = #tpu.dot_dimension_numbers<[1], [0], [0], [1], [0, 0, 1, 1], [], []>} : vector<64x32xbf16>, vector<32x64xbf16>, vector<64x64xf32> -> vector<64x64xf32>
    %78 = arith.addf %72, %77 : vector<64x64xf32>
    %79 = vector.extract_strided_slice %64 {offsets = [0, 2, 0], sizes = [2, 32, 32], strides = [1, 1, 1]} : vector<2x34x32xbf16> to vector<2x32x32xbf16>
    %80 = vector.shape_cast %79 : vector<2x32x32xbf16> to vector<64x32xbf16>
    %c2_44 = arith.constant 2 : index
    %c0_45 = arith.constant 0 : index
    %c0_46 = arith.constant 0 : index
    %81 = vector.load %arg6[%c2_44, %c0_45, %c0_46] : memref<3x32x64xbf16, #tpu.memory_space<vmem>>, vector<1x32x64xbf16>
    %82 = vector.shape_cast %81 : vector<1x32x64xbf16> to vector<32x64xbf16>
    %cst_47 = arith.constant dense<0.000000e+00> : vector<64x64xf32>
    %83 = tpu.matmul %80, %82, %cst_47 {dimension_numbers = #tpu.dot_dimension_numbers<[1], [0], [0], [1], [0, 0, 1, 1], [], []>} : vector<64x32xbf16>, vector<32x64xbf16>, vector<64x64xf32> -> vector<64x64xf32>
    %84 = arith.addf %78, %83 : vector<64x64xf32>
    %85 = vector.shape_cast %84 : vector<64x64xf32> to vector<2x32x64xf32>
    %86 = vector.extract_strided_slice %85 {offsets = [0, 0, 0], sizes = [2, 18, 64], strides = [1, 1, 1]} : vector<2x32x64xf32> to vector<2x18x64xf32>
    %cst_48 = arith.constant 0.000000e+00 : f32
    %87 = vector.broadcast %cst_48 : f32 to vector<2x18x64xf32>
    %88 = arith.cmpf ogt, %86, %87 : vector<2x18x64xf32>
    %89 = vector.broadcast %0 : f32 to vector<2x18x64xf32>
    %90 = arith.mulf %89, %86 : vector<2x18x64xf32>
    %91 = arith.select %88, %86, %90 : vector<2x18x64xi1>, vector<2x18x64xf32>
    %92 = arith.truncf %91 : vector<2x18x64xf32> to vector<2x18x64xbf16>
    %c0_49 = arith.constant 0 : index
    %c0_50 = arith.constant 0 : index
    %93 = vector.load %arg9[%c0_49, %c0_50] : memref<1x128xf32, #tpu.memory_space<vmem>>, vector<1x128xf32>
    %94 = vector.extract_strided_slice %92 {offsets = [0, 0, 0], sizes = [2, 16, 64], strides = [1, 1, 1]} : vector<2x18x64xbf16> to vector<2x16x64xbf16>
    %95 = vector.shape_cast %94 : vector<2x16x64xbf16> to vector<32x64xbf16>
    %c0_51 = arith.constant 0 : index
    %c0_52 = arith.constant 0 : index
    %c0_53 = arith.constant 0 : index
    %96 = vector.load %arg8[%c0_51, %c0_52, %c0_53] : memref<3x64x128xbf16, #tpu.memory_space<vmem>>, vector<1x64x128xbf16>
    %97 = vector.shape_cast %96 : vector<1x64x128xbf16> to vector<64x128xbf16>
    %cst_54 = arith.constant dense<0.000000e+00> : vector<32x128xf32>
    %98 = tpu.matmul %95, %97, %cst_54 {dimension_numbers = #tpu.dot_dimension_numbers<[1], [0], [0], [1], [0, 0, 1, 1], [], []>} : vector<32x64xbf16>, vector<64x128xbf16>, vector<32x128xf32> -> vector<32x128xf32>
    %99 = vector.broadcast %93 : vector<1x128xf32> to vector<32x128xf32>
    %100 = arith.addf %99, %98 : vector<32x128xf32>
    %101 = vector.extract_strided_slice %92 {offsets = [0, 1, 0], sizes = [2, 16, 64], strides = [1, 1, 1]} : vector<2x18x64xbf16> to vector<2x16x64xbf16>
    %102 = vector.shape_cast %101 : vector<2x16x64xbf16> to vector<32x64xbf16>
    %c1_55 = arith.constant 1 : index
    %c0_56 = arith.constant 0 : index
    %c0_57 = arith.constant 0 : index
    %103 = vector.load %arg8[%c1_55, %c0_56, %c0_57] : memref<3x64x128xbf16, #tpu.memory_space<vmem>>, vector<1x64x128xbf16>
    %104 = vector.shape_cast %103 : vector<1x64x128xbf16> to vector<64x128xbf16>
    %cst_58 = arith.constant dense<0.000000e+00> : vector<32x128xf32>
    %105 = tpu.matmul %102, %104, %cst_58 {dimension_numbers = #tpu.dot_dimension_numbers<[1], [0], [0], [1], [0, 0, 1, 1], [], []>} : vector<32x64xbf16>, vector<64x128xbf16>, vector<32x128xf32> -> vector<32x128xf32>
    %106 = arith.addf %100, %105 : vector<32x128xf32>
    %107 = vector.extract_strided_slice %92 {offsets = [0, 2, 0], sizes = [2, 16, 64], strides = [1, 1, 1]} : vector<2x18x64xbf16> to vector<2x16x64xbf16>
    %108 = vector.shape_cast %107 : vector<2x16x64xbf16> to vector<32x64xbf16>
    %c2_59 = arith.constant 2 : index
    %c0_60 = arith.constant 0 : index
    %c0_61 = arith.constant 0 : index
    %109 = vector.load %arg8[%c2_59, %c0_60, %c0_61] : memref<3x64x128xbf16, #tpu.memory_space<vmem>>, vector<1x64x128xbf16>
    %110 = vector.shape_cast %109 : vector<1x64x128xbf16> to vector<64x128xbf16>
    %cst_62 = arith.constant dense<0.000000e+00> : vector<32x128xf32>
    %111 = tpu.matmul %108, %110, %cst_62 {dimension_numbers = #tpu.dot_dimension_numbers<[1], [0], [0], [1], [0, 0, 1, 1], [], []>} : vector<32x64xbf16>, vector<64x128xbf16>, vector<32x128xf32> -> vector<32x128xf32>
    %112 = arith.addf %106, %111 : vector<32x128xf32>
    %113 = vector.shape_cast %112 : vector<32x128xf32> to vector<2x16x128xf32>
    %cst_63 = arith.constant 0.000000e+00 : f32
    %114 = vector.broadcast %cst_63 : f32 to vector<2x16x128xf32>
    %115 = arith.cmpf ogt, %113, %114 : vector<2x16x128xf32>
    %116 = vector.broadcast %0 : f32 to vector<2x16x128xf32>
    %117 = arith.mulf %116, %113 : vector<2x16x128xf32>
    %118 = arith.select %115, %113, %117 : vector<2x16x128xi1>, vector<2x16x128xf32>
    %119 = arith.truncf %118 : vector<2x16x128xf32> to vector<2x16x128xbf16>
    %cst_64 = arith.constant 0.000000e+00 : bf16
    %120 = vector.broadcast %cst_64 : bf16 to vector<2x2x128xbf16>
    %121 = tpu.concatenate %119, %120 in 1 : vector<2x16x128xbf16>, vector<2x2x128xbf16> -> vector<2x18x128xbf16>
    %c0_65 = arith.constant 0 : index
    %c0_66 = arith.constant 0 : index
    %122 = vector.load %arg11[%c0_65, %c0_66] : memref<1x256xf32, #tpu.memory_space<vmem>>, vector<1x256xf32>
    %123 = vector.extract_strided_slice %121 {offsets = [0, 0, 0], sizes = [2, 16, 128], strides = [1, 1, 1]} : vector<2x18x128xbf16> to vector<2x16x128xbf16>
    %124 = vector.shape_cast %123 : vector<2x16x128xbf16> to vector<32x128xbf16>
    %c0_67 = arith.constant 0 : index
    %c0_68 = arith.constant 0 : index
    %c0_69 = arith.constant 0 : index
    %125 = vector.load %arg10[%c0_67, %c0_68, %c0_69] : memref<3x128x256xbf16, #tpu.memory_space<vmem>>, vector<1x128x256xbf16>
    %126 = vector.shape_cast %125 : vector<1x128x256xbf16> to vector<128x256xbf16>
    %cst_70 = arith.constant dense<0.000000e+00> : vector<32x256xf32>
    %127 = tpu.matmul %124, %126, %cst_70 {dimension_numbers = #tpu.dot_dimension_numbers<[1], [0], [0], [1], [0, 0, 1, 1], [], []>} : vector<32x128xbf16>, vector<128x256xbf16>, vector<32x256xf32> -> vector<32x256xf32>
    %128 = vector.broadcast %122 : vector<1x256xf32> to vector<32x256xf32>
    %129 = arith.addf %128, %127 : vector<32x256xf32>
    %130 = vector.extract_strided_slice %121 {offsets = [0, 1, 0], sizes = [2, 16, 128], strides = [1, 1, 1]} : vector<2x18x128xbf16> to vector<2x16x128xbf16>
    %131 = vector.shape_cast %130 : vector<2x16x128xbf16> to vector<32x128xbf16>
    %c1_71 = arith.constant 1 : index
    %c0_72 = arith.constant 0 : index
    %c0_73 = arith.constant 0 : index
    %132 = vector.load %arg10[%c1_71, %c0_72, %c0_73] : memref<3x128x256xbf16, #tpu.memory_space<vmem>>, vector<1x128x256xbf16>
    %133 = vector.shape_cast %132 : vector<1x128x256xbf16> to vector<128x256xbf16>
    %cst_74 = arith.constant dense<0.000000e+00> : vector<32x256xf32>
    %134 = tpu.matmul %131, %133, %cst_74 {dimension_numbers = #tpu.dot_dimension_numbers<[1], [0], [0], [1], [0, 0, 1, 1], [], []>} : vector<32x128xbf16>, vector<128x256xbf16>, vector<32x256xf32> -> vector<32x256xf32>
    %135 = arith.addf %129, %134 : vector<32x256xf32>
    %136 = vector.extract_strided_slice %121 {offsets = [0, 2, 0], sizes = [2, 16, 128], strides = [1, 1, 1]} : vector<2x18x128xbf16> to vector<2x16x128xbf16>
    %137 = vector.shape_cast %136 : vector<2x16x128xbf16> to vector<32x128xbf16>
    %c2_75 = arith.constant 2 : index
    %c0_76 = arith.constant 0 : index
    %c0_77 = arith.constant 0 : index
    %138 = vector.load %arg10[%c2_75, %c0_76, %c0_77] : memref<3x128x256xbf16, #tpu.memory_space<vmem>>, vector<1x128x256xbf16>
    %139 = vector.shape_cast %138 : vector<1x128x256xbf16> to vector<128x256xbf16>
    %cst_78 = arith.constant dense<0.000000e+00> : vector<32x256xf32>
    %140 = tpu.matmul %137, %139, %cst_78 {dimension_numbers = #tpu.dot_dimension_numbers<[1], [0], [0], [1], [0, 0, 1, 1], [], []>} : vector<32x128xbf16>, vector<128x256xbf16>, vector<32x256xf32> -> vector<32x256xf32>
    %141 = arith.addf %135, %140 : vector<32x256xf32>
    %142 = vector.shape_cast %141 : vector<32x256xf32> to vector<2x16x256xf32>
    %143 = vector.extract_strided_slice %142 {offsets = [0, 0, 0], sizes = [2, 14, 256], strides = [1, 1, 1]} : vector<2x16x256xf32> to vector<2x14x256xf32>
    %cst_79 = arith.constant 0.000000e+00 : f32
    %144 = vector.broadcast %cst_79 : f32 to vector<2x14x256xf32>
    %145 = arith.cmpf ogt, %143, %144 : vector<2x14x256xf32>
    %146 = vector.broadcast %0 : f32 to vector<2x14x256xf32>
    %147 = arith.mulf %146, %143 : vector<2x14x256xf32>
    %148 = arith.select %145, %143, %147 : vector<2x14x256xi1>, vector<2x14x256xf32>
    %149 = arith.truncf %148 : vector<2x14x256xf32> to vector<2x14x256xbf16>
    %cst_80 = arith.constant 0.000000e+00 : bf16
    %150 = vector.broadcast %cst_80 : bf16 to vector<2x4x256xbf16>
    %151 = tpu.concatenate %149, %150 in 1 : vector<2x14x256xbf16>, vector<2x4x256xbf16> -> vector<2x18x256xbf16>
    %c0_81 = arith.constant 0 : index
    %c0_82 = arith.constant 0 : index
    %152 = vector.load %arg13[%c0_81, %c0_82] : memref<1x512xf32, #tpu.memory_space<vmem>>, vector<1x512xf32>
    %153 = vector.extract_strided_slice %151 {offsets = [0, 0, 0], sizes = [2, 16, 256], strides = [1, 1, 1]} : vector<2x18x256xbf16> to vector<2x16x256xbf16>
    %154 = vector.shape_cast %153 : vector<2x16x256xbf16> to vector<32x256xbf16>
    %c0_83 = arith.constant 0 : index
    %c0_84 = arith.constant 0 : index
    %c0_85 = arith.constant 0 : index
    %155 = vector.load %arg12[%c0_83, %c0_84, %c0_85] : memref<3x256x512xbf16, #tpu.memory_space<vmem>>, vector<1x256x512xbf16>
    %156 = vector.shape_cast %155 : vector<1x256x512xbf16> to vector<256x512xbf16>
    %cst_86 = arith.constant dense<0.000000e+00> : vector<32x512xf32>
    %157 = tpu.matmul %154, %156, %cst_86 {dimension_numbers = #tpu.dot_dimension_numbers<[1], [0], [0], [1], [0, 0, 1, 1], [], []>} : vector<32x256xbf16>, vector<256x512xbf16>, vector<32x512xf32> -> vector<32x512xf32>
    %158 = vector.broadcast %152 : vector<1x512xf32> to vector<32x512xf32>
    %159 = arith.addf %158, %157 : vector<32x512xf32>
    %160 = vector.extract_strided_slice %151 {offsets = [0, 1, 0], sizes = [2, 16, 256], strides = [1, 1, 1]} : vector<2x18x256xbf16> to vector<2x16x256xbf16>
    %161 = vector.shape_cast %160 : vector<2x16x256xbf16> to vector<32x256xbf16>
    %c1_87 = arith.constant 1 : index
    %c0_88 = arith.constant 0 : index
    %c0_89 = arith.constant 0 : index
    %162 = vector.load %arg12[%c1_87, %c0_88, %c0_89] : memref<3x256x512xbf16, #tpu.memory_space<vmem>>, vector<1x256x512xbf16>
    %163 = vector.shape_cast %162 : vector<1x256x512xbf16> to vector<256x512xbf16>
    %cst_90 = arith.constant dense<0.000000e+00> : vector<32x512xf32>
    %164 = tpu.matmul %161, %163, %cst_90 {dimension_numbers = #tpu.dot_dimension_numbers<[1], [0], [0], [1], [0, 0, 1, 1], [], []>} : vector<32x256xbf16>, vector<256x512xbf16>, vector<32x512xf32> -> vector<32x512xf32>
    %165 = arith.addf %159, %164 : vector<32x512xf32>
    %166 = vector.extract_strided_slice %151 {offsets = [0, 2, 0], sizes = [2, 16, 256], strides = [1, 1, 1]} : vector<2x18x256xbf16> to vector<2x16x256xbf16>
    %167 = vector.shape_cast %166 : vector<2x16x256xbf16> to vector<32x256xbf16>
    %c2_91 = arith.constant 2 : index
    %c0_92 = arith.constant 0 : index
    %c0_93 = arith.constant 0 : index
    %168 = vector.load %arg12[%c2_91, %c0_92, %c0_93] : memref<3x256x512xbf16, #tpu.memory_space<vmem>>, vector<1x256x512xbf16>
    %169 = vector.shape_cast %168 : vector<1x256x512xbf16> to vector<256x512xbf16>
    %cst_94 = arith.constant dense<0.000000e+00> : vector<32x512xf32>
    %170 = tpu.matmul %167, %169, %cst_94 {dimension_numbers = #tpu.dot_dimension_numbers<[1], [0], [0], [1], [0, 0, 1, 1], [], []>} : vector<32x256xbf16>, vector<256x512xbf16>, vector<32x512xf32> -> vector<32x512xf32>
    %171 = arith.addf %165, %170 : vector<32x512xf32>
    %172 = vector.shape_cast %171 : vector<32x512xf32> to vector<2x16x512xf32>
    %173 = vector.extract_strided_slice %172 {offsets = [0, 0, 0], sizes = [2, 12, 512], strides = [1, 1, 1]} : vector<2x16x512xf32> to vector<2x12x512xf32>
    %cst_95 = arith.constant 0.000000e+00 : f32
    %174 = vector.broadcast %cst_95 : f32 to vector<2x12x512xf32>
    %175 = arith.cmpf ogt, %173, %174 : vector<2x12x512xf32>
    %176 = vector.broadcast %0 : f32 to vector<2x12x512xf32>
    %177 = arith.mulf %176, %173 : vector<2x12x512xf32>
    %178 = arith.select %175, %173, %177 : vector<2x12x512xi1>, vector<2x12x512xf32>
    %179 = arith.truncf %178 : vector<2x12x512xf32> to vector<2x12x512xbf16>
    %cst_96 = arith.constant 0.000000e+00 : bf16
    %180 = vector.broadcast %cst_96 : bf16 to vector<2x2x512xbf16>
    %cst_97 = arith.constant 0.000000e+00 : bf16
    %181 = vector.broadcast %cst_97 : bf16 to vector<2x4x512xbf16>
    %182 = tpu.concatenate %180, %179, %181 in 1 : vector<2x2x512xbf16>, vector<2x12x512xbf16>, vector<2x4x512xbf16> -> vector<2x18x512xbf16>
    %c0_98 = arith.constant 0 : index
    %c0_99 = arith.constant 0 : index
    %183 = vector.load %arg15[%c0_98, %c0_99] : memref<1x256xf32, #tpu.memory_space<vmem>>, vector<1x256xf32>
    %184 = vector.extract_strided_slice %182 {offsets = [0, 0, 0], sizes = [2, 16, 512], strides = [1, 1, 1]} : vector<2x18x512xbf16> to vector<2x16x512xbf16>
    %185 = vector.shape_cast %184 : vector<2x16x512xbf16> to vector<32x512xbf16>
    %c0_100 = arith.constant 0 : index
    %c0_101 = arith.constant 0 : index
    %c0_102 = arith.constant 0 : index
    %186 = vector.load %arg14[%c0_100, %c0_101, %c0_102] : memref<3x512x256xbf16, #tpu.memory_space<vmem>>, vector<1x512x256xbf16>
    %187 = vector.shape_cast %186 : vector<1x512x256xbf16> to vector<512x256xbf16>
    %cst_103 = arith.constant dense<0.000000e+00> : vector<32x256xf32>
    %188 = tpu.matmul %185, %187, %cst_103 {dimension_numbers = #tpu.dot_dimension_numbers<[1], [0], [0], [1], [0, 0, 1, 1], [], []>} : vector<32x512xbf16>, vector<512x256xbf16>, vector<32x256xf32> -> vector<32x256xf32>
    %189 = vector.broadcast %183 : vector<1x256xf32> to vector<32x256xf32>
    %190 = arith.addf %189, %188 : vector<32x256xf32>
    %191 = vector.extract_strided_slice %182 {offsets = [0, 1, 0], sizes = [2, 16, 512], strides = [1, 1, 1]} : vector<2x18x512xbf16> to vector<2x16x512xbf16>
    %192 = vector.shape_cast %191 : vector<2x16x512xbf16> to vector<32x512xbf16>
    %c1_104 = arith.constant 1 : index
    %c0_105 = arith.constant 0 : index
    %c0_106 = arith.constant 0 : index
    %193 = vector.load %arg14[%c1_104, %c0_105, %c0_106] : memref<3x512x256xbf16, #tpu.memory_space<vmem>>, vector<1x512x256xbf16>
    %194 = vector.shape_cast %193 : vector<1x512x256xbf16> to vector<512x256xbf16>
    %cst_107 = arith.constant dense<0.000000e+00> : vector<32x256xf32>
    %195 = tpu.matmul %192, %194, %cst_107 {dimension_numbers = #tpu.dot_dimension_numbers<[1], [0], [0], [1], [0, 0, 1, 1], [], []>} : vector<32x512xbf16>, vector<512x256xbf16>, vector<32x256xf32> -> vector<32x256xf32>
    %196 = arith.addf %190, %195 : vector<32x256xf32>
    %197 = vector.extract_strided_slice %182 {offsets = [0, 2, 0], sizes = [2, 16, 512], strides = [1, 1, 1]} : vector<2x18x512xbf16> to vector<2x16x512xbf16>
    %198 = vector.shape_cast %197 : vector<2x16x512xbf16> to vector<32x512xbf16>
    %c2_108 = arith.constant 2 : index
    %c0_109 = arith.constant 0 : index
    %c0_110 = arith.constant 0 : index
    %199 = vector.load %arg14[%c2_108, %c0_109, %c0_110] : memref<3x512x256xbf16, #tpu.memory_space<vmem>>, vector<1x512x256xbf16>
    %200 = vector.shape_cast %199 : vector<1x512x256xbf16> to vector<512x256xbf16>
    %cst_111 = arith.constant dense<0.000000e+00> : vector<32x256xf32>
    %201 = tpu.matmul %198, %200, %cst_111 {dimension_numbers = #tpu.dot_dimension_numbers<[1], [0], [0], [1], [0, 0, 1, 1], [], []>} : vector<32x512xbf16>, vector<512x256xbf16>, vector<32x256xf32> -> vector<32x256xf32>
    %202 = arith.addf %196, %201 : vector<32x256xf32>
    %203 = vector.shape_cast %202 : vector<32x256xf32> to vector<2x16x256xf32>
    %204 = vector.extract_strided_slice %203 {offsets = [0, 0, 0], sizes = [2, 14, 256], strides = [1, 1, 1]} : vector<2x16x256xf32> to vector<2x14x256xf32>
    %cst_112 = arith.constant 0.000000e+00 : f32
    %205 = vector.broadcast %cst_112 : f32 to vector<2x14x256xf32>
    %206 = arith.cmpf ogt, %204, %205 : vector<2x14x256xf32>
    %207 = vector.broadcast %0 : f32 to vector<2x14x256xf32>
    %208 = arith.mulf %207, %204 : vector<2x14x256xf32>
    %209 = arith.select %206, %204, %208 : vector<2x14x256xi1>, vector<2x14x256xf32>
    %210 = arith.addf %209, %148 : vector<2x14x256xf32>
    %211 = arith.truncf %210 : vector<2x14x256xf32> to vector<2x14x256xbf16>
    %cst_113 = arith.constant 0.000000e+00 : bf16
    %212 = vector.broadcast %cst_113 : bf16 to vector<2x2x256xbf16>
    %cst_114 = arith.constant 0.000000e+00 : bf16
    %213 = vector.broadcast %cst_114 : bf16 to vector<2x2x256xbf16>
    %214 = tpu.concatenate %212, %211, %213 in 1 : vector<2x2x256xbf16>, vector<2x14x256xbf16>, vector<2x2x256xbf16> -> vector<2x18x256xbf16>
    %c0_115 = arith.constant 0 : index
    %c0_116 = arith.constant 0 : index
    %215 = vector.load %arg17[%c0_115, %c0_116] : memref<1x128xf32, #tpu.memory_space<vmem>>, vector<1x128xf32>
    %216 = vector.extract_strided_slice %214 {offsets = [0, 0, 0], sizes = [2, 16, 256], strides = [1, 1, 1]} : vector<2x18x256xbf16> to vector<2x16x256xbf16>
    %217 = vector.shape_cast %216 : vector<2x16x256xbf16> to vector<32x256xbf16>
    %c0_117 = arith.constant 0 : index
    %c0_118 = arith.constant 0 : index
    %c0_119 = arith.constant 0 : index
    %218 = vector.load %arg16[%c0_117, %c0_118, %c0_119] : memref<3x256x128xbf16, #tpu.memory_space<vmem>>, vector<1x256x128xbf16>
    %219 = vector.shape_cast %218 : vector<1x256x128xbf16> to vector<256x128xbf16>
    %cst_120 = arith.constant dense<0.000000e+00> : vector<32x128xf32>
    %220 = tpu.matmul %217, %219, %cst_120 {dimension_numbers = #tpu.dot_dimension_numbers<[1], [0], [0], [1], [0, 0, 1, 1], [], []>} : vector<32x256xbf16>, vector<256x128xbf16>, vector<32x128xf32> -> vector<32x128xf32>
    %221 = vector.broadcast %215 : vector<1x128xf32> to vector<32x128xf32>
    %222 = arith.addf %221, %220 : vector<32x128xf32>
    %223 = vector.extract_strided_slice %214 {offsets = [0, 1, 0], sizes = [2, 16, 256], strides = [1, 1, 1]} : vector<2x18x256xbf16> to vector<2x16x256xbf16>
    %224 = vector.shape_cast %223 : vector<2x16x256xbf16> to vector<32x256xbf16>
    %c1_121 = arith.constant 1 : index
    %c0_122 = arith.constant 0 : index
    %c0_123 = arith.constant 0 : index
    %225 = vector.load %arg16[%c1_121, %c0_122, %c0_123] : memref<3x256x128xbf16, #tpu.memory_space<vmem>>, vector<1x256x128xbf16>
    %226 = vector.shape_cast %225 : vector<1x256x128xbf16> to vector<256x128xbf16>
    %cst_124 = arith.constant dense<0.000000e+00> : vector<32x128xf32>
    %227 = tpu.matmul %224, %226, %cst_124 {dimension_numbers = #tpu.dot_dimension_numbers<[1], [0], [0], [1], [0, 0, 1, 1], [], []>} : vector<32x256xbf16>, vector<256x128xbf16>, vector<32x128xf32> -> vector<32x128xf32>
    %228 = arith.addf %222, %227 : vector<32x128xf32>
    %229 = vector.extract_strided_slice %214 {offsets = [0, 2, 0], sizes = [2, 16, 256], strides = [1, 1, 1]} : vector<2x18x256xbf16> to vector<2x16x256xbf16>
    %230 = vector.shape_cast %229 : vector<2x16x256xbf16> to vector<32x256xbf16>
    %c2_125 = arith.constant 2 : index
    %c0_126 = arith.constant 0 : index
    %c0_127 = arith.constant 0 : index
    %231 = vector.load %arg16[%c2_125, %c0_126, %c0_127] : memref<3x256x128xbf16, #tpu.memory_space<vmem>>, vector<1x256x128xbf16>
    %232 = vector.shape_cast %231 : vector<1x256x128xbf16> to vector<256x128xbf16>
    %cst_128 = arith.constant dense<0.000000e+00> : vector<32x128xf32>
    %233 = tpu.matmul %230, %232, %cst_128 {dimension_numbers = #tpu.dot_dimension_numbers<[1], [0], [0], [1], [0, 0, 1, 1], [], []>} : vector<32x256xbf16>, vector<256x128xbf16>, vector<32x128xf32> -> vector<32x128xf32>
    %234 = arith.addf %228, %233 : vector<32x128xf32>
    %235 = vector.shape_cast %234 : vector<32x128xf32> to vector<2x16x128xf32>
    %cst_129 = arith.constant 0.000000e+00 : f32
    %236 = vector.broadcast %cst_129 : f32 to vector<2x16x128xf32>
    %237 = arith.cmpf ogt, %235, %236 : vector<2x16x128xf32>
    %238 = vector.broadcast %0 : f32 to vector<2x16x128xf32>
    %239 = arith.mulf %238, %235 : vector<2x16x128xf32>
    %240 = arith.select %237, %235, %239 : vector<2x16x128xi1>, vector<2x16x128xf32>
    %241 = arith.addf %240, %118 : vector<2x16x128xf32>
    %242 = arith.truncf %241 : vector<2x16x128xf32> to vector<2x16x128xbf16>
    %cst_130 = arith.constant 0.000000e+00 : bf16
    %243 = vector.broadcast %cst_130 : bf16 to vector<2x2x128xbf16>
    %cst_131 = arith.constant 0.000000e+00 : bf16
    %244 = vector.broadcast %cst_131 : bf16 to vector<2x16x128xbf16>
    %245 = tpu.concatenate %243, %242, %244 in 1 : vector<2x2x128xbf16>, vector<2x16x128xbf16>, vector<2x16x128xbf16> -> vector<2x34x128xbf16>
    %c0_132 = arith.constant 0 : index
    %c0_133 = arith.constant 0 : index
    %246 = vector.load %arg19[%c0_132, %c0_133] : memref<1x64xf32, #tpu.memory_space<vmem>>, vector<1x64xf32>
    %247 = vector.extract_strided_slice %245 {offsets = [0, 0, 0], sizes = [2, 32, 128], strides = [1, 1, 1]} : vector<2x34x128xbf16> to vector<2x32x128xbf16>
    %248 = vector.shape_cast %247 : vector<2x32x128xbf16> to vector<64x128xbf16>
    %c0_134 = arith.constant 0 : index
    %c0_135 = arith.constant 0 : index
    %c0_136 = arith.constant 0 : index
    %249 = vector.load %arg18[%c0_134, %c0_135, %c0_136] : memref<3x128x64xbf16, #tpu.memory_space<vmem>>, vector<1x128x64xbf16>
    %250 = vector.shape_cast %249 : vector<1x128x64xbf16> to vector<128x64xbf16>
    %cst_137 = arith.constant dense<0.000000e+00> : vector<64x64xf32>
    %251 = tpu.matmul %248, %250, %cst_137 {dimension_numbers = #tpu.dot_dimension_numbers<[1], [0], [0], [1], [0, 0, 1, 1], [], []>} : vector<64x128xbf16>, vector<128x64xbf16>, vector<64x64xf32> -> vector<64x64xf32>
    %252 = vector.broadcast %246 : vector<1x64xf32> to vector<64x64xf32>
    %253 = arith.addf %252, %251 : vector<64x64xf32>
    %254 = vector.extract_strided_slice %245 {offsets = [0, 1, 0], sizes = [2, 32, 128], strides = [1, 1, 1]} : vector<2x34x128xbf16> to vector<2x32x128xbf16>
    %255 = vector.shape_cast %254 : vector<2x32x128xbf16> to vector<64x128xbf16>
    %c1_138 = arith.constant 1 : index
    %c0_139 = arith.constant 0 : index
    %c0_140 = arith.constant 0 : index
    %256 = vector.load %arg18[%c1_138, %c0_139, %c0_140] : memref<3x128x64xbf16, #tpu.memory_space<vmem>>, vector<1x128x64xbf16>
    %257 = vector.shape_cast %256 : vector<1x128x64xbf16> to vector<128x64xbf16>
    %cst_141 = arith.constant dense<0.000000e+00> : vector<64x64xf32>
    %258 = tpu.matmul %255, %257, %cst_141 {dimension_numbers = #tpu.dot_dimension_numbers<[1], [0], [0], [1], [0, 0, 1, 1], [], []>} : vector<64x128xbf16>, vector<128x64xbf16>, vector<64x64xf32> -> vector<64x64xf32>
    %259 = arith.addf %253, %258 : vector<64x64xf32>
    %260 = vector.extract_strided_slice %245 {offsets = [0, 2, 0], sizes = [2, 32, 128], strides = [1, 1, 1]} : vector<2x34x128xbf16> to vector<2x32x128xbf16>
    %261 = vector.shape_cast %260 : vector<2x32x128xbf16> to vector<64x128xbf16>
    %c2_142 = arith.constant 2 : index
    %c0_143 = arith.constant 0 : index
    %c0_144 = arith.constant 0 : index
    %262 = vector.load %arg18[%c2_142, %c0_143, %c0_144] : memref<3x128x64xbf16, #tpu.memory_space<vmem>>, vector<1x128x64xbf16>
    %263 = vector.shape_cast %262 : vector<1x128x64xbf16> to vector<128x64xbf16>
    %cst_145 = arith.constant dense<0.000000e+00> : vector<64x64xf32>
    %264 = tpu.matmul %261, %263, %cst_145 {dimension_numbers = #tpu.dot_dimension_numbers<[1], [0], [0], [1], [0, 0, 1, 1], [], []>} : vector<64x128xbf16>, vector<128x64xbf16>, vector<64x64xf32> -> vector<64x64xf32>
    %265 = arith.addf %259, %264 : vector<64x64xf32>
    %266 = vector.shape_cast %265 : vector<64x64xf32> to vector<2x32x64xf32>
    %267 = vector.extract_strided_slice %266 {offsets = [0, 0, 0], sizes = [2, 18, 64], strides = [1, 1, 1]} : vector<2x32x64xf32> to vector<2x18x64xf32>
    %cst_146 = arith.constant 0.000000e+00 : f32
    %268 = vector.broadcast %cst_146 : f32 to vector<2x18x64xf32>
    %269 = arith.cmpf ogt, %267, %268 : vector<2x18x64xf32>
    %270 = vector.broadcast %0 : f32 to vector<2x18x64xf32>
    %271 = arith.mulf %270, %267 : vector<2x18x64xf32>
    %272 = arith.select %269, %267, %271 : vector<2x18x64xi1>, vector<2x18x64xf32>
    %273 = arith.addf %272, %91 : vector<2x18x64xf32>
    %274 = arith.truncf %273 : vector<2x18x64xf32> to vector<2x18x64xbf16>
    %cst_147 = arith.constant 0.000000e+00 : bf16
    %275 = vector.broadcast %cst_147 : bf16 to vector<2x2x64xbf16>
    %cst_148 = arith.constant 0.000000e+00 : bf16
    %276 = vector.broadcast %cst_148 : bf16 to vector<2x14x64xbf16>
    %277 = tpu.concatenate %275, %274, %276 in 1 : vector<2x2x64xbf16>, vector<2x18x64xbf16>, vector<2x14x64xbf16> -> vector<2x34x64xbf16>
    %c0_149 = arith.constant 0 : index
    %c0_150 = arith.constant 0 : index
    %278 = vector.load %arg21[%c0_149, %c0_150] : memref<1x32xf32, #tpu.memory_space<vmem>>, vector<1x32xf32>
    %279 = vector.extract_strided_slice %277 {offsets = [0, 0, 0], sizes = [2, 32, 64], strides = [1, 1, 1]} : vector<2x34x64xbf16> to vector<2x32x64xbf16>
    %280 = vector.shape_cast %279 : vector<2x32x64xbf16> to vector<64x64xbf16>
    %c0_151 = arith.constant 0 : index
    %c0_152 = arith.constant 0 : index
    %c0_153 = arith.constant 0 : index
    %281 = vector.load %arg20[%c0_151, %c0_152, %c0_153] : memref<3x64x32xbf16, #tpu.memory_space<vmem>>, vector<1x64x32xbf16>
    %282 = vector.shape_cast %281 : vector<1x64x32xbf16> to vector<64x32xbf16>
    %cst_154 = arith.constant dense<0.000000e+00> : vector<64x32xf32>
    %283 = tpu.matmul %280, %282, %cst_154 {dimension_numbers = #tpu.dot_dimension_numbers<[1], [0], [0], [1], [0, 0, 1, 1], [], []>} : vector<64x64xbf16>, vector<64x32xbf16>, vector<64x32xf32> -> vector<64x32xf32>
    %284 = vector.broadcast %278 : vector<1x32xf32> to vector<64x32xf32>
    %285 = arith.addf %284, %283 : vector<64x32xf32>
    %286 = vector.extract_strided_slice %277 {offsets = [0, 1, 0], sizes = [2, 32, 64], strides = [1, 1, 1]} : vector<2x34x64xbf16> to vector<2x32x64xbf16>
    %287 = vector.shape_cast %286 : vector<2x32x64xbf16> to vector<64x64xbf16>
    %c1_155 = arith.constant 1 : index
    %c0_156 = arith.constant 0 : index
    %c0_157 = arith.constant 0 : index
    %288 = vector.load %arg20[%c1_155, %c0_156, %c0_157] : memref<3x64x32xbf16, #tpu.memory_space<vmem>>, vector<1x64x32xbf16>
    %289 = vector.shape_cast %288 : vector<1x64x32xbf16> to vector<64x32xbf16>
    %cst_158 = arith.constant dense<0.000000e+00> : vector<64x32xf32>
    %290 = tpu.matmul %287, %289, %cst_158 {dimension_numbers = #tpu.dot_dimension_numbers<[1], [0], [0], [1], [0, 0, 1, 1], [], []>} : vector<64x64xbf16>, vector<64x32xbf16>, vector<64x32xf32> -> vector<64x32xf32>
    %291 = arith.addf %285, %290 : vector<64x32xf32>
    %292 = vector.extract_strided_slice %277 {offsets = [0, 2, 0], sizes = [2, 32, 64], strides = [1, 1, 1]} : vector<2x34x64xbf16> to vector<2x32x64xbf16>
    %293 = vector.shape_cast %292 : vector<2x32x64xbf16> to vector<64x64xbf16>
    %c2_159 = arith.constant 2 : index
    %c0_160 = arith.constant 0 : index
    %c0_161 = arith.constant 0 : index
    %294 = vector.load %arg20[%c2_159, %c0_160, %c0_161] : memref<3x64x32xbf16, #tpu.memory_space<vmem>>, vector<1x64x32xbf16>
    %295 = vector.shape_cast %294 : vector<1x64x32xbf16> to vector<64x32xbf16>
    %cst_162 = arith.constant dense<0.000000e+00> : vector<64x32xf32>
    %296 = tpu.matmul %293, %295, %cst_162 {dimension_numbers = #tpu.dot_dimension_numbers<[1], [0], [0], [1], [0, 0, 1, 1], [], []>} : vector<64x64xbf16>, vector<64x32xbf16>, vector<64x32xf32> -> vector<64x32xf32>
    %297 = arith.addf %291, %296 : vector<64x32xf32>
    %298 = vector.shape_cast %297 : vector<64x32xf32> to vector<2x32x32xf32>
    %299 = vector.extract_strided_slice %298 {offsets = [0, 0, 0], sizes = [2, 20, 32], strides = [1, 1, 1]} : vector<2x32x32xf32> to vector<2x20x32xf32>
    %cst_163 = arith.constant 0.000000e+00 : f32
    %300 = vector.broadcast %cst_163 : f32 to vector<2x20x32xf32>
    %301 = arith.cmpf ogt, %299, %300 : vector<2x20x32xf32>
    %302 = vector.broadcast %0 : f32 to vector<2x20x32xf32>
    %303 = arith.mulf %302, %299 : vector<2x20x32xf32>
    %304 = arith.select %301, %299, %303 : vector<2x20x32xi1>, vector<2x20x32xf32>
    %305 = arith.addf %304, %61 : vector<2x20x32xf32>
    %306 = arith.truncf %305 : vector<2x20x32xf32> to vector<2x20x32xbf16>
    %cst_164 = arith.constant 0.000000e+00 : bf16
    %307 = vector.broadcast %cst_164 : bf16 to vector<2x2x32xbf16>
    %cst_165 = arith.constant 0.000000e+00 : bf16
    %308 = vector.broadcast %cst_165 : bf16 to vector<2x12x32xbf16>
    %309 = tpu.concatenate %307, %306, %308 in 1 : vector<2x2x32xbf16>, vector<2x20x32xbf16>, vector<2x12x32xbf16> -> vector<2x34x32xbf16>
    %c0_166 = arith.constant 0 : index
    %c0_167 = arith.constant 0 : index
    %310 = vector.load %arg23[%c0_166, %c0_167] : memref<1x16xf32, #tpu.memory_space<vmem>>, vector<1x16xf32>
    %311 = vector.extract_strided_slice %309 {offsets = [0, 0, 0], sizes = [2, 32, 32], strides = [1, 1, 1]} : vector<2x34x32xbf16> to vector<2x32x32xbf16>
    %312 = vector.shape_cast %311 : vector<2x32x32xbf16> to vector<64x32xbf16>
    %c0_168 = arith.constant 0 : index
    %c0_169 = arith.constant 0 : index
    %c0_170 = arith.constant 0 : index
    %313 = vector.load %arg22[%c0_168, %c0_169, %c0_170] : memref<3x32x16xbf16, #tpu.memory_space<vmem>>, vector<1x32x16xbf16>
    %314 = vector.shape_cast %313 : vector<1x32x16xbf16> to vector<32x16xbf16>
    %cst_171 = arith.constant dense<0.000000e+00> : vector<64x16xf32>
    %315 = tpu.matmul %312, %314, %cst_171 {dimension_numbers = #tpu.dot_dimension_numbers<[1], [0], [0], [1], [0, 0, 1, 1], [], []>} : vector<64x32xbf16>, vector<32x16xbf16>, vector<64x16xf32> -> vector<64x16xf32>
    %316 = vector.broadcast %310 : vector<1x16xf32> to vector<64x16xf32>
    %317 = arith.addf %316, %315 : vector<64x16xf32>
    %318 = vector.extract_strided_slice %309 {offsets = [0, 1, 0], sizes = [2, 32, 32], strides = [1, 1, 1]} : vector<2x34x32xbf16> to vector<2x32x32xbf16>
    %319 = vector.shape_cast %318 : vector<2x32x32xbf16> to vector<64x32xbf16>
    %c1_172 = arith.constant 1 : index
    %c0_173 = arith.constant 0 : index
    %c0_174 = arith.constant 0 : index
    %320 = vector.load %arg22[%c1_172, %c0_173, %c0_174] : memref<3x32x16xbf16, #tpu.memory_space<vmem>>, vector<1x32x16xbf16>
    %321 = vector.shape_cast %320 : vector<1x32x16xbf16> to vector<32x16xbf16>
    %cst_175 = arith.constant dense<0.000000e+00> : vector<64x16xf32>
    %322 = tpu.matmul %319, %321, %cst_175 {dimension_numbers = #tpu.dot_dimension_numbers<[1], [0], [0], [1], [0, 0, 1, 1], [], []>} : vector<64x32xbf16>, vector<32x16xbf16>, vector<64x16xf32> -> vector<64x16xf32>
    %323 = arith.addf %317, %322 : vector<64x16xf32>
    %324 = vector.extract_strided_slice %309 {offsets = [0, 2, 0], sizes = [2, 32, 32], strides = [1, 1, 1]} : vector<2x34x32xbf16> to vector<2x32x32xbf16>
    %325 = vector.shape_cast %324 : vector<2x32x32xbf16> to vector<64x32xbf16>
    %c2_176 = arith.constant 2 : index
    %c0_177 = arith.constant 0 : index
    %c0_178 = arith.constant 0 : index
    %326 = vector.load %arg22[%c2_176, %c0_177, %c0_178] : memref<3x32x16xbf16, #tpu.memory_space<vmem>>, vector<1x32x16xbf16>
    %327 = vector.shape_cast %326 : vector<1x32x16xbf16> to vector<32x16xbf16>
    %cst_179 = arith.constant dense<0.000000e+00> : vector<64x16xf32>
    %328 = tpu.matmul %325, %327, %cst_179 {dimension_numbers = #tpu.dot_dimension_numbers<[1], [0], [0], [1], [0, 0, 1, 1], [], []>} : vector<64x32xbf16>, vector<32x16xbf16>, vector<64x16xf32> -> vector<64x16xf32>
    %329 = arith.addf %323, %328 : vector<64x16xf32>
    %330 = vector.shape_cast %329 : vector<64x16xf32> to vector<2x32x16xf32>
    %331 = vector.extract_strided_slice %330 {offsets = [0, 0, 0], sizes = [2, 22, 16], strides = [1, 1, 1]} : vector<2x32x16xf32> to vector<2x22x16xf32>
    %cst_180 = arith.constant 0.000000e+00 : f32
    %332 = vector.broadcast %cst_180 : f32 to vector<2x22x16xf32>
    %333 = arith.cmpf ogt, %331, %332 : vector<2x22x16xf32>
    %334 = vector.broadcast %0 : f32 to vector<2x22x16xf32>
    %335 = arith.mulf %334, %331 : vector<2x22x16xf32>
    %336 = arith.select %333, %331, %335 : vector<2x22x16xi1>, vector<2x22x16xf32>
    %337 = arith.addf %336, %31 : vector<2x22x16xf32>
    %338 = arith.truncf %337 : vector<2x22x16xf32> to vector<2x22x16xbf16>
    %cst_181 = arith.constant 0.000000e+00 : bf16
    %339 = vector.broadcast %cst_181 : bf16 to vector<2x2x16xbf16>
    %cst_182 = arith.constant 0.000000e+00 : bf16
    %340 = vector.broadcast %cst_182 : bf16 to vector<2x10x16xbf16>
    %341 = tpu.concatenate %339, %338, %340 in 1 : vector<2x2x16xbf16>, vector<2x22x16xbf16>, vector<2x10x16xbf16> -> vector<2x34x16xbf16>
    %c0_183 = arith.constant 0 : index
    %c0_184 = arith.constant 0 : index
    %342 = vector.load %arg25[%c0_183, %c0_184] : memref<1x1xf32, #tpu.memory_space<vmem>>, vector<1x1xf32>
    %343 = vector.extract_strided_slice %341 {offsets = [0, 0, 0], sizes = [2, 32, 16], strides = [1, 1, 1]} : vector<2x34x16xbf16> to vector<2x32x16xbf16>
    %344 = vector.shape_cast %343 : vector<2x32x16xbf16> to vector<64x16xbf16>
    %c0_185 = arith.constant 0 : index
    %c0_186 = arith.constant 0 : index
    %c0_187 = arith.constant 0 : index
    %345 = vector.load %arg24[%c0_185, %c0_186, %c0_187] : memref<3x16x1xbf16, #tpu.memory_space<vmem>>, vector<1x16x1xbf16>
    %346 = vector.shape_cast %345 : vector<1x16x1xbf16> to vector<16x1xbf16>
    %cst_188 = arith.constant dense<0.000000e+00> : vector<64x1xf32>
    %347 = tpu.matmul %344, %346, %cst_188 {dimension_numbers = #tpu.dot_dimension_numbers<[1], [0], [0], [1], [0, 0, 1, 1], [], []>} : vector<64x16xbf16>, vector<16x1xbf16>, vector<64x1xf32> -> vector<64x1xf32>
    %348 = vector.broadcast %342 : vector<1x1xf32> to vector<64x1xf32>
    %349 = arith.addf %348, %347 : vector<64x1xf32>
    %350 = vector.extract_strided_slice %341 {offsets = [0, 1, 0], sizes = [2, 32, 16], strides = [1, 1, 1]} : vector<2x34x16xbf16> to vector<2x32x16xbf16>
    %351 = vector.shape_cast %350 : vector<2x32x16xbf16> to vector<64x16xbf16>
    %c1_189 = arith.constant 1 : index
    %c0_190 = arith.constant 0 : index
    %c0_191 = arith.constant 0 : index
    %352 = vector.load %arg24[%c1_189, %c0_190, %c0_191] : memref<3x16x1xbf16, #tpu.memory_space<vmem>>, vector<1x16x1xbf16>
    %353 = vector.shape_cast %352 : vector<1x16x1xbf16> to vector<16x1xbf16>
    %cst_192 = arith.constant dense<0.000000e+00> : vector<64x1xf32>
    %354 = tpu.matmul %351, %353, %cst_192 {dimension_numbers = #tpu.dot_dimension_numbers<[1], [0], [0], [1], [0, 0, 1, 1], [], []>} : vector<64x16xbf16>, vector<16x1xbf16>, vector<64x1xf32> -> vector<64x1xf32>
    %355 = arith.addf %349, %354 : vector<64x1xf32>
    %356 = vector.extract_strided_slice %341 {offsets = [0, 2, 0], sizes = [2, 32, 16], strides = [1, 1, 1]} : vector<2x34x16xbf16> to vector<2x32x16xbf16>
    %357 = vector.shape_cast %356 : vector<2x32x16xbf16> to vector<64x16xbf16>
    %c2_193 = arith.constant 2 : index
    %c0_194 = arith.constant 0 : index
    %c0_195 = arith.constant 0 : index
    %358 = vector.load %arg24[%c2_193, %c0_194, %c0_195] : memref<3x16x1xbf16, #tpu.memory_space<vmem>>, vector<1x16x1xbf16>
    %359 = vector.shape_cast %358 : vector<1x16x1xbf16> to vector<16x1xbf16>
    %cst_196 = arith.constant dense<0.000000e+00> : vector<64x1xf32>
    %360 = tpu.matmul %357, %359, %cst_196 {dimension_numbers = #tpu.dot_dimension_numbers<[1], [0], [0], [1], [0, 0, 1, 1], [], []>} : vector<64x16xbf16>, vector<16x1xbf16>, vector<64x1xf32> -> vector<64x1xf32>
    %361 = arith.addf %355, %360 : vector<64x1xf32>
    %362 = vector.shape_cast %361 : vector<64x1xf32> to vector<2x32x1xf32>
    %363 = vector.extract_strided_slice %362 {offsets = [0, 0, 0], sizes = [2, 24, 1], strides = [1, 1, 1]} : vector<2x32x1xf32> to vector<2x24x1xf32>
    %364 = math.tanh %363 : vector<2x24x1xf32>
    %c0_197 = arith.constant 0 : index
    %c0_198 = arith.constant 0 : index
    %c0_199 = arith.constant 0 : index
    %365 = vector.load %arg26[%c0_197, %c0_198, %c0_199] : memref<2x24x1xf32, #tpu.memory_space<vmem>>, vector<2x24x1xf32>
    tpu.vector_store %arg26[%c0_197, %c0_198, %c0_199], %364 {strides = array<i32>} : memref<2x24x1xf32, #tpu.memory_space<vmem>>, vector<2x24x1xf32>,
    return
  }
}

</mosaic_0001>

<llo_original>
// kernel: generator_forward.1
$region0: #{generator_forward.1}
  #allocation0 [shape = 'u32[]', space=smem, size = 0x4, offset = 0x4, fixed_abs, tag = 'smem constant byte address 0x4 - core index']
  #allocation1 [shape = 'u32[144,128]{1,0:T(1,128)}', space=vmem, size = 0x12000, scoped, tag = 'internal scratch']
  #allocation2 [shape = 'f32[1,1]{1,0:T(1,128)S(6)}', space=smem, size = 0x200, scoped, tag = 'scoped memory for generator_forward.1']
  #allocation3 [shape = 'f32[1,1]{1,0:T(1,128)S(1)}', space=vmem, size = 0x200, scoped, tag = 'scoped memory for generator_forward.1']
  %s0 = inlined_call_operand.vmem [shape: f32[2,24,1], index: 0, kind: input, shape index: {}]
  %s1 = inlined_call_operand.<no memory space> [shape: f32[1,1], index: 1, kind: input, shape index: {}]
  %s2 = inlined_call_operand.vmem [shape: bf16[3,1,16], index: 2, kind: input, shape index: {}]
  %s3 = inlined_call_operand.vmem [shape: f32[1,16], index: 3, kind: input, shape index: {}]
  %s4 = inlined_call_operand.vmem [shape: bf16[3,16,32], index: 4, kind: input, shape index: {}]
  %s5 = inlined_call_operand.hbm [shape: f32[1,32], index: 5, kind: input, shape index: {}]
  %s6 = inlined_call_operand.hbm [shape: bf16[3,32,64], index: 6, kind: input, shape index: {}]
  %s7 = inlined_call_operand.hbm [shape: f32[1,64], index: 7, kind: input, shape index: {}]
  %s8 = inlined_call_operand.vmem [shape: bf16[3,64,128], index: 8, kind: input, shape index: {}]
  %s9 = inlined_call_operand.hbm [shape: f32[1,128], index: 9, kind: input, shape index: {}]
  %s10 = inlined_call_operand.vmem [shape: bf16[3,128,256], index: 10, kind: input, shape index: {}]
  %s11 = inlined_call_operand.hbm [shape: f32[1,256], index: 11, kind: input, shape index: {}]
  %s12 = inlined_call_operand.hbm [shape: bf16[3,256,512], index: 12, kind: input, shape index: {}]
  %s13 = inlined_call_operand.hbm [shape: f32[1,512], index: 13, kind: input, shape index: {}]
  %s14 = inlined_call_operand.hbm [shape: bf16[3,512,256], index: 14, kind: input, shape index: {}]
  %s15 = inlined_call_operand.hbm [shape: f32[1,256], index: 15, kind: input, shape index: {}]
  %s16 = inlined_call_operand.hbm [shape: bf16[3,256,128], index: 16, kind: input, shape index: {}]
  %s17 = inlined_call_operand.hbm [shape: f32[1,128], index: 17, kind: input, shape index: {}]
  %s18 = inlined_call_operand.vmem [shape: bf16[3,128,64], index: 18, kind: input, shape index: {}]
  %s19 = inlined_call_operand.hbm [shape: f32[1,64], index: 19, kind: input, shape index: {}]
  %s20 = inlined_call_operand.vmem [shape: bf16[3,64,32], index: 20, kind: input, shape index: {}]
  %s21 = inlined_call_operand.hbm [shape: f32[1,32], index: 21, kind: input, shape index: {}]
  %s22 = inlined_call_operand.vmem [shape: bf16[3,32,16], index: 22, kind: input, shape index: {}]
  %s23 = inlined_call_operand.vmem [shape: f32[1,16], index: 23, kind: input, shape index: {}]
  %s24 = inlined_call_operand.vmem [shape: bf16[3,16,1], index: 24, kind: input, shape index: {}]
  %s25 = inlined_call_operand.<no memory space> [shape: f32[1,1], index: 25, kind: input, shape index: {}]
  %s26 = inlined_call_operand.vmem [shape: f32[2,24,1], index: 26, kind: output, shape index: {}]
  %s27 = sld [smem:[#allocation0]]
  $region166: #{generator_forward.1} parent=0
    _
  %s29 = ssub.s32 1, %s27
  %s30 = scalar_select 0, %s29, %s27
  %31 = sst [smem:[#allocation2]] %s1
  %v32 = vstv %s25
  %33 = vst [vmem:[#allocation3] sm:$0x1] %v32
  $region1: #{generator_forward.1} parent=0
    #allocation4 [shape = 'u8[512]{0}', space=vmem, size = 0x400, scoped, tag = 'input window, operand 5, single buffered']
    #allocation5 [shape = 's32[1]{0}', space=sflag, size = 0x4, scoped, tag = 'scoped memory for generator_forward.1']
    #allocation6 [shape = 'u8[24576]{0}', space=vmem, size = 0x6000, scoped, tag = 'input window, operand 6, single buffered']
    #allocation7 [shape = 's32[1]{0}', space=sflag, size = 0x4, scoped, tag = 'scoped memory for generator_forward.1']
    #allocation8 [shape = 'u8[512]{0}', space=vmem, size = 0x400, scoped, tag = 'input window, operand 7, single buffered']
    #allocation9 [shape = 'u8[512]{0}', space=vmem, size = 0x400, scoped, tag = 'input window, operand 9, single buffered']
    #allocation10 [shape = 's32[1]{0}', space=sflag, size = 0x4, scoped, tag = 'scoped memory for generator_forward.1']
    #allocation11 [shape = 'u8[1024]{0}', space=vmem, size = 0x400, scoped, tag = 'input window, operand 11, single buffered']
    #allocation12 [shape = 'u8[786432]{0}', space=vmem, size = 0xc0000, scoped, tag = 'input window, operand 12, single buffered']
    #allocation13 [shape = 's32[1]{0}', space=sflag, size = 0x4, scoped, tag = 'scoped memory for generator_forward.1']
    #allocation14 [shape = 'u8[2048]{0}', space=vmem, size = 0x800, scoped, tag = 'input window, operand 13, single buffered']
    #allocation15 [shape = 'u8[786432]{0}', space=vmem, size = 0xc0000, scoped, tag = 'input window, operand 14, single buffered']
    #allocation16 [shape = 's32[1]{0}', space=sflag, size = 0x4, scoped, tag = 'scoped memory for generator_forward.1']
    #allocation17 [shape = 'u8[1024]{0}', space=vmem, size = 0x400, scoped, tag = 'input window, operand 15, single buffered']
    #allocation18 [shape = 'u8[196608]{0}', space=vmem, size = 0x30000, scoped, tag = 'input window, operand 16, single buffered']
    #allocation19 [shape = 's32[1]{0}', space=sflag, size = 0x4, scoped, tag = 'scoped memory for generator_forward.1']
    #allocation20 [shape = 'u8[512]{0}', space=vmem, size = 0x400, scoped, tag = 'input window, operand 17, single buffered']
    #allocation21 [shape = 'u8[512]{0}', space=vmem, size = 0x400, scoped, tag = 'input window, operand 19, single buffered']
    #allocation22 [shape = 's32[1]{0}', space=sflag, size = 0x4, scoped, tag = 'scoped memory for generator_forward.1']
    #allocation23 [shape = 'u8[512]{0}', space=vmem, size = 0x400, scoped, tag = 'input window, operand 21, single buffered']
    %34 = vsyncpa [#allocation5], 0
    %35 = vsyncpa [#allocation7], 0
    %36 = vsyncpa [#allocation10], 0
    %37 = vsyncpa [#allocation13], 0
    %38 = vsyncpa [#allocation16], 0
    %39 = vsyncpa [#allocation19], 0
    %40 = vsyncpa [#allocation22], 0
    // Predicated region
    $region2: #{generator_forward.1} parent=1 // pred_check
      _
    $region3: #{generator_forward.1} parent=1 // pred_check_branch
      %42 = sbr.rel (0) target = $region5
    $region4: #{generator_forward.1} parent=1 // pred_region
      _
    $region5: #{generator_forward.1} parent=1 // pred_fallthru
      _
    // Predicated region
    $region6: #{generator_forward.1} parent=1 // pred_check
      _
    $region7: #{generator_forward.1} parent=1 // pred_check_branch
      %44 = sbr.rel (0) target = $region9
    $region8: #{generator_forward.1} parent=1 // pred_region
      _
    $region9: #{generator_forward.1} parent=1 // pred_fallthru
      _
    // Predicated region
    $region10: #{generator_forward.1} parent=1 // pred_check
      _
    $region11: #{generator_forward.1} parent=1 // pred_check_branch
      %46 = sbr.rel (0) target = $region13
    $region12: #{generator_forward.1} parent=1 // pred_region
      _
    $region13: #{generator_forward.1} parent=1 // pred_fallthru
      _
    // Predicated region
    $region14: #{generator_forward.1} parent=1 // pred_check
      _
    $region15: #{generator_forward.1} parent=1 // pred_check_branch
      %48 = sbr.rel (0) target = $region17
    $region16: #{generator_forward.1} parent=1 // pred_region
      _
    $region17: #{generator_forward.1} parent=1 // pred_fallthru
      _
    // Predicated region
    $region18: #{generator_forward.1} parent=1 // pred_check
      _
    $region19: #{generator_forward.1} parent=1 // pred_check_branch
      %50 = sbr.rel (0) target = $region21
    $region20: #{generator_forward.1} parent=1 // pred_region
      _
    $region21: #{generator_forward.1} parent=1 // pred_fallthru
      _
    // Predicated region
    $region22: #{generator_forward.1} parent=1 // pred_check
      _
    $region23: #{generator_forward.1} parent=1 // pred_check_branch
      %52 = sbr.rel (0) target = $region25
    $region24: #{generator_forward.1} parent=1 // pred_region
      %s54 = ssub.s32 16, 16
      %55 = vsyncadd [#allocation5], %s54
      %s57 = sshll.u32 [#allocation4], 4
      %s58 = int_to_ptr.vmem [resolvable:$true] %s57
      %60 = dma.hbm_to_vmem [thread:$0]  %s5, 16, %s58, [#allocation5]
    $region25: #{generator_forward.1} parent=1 // pred_fallthru
      _
    // Predicated region
    $region26: #{generator_forward.1} parent=1 // pred_check
      _
    $region27: #{generator_forward.1} parent=1 // pred_check_branch
      %62 = sbr.rel (0) target = $region29
    $region28: #{generator_forward.1} parent=1 // pred_region
      %s64 = ssub.s32 768, 768
      %65 = vsyncadd [#allocation7], %s64
      %s66 = sshll.u32 [#allocation6], 4
      %s67 = int_to_ptr.vmem [resolvable:$true] %s66
      %72 = dma.hbm_to_vmem [thread:$0]  %s6, 768, %s67, [#allocation7], 64, 64, 4
    $region29: #{generator_forward.1} parent=1 // pred_fallthru
      _
    // Predicated region
    $region30: #{generator_forward.1} parent=1 // pred_check
      _
    $region31: #{generator_forward.1} parent=1 // pred_check_branch
      %74 = sbr.rel (0) target = $region33
    $region32: #{generator_forward.1} parent=1 // pred_region
      %s76 = ssub.s32 16, 16
      %77 = vsyncadd [#allocation7], %s76
      %s79 = sshll.u32 [#allocation8], 4
      %s80 = int_to_ptr.vmem [resolvable:$true] %s79
      %82 = dma.hbm_to_vmem [thread:$0]  %s7, 16, %s80, [#allocation7]
    $region33: #{generator_forward.1} parent=1 // pred_fallthru
      _
    // Predicated region
    $region34: #{generator_forward.1} parent=1 // pred_check
      _
    $region35: #{generator_forward.1} parent=1 // pred_check_branch
      %84 = sbr.rel (0) target = $region37
    $region36: #{generator_forward.1} parent=1 // pred_region
      _
    $region37: #{generator_forward.1} parent=1 // pred_fallthru
      _
    // Predicated region
    $region38: #{generator_forward.1} parent=1 // pred_check
      _
    $region39: #{generator_forward.1} parent=1 // pred_check_branch
      %86 = sbr.rel (0) target = $region41
    $region40: #{generator_forward.1} parent=1 // pred_region
      %s88 = ssub.s32 16, 16
      %89 = vsyncadd [#allocation10], %s88
      %s91 = sshll.u32 [#allocation9], 4
      %s92 = int_to_ptr.vmem [resolvable:$true] %s91
      %94 = dma.hbm_to_vmem [thread:$0]  %s9, 16, %s92, [#allocation10]
    $region41: #{generator_forward.1} parent=1 // pred_fallthru
      _
    // Predicated region
    $region42: #{generator_forward.1} parent=1 // pred_check
      _
    $region43: #{generator_forward.1} parent=1 // pred_check_branch
      %96 = sbr.rel (0) target = $region45
    $region44: #{generator_forward.1} parent=1 // pred_region
      _
    $region45: #{generator_forward.1} parent=1 // pred_fallthru
      _
    // Predicated region
    $region46: #{generator_forward.1} parent=1 // pred_check
      _
    $region47: #{generator_forward.1} parent=1 // pred_check_branch
      %98 = sbr.rel (0) target = $region49
    $region48: #{generator_forward.1} parent=1 // pred_region
      %s100 = ssub.s32 32, 32
      %101 = vsyncadd [#allocation10], %s100
      %s103 = sshll.u32 [#allocation11], 4
      %s104 = int_to_ptr.vmem [resolvable:$true] %s103
      %106 = dma.hbm_to_vmem [thread:$0]  %s11, 32, %s104, [#allocation10]
    $region49: #{generator_forward.1} parent=1 // pred_fallthru
      _
    // Predicated region
    $region50: #{generator_forward.1} parent=1 // pred_check
      _
    $region51: #{generator_forward.1} parent=1 // pred_check_branch
      %108 = sbr.rel (0) target = $region53
    $region52: #{generator_forward.1} parent=1 // pred_region
      %s110 = ssub.s32 24576, 24576
      %111 = vsyncadd [#allocation13], %s110
      %s112 = sshll.u32 [#allocation12], 4
      %s113 = int_to_ptr.vmem [resolvable:$true] %s112
      %118 = dma.hbm_to_vmem [thread:$0]  %s12, 24576, %s113, [#allocation13], 256, 256, 16
    $region53: #{generator_forward.1} parent=1 // pred_fallthru
      _
    // Predicated region
    $region54: #{generator_forward.1} parent=1 // pred_check
      _
    $region55: #{generator_forward.1} parent=1 // pred_check_branch
      %120 = sbr.rel (0) target = $region57
    $region56: #{generator_forward.1} parent=1 // pred_region
      %s122 = ssub.s32 64, 64
      %123 = vsyncadd [#allocation13], %s122
      %s125 = sshll.u32 [#allocation14], 4
      %s126 = int_to_ptr.vmem [resolvable:$true] %s125
      %128 = dma.hbm_to_vmem [thread:$0]  %s13, 64, %s126, [#allocation13]
    $region57: #{generator_forward.1} parent=1 // pred_fallthru
      _
    // Predicated region
    $region58: #{generator_forward.1} parent=1 // pred_check
      _
    $region59: #{generator_forward.1} parent=1 // pred_check_branch
      %130 = sbr.rel (0) target = $region61
    $region60: #{generator_forward.1} parent=1 // pred_region
      %s132 = ssub.s32 24576, 24576
      %133 = vsyncadd [#allocation16], %s132
      %s134 = sshll.u32 [#allocation15], 4
      %s135 = int_to_ptr.vmem [resolvable:$true] %s134
      %140 = dma.hbm_to_vmem [thread:$0]  %s14, 24576, %s135, [#allocation16], 128, 128, 8
    $region61: #{generator_forward.1} parent=1 // pred_fallthru
      _
    // Predicated region
    $region62: #{generator_forward.1} parent=1 // pred_check
      _
    $region63: #{generator_forward.1} parent=1 // pred_check_branch
      %142 = sbr.rel (0) target = $region65
    $region64: #{generator_forward.1} parent=1 // pred_region
      %s144 = ssub.s32 32, 32
      %145 = vsyncadd [#allocation16], %s144
      %s147 = sshll.u32 [#allocation17], 4
      %s148 = int_to_ptr.vmem [resolvable:$true] %s147
      %150 = dma.hbm_to_vmem [thread:$0]  %s15, 32, %s148, [#allocation16]
    $region65: #{generator_forward.1} parent=1 // pred_fallthru
      _
    // Predicated region
    $region66: #{generator_forward.1} parent=1 // pred_check
      _
    $region67: #{generator_forward.1} parent=1 // pred_check_branch
      %152 = sbr.rel (0) target = $region69
    $region68: #{generator_forward.1} parent=1 // pred_region
      %s154 = ssub.s32 6144, 6144
      %155 = vsyncadd [#allocation19], %s154
      %s156 = sshll.u32 [#allocation18], 4
      %s157 = int_to_ptr.vmem [resolvable:$true] %s156
      %162 = dma.hbm_to_vmem [thread:$0]  %s16, 6144, %s157, [#allocation19], 64, 64, 4
    $region69: #{generator_forward.1} parent=1 // pred_fallthru
      _
    // Predicated region
    $region70: #{generator_forward.1} parent=1 // pred_check
      _
    $region71: #{generator_forward.1} parent=1 // pred_check_branch
      %164 = sbr.rel (0) target = $region73
    $region72: #{generator_forward.1} parent=1 // pred_region
      %s166 = ssub.s32 16, 16
      %167 = vsyncadd [#allocation19], %s166
      %s169 = sshll.u32 [#allocation20], 4
      %s170 = int_to_ptr.vmem [resolvable:$true] %s169
      %172 = dma.hbm_to_vmem [thread:$0]  %s17, 16, %s170, [#allocation19]
    $region73: #{generator_forward.1} parent=1 // pred_fallthru
      _
    // Predicated region
    $region74: #{generator_forward.1} parent=1 // pred_check
      _
    $region75: #{generator_forward.1} parent=1 // pred_check_branch
      %174 = sbr.rel (0) target = $region77
    $region76: #{generator_forward.1} parent=1 // pred_region
      _
    $region77: #{generator_forward.1} parent=1 // pred_fallthru
      _
    // Predicated region
    $region78: #{generator_forward.1} parent=1 // pred_check
      _
    $region79: #{generator_forward.1} parent=1 // pred_check_branch
      %176 = sbr.rel (0) target = $region81
    $region80: #{generator_forward.1} parent=1 // pred_region
      %s178 = ssub.s32 16, 16
      %179 = vsyncadd [#allocation22], %s178
      %s181 = sshll.u32 [#allocation21], 4
      %s182 = int_to_ptr.vmem [resolvable:$true] %s181
      %184 = dma.hbm_to_vmem [thread:$0]  %s19, 16, %s182, [#allocation22]
    $region81: #{generator_forward.1} parent=1 // pred_fallthru
      _
    // Predicated region
    $region82: #{generator_forward.1} parent=1 // pred_check
      _
    $region83: #{generator_forward.1} parent=1 // pred_check_branch
      %186 = sbr.rel (0) target = $region85
    $region84: #{generator_forward.1} parent=1 // pred_region
      _
    $region85: #{generator_forward.1} parent=1 // pred_fallthru
      _
    // Predicated region
    $region86: #{generator_forward.1} parent=1 // pred_check
      _
    $region87: #{generator_forward.1} parent=1 // pred_check_branch
      %188 = sbr.rel (0) target = $region89
    $region88: #{generator_forward.1} parent=1 // pred_region
      %s190 = ssub.s32 16, 16
      %191 = vsyncadd [#allocation22], %s190
      %s193 = sshll.u32 [#allocation23], 4
      %s194 = int_to_ptr.vmem [resolvable:$true] %s193
      %196 = dma.hbm_to_vmem [thread:$0]  %s21, 16, %s194, [#allocation22]
    $region89: #{generator_forward.1} parent=1 // pred_fallthru
      _
    // Predicated region
    $region90: #{generator_forward.1} parent=1 // pred_check
      _
    $region91: #{generator_forward.1} parent=1 // pred_check_branch
      %198 = sbr.rel (0) target = $region93
    $region92: #{generator_forward.1} parent=1 // pred_region
      _
    $region93: #{generator_forward.1} parent=1 // pred_fallthru
      _
    // Predicated region
    $region94: #{generator_forward.1} parent=1 // pred_check
      _
    $region95: #{generator_forward.1} parent=1 // pred_check_branch
      %200 = sbr.rel (0) target = $region97
    $region96: #{generator_forward.1} parent=1 // pred_region
      _
    $region97: #{generator_forward.1} parent=1 // pred_fallthru
      _
    // Predicated region
    $region98: #{generator_forward.1} parent=1 // pred_check
      _
    $region99: #{generator_forward.1} parent=1 // pred_check_branch
      %202 = sbr.rel (0) target = $region101
    $region100: #{generator_forward.1} parent=1 // pred_region
      _
    $region101: #{generator_forward.1} parent=1 // pred_fallthru
      _
    // Predicated region
    $region102: #{generator_forward.1} parent=1 // pred_check
      _
    $region103: #{generator_forward.1} parent=1 // pred_check_branch
      %204 = sbr.rel (0) target = $region105
    $region104: #{generator_forward.1} parent=1 // pred_region
      _
    $region105: #{generator_forward.1} parent=1 // pred_fallthru
      _
    // Predicated region
    $region106: #{generator_forward.1} parent=1 // pred_check
      _
    $region107: #{generator_forward.1} parent=1 // pred_check_branch
      %206 = sbr.rel (0) target = $region109
    $region108: #{generator_forward.1} parent=1 // pred_region
      %207 = dma.done [#allocation5], 16
    $region109: #{generator_forward.1} parent=1 // pred_fallthru
      _
    // Predicated region
    $region110: #{generator_forward.1} parent=1 // pred_check
      _
    $region111: #{generator_forward.1} parent=1 // pred_check_branch
      %209 = sbr.rel (0) target = $region113
    $region112: #{generator_forward.1} parent=1 // pred_region
      %210 = dma.done [#allocation7], 768
    $region113: #{generator_forward.1} parent=1 // pred_fallthru
      _
    // Predicated region
    $region114: #{generator_forward.1} parent=1 // pred_check
      _
    $region115: #{generator_forward.1} parent=1 // pred_check_branch
      %212 = sbr.rel (0) target = $region117
    $region116: #{generator_forward.1} parent=1 // pred_region
      %213 = dma.done [#allocation7], 16
    $region117: #{generator_forward.1} parent=1 // pred_fallthru
      _
    // Predicated region
    $region118: #{generator_forward.1} parent=1 // pred_check
      _
    $region119: #{generator_forward.1} parent=1 // pred_check_branch
      %215 = sbr.rel (0) target = $region121
    $region120: #{generator_forward.1} parent=1 // pred_region
      %216 = dma.done [#allocation10], 16
    $region121: #{generator_forward.1} parent=1 // pred_fallthru
      _
    // Predicated region
    $region122: #{generator_forward.1} parent=1 // pred_check
      _
    $region123: #{generator_forward.1} parent=1 // pred_check_branch
      %218 = sbr.rel (0) target = $region125
    $region124: #{generator_forward.1} parent=1 // pred_region
      %219 = dma.done [#allocation10], 32
    $region125: #{generator_forward.1} parent=1 // pred_fallthru
      _
    // Predicated region
    $region126: #{generator_forward.1} parent=1 // pred_check
      _
    $region127: #{generator_forward.1} parent=1 // pred_check_branch
      %221 = sbr.rel (0) target = $region129
    $region128: #{generator_forward.1} parent=1 // pred_region
      %222 = dma.done [#allocation13], 24576
    $region129: #{generator_forward.1} parent=1 // pred_fallthru
      _
    // Predicated region
    $region130: #{generator_forward.1} parent=1 // pred_check
      _
    $region131: #{generator_forward.1} parent=1 // pred_check_branch
      %224 = sbr.rel (0) target = $region133
    $region132: #{generator_forward.1} parent=1 // pred_region
      %225 = dma.done [#allocation13], 64
    $region133: #{generator_forward.1} parent=1 // pred_fallthru
      _
    // Predicated region
    $region134: #{generator_forward.1} parent=1 // pred_check
      _
    $region135: #{generator_forward.1} parent=1 // pred_check_branch
      %227 = sbr.rel (0) target = $region137
    $region136: #{generator_forward.1} parent=1 // pred_region
      %228 = dma.done [#allocation16], 24576
    $region137: #{generator_forward.1} parent=1 // pred_fallthru
      _
    // Predicated region
    $region138: #{generator_forward.1} parent=1 // pred_check
      _
    $region139: #{generator_forward.1} parent=1 // pred_check_branch
      %230 = sbr.rel (0) target = $region141
    $region140: #{generator_forward.1} parent=1 // pred_region
      %231 = dma.done [#allocation16], 32
    $region141: #{generator_forward.1} parent=1 // pred_fallthru
      _
    // Predicated region
    $region142: #{generator_forward.1} parent=1 // pred_check
      _
    $region143: #{generator_forward.1} parent=1 // pred_check_branch
      %233 = sbr.rel (0) target = $region145
    $region144: #{generator_forward.1} parent=1 // pred_region
      %234 = dma.done [#allocation19], 6144
    $region145: #{generator_forward.1} parent=1 // pred_fallthru
      _
    // Predicated region
    $region146: #{generator_forward.1} parent=1 // pred_check
      _
    $region147: #{generator_forward.1} parent=1 // pred_check_branch
      %236 = sbr.rel (0) target = $region149
    $region148: #{generator_forward.1} parent=1 // pred_region
      %237 = dma.done [#allocation19], 16
    $region149: #{generator_forward.1} parent=1 // pred_fallthru
      _
    // Predicated region
    $region150: #{generator_forward.1} parent=1 // pred_check
      _
    $region151: #{generator_forward.1} parent=1 // pred_check_branch
      %239 = sbr.rel (0) target = $region153
    $region152: #{generator_forward.1} parent=1 // pred_region
      %240 = dma.done [#allocation22], 16
    $region153: #{generator_forward.1} parent=1 // pred_fallthru
      _
    // Predicated region
    $region154: #{generator_forward.1} parent=1 // pred_check
      _
    $region155: #{generator_forward.1} parent=1 // pred_check_branch
      %242 = sbr.rel (0) target = $region157
    $region156: #{generator_forward.1} parent=1 // pred_region
      %243 = dma.done [#allocation22], 16
    $region157: #{generator_forward.1} parent=1 // pred_fallthru
      _
    %s245 = sld [smem:[#allocation2]]
    %v246 = vld [vmem:[%s0] sm:$0xff]
    %v247 = vld [vmem:[%s0 + $0x8] sm:$0xff]
    %v248 = vld [vmem:[%s0 + $0x10] sm:$0xff]
    %v249 = vld [vmem:[%s0 + $0x18] sm:$0xff]
    %v250 = vld [vmem:[%s0 + $0x20] sm:$0xff]
    %v251 = vld [vmem:[%s0 + $0x28] sm:$0xff]
    %v252 = vpack.c.bf16 %v247, %v246
    %v253 = vpack.c.bf16 %v248, %v248
    %v254 = vpack.c.bf16 %v250, %v249
    %v255 = vpack.c.bf16 %v251, %v251
    %vm256 = vcmask 1043456
    %v259 = vsel %vm256, %v253, 0
    %v261 = vsel %vm256, %v255, 0
    %v262 = vld [vmem:[%s3] sm:$0x1]
    %v263 = vld [vmem:[%s2] sm:$0x1]
    %vm264 = vcmask 7168
    %v266 = vsel %vm264, %v252, 0
    %v268 = vsel %vm264, %v259, 0
    %v271 = vsel %vm264, %v254, 0
    %v273 = vsel %vm264, %v261, 0
    %vm275 = vcmask 1040384
    %v276 = vsel 0, 4294967295, 65535
    %v277 = vsel %vm275, %v276, 0
    %v279 = vand.u32 %v263, %v277
    %281 = vmatprep.subr.bf16.mxu0 0
    %282 = vmatpush1.bf16.msra.mxu0 0
    %283 = vmatprep.subr.bf16.mxu0 0
    %284 = vmatpush1.bf16.msra.mxu0 0
    %285 = vmatprep.subr.bf16.mxu0 0
    %286 = vmatpush1.bf16.msra.mxu0 0
    %287 = vmatprep.subr.bf16.mxu0 0
    %288 = vmatpush1.bf16.msra.mxu0 0
    %289 = vmatprep.subr.bf16.mxu0 0
    %290 = vmatpush1.bf16.msra.mxu0 0
    %291 = vmatprep.subr.bf16.mxu0 0
    %292 = vmatpush1.bf16.msra.mxu0 0
    %293 = vmatprep.subr.bf16.mxu0 0
    %294 = vmatpush1.bf16.msra.mxu0 0
    %295 = vmatprep.subr.bf16.mxu0 0
    %296 = vmatpush1.bf16.msra.mxu0 %v279
    %297 = vmatprep.subr.bf16.mxu0 0
    %298 = vmatpush2.bf16.msra.mxu0 0
    %299 = vmatprep.subr.bf16.mxu0 0
    %300 = vmatpush2.bf16.msra.mxu0 0
    %301 = vmatprep.subr.bf16.mxu0 0
    %302 = vmatpush2.bf16.msra.mxu0 0
    %303 = vmatprep.subr.bf16.mxu0 0
    %304 = vmatpush2.bf16.msra.mxu0 0
    %305 = vmatprep.subr.bf16.mxu0 0
    %306 = vmatpush2.bf16.msra.mxu0 0
    %307 = vmatprep.subr.bf16.mxu0 0
    %308 = vmatpush2.bf16.msra.mxu0 0
    %309 = vmatprep.subr.bf16.mxu0 0
    %310 = vmatpush2.bf16.msra.mxu0 0
    %311 = vmatprep.subr.bf16.mxu0 0
    %312 = vmatpush2.bf16.msra.mxu0 0
    %313 = vmatprep.mubr.bf16.mxu0 0
    %314 = vmatmul.mubr.bf16.gmra.mxu0 %v266
    %v315 = vpop.f32.mrf.mxu0
    %v316 = vadd.f32 0.0, %v315
    %v317 = vpop.f32.mrf.mxu0
    %v318 = vpop.f32.mrf.mxu0
    %v319 = vadd.f32 0.0, %v318
    %v320 = vpop.f32.mrf.mxu0
    %321 = vmatprep.mubr.bf16.mxu0 0
    %322 = vmatmul.mubr.bf16.gmra.mxu0 %v268
    %v323 = vpop.f32.mrf.mxu0
    %v324 = vadd.f32 0.0, %v323
    %v325 = vpop.f32.mrf.mxu0
    %v326 = vpop.f32.mrf.mxu0
    %v327 = vpop.f32.mrf.mxu0
    %328 = vmatprep.mubr.bf16.mxu0 0
    %329 = vmatmul.mubr.bf16.gmra.mxu0 %v271
    %v330 = vpop.f32.mrf.mxu0
    %v331 = vadd.f32 0.0, %v330
    %v332 = vpop.f32.mrf.mxu0
    %v333 = vpop.f32.mrf.mxu0
    %v334 = vadd.f32 0.0, %v333
    %v335 = vpop.f32.mrf.mxu0
    %336 = vmatprep.mubr.bf16.mxu0 0
    %337 = vmatmul.mubr.bf16.gmra.mxu0 %v273
    %v338 = vpop.f32.mrf.mxu0
    %v339 = vadd.f32 0.0, %v338
    %v340 = vpop.f32.mrf.mxu0
    %v341 = vpop.f32.mrf.mxu0
    %v342 = vpop.f32.mrf.mxu0
    %343 = vdwg.mxu0
    %v345 = vlaneseq
    %v346 = vshrl.u32 %v345, 7
    %v347 = vsub.s32 0, %v346
    %v348 = vrot.slane %v262, %v347
    %v350 = vadd.f32 %v348, %v316
    %v351 = vadd.f32 %v348, %v319
    %v352 = vadd.f32 %v348, %v324
    %v353 = vadd.f32 %v348, %v331
    %v354 = vadd.f32 %v348, %v334
    %v355 = vadd.f32 %v348, %v339
    %vm356 = vsmask.f32 7424
    %v357 = vshrl.u32 %v252, 16
    %v359 = vshll.u32 %v252, 16
    %v361 = vrot.slane %v359, 1
    %v362 = vor.u32 %v357, %v361
    %v363 = vshll.u32 %v259, 16
    %v365 = vrot.slane %v363, 1
    %v366 = vsel %vm356, %v362, %v365
    %v367 = vshrl.u32 %v259, 16
    %v369 = vor.u32 %v367, %v365
    %v370 = vshll.u32 0, 16
    %v372 = vrot.slane %v370, 1
    %v373 = vsel %vm356, %v369, %v372
    %v374 = vshrl.u32 %v254, 16
    %v376 = vshll.u32 %v254, 16
    %v378 = vrot.slane %v376, 1
    %v379 = vor.u32 %v374, %v378
    %v380 = vshll.u32 %v261, 16
    %v382 = vrot.slane %v380, 1
    %v383 = vsel %vm356, %v379, %v382
    %v384 = vshrl.u32 %v261, 16
    %v386 = vor.u32 %v384, %v382
    %v387 = vsel %vm356, %v386, %v372
    %s388 = scalar_lea.vmem %s2, 1
    %v389 = vld [vmem:[%s388] sm:$0x1]
    %v391 = vsel %vm264, %v366, 0
    %v394 = vsel %vm264, %v373, 0
    %v397 = vsel %vm264, %v383, 0
    %v400 = vsel %vm264, %v387, 0
    %v403 = vand.u32 %v389, %v277
    %405 = vmatprep.subr.bf16.mxu0 0
    %406 = vmatpush1.bf16.msra.mxu0 0
    %407 = vmatprep.subr.bf16.mxu0 0
    %408 = vmatpush1.bf16.msra.mxu0 0
    %409 = vmatprep.subr.bf16.mxu0 0
    %410 = vmatpush1.bf16.msra.mxu0 0
    %411 = vmatprep.subr.bf16.mxu0 0
    %412 = vmatpush1.bf16.msra.mxu0 0
    %413 = vmatprep.subr.bf16.mxu0 0
    %414 = vmatpush1.bf16.msra.mxu0 0
    %415 = vmatprep.subr.bf16.mxu0 0
    %416 = vmatpush1.bf16.msra.mxu0 0
    %417 = vmatprep.subr.bf16.mxu0 0
    %418 = vmatpush1.bf16.msra.mxu0 0
    %419 = vmatprep.subr.bf16.mxu0 0
    %420 = vmatpush1.bf16.msra.mxu0 %v403
    %421 = vmatprep.subr.bf16.mxu0 0
    %422 = vmatpush2.bf16.msra.mxu0 0
    %423 = vmatprep.subr.bf16.mxu0 0
    %424 = vmatpush2.bf16.msra.mxu0 0
    %425 = vmatprep.subr.bf16.mxu0 0
    %426 = vmatpush2.bf16.msra.mxu0 0
    %427 = vmatprep.subr.bf16.mxu0 0
    %428 = vmatpush2.bf16.msra.mxu0 0
    %429 = vmatprep.subr.bf16.mxu0 0
    %430 = vmatpush2.bf16.msra.mxu0 0
    %431 = vmatprep.subr.bf16.mxu0 0
    %432 = vmatpush2.bf16.msra.mxu0 0
    %433 = vmatprep.subr.bf16.mxu0 0
    %434 = vmatpush2.bf16.msra.mxu0 0
    %435 = vmatprep.subr.bf16.mxu0 0
    %436 = vmatpush2.bf16.msra.mxu0 0
    %437 = vmatprep.mubr.bf16.mxu0 0
    %438 = vmatmul.mubr.bf16.gmra.mxu0 %v391
    %v439 = vpop.f32.mrf.mxu0
    %v440 = vadd.f32 0.0, %v439
    %v441 = vpop.f32.mrf.mxu0
    %v442 = vpop.f32.mrf.mxu0
    %v443 = vadd.f32 0.0, %v442
    %v444 = vpop.f32.mrf.mxu0
    %445 = vmatprep.mubr.bf16.mxu0 0
    %446 = vmatmul.mubr.bf16.gmra.mxu0 %v394
    %v447 = vpop.f32.mrf.mxu0
    %v448 = vadd.f32 0.0, %v447
    %v449 = vpop.f32.mrf.mxu0
    %v450 = vpop.f32.mrf.mxu0
    %v451 = vpop.f32.mrf.mxu0
    %452 = vmatprep.mubr.bf16.mxu0 0
    %453 = vmatmul.mubr.bf16.gmra.mxu0 %v397
    %v454 = vpop.f32.mrf.mxu0
    %v455 = vadd.f32 0.0, %v454
    %v456 = vpop.f32.mrf.mxu0
    %v457 = vpop.f32.mrf.mxu0
    %v458 = vadd.f32 0.0, %v457
    %v459 = vpop.f32.mrf.mxu0
    %460 = vmatprep.mubr.bf16.mxu0 0
    %461 = vmatmul.mubr.bf16.gmra.mxu0 %v400
    %v462 = vpop.f32.mrf.mxu0
    %v463 = vadd.f32 0.0, %v462
    %v464 = vpop.f32.mrf.mxu0
    %v465 = vpop.f32.mrf.mxu0
    %v466 = vpop.f32.mrf.mxu0
    %467 = vdwg.mxu0
    %v468 = vadd.f32 %v350, %v440
    %v469 = vadd.f32 %v351, %v443
    %v470 = vadd.f32 %v352, %v448
    %v471 = vadd.f32 %v353, %v455
    %v472 = vadd.f32 %v354, %v458
    %v473 = vadd.f32 %v355, %v463
    %vm479 = vcmask 1046528
    %v480 = vrot.slane %v252, 1
    %v481 = vrot.slane %v259, 1
    %v482 = vsel %vm479, %v480, %v481
    %v483 = vrot.slane 0, 1
    %v484 = vsel %vm479, %v481, %v483
    %v485 = vrot.slane %v254, 1
    %v486 = vrot.slane %v261, 1
    %v487 = vsel %vm479, %v485, %v486
    %v488 = vsel %vm479, %v486, %v483
    %s489 = scalar_lea.vmem %s2, 2
    %v490 = vld [vmem:[%s489] sm:$0x1]
    %v492 = vsel %vm264, %v482, 0
    %v495 = vsel %vm264, %v484, 0
    %v498 = vsel %vm264, %v487, 0
    %v501 = vsel %vm264, %v488, 0
    %v504 = vand.u32 %v490, %v277
    %506 = vmatprep.subr.bf16.mxu0 0
    %507 = vmatpush1.bf16.msra.mxu0 0
    %508 = vmatprep.subr.bf16.mxu0 0
    %509 = vmatpush1.bf16.msra.mxu0 0
    %510 = vmatprep.subr.bf16.mxu0 0
    %511 = vmatpush1.bf16.msra.mxu0 0
    %512 = vmatprep.subr.bf16.mxu0 0
    %513 = vmatpush1.bf16.msra.mxu0 0
    %514 = vmatprep.subr.bf16.mxu0 0
    %515 = vmatpush1.bf16.msra.mxu0 0
    %516 = vmatprep.subr.bf16.mxu0 0
    %517 = vmatpush1.bf16.msra.mxu0 0
    %518 = vmatprep.subr.bf16.mxu0 0
    %519 = vmatpush1.bf16.msra.mxu0 0
    %520 = vmatprep.subr.bf16.mxu0 0
    %521 = vmatpush1.bf16.msra.mxu0 %v504
    %522 = vmatprep.subr.bf16.mxu0 0
    %523 = vmatpush2.bf16.msra.mxu0 0
    %524 = vmatprep.subr.bf16.mxu0 0
    %525 = vmatpush2.bf16.msra.mxu0 0
    %526 = vmatprep.subr.bf16.mxu0 0
    %527 = vmatpush2.bf16.msra.mxu0 0
    %528 = vmatprep.subr.bf16.mxu0 0
    %529 = vmatpush2.bf16.msra.mxu0 0
    %530 = vmatprep.subr.bf16.mxu0 0
    %531 = vmatpush2.bf16.msra.mxu0 0
    %532 = vmatprep.subr.bf16.mxu0 0
    %533 = vmatpush2.bf16.msra.mxu0 0
    %534 = vmatprep.subr.bf16.mxu0 0
    %535 = vmatpush2.bf16.msra.mxu0 0
    %536 = vmatprep.subr.bf16.mxu0 0
    %537 = vmatpush2.bf16.msra.mxu0 0
    %538 = vmatprep.mubr.bf16.mxu0 0
    %539 = vmatmul.mubr.bf16.gmra.mxu0 %v492
    %v540 = vpop.f32.mrf.mxu0
    %v541 = vadd.f32 0.0, %v540
    %v542 = vpop.f32.mrf.mxu0
    %v543 = vpop.f32.mrf.mxu0
    %v544 = vadd.f32 0.0, %v543
    %v545 = vpop.f32.mrf.mxu0
    %546 = vmatprep.mubr.bf16.mxu0 0
    %547 = vmatmul.mubr.bf16.gmra.mxu0 %v495
    %v548 = vpop.f32.mrf.mxu0
    %v549 = vadd.f32 0.0, %v548
    %v550 = vpop.f32.mrf.mxu0
    %v551 = vpop.f32.mrf.mxu0
    %v552 = vpop.f32.mrf.mxu0
    %553 = vmatprep.mubr.bf16.mxu0 0
    %554 = vmatmul.mubr.bf16.gmra.mxu0 %v498
    %v555 = vpop.f32.mrf.mxu0
    %v556 = vadd.f32 0.0, %v555
    %v557 = vpop.f32.mrf.mxu0
    %v558 = vpop.f32.mrf.mxu0
    %v559 = vadd.f32 0.0, %v558
    %v560 = vpop.f32.mrf.mxu0
    %561 = vmatprep.mubr.bf16.mxu0 0
    %562 = vmatmul.mubr.bf16.gmra.mxu0 %v501
    %v563 = vpop.f32.mrf.mxu0
    %v564 = vadd.f32 0.0, %v563
    %v565 = vpop.f32.mrf.mxu0
    %v566 = vpop.f32.mrf.mxu0
    %v567 = vpop.f32.mrf.mxu0
    %568 = vdwg.mxu0
    %v569 = vadd.f32 %v468, %v541
    %v570 = vadd.f32 %v469, %v544
    %v571 = vadd.f32 %v470, %v549
    %v572 = vadd.f32 %v471, %v556
    %v573 = vadd.f32 %v472, %v559
    %v574 = vadd.f32 %v473, %v564
    %vm575 = vcmp.gt.f32.partialorder %v569, 0.0
    %vm576 = vcmp.gt.f32.partialorder %v570, 0.0
    %vm577 = vcmp.gt.f32.partialorder %v571, 0.0
    %vm578 = vcmp.gt.f32.partialorder %v572, 0.0
    %vm579 = vcmp.gt.f32.partialorder %v573, 0.0
    %vm580 = vcmp.gt.f32.partialorder %v574, 0.0
    %v581 = vstv %s245
    %v582 = vmul.f32 %v581, %v569
    %v583 = vmul.f32 %v581, %v570
    %v584 = vmul.f32 %v581, %v571
    %v585 = vmul.f32 %v581, %v572
    %v586 = vmul.f32 %v581, %v573
    %v587 = vmul.f32 %v581, %v574
    %v588 = vsel %vm575, %v569, %v582
    %v589 = vsel %vm576, %v570, %v583
    %v590 = vsel %vm577, %v571, %v584
    %v591 = vsel %vm578, %v572, %v585
    %v592 = vsel %vm579, %v573, %v586
    %v593 = vsel %vm580, %v574, %v587
    %v594 = vpack.c.bf16 %v589, %v588
    %v595 = vpack.c.bf16 %v590, %v590
    %v596 = vpack.c.bf16 %v592, %v591
    %v597 = vpack.c.bf16 %v593, %v593
    %vm598 = vcmask 1042432
    %v600 = vsel %vm598, %v595, 0
    %v602 = vsel %vm598, %v597, 0
    %v603 = vld [vmem:[#allocation4] sm:$0x1]
    %v604 = vld [vmem:[%s4] sm:$0xf]
    %v605 = vld [vmem:[%s4 + $0x4] sm:$0xf]
    %v608 = vunpack.c.l.b16 %v604
    %v609 = vunpack.c.l.b16 %v605
    %v610 = vpack.c.b16 %v609, %v608
    %vm612 = vcmask 130048
    %v614 = vsel %vm612, %v594, 0
    %v616 = vsel %vm612, %v600, 0
    %v619 = vsel %vm612, %v596, 0
    %v621 = vsel %vm612, %v602, 0
    %623 = vmatprep.subr.bf16.mxu0 0
    %624 = vmatpush1.bf16.msra.mxu0 0
    %625 = vmatprep.subr.bf16.mxu0 0
    %626 = vmatpush1.bf16.msra.mxu0 0
    %627 = vmatprep.subr.bf16.mxu0 0
    %628 = vmatpush1.bf16.msra.mxu0 0
    %629 = vmatprep.subr.bf16.mxu0 0
    %630 = vmatpush1.bf16.msra.mxu0 0
    %631 = vmatprep.subr.bf16.mxu0 0
    %632 = vmatpush1.bf16.msra.mxu0 0
    %633 = vmatprep.subr.bf16.mxu0 0
    %634 = vmatpush1.bf16.msra.mxu0 0
    %635 = vmatprep.subr.bf16.mxu0 0
    %636 = vmatpush1.bf16.msra.mxu0 0
    %637 = vmatprep.subr.bf16.mxu0 0
    %638 = vmatpush1.bf16.msra.mxu0 %v610
    %639 = vmatprep.subr.bf16.mxu0 0
    %640 = vmatpush2.bf16.msra.mxu0 0
    %641 = vmatprep.subr.bf16.mxu0 0
    %642 = vmatpush2.bf16.msra.mxu0 0
    %643 = vmatprep.subr.bf16.mxu0 0
    %644 = vmatpush2.bf16.msra.mxu0 0
    %645 = vmatprep.subr.bf16.mxu0 0
    %646 = vmatpush2.bf16.msra.mxu0 0
    %647 = vmatprep.subr.bf16.mxu0 0
    %648 = vmatpush2.bf16.msra.mxu0 0
    %649 = vmatprep.subr.bf16.mxu0 0
    %650 = vmatpush2.bf16.msra.mxu0 0
    %651 = vmatprep.subr.bf16.mxu0 0
    %652 = vmatpush2.bf16.msra.mxu0 0
    %653 = vmatprep.subr.bf16.mxu0 0
    %654 = vmatpush2.bf16.msra.mxu0 0
    %655 = vmatprep.mubr.bf16.mxu0 0
    %656 = vmatmul.mubr.bf16.gmra.mxu0 %v614
    %v657 = vpop.f32.mrf.mxu0
    %v658 = vadd.f32 0.0, %v657
    %v659 = vpop.f32.mrf.mxu0
    %v660 = vpop.f32.mrf.mxu0
    %v661 = vadd.f32 0.0, %v660
    %v662 = vpop.f32.mrf.mxu0
    %663 = vmatprep.mubr.bf16.mxu0 0
    %664 = vmatmul.mubr.bf16.gmra.mxu0 %v616
    %v665 = vpop.f32.mrf.mxu0
    %v666 = vadd.f32 0.0, %v665
    %v667 = vpop.f32.mrf.mxu0
    %v668 = vpop.f32.mrf.mxu0
    %v669 = vpop.f32.mrf.mxu0
    %670 = vmatprep.mubr.bf16.mxu0 0
    %671 = vmatmul.mubr.bf16.gmra.mxu0 %v619
    %v672 = vpop.f32.mrf.mxu0
    %v673 = vadd.f32 0.0, %v672
    %v674 = vpop.f32.mrf.mxu0
    %v675 = vpop.f32.mrf.mxu0
    %v676 = vadd.f32 0.0, %v675
    %v677 = vpop.f32.mrf.mxu0
    %678 = vmatprep.mubr.bf16.mxu0 0
    %679 = vmatmul.mubr.bf16.gmra.mxu0 %v621
    %v680 = vpop.f32.mrf.mxu0
    %v681 = vadd.f32 0.0, %v680
    %v682 = vpop.f32.mrf.mxu0
    %v683 = vpop.f32.mrf.mxu0
    %v684 = vpop.f32.mrf.mxu0
    %685 = vdwg.mxu0
    %v687 = vlaneseq
    %v688 = vshrl.u32 %v687, 7
    %v689 = vsub.s32 0, %v688
    %v690 = vrot.slane %v603, %v689
    %v692 = vadd.f32 %v690, %v658
    %v693 = vadd.f32 %v690, %v661
    %v694 = vadd.f32 %v690, %v666
    %v695 = vadd.f32 %v690, %v673
    %v696 = vadd.f32 %v690, %v676
    %v697 = vadd.f32 %v690, %v681
    %v698 = vshrl.u32 %v594, 16
    %v700 = vshll.u32 %v594, 16
    %v702 = vrot.slane %v700, 1
    %v703 = vor.u32 %v698, %v702
    %v704 = vshll.u32 %v600, 16
    %v706 = vrot.slane %v704, 1
    %v707 = vsel %vm356, %v703, %v706
    %v708 = vshrl.u32 %v600, 16
    %v710 = vor.u32 %v708, %v706
    %v711 = vsel %vm356, %v710, %v372
    %v712 = vshrl.u32 %v596, 16
    %v714 = vshll.u32 %v596, 16
    %v716 = vrot.slane %v714, 1
    %v717 = vor.u32 %v712, %v716
    %v718 = vshll.u32 %v602, 16
    %v720 = vrot.slane %v718, 1
    %v721 = vsel %vm356, %v717, %v720
    %v722 = vshrl.u32 %v602, 16
    %v724 = vor.u32 %v722, %v720
    %v725 = vsel %vm356, %v724, %v372
    %s726 = scalar_lea.vmem %s4, 8
    %v727 = vld [vmem:[%s726] sm:$0xf]
    %v728 = vld [vmem:[%s726 + $0x4] sm:$0xf]
    %v731 = vunpack.c.l.b16 %v727
    %v732 = vunpack.c.l.b16 %v728
    %v733 = vpack.c.b16 %v732, %v731
    %v736 = vsel %vm612, %v707, 0
    %v739 = vsel %vm612, %v711, 0
    %v742 = vsel %vm612, %v721, 0
    %v745 = vsel %vm612, %v725, 0
    %747 = vmatprep.subr.bf16.mxu0 0
    %748 = vmatpush1.bf16.msra.mxu0 0
    %749 = vmatprep.subr.bf16.mxu0 0
    %750 = vmatpush1.bf16.msra.mxu0 0
    %751 = vmatprep.subr.bf16.mxu0 0
    %752 = vmatpush1.bf16.msra.mxu0 0
    %753 = vmatprep.subr.bf16.mxu0 0
    %754 = vmatpush1.bf16.msra.mxu0 0
    %755 = vmatprep.subr.bf16.mxu0 0
    %756 = vmatpush1.bf16.msra.mxu0 0
    %757 = vmatprep.subr.bf16.mxu0 0
    %758 = vmatpush1.bf16.msra.mxu0 0
    %759 = vmatprep.subr.bf16.mxu0 0
    %760 = vmatpush1.bf16.msra.mxu0 0
    %761 = vmatprep.subr.bf16.mxu0 0
    %762 = vmatpush1.bf16.msra.mxu0 %v733
    %763 = vmatprep.subr.bf16.mxu0 0
    %764 = vmatpush2.bf16.msra.mxu0 0
    %765 = vmatprep.subr.bf16.mxu0 0
    %766 = vmatpush2.bf16.msra.mxu0 0
    %767 = vmatprep.subr.bf16.mxu0 0
    %768 = vmatpush2.bf16.msra.mxu0 0
    %769 = vmatprep.subr.bf16.mxu0 0
    %770 = vmatpush2.bf16.msra.mxu0 0
    %771 = vmatprep.subr.bf16.mxu0 0
    %772 = vmatpush2.bf16.msra.mxu0 0
    %773 = vmatprep.subr.bf16.mxu0 0
    %774 = vmatpush2.bf16.msra.mxu0 0
    %775 = vmatprep.subr.bf16.mxu0 0
    %776 = vmatpush2.bf16.msra.mxu0 0
    %777 = vmatprep.subr.bf16.mxu0 0
    %778 = vmatpush2.bf16.msra.mxu0 0
    %779 = vmatprep.mubr.bf16.mxu0 0
    %780 = vmatmul.mubr.bf16.gmra.mxu0 %v736
    %v781 = vpop.f32.mrf.mxu0
    %v782 = vadd.f32 0.0, %v781
    %v783 = vpop.f32.mrf.mxu0
    %v784 = vpop.f32.mrf.mxu0
    %v785 = vadd.f32 0.0, %v784
    %v786 = vpop.f32.mrf.mxu0
    %787 = vmatprep.mubr.bf16.mxu0 0
    %788 = vmatmul.mubr.bf16.gmra.mxu0 %v739
    %v789 = vpop.f32.mrf.mxu0
    %v790 = vadd.f32 0.0, %v789
    %v791 = vpop.f32.mrf.mxu0
    %v792 = vpop.f32.mrf.mxu0
    %v793 = vpop.f32.mrf.mxu0
    %794 = vmatprep.mubr.bf16.mxu0 0
    %795 = vmatmul.mubr.bf16.gmra.mxu0 %v742
    %v796 = vpop.f32.mrf.mxu0
    %v797 = vadd.f32 0.0, %v796
    %v798 = vpop.f32.mrf.mxu0
    %v799 = vpop.f32.mrf.mxu0
    %v800 = vadd.f32 0.0, %v799
    %v801 = vpop.f32.mrf.mxu0
    %802 = vmatprep.mubr.bf16.mxu0 0
    %803 = vmatmul.mubr.bf16.gmra.mxu0 %v745
    %v804 = vpop.f32.mrf.mxu0
    %v805 = vadd.f32 0.0, %v804
    %v806 = vpop.f32.mrf.mxu0
    %v807 = vpop.f32.mrf.mxu0
    %v808 = vpop.f32.mrf.mxu0
    %809 = vdwg.mxu0
    %v810 = vadd.f32 %v692, %v782
    %v811 = vadd.f32 %v693, %v785
    %v812 = vadd.f32 %v694, %v790
    %v813 = vadd.f32 %v695, %v797
    %v814 = vadd.f32 %v696, %v800
    %v815 = vadd.f32 %v697, %v805
    %v820 = vrot.slane %v594, 1
    %v821 = vrot.slane %v600, 1
    %v822 = vsel %vm479, %v820, %v821
    %v823 = vsel %vm479, %v821, %v483
    %v824 = vrot.slane %v596, 1
    %v825 = vrot.slane %v602, 1
    %v826 = vsel %vm479, %v824, %v825
    %v827 = vsel %vm479, %v825, %v483
    %s828 = scalar_lea.vmem %s4, 16
    %v829 = vld [vmem:[%s828] sm:$0xf]
    %v830 = vld [vmem:[%s828 + $0x4] sm:$0xf]
    %v833 = vunpack.c.l.b16 %v829
    %v834 = vunpack.c.l.b16 %v830
    %v835 = vpack.c.b16 %v834, %v833
    %v838 = vsel %vm612, %v822, 0
    %v841 = vsel %vm612, %v823, 0
    %v844 = vsel %vm612, %v826, 0
    %v847 = vsel %vm612, %v827, 0
    %849 = vmatprep.subr.bf16.mxu0 0
    %850 = vmatpush1.bf16.msra.mxu0 0
    %851 = vmatprep.subr.bf16.mxu0 0
    %852 = vmatpush1.bf16.msra.mxu0 0
    %853 = vmatprep.subr.bf16.mxu0 0
    %854 = vmatpush1.bf16.msra.mxu0 0
    %855 = vmatprep.subr.bf16.mxu0 0
    %856 = vmatpush1.bf16.msra.mxu0 0
    %857 = vmatprep.subr.bf16.mxu0 0
    %858 = vmatpush1.bf16.msra.mxu0 0
    %859 = vmatprep.subr.bf16.mxu0 0
    %860 = vmatpush1.bf16.msra.mxu0 0
    %861 = vmatprep.subr.bf16.mxu0 0
    %862 = vmatpush1.bf16.msra.mxu0 0
    %863 = vmatprep.subr.bf16.mxu0 0
    %864 = vmatpush1.bf16.msra.mxu0 %v835
    %865 = vmatprep.subr.bf16.mxu0 0
    %866 = vmatpush2.bf16.msra.mxu0 0
    %867 = vmatprep.subr.bf16.mxu0 0
    %868 = vmatpush2.bf16.msra.mxu0 0
    %869 = vmatprep.subr.bf16.mxu0 0
    %870 = vmatpush2.bf16.msra.mxu0 0
    %871 = vmatprep.subr.bf16.mxu0 0
    %872 = vmatpush2.bf16.msra.mxu0 0
    %873 = vmatprep.subr.bf16.mxu0 0
    %874 = vmatpush2.bf16.msra.mxu0 0
    %875 = vmatprep.subr.bf16.mxu0 0
    %876 = vmatpush2.bf16.msra.mxu0 0
    %877 = vmatprep.subr.bf16.mxu0 0
    %878 = vmatpush2.bf16.msra.mxu0 0
    %879 = vmatprep.subr.bf16.mxu0 0
    %880 = vmatpush2.bf16.msra.mxu0 0
    %881 = vmatprep.mubr.bf16.mxu0 0
    %882 = vmatmul.mubr.bf16.gmra.mxu0 %v838
    %v883 = vpop.f32.mrf.mxu0
    %v884 = vadd.f32 0.0, %v883
    %v885 = vpop.f32.mrf.mxu0
    %v886 = vpop.f32.mrf.mxu0
    %v887 = vadd.f32 0.0, %v886
    %v888 = vpop.f32.mrf.mxu0
    %889 = vmatprep.mubr.bf16.mxu0 0
    %890 = vmatmul.mubr.bf16.gmra.mxu0 %v841
    %v891 = vpop.f32.mrf.mxu0
    %v892 = vadd.f32 0.0, %v891
    %v893 = vpop.f32.mrf.mxu0
    %v894 = vpop.f32.mrf.mxu0
    %v895 = vpop.f32.mrf.mxu0
    %896 = vmatprep.mubr.bf16.mxu0 0
    %897 = vmatmul.mubr.bf16.gmra.mxu0 %v844
    %v898 = vpop.f32.mrf.mxu0
    %v899 = vadd.f32 0.0, %v898
    %v900 = vpop.f32.mrf.mxu0
    %v901 = vpop.f32.mrf.mxu0
    %v902 = vadd.f32 0.0, %v901
    %v903 = vpop.f32.mrf.mxu0
    %904 = vmatprep.mubr.bf16.mxu0 0
    %905 = vmatmul.mubr.bf16.gmra.mxu0 %v847
    %v906 = vpop.f32.mrf.mxu0
    %v907 = vadd.f32 0.0, %v906
    %v908 = vpop.f32.mrf.mxu0
    %v909 = vpop.f32.mrf.mxu0
    %v910 = vpop.f32.mrf.mxu0
    %911 = vdwg.mxu0
    %v912 = vadd.f32 %v810, %v884
    %v913 = vadd.f32 %v811, %v887
    %v914 = vadd.f32 %v812, %v892
    %v915 = vadd.f32 %v813, %v899
    %v916 = vadd.f32 %v814, %v902
    %v917 = vadd.f32 %v815, %v907
    %vm918 = vcmp.gt.f32.partialorder %v912, 0.0
    %vm919 = vcmp.gt.f32.partialorder %v913, 0.0
    %vm920 = vcmp.gt.f32.partialorder %v914, 0.0
    %vm921 = vcmp.gt.f32.partialorder %v915, 0.0
    %vm922 = vcmp.gt.f32.partialorder %v916, 0.0
    %vm923 = vcmp.gt.f32.partialorder %v917, 0.0
    %v924 = vmul.f32 %v581, %v912
    %v925 = vmul.f32 %v581, %v913
    %v926 = vmul.f32 %v581, %v914
    %v927 = vmul.f32 %v581, %v915
    %v928 = vmul.f32 %v581, %v916
    %v929 = vmul.f32 %v581, %v917
    %v930 = vsel %vm918, %v912, %v924
    %v931 = vsel %vm919, %v913, %v925
    %v932 = vsel %vm920, %v914, %v926
    %v933 = vsel %vm921, %v915, %v927
    %v934 = vsel %vm922, %v916, %v928
    %v935 = vsel %vm923, %v917, %v929
    %v936 = vpack.c.bf16 %v931, %v930
    %v937 = vpack.c.bf16 %v932, %v932
    %v938 = vpack.c.bf16 %v934, %v933
    %v939 = vpack.c.bf16 %v935, %v935
    %vm940 = vcmask 1041408
    %v942 = vsel %vm940, %v937, 0
    %v944 = vsel %vm940, %v939, 0
    %v945 = vld [vmem:[#allocation8] sm:$0x1]
    %v946 = vld [vmem:[#allocation6] sm:$0xf]
    %v947 = vld [vmem:[#allocation6 + $0x4] sm:$0xf]
    %v948 = vld [vmem:[#allocation6 + $0x8] sm:$0xf]
    %v949 = vld [vmem:[#allocation6 + $0xc] sm:$0xf]
    %v954 = vunpack.c.l.b16 %v946
    %v955 = vunpack.c.l.b16 %v947
    %v956 = vunpack.c.l.b16 %v948
    %v957 = vunpack.c.l.b16 %v949
    %v958 = vpack.c.b16 %v955, %v954
    %v959 = vpack.c.b16 %v957, %v956
    %vm962 = vcmask 261120
    %v964 = vsel %vm962, %v936, 0
    %v966 = vsel %vm962, %v942, 0
    %v969 = vsel %vm962, %v938, 0
    %v971 = vsel %vm962, %v944, 0
    %973 = vmatprep.subr.bf16.mxu0 0
    %974 = vmatpush1.bf16.msra.mxu0 0
    %975 = vmatprep.subr.bf16.mxu0 0
    %976 = vmatpush1.bf16.msra.mxu0 0
    %977 = vmatprep.subr.bf16.mxu0 0
    %978 = vmatpush1.bf16.msra.mxu0 0
    %979 = vmatprep.subr.bf16.mxu0 0
    %980 = vmatpush1.bf16.msra.mxu0 0
    %981 = vmatprep.subr.bf16.mxu0 0
    %982 = vmatpush1.bf16.msra.mxu0 0
    %983 = vmatprep.subr.bf16.mxu0 0
    %984 = vmatpush1.bf16.msra.mxu0 0
    %985 = vmatprep.subr.bf16.mxu0 0
    %986 = vmatpush1.bf16.msra.mxu0 %v959
    %987 = vmatprep.subr.bf16.mxu0 0
    %988 = vmatpush1.bf16.msra.mxu0 %v958
    %989 = vmatprep.subr.bf16.mxu0 0
    %990 = vmatpush2.bf16.msra.mxu0 0
    %991 = vmatprep.subr.bf16.mxu0 0
    %992 = vmatpush2.bf16.msra.mxu0 0
    %993 = vmatprep.subr.bf16.mxu0 0
    %994 = vmatpush2.bf16.msra.mxu0 0
    %995 = vmatprep.subr.bf16.mxu0 0
    %996 = vmatpush2.bf16.msra.mxu0 0
    %997 = vmatprep.subr.bf16.mxu0 0
    %998 = vmatpush2.bf16.msra.mxu0 0
    %999 = vmatprep.subr.bf16.mxu0 0
    %1000 = vmatpush2.bf16.msra.mxu0 0
    %1001 = vmatprep.subr.bf16.mxu0 0
    %1002 = vmatpush2.bf16.msra.mxu0 0
    %1003 = vmatprep.subr.bf16.mxu0 0
    %1004 = vmatpush2.bf16.msra.mxu0 0
    %1005 = vmatprep.mubr.bf16.mxu0 0
    %1006 = vmatmul.mubr.bf16.gmra.mxu0 %v964
    %v1007 = vpop.f32.mrf.mxu0
    %v1008 = vadd.f32 0.0, %v1007
    %v1009 = vpop.f32.mrf.mxu0
    %v1010 = vpop.f32.mrf.mxu0
    %v1011 = vadd.f32 0.0, %v1010
    %v1012 = vpop.f32.mrf.mxu0
    %1013 = vmatprep.mubr.bf16.mxu0 0
    %1014 = vmatmul.mubr.bf16.gmra.mxu0 %v966
    %v1015 = vpop.f32.mrf.mxu0
    %v1016 = vadd.f32 0.0, %v1015
    %v1017 = vpop.f32.mrf.mxu0
    %v1018 = vpop.f32.mrf.mxu0
    %v1019 = vpop.f32.mrf.mxu0
    %1020 = vmatprep.mubr.bf16.mxu0 0
    %1021 = vmatmul.mubr.bf16.gmra.mxu0 %v969
    %v1022 = vpop.f32.mrf.mxu0
    %v1023 = vadd.f32 0.0, %v1022
    %v1024 = vpop.f32.mrf.mxu0
    %v1025 = vpop.f32.mrf.mxu0
    %v1026 = vadd.f32 0.0, %v1025
    %v1027 = vpop.f32.mrf.mxu0
    %1028 = vmatprep.mubr.bf16.mxu0 0
    %1029 = vmatmul.mubr.bf16.gmra.mxu0 %v971
    %v1030 = vpop.f32.mrf.mxu0
    %v1031 = vadd.f32 0.0, %v1030
    %v1032 = vpop.f32.mrf.mxu0
    %v1033 = vpop.f32.mrf.mxu0
    %v1034 = vpop.f32.mrf.mxu0
    %1035 = vdwg.mxu0
    %v1037 = vlaneseq
    %v1038 = vshrl.u32 %v1037, 7
    %v1039 = vsub.s32 0, %v1038
    %v1040 = vrot.slane %v945, %v1039
    %v1042 = vadd.f32 %v1040, %v1008
    %v1043 = vadd.f32 %v1040, %v1011
    %v1044 = vadd.f32 %v1040, %v1016
    %v1045 = vadd.f32 %v1040, %v1023
    %v1046 = vadd.f32 %v1040, %v1026
    %v1047 = vadd.f32 %v1040, %v1031
    %v1048 = vshrl.u32 %v936, 16
    %v1050 = vshll.u32 %v936, 16
    %v1052 = vrot.slane %v1050, 1
    %v1053 = vor.u32 %v1048, %v1052
    %v1054 = vshll.u32 %v942, 16
    %v1056 = vrot.slane %v1054, 1
    %v1057 = vsel %vm356, %v1053, %v1056
    %v1058 = vshrl.u32 %v942, 16
    %v1060 = vor.u32 %v1058, %v1056
    %v1061 = vsel %vm356, %v1060, %v372
    %v1062 = vshrl.u32 %v938, 16
    %v1064 = vshll.u32 %v938, 16
    %v1066 = vrot.slane %v1064, 1
    %v1067 = vor.u32 %v1062, %v1066
    %v1068 = vshll.u32 %v944, 16
    %v1070 = vrot.slane %v1068, 1
    %v1071 = vsel %vm356, %v1067, %v1070
    %v1072 = vshrl.u32 %v944, 16
    %v1074 = vor.u32 %v1072, %v1070
    %v1075 = vsel %vm356, %v1074, %v372
    %s1076 = scalar_lea.vmem [#allocation6], 16
    %v1077 = vld [vmem:[%s1076] sm:$0xf]
    %v1078 = vld [vmem:[%s1076 + $0x4] sm:$0xf]
    %v1079 = vld [vmem:[%s1076 + $0x8] sm:$0xf]
    %v1080 = vld [vmem:[%s1076 + $0xc] sm:$0xf]
    %v1085 = vunpack.c.l.b16 %v1077
    %v1086 = vunpack.c.l.b16 %v1078
    %v1087 = vunpack.c.l.b16 %v1079
    %v1088 = vunpack.c.l.b16 %v1080
    %v1089 = vpack.c.b16 %v1086, %v1085
    %v1090 = vpack.c.b16 %v1088, %v1087
    %v1094 = vsel %vm962, %v1057, 0
    %v1097 = vsel %vm962, %v1061, 0
    %v1100 = vsel %vm962, %v1071, 0
    %v1103 = vsel %vm962, %v1075, 0
    %1105 = vmatprep.subr.bf16.mxu0 0
    %1106 = vmatpush1.bf16.msra.mxu0 0
    %1107 = vmatprep.subr.bf16.mxu0 0
    %1108 = vmatpush1.bf16.msra.mxu0 0
    %1109 = vmatprep.subr.bf16.mxu0 0
    %1110 = vmatpush1.bf16.msra.mxu0 0
    %1111 = vmatprep.subr.bf16.mxu0 0
    %1112 = vmatpush1.bf16.msra.mxu0 0
    %1113 = vmatprep.subr.bf16.mxu0 0
    %1114 = vmatpush1.bf16.msra.mxu0 0
    %1115 = vmatprep.subr.bf16.mxu0 0
    %1116 = vmatpush1.bf16.msra.mxu0 0
    %1117 = vmatprep.subr.bf16.mxu0 0
    %1118 = vmatpush1.bf16.msra.mxu0 %v1090
    %1119 = vmatprep.subr.bf16.mxu0 0
    %1120 = vmatpush1.bf16.msra.mxu0 %v1089
    %1121 = vmatprep.subr.bf16.mxu0 0
    %1122 = vmatpush2.bf16.msra.mxu0 0
    %1123 = vmatprep.subr.bf16.mxu0 0
    %1124 = vmatpush2.bf16.msra.mxu0 0
    %1125 = vmatprep.subr.bf16.mxu0 0
    %1126 = vmatpush2.bf16.msra.mxu0 0
    %1127 = vmatprep.subr.bf16.mxu0 0
    %1128 = vmatpush2.bf16.msra.mxu0 0
    %1129 = vmatprep.subr.bf16.mxu0 0
    %1130 = vmatpush2.bf16.msra.mxu0 0
    %1131 = vmatprep.subr.bf16.mxu0 0
    %1132 = vmatpush2.bf16.msra.mxu0 0
    %1133 = vmatprep.subr.bf16.mxu0 0
    %1134 = vmatpush2.bf16.msra.mxu0 0
    %1135 = vmatprep.subr.bf16.mxu0 0
    %1136 = vmatpush2.bf16.msra.mxu0 0
    %1137 = vmatprep.mubr.bf16.mxu0 0
    %1138 = vmatmul.mubr.bf16.gmra.mxu0 %v1094
    %v1139 = vpop.f32.mrf.mxu0
    %v1140 = vadd.f32 0.0, %v1139
    %v1141 = vpop.f32.mrf.mxu0
    %v1142 = vpop.f32.mrf.mxu0
    %v1143 = vadd.f32 0.0, %v1142
    %v1144 = vpop.f32.mrf.mxu0
    %1145 = vmatprep.mubr.bf16.mxu0 0
    %1146 = vmatmul.mubr.bf16.gmra.mxu0 %v1097
    %v1147 = vpop.f32.mrf.mxu0
    %v1148 = vadd.f32 0.0, %v1147
    %v1149 = vpop.f32.mrf.mxu0
    %v1150 = vpop.f32.mrf.mxu0
    %v1151 = vpop.f32.mrf.mxu0
    %1152 = vmatprep.mubr.bf16.mxu0 0
    %1153 = vmatmul.mubr.bf16.gmra.mxu0 %v1100
    %v1154 = vpop.f32.mrf.mxu0
    %v1155 = vadd.f32 0.0, %v1154
    %v1156 = vpop.f32.mrf.mxu0
    %v1157 = vpop.f32.mrf.mxu0
    %v1158 = vadd.f32 0.0, %v1157
    %v1159 = vpop.f32.mrf.mxu0
    %1160 = vmatprep.mubr.bf16.mxu0 0
    %1161 = vmatmul.mubr.bf16.gmra.mxu0 %v1103
    %v1162 = vpop.f32.mrf.mxu0
    %v1163 = vadd.f32 0.0, %v1162
    %v1164 = vpop.f32.mrf.mxu0
    %v1165 = vpop.f32.mrf.mxu0
    %v1166 = vpop.f32.mrf.mxu0
    %1167 = vdwg.mxu0
    %v1168 = vadd.f32 %v1042, %v1140
    %v1169 = vadd.f32 %v1043, %v1143
    %v1170 = vadd.f32 %v1044, %v1148
    %v1171 = vadd.f32 %v1045, %v1155
    %v1172 = vadd.f32 %v1046, %v1158
    %v1173 = vadd.f32 %v1047, %v1163
    %v1178 = vrot.slane %v936, 1
    %v1179 = vrot.slane %v942, 1
    %v1180 = vsel %vm479, %v1178, %v1179
    %v1181 = vsel %vm479, %v1179, %v483
    %v1182 = vrot.slane %v938, 1
    %v1183 = vrot.slane %v944, 1
    %v1184 = vsel %vm479, %v1182, %v1183
    %v1185 = vsel %vm479, %v1183, %v483
    %s1186 = scalar_lea.vmem [#allocation6], 32
    %v1187 = vld [vmem:[%s1186] sm:$0xf]
    %v1188 = vld [vmem:[%s1186 + $0x4] sm:$0xf]
    %v1189 = vld [vmem:[%s1186 + $0x8] sm:$0xf]
    %v1190 = vld [vmem:[%s1186 + $0xc] sm:$0xf]
    %v1195 = vunpack.c.l.b16 %v1187
    %v1196 = vunpack.c.l.b16 %v1188
    %v1197 = vunpack.c.l.b16 %v1189
    %v1198 = vunpack.c.l.b16 %v1190
    %v1199 = vpack.c.b16 %v1196, %v1195
    %v1200 = vpack.c.b16 %v1198, %v1197
    %v1204 = vsel %vm962, %v1180, 0
    %v1207 = vsel %vm962, %v1181, 0
    %v1210 = vsel %vm962, %v1184, 0
    %v1213 = vsel %vm962, %v1185, 0
    %1215 = vmatprep.subr.bf16.mxu0 0
    %1216 = vmatpush1.bf16.msra.mxu0 0
    %1217 = vmatprep.subr.bf16.mxu0 0
    %1218 = vmatpush1.bf16.msra.mxu0 0
    %1219 = vmatprep.subr.bf16.mxu0 0
    %1220 = vmatpush1.bf16.msra.mxu0 0
    %1221 = vmatprep.subr.bf16.mxu0 0
    %1222 = vmatpush1.bf16.msra.mxu0 0
    %1223 = vmatprep.subr.bf16.mxu0 0
    %1224 = vmatpush1.bf16.msra.mxu0 0
    %1225 = vmatprep.subr.bf16.mxu0 0
    %1226 = vmatpush1.bf16.msra.mxu0 0
    %1227 = vmatprep.subr.bf16.mxu0 0
    %1228 = vmatpush1.bf16.msra.mxu0 %v1200
    %1229 = vmatprep.subr.bf16.mxu0 0
    %1230 = vmatpush1.bf16.msra.mxu0 %v1199
    %1231 = vmatprep.subr.bf16.mxu0 0
    %1232 = vmatpush2.bf16.msra.mxu0 0
    %1233 = vmatprep.subr.bf16.mxu0 0
    %1234 = vmatpush2.bf16.msra.mxu0 0
    %1235 = vmatprep.subr.bf16.mxu0 0
    %1236 = vmatpush2.bf16.msra.mxu0 0
    %1237 = vmatprep.subr.bf16.mxu0 0
    %1238 = vmatpush2.bf16.msra.mxu0 0
    %1239 = vmatprep.subr.bf16.mxu0 0
    %1240 = vmatpush2.bf16.msra.mxu0 0
    %1241 = vmatprep.subr.bf16.mxu0 0
    %1242 = vmatpush2.bf16.msra.mxu0 0
    %1243 = vmatprep.subr.bf16.mxu0 0
    %1244 = vmatpush2.bf16.msra.mxu0 0
    %1245 = vmatprep.subr.bf16.mxu0 0
    %1246 = vmatpush2.bf16.msra.mxu0 0
    %1247 = vmatprep.mubr.bf16.mxu0 0
    %1248 = vmatmul.mubr.bf16.gmra.mxu0 %v1204
    %v1249 = vpop.f32.mrf.mxu0
    %v1250 = vadd.f32 0.0, %v1249
    %v1251 = vpop.f32.mrf.mxu0
    %v1252 = vpop.f32.mrf.mxu0
    %v1253 = vadd.f32 0.0, %v1252
    %v1254 = vpop.f32.mrf.mxu0
    %1255 = vmatprep.mubr.bf16.mxu0 0
    %1256 = vmatmul.mubr.bf16.gmra.mxu0 %v1207
    %v1257 = vpop.f32.mrf.mxu0
    %v1258 = vadd.f32 0.0, %v1257
    %v1259 = vpop.f32.mrf.mxu0
    %v1260 = vpop.f32.mrf.mxu0
    %v1261 = vpop.f32.mrf.mxu0
    %1262 = vmatprep.mubr.bf16.mxu0 0
    %1263 = vmatmul.mubr.bf16.gmra.mxu0 %v1210
    %v1264 = vpop.f32.mrf.mxu0
    %v1265 = vadd.f32 0.0, %v1264
    %v1266 = vpop.f32.mrf.mxu0
    %v1267 = vpop.f32.mrf.mxu0
    %v1268 = vadd.f32 0.0, %v1267
    %v1269 = vpop.f32.mrf.mxu0
    %1270 = vmatprep.mubr.bf16.mxu0 0
    %1271 = vmatmul.mubr.bf16.gmra.mxu0 %v1213
    %v1272 = vpop.f32.mrf.mxu0
    %v1273 = vadd.f32 0.0, %v1272
    %v1274 = vpop.f32.mrf.mxu0
    %v1275 = vpop.f32.mrf.mxu0
    %v1276 = vpop.f32.mrf.mxu0
    %1277 = vdwg.mxu0
    %v1278 = vadd.f32 %v1168, %v1250
    %v1279 = vadd.f32 %v1169, %v1253
    %v1280 = vadd.f32 %v1170, %v1258
    %v1281 = vadd.f32 %v1171, %v1265
    %v1282 = vadd.f32 %v1172, %v1268
    %v1283 = vadd.f32 %v1173, %v1273
    %vm1284 = vcmp.gt.f32.partialorder %v1278, 0.0
    %vm1285 = vcmp.gt.f32.partialorder %v1279, 0.0
    %vm1286 = vcmp.gt.f32.partialorder %v1280, 0.0
    %vm1287 = vcmp.gt.f32.partialorder %v1281, 0.0
    %vm1288 = vcmp.gt.f32.partialorder %v1282, 0.0
    %vm1289 = vcmp.gt.f32.partialorder %v1283, 0.0
    %v1290 = vmul.f32 %v581, %v1278
    %v1291 = vmul.f32 %v581, %v1279
    %v1292 = vmul.f32 %v581, %v1280
    %v1293 = vmul.f32 %v581, %v1281
    %v1294 = vmul.f32 %v581, %v1282
    %v1295 = vmul.f32 %v581, %v1283
    %v1296 = vsel %vm1284, %v1278, %v1290
    %v1297 = vsel %vm1285, %v1279, %v1291
    %v1298 = vsel %vm1286, %v1280, %v1292
    %v1299 = vsel %vm1287, %v1281, %v1293
    %v1300 = vsel %vm1288, %v1282, %v1294
    %v1301 = vsel %vm1289, %v1283, %v1295
    %v1302 = vpack.c.bf16 %v1297, %v1296
    %v1303 = vpack.c.bf16 %v1298, %v1298
    %v1304 = vpack.c.bf16 %v1300, %v1299
    %v1305 = vpack.c.bf16 %v1301, %v1301
    %v1306 = vld [vmem:[#allocation9] sm:$0x1]
    %v1307 = vld [vmem:[%s8] sm:$0xf]
    %v1308 = vld [vmem:[%s8 + $0x4] sm:$0xf]
    %v1309 = vld [vmem:[%s8 + $0x8] sm:$0xf]
    %v1310 = vld [vmem:[%s8 + $0xc] sm:$0xf]
    %v1311 = vld [vmem:[%s8 + $0x10] sm:$0xf]
    %v1312 = vld [vmem:[%s8 + $0x14] sm:$0xf]
    %v1313 = vld [vmem:[%s8 + $0x18] sm:$0xf]
    %v1314 = vld [vmem:[%s8 + $0x1c] sm:$0xf]
    %v1323 = vunpack.c.l.b16 %v1307
    %v1324 = vunpack.c.l.b16 %v1308
    %v1325 = vunpack.c.l.b16 %v1309
    %v1326 = vunpack.c.l.b16 %v1310
    %v1327 = vunpack.c.l.b16 %v1311
    %v1328 = vunpack.c.l.b16 %v1312
    %v1329 = vunpack.c.l.b16 %v1313
    %v1330 = vunpack.c.l.b16 %v1314
    %v1331 = vpack.c.b16 %v1324, %v1323
    %v1332 = vpack.c.b16 %v1326, %v1325
    %v1333 = vpack.c.b16 %v1328, %v1327
    %v1334 = vpack.c.b16 %v1330, %v1329
    %vm1339 = vcmask 523264
    %v1341 = vsel %vm1339, %v1302, 0
    %v1344 = vsel %vm1339, %v1304, 0
    %1346 = vmatprep.subr.bf16.mxu0 0
    %1347 = vmatpush1.bf16.msra.mxu0 0
    %1348 = vmatprep.subr.bf16.mxu0 0
    %1349 = vmatpush1.bf16.msra.mxu0 0
    %1350 = vmatprep.subr.bf16.mxu0 0
    %1351 = vmatpush1.bf16.msra.mxu0 0
    %1352 = vmatprep.subr.bf16.mxu0 0
    %1353 = vmatpush1.bf16.msra.mxu0 0
    %1354 = vmatprep.subr.bf16.mxu0 0
    %1355 = vmatpush1.bf16.msra.mxu0 %v1334
    %1356 = vmatprep.subr.bf16.mxu0 0
    %1357 = vmatpush1.bf16.msra.mxu0 %v1333
    %1358 = vmatprep.subr.bf16.mxu0 0
    %1359 = vmatpush1.bf16.msra.mxu0 %v1332
    %1360 = vmatprep.subr.bf16.mxu0 0
    %1361 = vmatpush1.bf16.msra.mxu0 %v1331
    %1362 = vmatprep.subr.bf16.mxu0 0
    %1363 = vmatpush2.bf16.msra.mxu0 0
    %1364 = vmatprep.subr.bf16.mxu0 0
    %1365 = vmatpush2.bf16.msra.mxu0 0
    %1366 = vmatprep.subr.bf16.mxu0 0
    %1367 = vmatpush2.bf16.msra.mxu0 0
    %1368 = vmatprep.subr.bf16.mxu0 0
    %1369 = vmatpush2.bf16.msra.mxu0 0
    %1370 = vmatprep.subr.bf16.mxu0 0
    %1371 = vmatpush2.bf16.msra.mxu0 0
    %1372 = vmatprep.subr.bf16.mxu0 0
    %1373 = vmatpush2.bf16.msra.mxu0 0
    %1374 = vmatprep.subr.bf16.mxu0 0
    %1375 = vmatpush2.bf16.msra.mxu0 0
    %1376 = vmatprep.subr.bf16.mxu0 0
    %1377 = vmatpush2.bf16.msra.mxu0 0
    %1378 = vmatprep.mubr.bf16.mxu0 0
    %1379 = vmatmul.mubr.bf16.gmra.mxu0 %v1341
    %v1380 = vpop.f32.mrf.mxu0
    %v1381 = vadd.f32 0.0, %v1380
    %v1382 = vpop.f32.mrf.mxu0
    %v1383 = vpop.f32.mrf.mxu0
    %v1384 = vadd.f32 0.0, %v1383
    %v1385 = vpop.f32.mrf.mxu0
    %1386 = vmatprep.mubr.bf16.mxu0 0
    %1387 = vmatmul.mubr.bf16.gmra.mxu0 %v1344
    %v1388 = vpop.f32.mrf.mxu0
    %v1389 = vadd.f32 0.0, %v1388
    %v1390 = vpop.f32.mrf.mxu0
    %v1391 = vpop.f32.mrf.mxu0
    %v1392 = vadd.f32 0.0, %v1391
    %v1393 = vpop.f32.mrf.mxu0
    %1394 = vdwg.mxu0
    %v1396 = vlaneseq
    %v1397 = vshrl.u32 %v1396, 7
    %v1398 = vsub.s32 0, %v1397
    %v1399 = vrot.slane %v1306, %v1398
    %v1401 = vadd.f32 %v1399, %v1381
    %v1402 = vadd.f32 %v1399, %v1384
    %v1403 = vadd.f32 %v1399, %v1389
    %v1404 = vadd.f32 %v1399, %v1392
    %v1405 = vshrl.u32 %v1302, 16
    %v1407 = vshll.u32 %v1302, 16
    %v1409 = vrot.slane %v1407, 1
    %v1410 = vor.u32 %v1405, %v1409
    %v1412 = vshll.u32 %v1303, 16
    %v1414 = vrot.slane %v1412, 1
    %v1415 = vsel %vm356, %v1410, %v1414
    %v1416 = vshrl.u32 %v1304, 16
    %v1418 = vshll.u32 %v1304, 16
    %v1420 = vrot.slane %v1418, 1
    %v1421 = vor.u32 %v1416, %v1420
    %v1423 = vshll.u32 %v1305, 16
    %v1425 = vrot.slane %v1423, 1
    %v1426 = vsel %vm356, %v1421, %v1425
    %s1427 = scalar_lea.vmem %s8, 32
    %v1428 = vld [vmem:[%s1427] sm:$0xf]
    %v1429 = vld [vmem:[%s1427 + $0x4] sm:$0xf]
    %v1430 = vld [vmem:[%s1427 + $0x8] sm:$0xf]
    %v1431 = vld [vmem:[%s1427 + $0xc] sm:$0xf]
    %v1432 = vld [vmem:[%s1427 + $0x10] sm:$0xf]
    %v1433 = vld [vmem:[%s1427 + $0x14] sm:$0xf]
    %v1434 = vld [vmem:[%s1427 + $0x18] sm:$0xf]
    %v1435 = vld [vmem:[%s1427 + $0x1c] sm:$0xf]
    %v1444 = vunpack.c.l.b16 %v1428
    %v1445 = vunpack.c.l.b16 %v1429
    %v1446 = vunpack.c.l.b16 %v1430
    %v1447 = vunpack.c.l.b16 %v1431
    %v1448 = vunpack.c.l.b16 %v1432
    %v1449 = vunpack.c.l.b16 %v1433
    %v1450 = vunpack.c.l.b16 %v1434
    %v1451 = vunpack.c.l.b16 %v1435
    %v1452 = vpack.c.b16 %v1445, %v1444
    %v1453 = vpack.c.b16 %v1447, %v1446
    %v1454 = vpack.c.b16 %v1449, %v1448
    %v1455 = vpack.c.b16 %v1451, %v1450
    %v1461 = vsel %vm1339, %v1415, 0
    %v1464 = vsel %vm1339, %v1426, 0
    %1466 = vmatprep.subr.bf16.mxu0 0
    %1467 = vmatpush1.bf16.msra.mxu0 0
    %1468 = vmatprep.subr.bf16.mxu0 0
    %1469 = vmatpush1.bf16.msra.mxu0 0
    %1470 = vmatprep.subr.bf16.mxu0 0
    %1471 = vmatpush1.bf16.msra.mxu0 0
    %1472 = vmatprep.subr.bf16.mxu0 0
    %1473 = vmatpush1.bf16.msra.mxu0 0
    %1474 = vmatprep.subr.bf16.mxu0 0
    %1475 = vmatpush1.bf16.msra.mxu0 %v1455
    %1476 = vmatprep.subr.bf16.mxu0 0
    %1477 = vmatpush1.bf16.msra.mxu0 %v1454
    %1478 = vmatprep.subr.bf16.mxu0 0
    %1479 = vmatpush1.bf16.msra.mxu0 %v1453
    %1480 = vmatprep.subr.bf16.mxu0 0
    %1481 = vmatpush1.bf16.msra.mxu0 %v1452
    %1482 = vmatprep.subr.bf16.mxu0 0
    %1483 = vmatpush2.bf16.msra.mxu0 0
    %1484 = vmatprep.subr.bf16.mxu0 0
    %1485 = vmatpush2.bf16.msra.mxu0 0
    %1486 = vmatprep.subr.bf16.mxu0 0
    %1487 = vmatpush2.bf16.msra.mxu0 0
    %1488 = vmatprep.subr.bf16.mxu0 0
    %1489 = vmatpush2.bf16.msra.mxu0 0
    %1490 = vmatprep.subr.bf16.mxu0 0
    %1491 = vmatpush2.bf16.msra.mxu0 0
    %1492 = vmatprep.subr.bf16.mxu0 0
    %1493 = vmatpush2.bf16.msra.mxu0 0
    %1494 = vmatprep.subr.bf16.mxu0 0
    %1495 = vmatpush2.bf16.msra.mxu0 0
    %1496 = vmatprep.subr.bf16.mxu0 0
    %1497 = vmatpush2.bf16.msra.mxu0 0
    %1498 = vmatprep.mubr.bf16.mxu0 0
    %1499 = vmatmul.mubr.bf16.gmra.mxu0 %v1461
    %v1500 = vpop.f32.mrf.mxu0
    %v1501 = vadd.f32 0.0, %v1500
    %v1502 = vpop.f32.mrf.mxu0
    %v1503 = vpop.f32.mrf.mxu0
    %v1504 = vadd.f32 0.0, %v1503
    %v1505 = vpop.f32.mrf.mxu0
    %1506 = vmatprep.mubr.bf16.mxu0 0
    %1507 = vmatmul.mubr.bf16.gmra.mxu0 %v1464
    %v1508 = vpop.f32.mrf.mxu0
    %v1509 = vadd.f32 0.0, %v1508
    %v1510 = vpop.f32.mrf.mxu0
    %v1511 = vpop.f32.mrf.mxu0
    %v1512 = vadd.f32 0.0, %v1511
    %v1513 = vpop.f32.mrf.mxu0
    %1514 = vdwg.mxu0
    %v1515 = vadd.f32 %v1401, %v1501
    %v1516 = vadd.f32 %v1402, %v1504
    %v1517 = vadd.f32 %v1403, %v1509
    %v1518 = vadd.f32 %v1404, %v1512
    %v1523 = vrot.slane %v1302, 1
    %v1524 = vrot.slane %v1303, 1
    %v1525 = vsel %vm479, %v1523, %v1524
    %v1526 = vrot.slane %v1304, 1
    %v1527 = vrot.slane %v1305, 1
    %v1528 = vsel %vm479, %v1526, %v1527
    %s1529 = scalar_lea.vmem %s8, 64
    %v1530 = vld [vmem:[%s1529] sm:$0xf]
    %v1531 = vld [vmem:[%s1529 + $0x4] sm:$0xf]
    %v1532 = vld [vmem:[%s1529 + $0x8] sm:$0xf]
    %v1533 = vld [vmem:[%s1529 + $0xc] sm:$0xf]
    %v1534 = vld [vmem:[%s1529 + $0x10] sm:$0xf]
    %v1535 = vld [vmem:[%s1529 + $0x14] sm:$0xf]
    %v1536 = vld [vmem:[%s1529 + $0x18] sm:$0xf]
    %v1537 = vld [vmem:[%s1529 + $0x1c] sm:$0xf]
    %v1546 = vunpack.c.l.b16 %v1530
    %v1547 = vunpack.c.l.b16 %v1531
    %v1548 = vunpack.c.l.b16 %v1532
    %v1549 = vunpack.c.l.b16 %v1533
    %v1550 = vunpack.c.l.b16 %v1534
    %v1551 = vunpack.c.l.b16 %v1535
    %v1552 = vunpack.c.l.b16 %v1536
    %v1553 = vunpack.c.l.b16 %v1537
    %v1554 = vpack.c.b16 %v1547, %v1546
    %v1555 = vpack.c.b16 %v1549, %v1548
    %v1556 = vpack.c.b16 %v1551, %v1550
    %v1557 = vpack.c.b16 %v1553, %v1552
    %v1563 = vsel %vm1339, %v1525, 0
    %v1566 = vsel %vm1339, %v1528, 0
    %1568 = vmatprep.subr.bf16.mxu0 0
    %1569 = vmatpush1.bf16.msra.mxu0 0
    %1570 = vmatprep.subr.bf16.mxu0 0
    %1571 = vmatpush1.bf16.msra.mxu0 0
    %1572 = vmatprep.subr.bf16.mxu0 0
    %1573 = vmatpush1.bf16.msra.mxu0 0
    %1574 = vmatprep.subr.bf16.mxu0 0
    %1575 = vmatpush1.bf16.msra.mxu0 0
    %1576 = vmatprep.subr.bf16.mxu0 0
    %1577 = vmatpush1.bf16.msra.mxu0 %v1557
    %1578 = vmatprep.subr.bf16.mxu0 0
    %1579 = vmatpush1.bf16.msra.mxu0 %v1556
    %1580 = vmatprep.subr.bf16.mxu0 0
    %1581 = vmatpush1.bf16.msra.mxu0 %v1555
    %1582 = vmatprep.subr.bf16.mxu0 0
    %1583 = vmatpush1.bf16.msra.mxu0 %v1554
    %1584 = vmatprep.subr.bf16.mxu0 0
    %1585 = vmatpush2.bf16.msra.mxu0 0
    %1586 = vmatprep.subr.bf16.mxu0 0
    %1587 = vmatpush2.bf16.msra.mxu0 0
    %1588 = vmatprep.subr.bf16.mxu0 0
    %1589 = vmatpush2.bf16.msra.mxu0 0
    %1590 = vmatprep.subr.bf16.mxu0 0
    %1591 = vmatpush2.bf16.msra.mxu0 0
    %1592 = vmatprep.subr.bf16.mxu0 0
    %1593 = vmatpush2.bf16.msra.mxu0 0
    %1594 = vmatprep.subr.bf16.mxu0 0
    %1595 = vmatpush2.bf16.msra.mxu0 0
    %1596 = vmatprep.subr.bf16.mxu0 0
    %1597 = vmatpush2.bf16.msra.mxu0 0
    %1598 = vmatprep.subr.bf16.mxu0 0
    %1599 = vmatpush2.bf16.msra.mxu0 0
    %1600 = vmatprep.mubr.bf16.mxu0 0
    %1601 = vmatmul.mubr.bf16.gmra.mxu0 %v1563
    %v1602 = vpop.f32.mrf.mxu0
    %v1603 = vadd.f32 0.0, %v1602
    %v1604 = vpop.f32.mrf.mxu0
    %v1605 = vpop.f32.mrf.mxu0
    %v1606 = vadd.f32 0.0, %v1605
    %v1607 = vpop.f32.mrf.mxu0
    %1608 = vmatprep.mubr.bf16.mxu0 0
    %1609 = vmatmul.mubr.bf16.gmra.mxu0 %v1566
    %v1610 = vpop.f32.mrf.mxu0
    %v1611 = vadd.f32 0.0, %v1610
    %v1612 = vpop.f32.mrf.mxu0
    %v1613 = vpop.f32.mrf.mxu0
    %v1614 = vadd.f32 0.0, %v1613
    %v1615 = vpop.f32.mrf.mxu0
    %1616 = vdwg.mxu0
    %v1617 = vadd.f32 %v1515, %v1603
    %v1618 = vadd.f32 %v1516, %v1606
    %v1619 = vadd.f32 %v1517, %v1611
    %v1620 = vadd.f32 %v1518, %v1614
    %vm1621 = vcmp.gt.f32.partialorder %v1617, 0.0
    %vm1622 = vcmp.gt.f32.partialorder %v1618, 0.0
    %vm1623 = vcmp.gt.f32.partialorder %v1619, 0.0
    %vm1624 = vcmp.gt.f32.partialorder %v1620, 0.0
    %v1625 = vmul.f32 %v581, %v1617
    %v1626 = vmul.f32 %v581, %v1618
    %v1627 = vmul.f32 %v581, %v1619
    %v1628 = vmul.f32 %v581, %v1620
    %v1629 = vsel %vm1621, %v1617, %v1625
    %v1630 = vsel %vm1622, %v1618, %v1626
    %v1631 = vsel %vm1623, %v1619, %v1627
    %v1632 = vsel %vm1624, %v1620, %v1628
    %v1633 = vpack.c.bf16 %v1630, %v1629
    %v1634 = vpack.c.bf16 %v1632, %v1631
    %v1635 = vld [vmem:[#allocation11] sm:$0x3]
    %v1636 = vld [vmem:[%s10] sm:$0xff]
    %v1637 = vld [vmem:[%s10 + $0x8] sm:$0xff]
    %v1638 = vld [vmem:[%s10 + $0x10] sm:$0xff]
    %v1639 = vld [vmem:[%s10 + $0x18] sm:$0xff]
    %v1640 = vld [vmem:[%s10 + $0x20] sm:$0xff]
    %v1641 = vld [vmem:[%s10 + $0x28] sm:$0xff]
    %v1642 = vld [vmem:[%s10 + $0x30] sm:$0xff]
    %v1643 = vld [vmem:[%s10 + $0x38] sm:$0xff]
    %v1644 = vld [vmem:[%s10 + $0x40] sm:$0xff]
    %v1645 = vld [vmem:[%s10 + $0x48] sm:$0xff]
    %v1646 = vld [vmem:[%s10 + $0x50] sm:$0xff]
    %v1647 = vld [vmem:[%s10 + $0x58] sm:$0xff]
    %v1648 = vld [vmem:[%s10 + $0x60] sm:$0xff]
    %v1649 = vld [vmem:[%s10 + $0x68] sm:$0xff]
    %v1650 = vld [vmem:[%s10 + $0x70] sm:$0xff]
    %v1651 = vld [vmem:[%s10 + $0x78] sm:$0xff]
    %v1668 = vunpack.c.l.b16 %v1636
    %v1669 = vunpack.c.h.b16 %v1636
    %v1670 = vunpack.c.l.b16 %v1637
    %v1671 = vunpack.c.h.b16 %v1637
    %v1672 = vunpack.c.l.b16 %v1638
    %v1673 = vunpack.c.h.b16 %v1638
    %v1674 = vunpack.c.l.b16 %v1639
    %v1675 = vunpack.c.h.b16 %v1639
    %v1676 = vunpack.c.l.b16 %v1640
    %v1677 = vunpack.c.h.b16 %v1640
    %v1678 = vunpack.c.l.b16 %v1641
    %v1679 = vunpack.c.h.b16 %v1641
    %v1680 = vunpack.c.l.b16 %v1642
    %v1681 = vunpack.c.h.b16 %v1642
    %v1682 = vunpack.c.l.b16 %v1643
    %v1683 = vunpack.c.h.b16 %v1643
    %v1684 = vunpack.c.l.b16 %v1644
    %v1685 = vunpack.c.h.b16 %v1644
    %v1686 = vunpack.c.l.b16 %v1645
    %v1687 = vunpack.c.h.b16 %v1645
    %v1688 = vunpack.c.l.b16 %v1646
    %v1689 = vunpack.c.h.b16 %v1646
    %v1690 = vunpack.c.l.b16 %v1647
    %v1691 = vunpack.c.h.b16 %v1647
    %v1692 = vunpack.c.l.b16 %v1648
    %v1693 = vunpack.c.h.b16 %v1648
    %v1694 = vunpack.c.l.b16 %v1649
    %v1695 = vunpack.c.h.b16 %v1649
    %v1696 = vunpack.c.l.b16 %v1650
    %v1697 = vunpack.c.h.b16 %v1650
    %v1698 = vunpack.c.l.b16 %v1651
    %v1699 = vunpack.c.h.b16 %v1651
    %v1700 = vpack.c.b16 %v1670, %v1668
    %v1701 = vpack.c.b16 %v1671, %v1669
    %v1702 = vpack.c.b16 %v1674, %v1672
    %v1703 = vpack.c.b16 %v1675, %v1673
    %v1704 = vpack.c.b16 %v1678, %v1676
    %v1705 = vpack.c.b16 %v1679, %v1677
    %v1706 = vpack.c.b16 %v1682, %v1680
    %v1707 = vpack.c.b16 %v1683, %v1681
    %v1708 = vpack.c.b16 %v1686, %v1684
    %v1709 = vpack.c.b16 %v1687, %v1685
    %v1710 = vpack.c.b16 %v1690, %v1688
    %v1711 = vpack.c.b16 %v1691, %v1689
    %v1712 = vpack.c.b16 %v1694, %v1692
    %v1713 = vpack.c.b16 %v1695, %v1693
    %v1714 = vpack.c.b16 %v1698, %v1696
    %v1715 = vpack.c.b16 %v1699, %v1697
    %1732 = vmatprep.subr.bf16.mxu0 %v1715
    %1733 = vmatpush1.bf16.msra.mxu0 %v1714
    %1734 = vmatprep.subr.bf16.mxu0 %v1713
    %1735 = vmatpush1.bf16.msra.mxu0 %v1712
    %1736 = vmatprep.subr.bf16.mxu0 %v1711
    %1737 = vmatpush1.bf16.msra.mxu0 %v1710
    %1738 = vmatprep.subr.bf16.mxu0 %v1709
    %1739 = vmatpush1.bf16.msra.mxu0 %v1708
    %1740 = vmatprep.subr.bf16.mxu0 %v1707
    %1741 = vmatpush1.bf16.msra.mxu0 %v1706
    %1742 = vmatprep.subr.bf16.mxu0 %v1705
    %1743 = vmatpush1.bf16.msra.mxu0 %v1704
    %1744 = vmatprep.subr.bf16.mxu0 %v1703
    %1745 = vmatpush1.bf16.msra.mxu0 %v1702
    %1746 = vmatprep.subr.bf16.mxu0 %v1701
    %1747 = vmatpush1.bf16.msra.mxu0 %v1700
    %1748 = vmatprep.subr.bf16.mxu0 0
    %1749 = vmatpush2.bf16.msra.mxu0 0
    %1750 = vmatprep.subr.bf16.mxu0 0
    %1751 = vmatpush2.bf16.msra.mxu0 0
    %1752 = vmatprep.subr.bf16.mxu0 0
    %1753 = vmatpush2.bf16.msra.mxu0 0
    %1754 = vmatprep.subr.bf16.mxu0 0
    %1755 = vmatpush2.bf16.msra.mxu0 0
    %1756 = vmatprep.subr.bf16.mxu0 0
    %1757 = vmatpush2.bf16.msra.mxu0 0
    %1758 = vmatprep.subr.bf16.mxu0 0
    %1759 = vmatpush2.bf16.msra.mxu0 0
    %1760 = vmatprep.subr.bf16.mxu0 0
    %1761 = vmatpush2.bf16.msra.mxu0 0
    %1762 = vmatprep.subr.bf16.mxu0 0
    %1763 = vmatpush2.bf16.msra.mxu0 0
    %1764 = vmatprep.mubr.bf16.mxu0 0
    %1765 = vmatmul.mubr.bf16.gmra.mxu0 %v1633
    %v1766 = vpop.f32.mrf.mxu0
    %v1767 = vadd.f32 0.0, %v1766
    %v1768 = vpop.f32.mrf.mxu0
    %v1769 = vadd.f32 0.0, %v1768
    %v1770 = vpop.f32.mrf.mxu0
    %v1771 = vadd.f32 0.0, %v1770
    %v1772 = vpop.f32.mrf.mxu0
    %v1773 = vadd.f32 0.0, %v1772
    %1774 = vmatprep.mubr.bf16.mxu0 0
    %1775 = vmatmul.mubr.bf16.gmra.mxu0 %v1634
    %v1776 = vpop.f32.mrf.mxu0
    %v1777 = vadd.f32 0.0, %v1776
    %v1778 = vpop.f32.mrf.mxu0
    %v1779 = vadd.f32 0.0, %v1778
    %v1780 = vpop.f32.mrf.mxu0
    %v1781 = vadd.f32 0.0, %v1780
    %v1782 = vpop.f32.mrf.mxu0
    %v1783 = vadd.f32 0.0, %v1782
    %1784 = vdwg.mxu0
    %v1786 = vlaneseq
    %v1787 = vshrl.u32 %v1786, 7
    %v1788 = vsub.s32 0, %v1787
    %v1789 = vrot.slane %v1635, %v1788
    %v1790 = vlaneseq
    %v1791 = vshrl.u32 %v1790, 7
    %v1792 = vsub.s32 1, %v1791
    %v1793 = vrot.slane %v1635, %v1792
    %v1796 = vadd.f32 %v1789, %v1767
    %v1797 = vadd.f32 %v1793, %v1769
    %v1798 = vadd.f32 %v1789, %v1771
    %v1799 = vadd.f32 %v1793, %v1773
    %v1800 = vadd.f32 %v1789, %v1777
    %v1801 = vadd.f32 %v1793, %v1779
    %v1802 = vadd.f32 %v1789, %v1781
    %v1803 = vadd.f32 %v1793, %v1783
    %v1805 = vshrl.u32 %v1633, 16
    %v1807 = vshll.u32 %v1633, 16
    %v1809 = vrot.slane %v1807, 1
    %v1810 = vor.u32 %v1805, %v1809
    %v1811 = vsel %vm356, %v1810, %v372
    %v1813 = vshrl.u32 %v1634, 16
    %v1815 = vshll.u32 %v1634, 16
    %v1817 = vrot.slane %v1815, 1
    %v1818 = vor.u32 %v1813, %v1817
    %v1819 = vsel %vm356, %v1818, %v372
    %s1822 = scalar_lea.vmem %s10, 128
    %v1823 = vld [vmem:[%s1822] sm:$0xff]
    %v1824 = vld [vmem:[%s1822 + $0x8] sm:$0xff]
    %v1825 = vld [vmem:[%s1822 + $0x10] sm:$0xff]
    %v1826 = vld [vmem:[%s1822 + $0x18] sm:$0xff]
    %v1827 = vld [vmem:[%s1822 + $0x20] sm:$0xff]
    %v1828 = vld [vmem:[%s1822 + $0x28] sm:$0xff]
    %v1829 = vld [vmem:[%s1822 + $0x30] sm:$0xff]
    %v1830 = vld [vmem:[%s1822 + $0x38] sm:$0xff]
    %v1831 = vld [vmem:[%s1822 + $0x40] sm:$0xff]
    %v1832 = vld [vmem:[%s1822 + $0x48] sm:$0xff]
    %v1833 = vld [vmem:[%s1822 + $0x50] sm:$0xff]
    %v1834 = vld [vmem:[%s1822 + $0x58] sm:$0xff]
    %v1835 = vld [vmem:[%s1822 + $0x60] sm:$0xff]
    %v1836 = vld [vmem:[%s1822 + $0x68] sm:$0xff]
    %v1837 = vld [vmem:[%s1822 + $0x70] sm:$0xff]
    %v1838 = vld [vmem:[%s1822 + $0x78] sm:$0xff]
    %v1855 = vunpack.c.l.b16 %v1823
    %v1856 = vunpack.c.h.b16 %v1823
    %v1857 = vunpack.c.l.b16 %v1824
    %v1858 = vunpack.c.h.b16 %v1824
    %v1859 = vunpack.c.l.b16 %v1825
    %v1860 = vunpack.c.h.b16 %v1825
    %v1861 = vunpack.c.l.b16 %v1826
    %v1862 = vunpack.c.h.b16 %v1826
    %v1863 = vunpack.c.l.b16 %v1827
    %v1864 = vunpack.c.h.b16 %v1827
    %v1865 = vunpack.c.l.b16 %v1828
    %v1866 = vunpack.c.h.b16 %v1828
    %v1867 = vunpack.c.l.b16 %v1829
    %v1868 = vunpack.c.h.b16 %v1829
    %v1869 = vunpack.c.l.b16 %v1830
    %v1870 = vunpack.c.h.b16 %v1830
    %v1871 = vunpack.c.l.b16 %v1831
    %v1872 = vunpack.c.h.b16 %v1831
    %v1873 = vunpack.c.l.b16 %v1832
    %v1874 = vunpack.c.h.b16 %v1832
    %v1875 = vunpack.c.l.b16 %v1833
    %v1876 = vunpack.c.h.b16 %v1833
    %v1877 = vunpack.c.l.b16 %v1834
    %v1878 = vunpack.c.h.b16 %v1834
    %v1879 = vunpack.c.l.b16 %v1835
    %v1880 = vunpack.c.h.b16 %v1835
    %v1881 = vunpack.c.l.b16 %v1836
    %v1882 = vunpack.c.h.b16 %v1836
    %v1883 = vunpack.c.l.b16 %v1837
    %v1884 = vunpack.c.h.b16 %v1837
    %v1885 = vunpack.c.l.b16 %v1838
    %v1886 = vunpack.c.h.b16 %v1838
    %v1887 = vpack.c.b16 %v1857, %v1855
    %v1888 = vpack.c.b16 %v1858, %v1856
    %v1889 = vpack.c.b16 %v1861, %v1859
    %v1890 = vpack.c.b16 %v1862, %v1860
    %v1891 = vpack.c.b16 %v1865, %v1863
    %v1892 = vpack.c.b16 %v1866, %v1864
    %v1893 = vpack.c.b16 %v1869, %v1867
    %v1894 = vpack.c.b16 %v1870, %v1868
    %v1895 = vpack.c.b16 %v1873, %v1871
    %v1896 = vpack.c.b16 %v1874, %v1872
    %v1897 = vpack.c.b16 %v1877, %v1875
    %v1898 = vpack.c.b16 %v1878, %v1876
    %v1899 = vpack.c.b16 %v1881, %v1879
    %v1900 = vpack.c.b16 %v1882, %v1880
    %v1901 = vpack.c.b16 %v1885, %v1883
    %v1902 = vpack.c.b16 %v1886, %v1884
    %1919 = vmatprep.subr.bf16.mxu0 %v1902
    %1920 = vmatpush1.bf16.msra.mxu0 %v1901
    %1921 = vmatprep.subr.bf16.mxu0 %v1900
    %1922 = vmatpush1.bf16.msra.mxu0 %v1899
    %1923 = vmatprep.subr.bf16.mxu0 %v1898
    %1924 = vmatpush1.bf16.msra.mxu0 %v1897
    %1925 = vmatprep.subr.bf16.mxu0 %v1896
    %1926 = vmatpush1.bf16.msra.mxu0 %v1895
    %1927 = vmatprep.subr.bf16.mxu0 %v1894
    %1928 = vmatpush1.bf16.msra.mxu0 %v1893
    %1929 = vmatprep.subr.bf16.mxu0 %v1892
    %1930 = vmatpush1.bf16.msra.mxu0 %v1891
    %1931 = vmatprep.subr.bf16.mxu0 %v1890
    %1932 = vmatpush1.bf16.msra.mxu0 %v1889
    %1933 = vmatprep.subr.bf16.mxu0 %v1888
    %1934 = vmatpush1.bf16.msra.mxu0 %v1887
    %1935 = vmatprep.subr.bf16.mxu0 0
    %1936 = vmatpush2.bf16.msra.mxu0 0
    %1937 = vmatprep.subr.bf16.mxu0 0
    %1938 = vmatpush2.bf16.msra.mxu0 0
    %1939 = vmatprep.subr.bf16.mxu0 0
    %1940 = vmatpush2.bf16.msra.mxu0 0
    %1941 = vmatprep.subr.bf16.mxu0 0
    %1942 = vmatpush2.bf16.msra.mxu0 0
    %1943 = vmatprep.subr.bf16.mxu0 0
    %1944 = vmatpush2.bf16.msra.mxu0 0
    %1945 = vmatprep.subr.bf16.mxu0 0
    %1946 = vmatpush2.bf16.msra.mxu0 0
    %1947 = vmatprep.subr.bf16.mxu0 0
    %1948 = vmatpush2.bf16.msra.mxu0 0
    %1949 = vmatprep.subr.bf16.mxu0 0
    %1950 = vmatpush2.bf16.msra.mxu0 0
    %1951 = vmatprep.mubr.bf16.mxu0 0
    %1952 = vmatmul.mubr.bf16.gmra.mxu0 %v1811
    %v1953 = vpop.f32.mrf.mxu0
    %v1954 = vadd.f32 0.0, %v1953
    %v1955 = vpop.f32.mrf.mxu0
    %v1956 = vadd.f32 0.0, %v1955
    %v1957 = vpop.f32.mrf.mxu0
    %v1958 = vadd.f32 0.0, %v1957
    %v1959 = vpop.f32.mrf.mxu0
    %v1960 = vadd.f32 0.0, %v1959
    %1961 = vmatprep.mubr.bf16.mxu0 0
    %1962 = vmatmul.mubr.bf16.gmra.mxu0 %v1819
    %v1963 = vpop.f32.mrf.mxu0
    %v1964 = vadd.f32 0.0, %v1963
    %v1965 = vpop.f32.mrf.mxu0
    %v1966 = vadd.f32 0.0, %v1965
    %v1967 = vpop.f32.mrf.mxu0
    %v1968 = vadd.f32 0.0, %v1967
    %v1969 = vpop.f32.mrf.mxu0
    %v1970 = vadd.f32 0.0, %v1969
    %1971 = vdwg.mxu0
    %v1972 = vadd.f32 %v1796, %v1954
    %v1973 = vadd.f32 %v1797, %v1956
    %v1974 = vadd.f32 %v1798, %v1958
    %v1975 = vadd.f32 %v1799, %v1960
    %v1976 = vadd.f32 %v1800, %v1964
    %v1977 = vadd.f32 %v1801, %v1966
    %v1978 = vadd.f32 %v1802, %v1968
    %v1979 = vadd.f32 %v1803, %v1970
    %v1982 = vrot.slane %v1633, 1
    %v1983 = vsel %vm479, %v1982, %v483
    %v1984 = vrot.slane %v1634, 1
    %v1985 = vsel %vm479, %v1984, %v483
    %s1988 = scalar_lea.vmem %s10, 256
    %v1989 = vld [vmem:[%s1988] sm:$0xff]
    %v1990 = vld [vmem:[%s1988 + $0x8] sm:$0xff]
    %v1991 = vld [vmem:[%s1988 + $0x10] sm:$0xff]
    %v1992 = vld [vmem:[%s1988 + $0x18] sm:$0xff]
    %v1993 = vld [vmem:[%s1988 + $0x20] sm:$0xff]
    %v1994 = vld [vmem:[%s1988 + $0x28] sm:$0xff]
    %v1995 = vld [vmem:[%s1988 + $0x30] sm:$0xff]
    %v1996 = vld [vmem:[%s1988 + $0x38] sm:$0xff]
    %v1997 = vld [vmem:[%s1988 + $0x40] sm:$0xff]
    %v1998 = vld [vmem:[%s1988 + $0x48] sm:$0xff]
    %v1999 = vld [vmem:[%s1988 + $0x50] sm:$0xff]
    %v2000 = vld [vmem:[%s1988 + $0x58] sm:$0xff]
    %v2001 = vld [vmem:[%s1988 + $0x60] sm:$0xff]
    %v2002 = vld [vmem:[%s1988 + $0x68] sm:$0xff]
    %v2003 = vld [vmem:[%s1988 + $0x70] sm:$0xff]
    %v2004 = vld [vmem:[%s1988 + $0x78] sm:$0xff]
    %v2021 = vunpack.c.l.b16 %v1989
    %v2022 = vunpack.c.h.b16 %v1989
    %v2023 = vunpack.c.l.b16 %v1990
    %v2024 = vunpack.c.h.b16 %v1990
    %v2025 = vunpack.c.l.b16 %v1991
    %v2026 = vunpack.c.h.b16 %v1991
    %v2027 = vunpack.c.l.b16 %v1992
    %v2028 = vunpack.c.h.b16 %v1992
    %v2029 = vunpack.c.l.b16 %v1993
    %v2030 = vunpack.c.h.b16 %v1993
    %v2031 = vunpack.c.l.b16 %v1994
    %v2032 = vunpack.c.h.b16 %v1994
    %v2033 = vunpack.c.l.b16 %v1995
    %v2034 = vunpack.c.h.b16 %v1995
    %v2035 = vunpack.c.l.b16 %v1996
    %v2036 = vunpack.c.h.b16 %v1996
    %v2037 = vunpack.c.l.b16 %v1997
    %v2038 = vunpack.c.h.b16 %v1997
    %v2039 = vunpack.c.l.b16 %v1998
    %v2040 = vunpack.c.h.b16 %v1998
    %v2041 = vunpack.c.l.b16 %v1999
    %v2042 = vunpack.c.h.b16 %v1999
    %v2043 = vunpack.c.l.b16 %v2000
    %v2044 = vunpack.c.h.b16 %v2000
    %v2045 = vunpack.c.l.b16 %v2001
    %v2046 = vunpack.c.h.b16 %v2001
    %v2047 = vunpack.c.l.b16 %v2002
    %v2048 = vunpack.c.h.b16 %v2002
    %v2049 = vunpack.c.l.b16 %v2003
    %v2050 = vunpack.c.h.b16 %v2003
    %v2051 = vunpack.c.l.b16 %v2004
    %v2052 = vunpack.c.h.b16 %v2004
    %v2053 = vpack.c.b16 %v2023, %v2021
    %v2054 = vpack.c.b16 %v2024, %v2022
    %v2055 = vpack.c.b16 %v2027, %v2025
    %v2056 = vpack.c.b16 %v2028, %v2026
    %v2057 = vpack.c.b16 %v2031, %v2029
    %v2058 = vpack.c.b16 %v2032, %v2030
    %v2059 = vpack.c.b16 %v2035, %v2033
    %v2060 = vpack.c.b16 %v2036, %v2034
    %v2061 = vpack.c.b16 %v2039, %v2037
    %v2062 = vpack.c.b16 %v2040, %v2038
    %v2063 = vpack.c.b16 %v2043, %v2041
    %v2064 = vpack.c.b16 %v2044, %v2042
    %v2065 = vpack.c.b16 %v2047, %v2045
    %v2066 = vpack.c.b16 %v2048, %v2046
    %v2067 = vpack.c.b16 %v2051, %v2049
    %v2068 = vpack.c.b16 %v2052, %v2050
    %2085 = vmatprep.subr.bf16.mxu0 %v2068
    %2086 = vmatpush1.bf16.msra.mxu0 %v2067
    %2087 = vmatprep.subr.bf16.mxu0 %v2066
    %2088 = vmatpush1.bf16.msra.mxu0 %v2065
    %2089 = vmatprep.subr.bf16.mxu0 %v2064
    %2090 = vmatpush1.bf16.msra.mxu0 %v2063
    %2091 = vmatprep.subr.bf16.mxu0 %v2062
    %2092 = vmatpush1.bf16.msra.mxu0 %v2061
    %2093 = vmatprep.subr.bf16.mxu0 %v2060
    %2094 = vmatpush1.bf16.msra.mxu0 %v2059
    %2095 = vmatprep.subr.bf16.mxu0 %v2058
    %2096 = vmatpush1.bf16.msra.mxu0 %v2057
    %2097 = vmatprep.subr.bf16.mxu0 %v2056
    %2098 = vmatpush1.bf16.msra.mxu0 %v2055
    %2099 = vmatprep.subr.bf16.mxu0 %v2054
    %2100 = vmatpush1.bf16.msra.mxu0 %v2053
    %2101 = vmatprep.subr.bf16.mxu0 0
    %2102 = vmatpush2.bf16.msra.mxu0 0
    %2103 = vmatprep.subr.bf16.mxu0 0
    %2104 = vmatpush2.bf16.msra.mxu0 0
    %2105 = vmatprep.subr.bf16.mxu0 0
    %2106 = vmatpush2.bf16.msra.mxu0 0
    %2107 = vmatprep.subr.bf16.mxu0 0
    %2108 = vmatpush2.bf16.msra.mxu0 0
    %2109 = vmatprep.subr.bf16.mxu0 0
    %2110 = vmatpush2.bf16.msra.mxu0 0
    %2111 = vmatprep.subr.bf16.mxu0 0
    %2112 = vmatpush2.bf16.msra.mxu0 0
    %2113 = vmatprep.subr.bf16.mxu0 0
    %2114 = vmatpush2.bf16.msra.mxu0 0
    %2115 = vmatprep.subr.bf16.mxu0 0
    %2116 = vmatpush2.bf16.msra.mxu0 0
    %2117 = vmatprep.mubr.bf16.mxu0 0
    %2118 = vmatmul.mubr.bf16.gmra.mxu0 %v1983
    %v2119 = vpop.f32.mrf.mxu0
    %v2120 = vadd.f32 0.0, %v2119
    %v2121 = vpop.f32.mrf.mxu0
    %v2122 = vadd.f32 0.0, %v2121
    %v2123 = vpop.f32.mrf.mxu0
    %v2124 = vadd.f32 0.0, %v2123
    %v2125 = vpop.f32.mrf.mxu0
    %v2126 = vadd.f32 0.0, %v2125
    %2127 = vmatprep.mubr.bf16.mxu0 0
    %2128 = vmatmul.mubr.bf16.gmra.mxu0 %v1985
    %v2129 = vpop.f32.mrf.mxu0
    %v2130 = vadd.f32 0.0, %v2129
    %v2131 = vpop.f32.mrf.mxu0
    %v2132 = vadd.f32 0.0, %v2131
    %v2133 = vpop.f32.mrf.mxu0
    %v2134 = vadd.f32 0.0, %v2133
    %v2135 = vpop.f32.mrf.mxu0
    %v2136 = vadd.f32 0.0, %v2135
    %2137 = vdwg.mxu0
    %v2138 = vadd.f32 %v1972, %v2120
    %v2139 = vadd.f32 %v1973, %v2122
    %v2140 = vadd.f32 %v1974, %v2124
    %v2141 = vadd.f32 %v1975, %v2126
    %v2142 = vadd.f32 %v1976, %v2130
    %v2143 = vadd.f32 %v1977, %v2132
    %v2144 = vadd.f32 %v1978, %v2134
    %v2145 = vadd.f32 %v1979, %v2136
    %vm2146 = vcmp.gt.f32.partialorder %v2138, 0.0
    %vm2147 = vcmp.gt.f32.partialorder %v2139, 0.0
    %vm2148 = vcmp.gt.f32.partialorder %v2140, 0.0
    %vm2149 = vcmp.gt.f32.partialorder %v2141, 0.0
    %vm2150 = vcmp.gt.f32.partialorder %v2142, 0.0
    %vm2151 = vcmp.gt.f32.partialorder %v2143, 0.0
    %vm2152 = vcmp.gt.f32.partialorder %v2144, 0.0
    %vm2153 = vcmp.gt.f32.partialorder %v2145, 0.0
    %v2154 = vmul.f32 %v581, %v2138
    %v2155 = vmul.f32 %v581, %v2139
    %v2156 = vmul.f32 %v581, %v2140
    %v2157 = vmul.f32 %v581, %v2141
    %v2158 = vmul.f32 %v581, %v2142
    %v2159 = vmul.f32 %v581, %v2143
    %v2160 = vmul.f32 %v581, %v2144
    %v2161 = vmul.f32 %v581, %v2145
    %v2162 = vsel %vm2146, %v2138, %v2154
    %v2163 = vsel %vm2147, %v2139, %v2155
    %v2164 = vsel %vm2148, %v2140, %v2156
    %v2165 = vsel %vm2149, %v2141, %v2157
    %v2166 = vsel %vm2150, %v2142, %v2158
    %v2167 = vsel %vm2151, %v2143, %v2159
    %v2168 = vsel %vm2152, %v2144, %v2160
    %v2169 = vsel %vm2153, %v2145, %v2161
    %v2170 = vpack.c.bf16 %v2164, %v2162
    %v2171 = vpack.c.bf16 %v2165, %v2163
    %v2172 = vpack.c.bf16 %v2168, %v2166
    %v2173 = vpack.c.bf16 %v2169, %v2167
    %vm2174 = vcmask 1046528
    %v2176 = vsel %vm2174, %v2170, 0
    %v2179 = vsel %vm2174, %v2171, 0
    %v2182 = vsel %vm2174, %v2172, 0
    %v2185 = vsel %vm2174, %v2173, 0
    %v2187 = vld [vmem:[#allocation14] sm:$0xf]
    %v2188 = vld [vmem:[#allocation12] sm:$0xff]
    %v2189 = vld [vmem:[#allocation12 + $0x8] sm:$0xff]
    %v2190 = vld [vmem:[#allocation12 + $0x10] sm:$0xff]
    %v2191 = vld [vmem:[#allocation12 + $0x18] sm:$0xff]
    %v2192 = vld [vmem:[#allocation12 + $0x20] sm:$0xff]
    %v2193 = vld [vmem:[#allocation12 + $0x28] sm:$0xff]
    %v2194 = vld [vmem:[#allocation12 + $0x30] sm:$0xff]
    %v2195 = vld [vmem:[#allocation12 + $0x38] sm:$0xff]
    %v2196 = vld [vmem:[#allocation12 + $0x40] sm:$0xff]
    %v2197 = vld [vmem:[#allocation12 + $0x48] sm:$0xff]
    %v2198 = vld [vmem:[#allocation12 + $0x50] sm:$0xff]
    %v2199 = vld [vmem:[#allocation12 + $0x58] sm:$0xff]
    %v2200 = vld [vmem:[#allocation12 + $0x60] sm:$0xff]
    %v2201 = vld [vmem:[#allocation12 + $0x68] sm:$0xff]
    %v2202 = vld [vmem:[#allocation12 + $0x70] sm:$0xff]
    %v2203 = vld [vmem:[#allocation12 + $0x78] sm:$0xff]
    %v2204 = vld [vmem:[#allocation12 + $0x80] sm:$0xff]
    %v2205 = vld [vmem:[#allocation12 + $0x88] sm:$0xff]
    %v2206 = vld [vmem:[#allocation12 + $0x90] sm:$0xff]
    %v2207 = vld [vmem:[#allocation12 + $0x98] sm:$0xff]
    %v2208 = vld [vmem:[#allocation12 + $0xa0] sm:$0xff]
    %v2209 = vld [vmem:[#allocation12 + $0xa8] sm:$0xff]
    %v2210 = vld [vmem:[#allocation12 + $0xb0] sm:$0xff]
    %v2211 = vld [vmem:[#allocation12 + $0xb8] sm:$0xff]
    %v2212 = vld [vmem:[#allocation12 + $0xc0] sm:$0xff]
    %v2213 = vld [vmem:[#allocation12 + $0xc8] sm:$0xff]
    %v2214 = vld [vmem:[#allocation12 + $0xd0] sm:$0xff]
    %v2215 = vld [vmem:[#allocation12 + $0xd8] sm:$0xff]
    %v2216 = vld [vmem:[#allocation12 + $0xe0] sm:$0xff]
    %v2217 = vld [vmem:[#allocation12 + $0xe8] sm:$0xff]
    %v2218 = vld [vmem:[#allocation12 + $0xf0] sm:$0xff]
    %v2219 = vld [vmem:[#allocation12 + $0xf8] sm:$0xff]
    %v2220 = vld [vmem:[#allocation12 + $0x100] sm:$0xff]
    %v2221 = vld [vmem:[#allocation12 + $0x108] sm:$0xff]
    %v2222 = vld [vmem:[#allocation12 + $0x110] sm:$0xff]
    %v2223 = vld [vmem:[#allocation12 + $0x118] sm:$0xff]
    %v2224 = vld [vmem:[#allocation12 + $0x120] sm:$0xff]
    %v2225 = vld [vmem:[#allocation12 + $0x128] sm:$0xff]
    %v2226 = vld [vmem:[#allocation12 + $0x130] sm:$0xff]
    %v2227 = vld [vmem:[#allocation12 + $0x138] sm:$0xff]
    %v2228 = vld [vmem:[#allocation12 + $0x140] sm:$0xff]
    %v2229 = vld [vmem:[#allocation12 + $0x148] sm:$0xff]
    %v2230 = vld [vmem:[#allocation12 + $0x150] sm:$0xff]
    %v2231 = vld [vmem:[#allocation12 + $0x158] sm:$0xff]
    %v2232 = vld [vmem:[#allocation12 + $0x160] sm:$0xff]
    %v2233 = vld [vmem:[#allocation12 + $0x168] sm:$0xff]
    %v2234 = vld [vmem:[#allocation12 + $0x170] sm:$0xff]
    %v2235 = vld [vmem:[#allocation12 + $0x178] sm:$0xff]
    %v2236 = vld [vmem:[#allocation12 + $0x180] sm:$0xff]
    %v2237 = vld [vmem:[#allocation12 + $0x188] sm:$0xff]
    %v2238 = vld [vmem:[#allocation12 + $0x190] sm:$0xff]
    %v2239 = vld [vmem:[#allocation12 + $0x198] sm:$0xff]
    %v2240 = vld [vmem:[#allocation12 + $0x1a0] sm:$0xff]
    %v2241 = vld [vmem:[#allocation12 + $0x1a8] sm:$0xff]
    %v2242 = vld [vmem:[#allocation12 + $0x1b0] sm:$0xff]
    %v2243 = vld [vmem:[#allocation12 + $0x1b8] sm:$0xff]
    %v2244 = vld [vmem:[#allocation12 + $0x1c0] sm:$0xff]
    %v2245 = vld [vmem:[#allocation12 + $0x1c8] sm:$0xff]
    %v2246 = vld [vmem:[#allocation12 + $0x1d0] sm:$0xff]
    %v2247 = vld [vmem:[#allocation12 + $0x1d8] sm:$0xff]
    %v2248 = vld [vmem:[#allocation12 + $0x1e0] sm:$0xff]
    %v2249 = vld [vmem:[#allocation12 + $0x1e8] sm:$0xff]
    %v2250 = vld [vmem:[#allocation12 + $0x1f0] sm:$0xff]
    %v2251 = vld [vmem:[#allocation12 + $0x1f8] sm:$0xff]
    %v2316 = vunpack.c.l.b16 %v2188
    %v2317 = vunpack.c.h.b16 %v2188
    %v2318 = vunpack.c.l.b16 %v2189
    %v2319 = vunpack.c.h.b16 %v2189
    %v2320 = vunpack.c.l.b16 %v2190
    %v2321 = vunpack.c.h.b16 %v2190
    %v2322 = vunpack.c.l.b16 %v2191
    %v2323 = vunpack.c.h.b16 %v2191
    %v2324 = vunpack.c.l.b16 %v2192
    %v2325 = vunpack.c.h.b16 %v2192
    %v2326 = vunpack.c.l.b16 %v2193
    %v2327 = vunpack.c.h.b16 %v2193
    %v2328 = vunpack.c.l.b16 %v2194
    %v2329 = vunpack.c.h.b16 %v2194
    %v2330 = vunpack.c.l.b16 %v2195
    %v2331 = vunpack.c.h.b16 %v2195
    %v2332 = vunpack.c.l.b16 %v2196
    %v2333 = vunpack.c.h.b16 %v2196
    %v2334 = vunpack.c.l.b16 %v2197
    %v2335 = vunpack.c.h.b16 %v2197
    %v2336 = vunpack.c.l.b16 %v2198
    %v2337 = vunpack.c.h.b16 %v2198
    %v2338 = vunpack.c.l.b16 %v2199
    %v2339 = vunpack.c.h.b16 %v2199
    %v2340 = vunpack.c.l.b16 %v2200
    %v2341 = vunpack.c.h.b16 %v2200
    %v2342 = vunpack.c.l.b16 %v2201
    %v2343 = vunpack.c.h.b16 %v2201
    %v2344 = vunpack.c.l.b16 %v2202
    %v2345 = vunpack.c.h.b16 %v2202
    %v2346 = vunpack.c.l.b16 %v2203
    %v2347 = vunpack.c.h.b16 %v2203
    %v2348 = vunpack.c.l.b16 %v2204
    %v2349 = vunpack.c.h.b16 %v2204
    %v2350 = vunpack.c.l.b16 %v2205
    %v2351 = vunpack.c.h.b16 %v2205
    %v2352 = vunpack.c.l.b16 %v2206
    %v2353 = vunpack.c.h.b16 %v2206
    %v2354 = vunpack.c.l.b16 %v2207
    %v2355 = vunpack.c.h.b16 %v2207
    %v2356 = vunpack.c.l.b16 %v2208
    %v2357 = vunpack.c.h.b16 %v2208
    %v2358 = vunpack.c.l.b16 %v2209
    %v2359 = vunpack.c.h.b16 %v2209
    %v2360 = vunpack.c.l.b16 %v2210
    %v2361 = vunpack.c.h.b16 %v2210
    %v2362 = vunpack.c.l.b16 %v2211
    %v2363 = vunpack.c.h.b16 %v2211
    %v2364 = vunpack.c.l.b16 %v2212
    %v2365 = vunpack.c.h.b16 %v2212
    %v2366 = vunpack.c.l.b16 %v2213
    %v2367 = vunpack.c.h.b16 %v2213
    %v2368 = vunpack.c.l.b16 %v2214
    %v2369 = vunpack.c.h.b16 %v2214
    %v2370 = vunpack.c.l.b16 %v2215
    %v2371 = vunpack.c.h.b16 %v2215
    %v2372 = vunpack.c.l.b16 %v2216
    %v2373 = vunpack.c.h.b16 %v2216
    %v2374 = vunpack.c.l.b16 %v2217
    %v2375 = vunpack.c.h.b16 %v2217
    %v2376 = vunpack.c.l.b16 %v2218
    %v2377 = vunpack.c.h.b16 %v2218
    %v2378 = vunpack.c.l.b16 %v2219
    %v2379 = vunpack.c.h.b16 %v2219
    %v2380 = vunpack.c.l.b16 %v2220
    %v2381 = vunpack.c.h.b16 %v2220
    %v2382 = vunpack.c.l.b16 %v2221
    %v2383 = vunpack.c.h.b16 %v2221
    %v2384 = vunpack.c.l.b16 %v2222
    %v2385 = vunpack.c.h.b16 %v2222
    %v2386 = vunpack.c.l.b16 %v2223
    %v2387 = vunpack.c.h.b16 %v2223
    %v2388 = vunpack.c.l.b16 %v2224
    %v2389 = vunpack.c.h.b16 %v2224
    %v2390 = vunpack.c.l.b16 %v2225
    %v2391 = vunpack.c.h.b16 %v2225
    %v2392 = vunpack.c.l.b16 %v2226
    %v2393 = vunpack.c.h.b16 %v2226
    %v2394 = vunpack.c.l.b16 %v2227
    %v2395 = vunpack.c.h.b16 %v2227
    %v2396 = vunpack.c.l.b16 %v2228
    %v2397 = vunpack.c.h.b16 %v2228
    %v2398 = vunpack.c.l.b16 %v2229
    %v2399 = vunpack.c.h.b16 %v2229
    %v2400 = vunpack.c.l.b16 %v2230
    %v2401 = vunpack.c.h.b16 %v2230
    %v2402 = vunpack.c.l.b16 %v2231
    %v2403 = vunpack.c.h.b16 %v2231
    %v2404 = vunpack.c.l.b16 %v2232
    %v2405 = vunpack.c.h.b16 %v2232
    %v2406 = vunpack.c.l.b16 %v2233
    %v2407 = vunpack.c.h.b16 %v2233
    %v2408 = vunpack.c.l.b16 %v2234
    %v2409 = vunpack.c.h.b16 %v2234
    %v2410 = vunpack.c.l.b16 %v2235
    %v2411 = vunpack.c.h.b16 %v2235
    %v2412 = vunpack.c.l.b16 %v2236
    %v2413 = vunpack.c.h.b16 %v2236
    %v2414 = vunpack.c.l.b16 %v2237
    %v2415 = vunpack.c.h.b16 %v2237
    %v2416 = vunpack.c.l.b16 %v2238
    %v2417 = vunpack.c.h.b16 %v2238
    %v2418 = vunpack.c.l.b16 %v2239
    %v2419 = vunpack.c.h.b16 %v2239
    %v2420 = vunpack.c.l.b16 %v2240
    %v2421 = vunpack.c.h.b16 %v2240
    %v2422 = vunpack.c.l.b16 %v2241
    %v2423 = vunpack.c.h.b16 %v2241
    %v2424 = vunpack.c.l.b16 %v2242
    %v2425 = vunpack.c.h.b16 %v2242
    %v2426 = vunpack.c.l.b16 %v2243
    %v2427 = vunpack.c.h.b16 %v2243
    %v2428 = vunpack.c.l.b16 %v2244
    %v2429 = vunpack.c.h.b16 %v2244
    %v2430 = vunpack.c.l.b16 %v2245
    %v2431 = vunpack.c.h.b16 %v2245
    %v2432 = vunpack.c.l.b16 %v2246
    %v2433 = vunpack.c.h.b16 %v2246
    %v2434 = vunpack.c.l.b16 %v2247
    %v2435 = vunpack.c.h.b16 %v2247
    %v2436 = vunpack.c.l.b16 %v2248
    %v2437 = vunpack.c.h.b16 %v2248
    %v2438 = vunpack.c.l.b16 %v2249
    %v2439 = vunpack.c.h.b16 %v2249
    %v2440 = vunpack.c.l.b16 %v2250
    %v2441 = vunpack.c.h.b16 %v2250
    %v2442 = vunpack.c.l.b16 %v2251
    %v2443 = vunpack.c.h.b16 %v2251
    %v2444 = vpack.c.b16 %v2320, %v2316
    %v2445 = vpack.c.b16 %v2321, %v2317
    %v2446 = vpack.c.b16 %v2322, %v2318
    %v2447 = vpack.c.b16 %v2323, %v2319
    %v2448 = vpack.c.b16 %v2328, %v2324
    %v2449 = vpack.c.b16 %v2329, %v2325
    %v2450 = vpack.c.b16 %v2330, %v2326
    %v2451 = vpack.c.b16 %v2331, %v2327
    %v2452 = vpack.c.b16 %v2336, %v2332
    %v2453 = vpack.c.b16 %v2337, %v2333
    %v2454 = vpack.c.b16 %v2338, %v2334
    %v2455 = vpack.c.b16 %v2339, %v2335
    %v2456 = vpack.c.b16 %v2344, %v2340
    %v2457 = vpack.c.b16 %v2345, %v2341
    %v2458 = vpack.c.b16 %v2346, %v2342
    %v2459 = vpack.c.b16 %v2347, %v2343
    %v2460 = vpack.c.b16 %v2352, %v2348
    %v2461 = vpack.c.b16 %v2353, %v2349
    %v2462 = vpack.c.b16 %v2354, %v2350
    %v2463 = vpack.c.b16 %v2355, %v2351
    %v2464 = vpack.c.b16 %v2360, %v2356
    %v2465 = vpack.c.b16 %v2361, %v2357
    %v2466 = vpack.c.b16 %v2362, %v2358
    %v2467 = vpack.c.b16 %v2363, %v2359
    %v2468 = vpack.c.b16 %v2368, %v2364
    %v2469 = vpack.c.b16 %v2369, %v2365
    %v2470 = vpack.c.b16 %v2370, %v2366
    %v2471 = vpack.c.b16 %v2371, %v2367
    %v2472 = vpack.c.b16 %v2376, %v2372
    %v2473 = vpack.c.b16 %v2377, %v2373
    %v2474 = vpack.c.b16 %v2378, %v2374
    %v2475 = vpack.c.b16 %v2379, %v2375
    %v2476 = vpack.c.b16 %v2384, %v2380
    %v2477 = vpack.c.b16 %v2385, %v2381
    %v2478 = vpack.c.b16 %v2386, %v2382
    %v2479 = vpack.c.b16 %v2387, %v2383
    %v2480 = vpack.c.b16 %v2392, %v2388
    %v2481 = vpack.c.b16 %v2393, %v2389
    %v2482 = vpack.c.b16 %v2394, %v2390
    %v2483 = vpack.c.b16 %v2395, %v2391
    %v2484 = vpack.c.b16 %v2400, %v2396
    %v2485 = vpack.c.b16 %v2401, %v2397
    %v2486 = vpack.c.b16 %v2402, %v2398
    %v2487 = vpack.c.b16 %v2403, %v2399
    %v2488 = vpack.c.b16 %v2408, %v2404
    %v2489 = vpack.c.b16 %v2409, %v2405
    %v2490 = vpack.c.b16 %v2410, %v2406
    %v2491 = vpack.c.b16 %v2411, %v2407
    %v2492 = vpack.c.b16 %v2416, %v2412
    %v2493 = vpack.c.b16 %v2417, %v2413
    %v2494 = vpack.c.b16 %v2418, %v2414
    %v2495 = vpack.c.b16 %v2419, %v2415
    %v2496 = vpack.c.b16 %v2424, %v2420
    %v2497 = vpack.c.b16 %v2425, %v2421
    %v2498 = vpack.c.b16 %v2426, %v2422
    %v2499 = vpack.c.b16 %v2427, %v2423
    %v2500 = vpack.c.b16 %v2432, %v2428
    %v2501 = vpack.c.b16 %v2433, %v2429
    %v2502 = vpack.c.b16 %v2434, %v2430
    %v2503 = vpack.c.b16 %v2435, %v2431
    %v2504 = vpack.c.b16 %v2440, %v2436
    %v2505 = vpack.c.b16 %v2441, %v2437
    %v2506 = vpack.c.b16 %v2442, %v2438
    %v2507 = vpack.c.b16 %v2443, %v2439
    %2572 = vmatprep.subr.bf16.mxu0 %v2473
    %2573 = vmatpush1.bf16.msra.mxu0 %v2472
    %2574 = vmatprep.subr.bf16.mxu0 %v2469
    %2575 = vmatpush1.bf16.msra.mxu0 %v2468
    %2576 = vmatprep.subr.bf16.mxu0 %v2465
    %2577 = vmatpush1.bf16.msra.mxu0 %v2464
    %2578 = vmatprep.subr.bf16.mxu0 %v2461
    %2579 = vmatpush1.bf16.msra.mxu0 %v2460
    %2580 = vmatprep.subr.bf16.mxu0 %v2457
    %2581 = vmatpush1.bf16.msra.mxu0 %v2456
    %2582 = vmatprep.subr.bf16.mxu0 %v2453
    %2583 = vmatpush1.bf16.msra.mxu0 %v2452
    %2584 = vmatprep.subr.bf16.mxu0 %v2449
    %2585 = vmatpush1.bf16.msra.mxu0 %v2448
    %2586 = vmatprep.subr.bf16.mxu0 %v2445
    %2587 = vmatpush1.bf16.msra.mxu0 %v2444
    %2588 = vmatprep.subr.bf16.mxu0 %v2505
    %2589 = vmatpush2.bf16.msra.mxu0 %v2504
    %2590 = vmatprep.subr.bf16.mxu0 %v2501
    %2591 = vmatpush2.bf16.msra.mxu0 %v2500
    %2592 = vmatprep.subr.bf16.mxu0 %v2497
    %2593 = vmatpush2.bf16.msra.mxu0 %v2496
    %2594 = vmatprep.subr.bf16.mxu0 %v2493
    %2595 = vmatpush2.bf16.msra.mxu0 %v2492
    %2596 = vmatprep.subr.bf16.mxu0 %v2489
    %2597 = vmatpush2.bf16.msra.mxu0 %v2488
    %2598 = vmatprep.subr.bf16.mxu0 %v2485
    %2599 = vmatpush2.bf16.msra.mxu0 %v2484
    %2600 = vmatprep.subr.bf16.mxu0 %v2481
    %2601 = vmatpush2.bf16.msra.mxu0 %v2480
    %2602 = vmatprep.subr.bf16.mxu0 %v2477
    %2603 = vmatpush2.bf16.msra.mxu0 %v2476
    %2604 = vmatprep.mubr.bf16.mxu0 %v2179
    %2605 = vmatmul.mubr.bf16.gmra.mxu0 %v2176
    %v2606 = vpop.f32.mrf.mxu0
    %v2607 = vadd.f32 0.0, %v2606
    %v2608 = vpop.f32.mrf.mxu0
    %v2609 = vadd.f32 0.0, %v2608
    %v2610 = vpop.f32.mrf.mxu0
    %v2611 = vadd.f32 0.0, %v2610
    %v2612 = vpop.f32.mrf.mxu0
    %v2613 = vadd.f32 0.0, %v2612
    %2614 = vmatprep.mubr.bf16.mxu0 %v2185
    %2615 = vmatmul.mubr.bf16.gmra.mxu0 %v2182
    %v2616 = vpop.f32.mrf.mxu0
    %v2617 = vadd.f32 0.0, %v2616
    %v2618 = vpop.f32.mrf.mxu0
    %v2619 = vadd.f32 0.0, %v2618
    %v2620 = vpop.f32.mrf.mxu0
    %v2621 = vadd.f32 0.0, %v2620
    %v2622 = vpop.f32.mrf.mxu0
    %v2623 = vadd.f32 0.0, %v2622
    %2624 = vdwg.mxu0
    %2625 = vmatprep.subr.bf16.mxu0 %v2475
    %2626 = vmatpush1.bf16.msra.mxu0 %v2474
    %2627 = vmatprep.subr.bf16.mxu0 %v2471
    %2628 = vmatpush1.bf16.msra.mxu0 %v2470
    %2629 = vmatprep.subr.bf16.mxu0 %v2467
    %2630 = vmatpush1.bf16.msra.mxu0 %v2466
    %2631 = vmatprep.subr.bf16.mxu0 %v2463
    %2632 = vmatpush1.bf16.msra.mxu0 %v2462
    %2633 = vmatprep.subr.bf16.mxu0 %v2459
    %2634 = vmatpush1.bf16.msra.mxu0 %v2458
    %2635 = vmatprep.subr.bf16.mxu0 %v2455
    %2636 = vmatpush1.bf16.msra.mxu0 %v2454
    %2637 = vmatprep.subr.bf16.mxu0 %v2451
    %2638 = vmatpush1.bf16.msra.mxu0 %v2450
    %2639 = vmatprep.subr.bf16.mxu0 %v2447
    %2640 = vmatpush1.bf16.msra.mxu0 %v2446
    %2641 = vmatprep.subr.bf16.mxu0 %v2507
    %2642 = vmatpush2.bf16.msra.mxu0 %v2506
    %2643 = vmatprep.subr.bf16.mxu0 %v2503
    %2644 = vmatpush2.bf16.msra.mxu0 %v2502
    %2645 = vmatprep.subr.bf16.mxu0 %v2499
    %2646 = vmatpush2.bf16.msra.mxu0 %v2498
    %2647 = vmatprep.subr.bf16.mxu0 %v2495
    %2648 = vmatpush2.bf16.msra.mxu0 %v2494
    %2649 = vmatprep.subr.bf16.mxu0 %v2491
    %2650 = vmatpush2.bf16.msra.mxu0 %v2490
    %2651 = vmatprep.subr.bf16.mxu0 %v2487
    %2652 = vmatpush2.bf16.msra.mxu0 %v2486
    %2653 = vmatprep.subr.bf16.mxu0 %v2483
    %2654 = vmatpush2.bf16.msra.mxu0 %v2482
    %2655 = vmatprep.subr.bf16.mxu0 %v2479
    %2656 = vmatpush2.bf16.msra.mxu0 %v2478
    %2657 = vmatprep.mubr.bf16.mxu0 %v2179
    %2658 = vmatmul.mubr.bf16.gmra.mxu0 %v2176
    %v2659 = vpop.f32.mrf.mxu0
    %v2660 = vadd.f32 0.0, %v2659
    %v2661 = vpop.f32.mrf.mxu0
    %v2662 = vadd.f32 0.0, %v2661
    %v2663 = vpop.f32.mrf.mxu0
    %v2664 = vadd.f32 0.0, %v2663
    %v2665 = vpop.f32.mrf.mxu0
    %v2666 = vadd.f32 0.0, %v2665
    %2667 = vmatprep.mubr.bf16.mxu0 %v2185
    %2668 = vmatmul.mubr.bf16.gmra.mxu0 %v2182
    %v2669 = vpop.f32.mrf.mxu0
    %v2670 = vadd.f32 0.0, %v2669
    %v2671 = vpop.f32.mrf.mxu0
    %v2672 = vadd.f32 0.0, %v2671
    %v2673 = vpop.f32.mrf.mxu0
    %v2674 = vadd.f32 0.0, %v2673
    %v2675 = vpop.f32.mrf.mxu0
    %v2676 = vadd.f32 0.0, %v2675
    %2677 = vdwg.mxu0
    %v2679 = vlaneseq
    %v2680 = vshrl.u32 %v2679, 7
    %v2681 = vsub.s32 0, %v2680
    %v2682 = vrot.slane %v2187, %v2681
    %v2683 = vlaneseq
    %v2684 = vshrl.u32 %v2683, 7
    %v2685 = vsub.s32 1, %v2684
    %v2686 = vrot.slane %v2187, %v2685
    %v2687 = vlaneseq
    %v2688 = vshrl.u32 %v2687, 7
    %v2689 = vsub.s32 2, %v2688
    %v2690 = vrot.slane %v2187, %v2689
    %v2691 = vlaneseq
    %v2692 = vshrl.u32 %v2691, 7
    %v2693 = vsub.s32 3, %v2692
    %v2694 = vrot.slane %v2187, %v2693
    %v2699 = vadd.f32 %v2682, %v2607
    %v2700 = vadd.f32 %v2686, %v2609
    %v2701 = vadd.f32 %v2690, %v2660
    %v2702 = vadd.f32 %v2694, %v2662
    %v2703 = vadd.f32 %v2682, %v2611
    %v2704 = vadd.f32 %v2686, %v2613
    %v2705 = vadd.f32 %v2690, %v2664
    %v2706 = vadd.f32 %v2694, %v2666
    %v2707 = vadd.f32 %v2682, %v2617
    %v2708 = vadd.f32 %v2686, %v2619
    %v2709 = vadd.f32 %v2690, %v2670
    %v2710 = vadd.f32 %v2694, %v2672
    %v2711 = vadd.f32 %v2682, %v2621
    %v2712 = vadd.f32 %v2686, %v2623
    %v2713 = vadd.f32 %v2690, %v2674
    %v2714 = vadd.f32 %v2694, %v2676
    %v2715 = vshrl.u32 %v2176, 16
    %v2717 = vshll.u32 %v2176, 16
    %v2719 = vrot.slane %v2717, 1
    %v2720 = vor.u32 %v2715, %v2719
    %v2721 = vsel %vm356, %v2720, %v372
    %v2722 = vshrl.u32 %v2179, 16
    %v2724 = vshll.u32 %v2179, 16
    %v2726 = vrot.slane %v2724, 1
    %v2727 = vor.u32 %v2722, %v2726
    %v2728 = vsel %vm356, %v2727, %v372
    %v2729 = vshrl.u32 %v2182, 16
    %v2731 = vshll.u32 %v2182, 16
    %v2733 = vrot.slane %v2731, 1
    %v2734 = vor.u32 %v2729, %v2733
    %v2735 = vsel %vm356, %v2734, %v372
    %v2736 = vshrl.u32 %v2185, 16
    %v2738 = vshll.u32 %v2185, 16
    %v2740 = vrot.slane %v2738, 1
    %v2741 = vor.u32 %v2736, %v2740
    %v2742 = vsel %vm356, %v2741, %v372
    %s2747 = scalar_lea.vmem [#allocation12], 512
    %v2748 = vld [vmem:[%s2747] sm:$0xff]
    %v2749 = vld [vmem:[%s2747 + $0x8] sm:$0xff]
    %v2750 = vld [vmem:[%s2747 + $0x10] sm:$0xff]
    %v2751 = vld [vmem:[%s2747 + $0x18] sm:$0xff]
    %v2752 = vld [vmem:[%s2747 + $0x20] sm:$0xff]
    %v2753 = vld [vmem:[%s2747 + $0x28] sm:$0xff]
    %v2754 = vld [vmem:[%s2747 + $0x30] sm:$0xff]
    %v2755 = vld [vmem:[%s2747 + $0x38] sm:$0xff]
    %v2756 = vld [vmem:[%s2747 + $0x40] sm:$0xff]
    %v2757 = vld [vmem:[%s2747 + $0x48] sm:$0xff]
    %v2758 = vld [vmem:[%s2747 + $0x50] sm:$0xff]
    %v2759 = vld [vmem:[%s2747 + $0x58] sm:$0xff]
    %v2760 = vld [vmem:[%s2747 + $0x60] sm:$0xff]
    %v2761 = vld [vmem:[%s2747 + $0x68] sm:$0xff]
    %v2762 = vld [vmem:[%s2747 + $0x70] sm:$0xff]
    %v2763 = vld [vmem:[%s2747 + $0x78] sm:$0xff]
    %v2764 = vld [vmem:[%s2747 + $0x80] sm:$0xff]
    %v2765 = vld [vmem:[%s2747 + $0x88] sm:$0xff]
    %v2766 = vld [vmem:[%s2747 + $0x90] sm:$0xff]
    %v2767 = vld [vmem:[%s2747 + $0x98] sm:$0xff]
    %v2768 = vld [vmem:[%s2747 + $0xa0] sm:$0xff]
    %v2769 = vld [vmem:[%s2747 + $0xa8] sm:$0xff]
    %v2770 = vld [vmem:[%s2747 + $0xb0] sm:$0xff]
    %v2771 = vld [vmem:[%s2747 + $0xb8] sm:$0xff]
    %v2772 = vld [vmem:[%s2747 + $0xc0] sm:$0xff]
    %v2773 = vld [vmem:[%s2747 + $0xc8] sm:$0xff]
    %v2774 = vld [vmem:[%s2747 + $0xd0] sm:$0xff]
    %v2775 = vld [vmem:[%s2747 + $0xd8] sm:$0xff]
    %v2776 = vld [vmem:[%s2747 + $0xe0] sm:$0xff]
    %v2777 = vld [vmem:[%s2747 + $0xe8] sm:$0xff]
    %v2778 = vld [vmem:[%s2747 + $0xf0] sm:$0xff]
    %v2779 = vld [vmem:[%s2747 + $0xf8] sm:$0xff]
    %v2780 = vld [vmem:[%s2747 + $0x100] sm:$0xff]
    %v2781 = vld [vmem:[%s2747 + $0x108] sm:$0xff]
    %v2782 = vld [vmem:[%s2747 + $0x110] sm:$0xff]
    %v2783 = vld [vmem:[%s2747 + $0x118] sm:$0xff]
    %v2784 = vld [vmem:[%s2747 + $0x120] sm:$0xff]
    %v2785 = vld [vmem:[%s2747 + $0x128] sm:$0xff]
    %v2786 = vld [vmem:[%s2747 + $0x130] sm:$0xff]
    %v2787 = vld [vmem:[%s2747 + $0x138] sm:$0xff]
    %v2788 = vld [vmem:[%s2747 + $0x140] sm:$0xff]
    %v2789 = vld [vmem:[%s2747 + $0x148] sm:$0xff]
    %v2790 = vld [vmem:[%s2747 + $0x150] sm:$0xff]
    %v2791 = vld [vmem:[%s2747 + $0x158] sm:$0xff]
    %v2792 = vld [vmem:[%s2747 + $0x160] sm:$0xff]
    %v2793 = vld [vmem:[%s2747 + $0x168] sm:$0xff]
    %v2794 = vld [vmem:[%s2747 + $0x170] sm:$0xff]
    %v2795 = vld [vmem:[%s2747 + $0x178] sm:$0xff]
    %v2796 = vld [vmem:[%s2747 + $0x180] sm:$0xff]
    %v2797 = vld [vmem:[%s2747 + $0x188] sm:$0xff]
    %v2798 = vld [vmem:[%s2747 + $0x190] sm:$0xff]
    %v2799 = vld [vmem:[%s2747 + $0x198] sm:$0xff]
    %v2800 = vld [vmem:[%s2747 + $0x1a0] sm:$0xff]
    %v2801 = vld [vmem:[%s2747 + $0x1a8] sm:$0xff]
    %v2802 = vld [vmem:[%s2747 + $0x1b0] sm:$0xff]
    %v2803 = vld [vmem:[%s2747 + $0x1b8] sm:$0xff]
    %v2804 = vld [vmem:[%s2747 + $0x1c0] sm:$0xff]
    %v2805 = vld [vmem:[%s2747 + $0x1c8] sm:$0xff]
    %v2806 = vld [vmem:[%s2747 + $0x1d0] sm:$0xff]
    %v2807 = vld [vmem:[%s2747 + $0x1d8] sm:$0xff]
    %v2808 = vld [vmem:[%s2747 + $0x1e0] sm:$0xff]
    %v2809 = vld [vmem:[%s2747 + $0x1e8] sm:$0xff]
    %v2810 = vld [vmem:[%s2747 + $0x1f0] sm:$0xff]
    %v2811 = vld [vmem:[%s2747 + $0x1f8] sm:$0xff]
    %v2876 = vunpack.c.l.b16 %v2748
    %v2877 = vunpack.c.h.b16 %v2748
    %v2878 = vunpack.c.l.b16 %v2749
    %v2879 = vunpack.c.h.b16 %v2749
    %v2880 = vunpack.c.l.b16 %v2750
    %v2881 = vunpack.c.h.b16 %v2750
    %v2882 = vunpack.c.l.b16 %v2751
    %v2883 = vunpack.c.h.b16 %v2751
    %v2884 = vunpack.c.l.b16 %v2752
    %v2885 = vunpack.c.h.b16 %v2752
    %v2886 = vunpack.c.l.b16 %v2753
    %v2887 = vunpack.c.h.b16 %v2753
    %v2888 = vunpack.c.l.b16 %v2754
    %v2889 = vunpack.c.h.b16 %v2754
    %v2890 = vunpack.c.l.b16 %v2755
    %v2891 = vunpack.c.h.b16 %v2755
    %v2892 = vunpack.c.l.b16 %v2756
    %v2893 = vunpack.c.h.b16 %v2756
    %v2894 = vunpack.c.l.b16 %v2757
    %v2895 = vunpack.c.h.b16 %v2757
    %v2896 = vunpack.c.l.b16 %v2758
    %v2897 = vunpack.c.h.b16 %v2758
    %v2898 = vunpack.c.l.b16 %v2759
    %v2899 = vunpack.c.h.b16 %v2759
    %v2900 = vunpack.c.l.b16 %v2760
    %v2901 = vunpack.c.h.b16 %v2760
    %v2902 = vunpack.c.l.b16 %v2761
    %v2903 = vunpack.c.h.b16 %v2761
    %v2904 = vunpack.c.l.b16 %v2762
    %v2905 = vunpack.c.h.b16 %v2762
    %v2906 = vunpack.c.l.b16 %v2763
    %v2907 = vunpack.c.h.b16 %v2763
    %v2908 = vunpack.c.l.b16 %v2764
    %v2909 = vunpack.c.h.b16 %v2764
    %v2910 = vunpack.c.l.b16 %v2765
    %v2911 = vunpack.c.h.b16 %v2765
    %v2912 = vunpack.c.l.b16 %v2766
    %v2913 = vunpack.c.h.b16 %v2766
    %v2914 = vunpack.c.l.b16 %v2767
    %v2915 = vunpack.c.h.b16 %v2767
    %v2916 = vunpack.c.l.b16 %v2768
    %v2917 = vunpack.c.h.b16 %v2768
    %v2918 = vunpack.c.l.b16 %v2769
    %v2919 = vunpack.c.h.b16 %v2769
    %v2920 = vunpack.c.l.b16 %v2770
    %v2921 = vunpack.c.h.b16 %v2770
    %v2922 = vunpack.c.l.b16 %v2771
    %v2923 = vunpack.c.h.b16 %v2771
    %v2924 = vunpack.c.l.b16 %v2772
    %v2925 = vunpack.c.h.b16 %v2772
    %v2926 = vunpack.c.l.b16 %v2773
    %v2927 = vunpack.c.h.b16 %v2773
    %v2928 = vunpack.c.l.b16 %v2774
    %v2929 = vunpack.c.h.b16 %v2774
    %v2930 = vunpack.c.l.b16 %v2775
    %v2931 = vunpack.c.h.b16 %v2775
    %v2932 = vunpack.c.l.b16 %v2776
    %v2933 = vunpack.c.h.b16 %v2776
    %v2934 = vunpack.c.l.b16 %v2777
    %v2935 = vunpack.c.h.b16 %v2777
    %v2936 = vunpack.c.l.b16 %v2778
    %v2937 = vunpack.c.h.b16 %v2778
    %v2938 = vunpack.c.l.b16 %v2779
    %v2939 = vunpack.c.h.b16 %v2779
    %v2940 = vunpack.c.l.b16 %v2780
    %v2941 = vunpack.c.h.b16 %v2780
    %v2942 = vunpack.c.l.b16 %v2781
    %v2943 = vunpack.c.h.b16 %v2781
    %v2944 = vunpack.c.l.b16 %v2782
    %v2945 = vunpack.c.h.b16 %v2782
    %v2946 = vunpack.c.l.b16 %v2783
    %v2947 = vunpack.c.h.b16 %v2783
    %v2948 = vunpack.c.l.b16 %v2784
    %v2949 = vunpack.c.h.b16 %v2784
    %v2950 = vunpack.c.l.b16 %v2785
    %v2951 = vunpack.c.h.b16 %v2785
    %v2952 = vunpack.c.l.b16 %v2786
    %v2953 = vunpack.c.h.b16 %v2786
    %v2954 = vunpack.c.l.b16 %v2787
    %v2955 = vunpack.c.h.b16 %v2787
    %v2956 = vunpack.c.l.b16 %v2788
    %v2957 = vunpack.c.h.b16 %v2788
    %v2958 = vunpack.c.l.b16 %v2789
    %v2959 = vunpack.c.h.b16 %v2789
    %v2960 = vunpack.c.l.b16 %v2790
    %v2961 = vunpack.c.h.b16 %v2790
    %v2962 = vunpack.c.l.b16 %v2791
    %v2963 = vunpack.c.h.b16 %v2791
    %v2964 = vunpack.c.l.b16 %v2792
    %v2965 = vunpack.c.h.b16 %v2792
    %v2966 = vunpack.c.l.b16 %v2793
    %v2967 = vunpack.c.h.b16 %v2793
    %v2968 = vunpack.c.l.b16 %v2794
    %v2969 = vunpack.c.h.b16 %v2794
    %v2970 = vunpack.c.l.b16 %v2795
    %v2971 = vunpack.c.h.b16 %v2795
    %v2972 = vunpack.c.l.b16 %v2796
    %v2973 = vunpack.c.h.b16 %v2796
    %v2974 = vunpack.c.l.b16 %v2797
    %v2975 = vunpack.c.h.b16 %v2797
    %v2976 = vunpack.c.l.b16 %v2798
    %v2977 = vunpack.c.h.b16 %v2798
    %v2978 = vunpack.c.l.b16 %v2799
    %v2979 = vunpack.c.h.b16 %v2799
    %v2980 = vunpack.c.l.b16 %v2800
    %v2981 = vunpack.c.h.b16 %v2800
    %v2982 = vunpack.c.l.b16 %v2801
    %v2983 = vunpack.c.h.b16 %v2801
    %v2984 = vunpack.c.l.b16 %v2802
    %v2985 = vunpack.c.h.b16 %v2802
    %v2986 = vunpack.c.l.b16 %v2803
    %v2987 = vunpack.c.h.b16 %v2803
    %v2988 = vunpack.c.l.b16 %v2804
    %v2989 = vunpack.c.h.b16 %v2804
    %v2990 = vunpack.c.l.b16 %v2805
    %v2991 = vunpack.c.h.b16 %v2805
    %v2992 = vunpack.c.l.b16 %v2806
    %v2993 = vunpack.c.h.b16 %v2806
    %v2994 = vunpack.c.l.b16 %v2807
    %v2995 = vunpack.c.h.b16 %v2807
    %v2996 = vunpack.c.l.b16 %v2808
    %v2997 = vunpack.c.h.b16 %v2808
    %v2998 = vunpack.c.l.b16 %v2809
    %v2999 = vunpack.c.h.b16 %v2809
    %v3000 = vunpack.c.l.b16 %v2810
    %v3001 = vunpack.c.h.b16 %v2810
    %v3002 = vunpack.c.l.b16 %v2811
    %v3003 = vunpack.c.h.b16 %v2811
    %v3004 = vpack.c.b16 %v2880, %v2876
    %v3005 = vpack.c.b16 %v2881, %v2877
    %v3006 = vpack.c.b16 %v2882, %v2878
    %v3007 = vpack.c.b16 %v2883, %v2879
    %v3008 = vpack.c.b16 %v2888, %v2884
    %v3009 = vpack.c.b16 %v2889, %v2885
    %v3010 = vpack.c.b16 %v2890, %v2886
    %v3011 = vpack.c.b16 %v2891, %v2887
    %v3012 = vpack.c.b16 %v2896, %v2892
    %v3013 = vpack.c.b16 %v2897, %v2893
    %v3014 = vpack.c.b16 %v2898, %v2894
    %v3015 = vpack.c.b16 %v2899, %v2895
    %v3016 = vpack.c.b16 %v2904, %v2900
    %v3017 = vpack.c.b16 %v2905, %v2901
    %v3018 = vpack.c.b16 %v2906, %v2902
    %v3019 = vpack.c.b16 %v2907, %v2903
    %v3020 = vpack.c.b16 %v2912, %v2908
    %v3021 = vpack.c.b16 %v2913, %v2909
    %v3022 = vpack.c.b16 %v2914, %v2910
    %v3023 = vpack.c.b16 %v2915, %v2911
    %v3024 = vpack.c.b16 %v2920, %v2916
    %v3025 = vpack.c.b16 %v2921, %v2917
    %v3026 = vpack.c.b16 %v2922, %v2918
    %v3027 = vpack.c.b16 %v2923, %v2919
    %v3028 = vpack.c.b16 %v2928, %v2924
    %v3029 = vpack.c.b16 %v2929, %v2925
    %v3030 = vpack.c.b16 %v2930, %v2926
    %v3031 = vpack.c.b16 %v2931, %v2927
    %v3032 = vpack.c.b16 %v2936, %v2932
    %v3033 = vpack.c.b16 %v2937, %v2933
    %v3034 = vpack.c.b16 %v2938, %v2934
    %v3035 = vpack.c.b16 %v2939, %v2935
    %v3036 = vpack.c.b16 %v2944, %v2940
    %v3037 = vpack.c.b16 %v2945, %v2941
    %v3038 = vpack.c.b16 %v2946, %v2942
    %v3039 = vpack.c.b16 %v2947, %v2943
    %v3040 = vpack.c.b16 %v2952, %v2948
    %v3041 = vpack.c.b16 %v2953, %v2949
    %v3042 = vpack.c.b16 %v2954, %v2950
    %v3043 = vpack.c.b16 %v2955, %v2951
    %v3044 = vpack.c.b16 %v2960, %v2956
    %v3045 = vpack.c.b16 %v2961, %v2957
    %v3046 = vpack.c.b16 %v2962, %v2958
    %v3047 = vpack.c.b16 %v2963, %v2959
    %v3048 = vpack.c.b16 %v2968, %v2964
    %v3049 = vpack.c.b16 %v2969, %v2965
    %v3050 = vpack.c.b16 %v2970, %v2966
    %v3051 = vpack.c.b16 %v2971, %v2967
    %v3052 = vpack.c.b16 %v2976, %v2972
    %v3053 = vpack.c.b16 %v2977, %v2973
    %v3054 = vpack.c.b16 %v2978, %v2974
    %v3055 = vpack.c.b16 %v2979, %v2975
    %v3056 = vpack.c.b16 %v2984, %v2980
    %v3057 = vpack.c.b16 %v2985, %v2981
    %v3058 = vpack.c.b16 %v2986, %v2982
    %v3059 = vpack.c.b16 %v2987, %v2983
    %v3060 = vpack.c.b16 %v2992, %v2988
    %v3061 = vpack.c.b16 %v2993, %v2989
    %v3062 = vpack.c.b16 %v2994, %v2990
    %v3063 = vpack.c.b16 %v2995, %v2991
    %v3064 = vpack.c.b16 %v3000, %v2996
    %v3065 = vpack.c.b16 %v3001, %v2997
    %v3066 = vpack.c.b16 %v3002, %v2998
    %v3067 = vpack.c.b16 %v3003, %v2999
    %3132 = vmatprep.subr.bf16.mxu0 %v3033
    %3133 = vmatpush1.bf16.msra.mxu0 %v3032
    %3134 = vmatprep.subr.bf16.mxu0 %v3029
    %3135 = vmatpush1.bf16.msra.mxu0 %v3028
    %3136 = vmatprep.subr.bf16.mxu0 %v3025
    %3137 = vmatpush1.bf16.msra.mxu0 %v3024
    %3138 = vmatprep.subr.bf16.mxu0 %v3021
    %3139 = vmatpush1.bf16.msra.mxu0 %v3020
    %3140 = vmatprep.subr.bf16.mxu0 %v3017
    %3141 = vmatpush1.bf16.msra.mxu0 %v3016
    %3142 = vmatprep.subr.bf16.mxu0 %v3013
    %3143 = vmatpush1.bf16.msra.mxu0 %v3012
    %3144 = vmatprep.subr.bf16.mxu0 %v3009
    %3145 = vmatpush1.bf16.msra.mxu0 %v3008
    %3146 = vmatprep.subr.bf16.mxu0 %v3005
    %3147 = vmatpush1.bf16.msra.mxu0 %v3004
    %3148 = vmatprep.subr.bf16.mxu0 %v3065
    %3149 = vmatpush2.bf16.msra.mxu0 %v3064
    %3150 = vmatprep.subr.bf16.mxu0 %v3061
    %3151 = vmatpush2.bf16.msra.mxu0 %v3060
    %3152 = vmatprep.subr.bf16.mxu0 %v3057
    %3153 = vmatpush2.bf16.msra.mxu0 %v3056
    %3154 = vmatprep.subr.bf16.mxu0 %v3053
    %3155 = vmatpush2.bf16.msra.mxu0 %v3052
    %3156 = vmatprep.subr.bf16.mxu0 %v3049
    %3157 = vmatpush2.bf16.msra.mxu0 %v3048
    %3158 = vmatprep.subr.bf16.mxu0 %v3045
    %3159 = vmatpush2.bf16.msra.mxu0 %v3044
    %3160 = vmatprep.subr.bf16.mxu0 %v3041
    %3161 = vmatpush2.bf16.msra.mxu0 %v3040
    %3162 = vmatprep.subr.bf16.mxu0 %v3037
    %3163 = vmatpush2.bf16.msra.mxu0 %v3036
    %3164 = vmatprep.mubr.bf16.mxu0 %v2728
    %3165 = vmatmul.mubr.bf16.gmra.mxu0 %v2721
    %v3166 = vpop.f32.mrf.mxu0
    %v3167 = vadd.f32 0.0, %v3166
    %v3168 = vpop.f32.mrf.mxu0
    %v3169 = vadd.f32 0.0, %v3168
    %v3170 = vpop.f32.mrf.mxu0
    %v3171 = vadd.f32 0.0, %v3170
    %v3172 = vpop.f32.mrf.mxu0
    %v3173 = vadd.f32 0.0, %v3172
    %3174 = vmatprep.mubr.bf16.mxu0 %v2742
    %3175 = vmatmul.mubr.bf16.gmra.mxu0 %v2735
    %v3176 = vpop.f32.mrf.mxu0
    %v3177 = vadd.f32 0.0, %v3176
    %v3178 = vpop.f32.mrf.mxu0
    %v3179 = vadd.f32 0.0, %v3178
    %v3180 = vpop.f32.mrf.mxu0
    %v3181 = vadd.f32 0.0, %v3180
    %v3182 = vpop.f32.mrf.mxu0
    %v3183 = vadd.f32 0.0, %v3182
    %3184 = vdwg.mxu0
    %3185 = vmatprep.subr.bf16.mxu0 %v3035
    %3186 = vmatpush1.bf16.msra.mxu0 %v3034
    %3187 = vmatprep.subr.bf16.mxu0 %v3031
    %3188 = vmatpush1.bf16.msra.mxu0 %v3030
    %3189 = vmatprep.subr.bf16.mxu0 %v3027
    %3190 = vmatpush1.bf16.msra.mxu0 %v3026
    %3191 = vmatprep.subr.bf16.mxu0 %v3023
    %3192 = vmatpush1.bf16.msra.mxu0 %v3022
    %3193 = vmatprep.subr.bf16.mxu0 %v3019
    %3194 = vmatpush1.bf16.msra.mxu0 %v3018
    %3195 = vmatprep.subr.bf16.mxu0 %v3015
    %3196 = vmatpush1.bf16.msra.mxu0 %v3014
    %3197 = vmatprep.subr.bf16.mxu0 %v3011
    %3198 = vmatpush1.bf16.msra.mxu0 %v3010
    %3199 = vmatprep.subr.bf16.mxu0 %v3007
    %3200 = vmatpush1.bf16.msra.mxu0 %v3006
    %3201 = vmatprep.subr.bf16.mxu0 %v3067
    %3202 = vmatpush2.bf16.msra.mxu0 %v3066
    %3203 = vmatprep.subr.bf16.mxu0 %v3063
    %3204 = vmatpush2.bf16.msra.mxu0 %v3062
    %3205 = vmatprep.subr.bf16.mxu0 %v3059
    %3206 = vmatpush2.bf16.msra.mxu0 %v3058
    %3207 = vmatprep.subr.bf16.mxu0 %v3055
    %3208 = vmatpush2.bf16.msra.mxu0 %v3054
    %3209 = vmatprep.subr.bf16.mxu0 %v3051
    %3210 = vmatpush2.bf16.msra.mxu0 %v3050
    %3211 = vmatprep.subr.bf16.mxu0 %v3047
    %3212 = vmatpush2.bf16.msra.mxu0 %v3046
    %3213 = vmatprep.subr.bf16.mxu0 %v3043
    %3214 = vmatpush2.bf16.msra.mxu0 %v3042
    %3215 = vmatprep.subr.bf16.mxu0 %v3039
    %3216 = vmatpush2.bf16.msra.mxu0 %v3038
    %3217 = vmatprep.mubr.bf16.mxu0 %v2728
    %3218 = vmatmul.mubr.bf16.gmra.mxu0 %v2721
    %v3219 = vpop.f32.mrf.mxu0
    %v3220 = vadd.f32 0.0, %v3219
    %v3221 = vpop.f32.mrf.mxu0
    %v3222 = vadd.f32 0.0, %v3221
    %v3223 = vpop.f32.mrf.mxu0
    %v3224 = vadd.f32 0.0, %v3223
    %v3225 = vpop.f32.mrf.mxu0
    %v3226 = vadd.f32 0.0, %v3225
    %3227 = vmatprep.mubr.bf16.mxu0 %v2742
    %3228 = vmatmul.mubr.bf16.gmra.mxu0 %v2735
    %v3229 = vpop.f32.mrf.mxu0
    %v3230 = vadd.f32 0.0, %v3229
    %v3231 = vpop.f32.mrf.mxu0
    %v3232 = vadd.f32 0.0, %v3231
    %v3233 = vpop.f32.mrf.mxu0
    %v3234 = vadd.f32 0.0, %v3233
    %v3235 = vpop.f32.mrf.mxu0
    %v3236 = vadd.f32 0.0, %v3235
    %3237 = vdwg.mxu0
    %v3238 = vadd.f32 %v2699, %v3167
    %v3239 = vadd.f32 %v2700, %v3169
    %v3240 = vadd.f32 %v2701, %v3220
    %v3241 = vadd.f32 %v2702, %v3222
    %v3242 = vadd.f32 %v2703, %v3171
    %v3243 = vadd.f32 %v2704, %v3173
    %v3244 = vadd.f32 %v2705, %v3224
    %v3245 = vadd.f32 %v2706, %v3226
    %v3246 = vadd.f32 %v2707, %v3177
    %v3247 = vadd.f32 %v2708, %v3179
    %v3248 = vadd.f32 %v2709, %v3230
    %v3249 = vadd.f32 %v2710, %v3232
    %v3250 = vadd.f32 %v2711, %v3181
    %v3251 = vadd.f32 %v2712, %v3183
    %v3252 = vadd.f32 %v2713, %v3234
    %v3253 = vadd.f32 %v2714, %v3236
    %v3258 = vrot.slane %v2176, 1
    %v3259 = vsel %vm479, %v3258, %v483
    %v3260 = vrot.slane %v2179, 1
    %v3261 = vsel %vm479, %v3260, %v483
    %v3262 = vrot.slane %v2182, 1
    %v3263 = vsel %vm479, %v3262, %v483
    %v3264 = vrot.slane %v2185, 1
    %v3265 = vsel %vm479, %v3264, %v483
    %s3270 = scalar_lea.vmem [#allocation12], 1024
    %v3271 = vld [vmem:[%s3270] sm:$0xff]
    %v3272 = vld [vmem:[%s3270 + $0x8] sm:$0xff]
    %v3273 = vld [vmem:[%s3270 + $0x10] sm:$0xff]
    %v3274 = vld [vmem:[%s3270 + $0x18] sm:$0xff]
    %v3275 = vld [vmem:[%s3270 + $0x20] sm:$0xff]
    %v3276 = vld [vmem:[%s3270 + $0x28] sm:$0xff]
    %v3277 = vld [vmem:[%s3270 + $0x30] sm:$0xff]
    %v3278 = vld [vmem:[%s3270 + $0x38] sm:$0xff]
    %v3279 = vld [vmem:[%s3270 + $0x40] sm:$0xff]
    %v3280 = vld [vmem:[%s3270 + $0x48] sm:$0xff]
    %v3281 = vld [vmem:[%s3270 + $0x50] sm:$0xff]
    %v3282 = vld [vmem:[%s3270 + $0x58] sm:$0xff]
    %v3283 = vld [vmem:[%s3270 + $0x60] sm:$0xff]
    %v3284 = vld [vmem:[%s3270 + $0x68] sm:$0xff]
    %v3285 = vld [vmem:[%s3270 + $0x70] sm:$0xff]
    %v3286 = vld [vmem:[%s3270 + $0x78] sm:$0xff]
    %v3287 = vld [vmem:[%s3270 + $0x80] sm:$0xff]
    %v3288 = vld [vmem:[%s3270 + $0x88] sm:$0xff]
    %v3289 = vld [vmem:[%s3270 + $0x90] sm:$0xff]
    %v3290 = vld [vmem:[%s3270 + $0x98] sm:$0xff]
    %v3291 = vld [vmem:[%s3270 + $0xa0] sm:$0xff]
    %v3292 = vld [vmem:[%s3270 + $0xa8] sm:$0xff]
    %v3293 = vld [vmem:[%s3270 + $0xb0] sm:$0xff]
    %v3294 = vld [vmem:[%s3270 + $0xb8] sm:$0xff]
    %v3295 = vld [vmem:[%s3270 + $0xc0] sm:$0xff]
    %v3296 = vld [vmem:[%s3270 + $0xc8] sm:$0xff]
    %v3297 = vld [vmem:[%s3270 + $0xd0] sm:$0xff]
    %v3298 = vld [vmem:[%s3270 + $0xd8] sm:$0xff]
    %v3299 = vld [vmem:[%s3270 + $0xe0] sm:$0xff]
    %v3300 = vld [vmem:[%s3270 + $0xe8] sm:$0xff]
    %v3301 = vld [vmem:[%s3270 + $0xf0] sm:$0xff]
    %v3302 = vld [vmem:[%s3270 + $0xf8] sm:$0xff]
    %v3303 = vld [vmem:[%s3270 + $0x100] sm:$0xff]
    %v3304 = vld [vmem:[%s3270 + $0x108] sm:$0xff]
    %v3305 = vld [vmem:[%s3270 + $0x110] sm:$0xff]
    %v3306 = vld [vmem:[%s3270 + $0x118] sm:$0xff]
    %v3307 = vld [vmem:[%s3270 + $0x120] sm:$0xff]
    %v3308 = vld [vmem:[%s3270 + $0x128] sm:$0xff]
    %v3309 = vld [vmem:[%s3270 + $0x130] sm:$0xff]
    %v3310 = vld [vmem:[%s3270 + $0x138] sm:$0xff]
    %v3311 = vld [vmem:[%s3270 + $0x140] sm:$0xff]
    %v3312 = vld [vmem:[%s3270 + $0x148] sm:$0xff]
    %v3313 = vld [vmem:[%s3270 + $0x150] sm:$0xff]
    %v3314 = vld [vmem:[%s3270 + $0x158] sm:$0xff]
    %v3315 = vld [vmem:[%s3270 + $0x160] sm:$0xff]
    %v3316 = vld [vmem:[%s3270 + $0x168] sm:$0xff]
    %v3317 = vld [vmem:[%s3270 + $0x170] sm:$0xff]
    %v3318 = vld [vmem:[%s3270 + $0x178] sm:$0xff]
    %v3319 = vld [vmem:[%s3270 + $0x180] sm:$0xff]
    %v3320 = vld [vmem:[%s3270 + $0x188] sm:$0xff]
    %v3321 = vld [vmem:[%s3270 + $0x190] sm:$0xff]
    %v3322 = vld [vmem:[%s3270 + $0x198] sm:$0xff]
    %v3323 = vld [vmem:[%s3270 + $0x1a0] sm:$0xff]
    %v3324 = vld [vmem:[%s3270 + $0x1a8] sm:$0xff]
    %v3325 = vld [vmem:[%s3270 + $0x1b0] sm:$0xff]
    %v3326 = vld [vmem:[%s3270 + $0x1b8] sm:$0xff]
    %v3327 = vld [vmem:[%s3270 + $0x1c0] sm:$0xff]
    %v3328 = vld [vmem:[%s3270 + $0x1c8] sm:$0xff]
    %v3329 = vld [vmem:[%s3270 + $0x1d0] sm:$0xff]
    %v3330 = vld [vmem:[%s3270 + $0x1d8] sm:$0xff]
    %v3331 = vld [vmem:[%s3270 + $0x1e0] sm:$0xff]
    %v3332 = vld [vmem:[%s3270 + $0x1e8] sm:$0xff]
    %v3333 = vld [vmem:[%s3270 + $0x1f0] sm:$0xff]
    %v3334 = vld [vmem:[%s3270 + $0x1f8] sm:$0xff]
    %v3399 = vunpack.c.l.b16 %v3271
    %v3400 = vunpack.c.h.b16 %v3271
    %v3401 = vunpack.c.l.b16 %v3272
    %v3402 = vunpack.c.h.b16 %v3272
    %v3403 = vunpack.c.l.b16 %v3273
    %v3404 = vunpack.c.h.b16 %v3273
    %v3405 = vunpack.c.l.b16 %v3274
    %v3406 = vunpack.c.h.b16 %v3274
    %v3407 = vunpack.c.l.b16 %v3275
    %v3408 = vunpack.c.h.b16 %v3275
    %v3409 = vunpack.c.l.b16 %v3276
    %v3410 = vunpack.c.h.b16 %v3276
    %v3411 = vunpack.c.l.b16 %v3277
    %v3412 = vunpack.c.h.b16 %v3277
    %v3413 = vunpack.c.l.b16 %v3278
    %v3414 = vunpack.c.h.b16 %v3278
    %v3415 = vunpack.c.l.b16 %v3279
    %v3416 = vunpack.c.h.b16 %v3279
    %v3417 = vunpack.c.l.b16 %v3280
    %v3418 = vunpack.c.h.b16 %v3280
    %v3419 = vunpack.c.l.b16 %v3281
    %v3420 = vunpack.c.h.b16 %v3281
    %v3421 = vunpack.c.l.b16 %v3282
    %v3422 = vunpack.c.h.b16 %v3282
    %v3423 = vunpack.c.l.b16 %v3283
    %v3424 = vunpack.c.h.b16 %v3283
    %v3425 = vunpack.c.l.b16 %v3284
    %v3426 = vunpack.c.h.b16 %v3284
    %v3427 = vunpack.c.l.b16 %v3285
    %v3428 = vunpack.c.h.b16 %v3285
    %v3429 = vunpack.c.l.b16 %v3286
    %v3430 = vunpack.c.h.b16 %v3286
    %v3431 = vunpack.c.l.b16 %v3287
    %v3432 = vunpack.c.h.b16 %v3287
    %v3433 = vunpack.c.l.b16 %v3288
    %v3434 = vunpack.c.h.b16 %v3288
    %v3435 = vunpack.c.l.b16 %v3289
    %v3436 = vunpack.c.h.b16 %v3289
    %v3437 = vunpack.c.l.b16 %v3290
    %v3438 = vunpack.c.h.b16 %v3290
    %v3439 = vunpack.c.l.b16 %v3291
    %v3440 = vunpack.c.h.b16 %v3291
    %v3441 = vunpack.c.l.b16 %v3292
    %v3442 = vunpack.c.h.b16 %v3292
    %v3443 = vunpack.c.l.b16 %v3293
    %v3444 = vunpack.c.h.b16 %v3293
    %v3445 = vunpack.c.l.b16 %v3294
    %v3446 = vunpack.c.h.b16 %v3294
    %v3447 = vunpack.c.l.b16 %v3295
    %v3448 = vunpack.c.h.b16 %v3295
    %v3449 = vunpack.c.l.b16 %v3296
    %v3450 = vunpack.c.h.b16 %v3296
    %v3451 = vunpack.c.l.b16 %v3297
    %v3452 = vunpack.c.h.b16 %v3297
    %v3453 = vunpack.c.l.b16 %v3298
    %v3454 = vunpack.c.h.b16 %v3298
    %v3455 = vunpack.c.l.b16 %v3299
    %v3456 = vunpack.c.h.b16 %v3299
    %v3457 = vunpack.c.l.b16 %v3300
    %v3458 = vunpack.c.h.b16 %v3300
    %v3459 = vunpack.c.l.b16 %v3301
    %v3460 = vunpack.c.h.b16 %v3301
    %v3461 = vunpack.c.l.b16 %v3302
    %v3462 = vunpack.c.h.b16 %v3302
    %v3463 = vunpack.c.l.b16 %v3303
    %v3464 = vunpack.c.h.b16 %v3303
    %v3465 = vunpack.c.l.b16 %v3304
    %v3466 = vunpack.c.h.b16 %v3304
    %v3467 = vunpack.c.l.b16 %v3305
    %v3468 = vunpack.c.h.b16 %v3305
    %v3469 = vunpack.c.l.b16 %v3306
    %v3470 = vunpack.c.h.b16 %v3306
    %v3471 = vunpack.c.l.b16 %v3307
    %v3472 = vunpack.c.h.b16 %v3307
    %v3473 = vunpack.c.l.b16 %v3308
    %v3474 = vunpack.c.h.b16 %v3308
    %v3475 = vunpack.c.l.b16 %v3309
    %v3476 = vunpack.c.h.b16 %v3309
    %v3477 = vunpack.c.l.b16 %v3310
    %v3478 = vunpack.c.h.b16 %v3310
    %v3479 = vunpack.c.l.b16 %v3311
    %v3480 = vunpack.c.h.b16 %v3311
    %v3481 = vunpack.c.l.b16 %v3312
    %v3482 = vunpack.c.h.b16 %v3312
    %v3483 = vunpack.c.l.b16 %v3313
    %v3484 = vunpack.c.h.b16 %v3313
    %v3485 = vunpack.c.l.b16 %v3314
    %v3486 = vunpack.c.h.b16 %v3314
    %v3487 = vunpack.c.l.b16 %v3315
    %v3488 = vunpack.c.h.b16 %v3315
    %v3489 = vunpack.c.l.b16 %v3316
    %v3490 = vunpack.c.h.b16 %v3316
    %v3491 = vunpack.c.l.b16 %v3317
    %v3492 = vunpack.c.h.b16 %v3317
    %v3493 = vunpack.c.l.b16 %v3318
    %v3494 = vunpack.c.h.b16 %v3318
    %v3495 = vunpack.c.l.b16 %v3319
    %v3496 = vunpack.c.h.b16 %v3319
    %v3497 = vunpack.c.l.b16 %v3320
    %v3498 = vunpack.c.h.b16 %v3320
    %v3499 = vunpack.c.l.b16 %v3321
    %v3500 = vunpack.c.h.b16 %v3321
    %v3501 = vunpack.c.l.b16 %v3322
    %v3502 = vunpack.c.h.b16 %v3322
    %v3503 = vunpack.c.l.b16 %v3323
    %v3504 = vunpack.c.h.b16 %v3323
    %v3505 = vunpack.c.l.b16 %v3324
    %v3506 = vunpack.c.h.b16 %v3324
    %v3507 = vunpack.c.l.b16 %v3325
    %v3508 = vunpack.c.h.b16 %v3325
    %v3509 = vunpack.c.l.b16 %v3326
    %v3510 = vunpack.c.h.b16 %v3326
    %v3511 = vunpack.c.l.b16 %v3327
    %v3512 = vunpack.c.h.b16 %v3327
    %v3513 = vunpack.c.l.b16 %v3328
    %v3514 = vunpack.c.h.b16 %v3328
    %v3515 = vunpack.c.l.b16 %v3329
    %v3516 = vunpack.c.h.b16 %v3329
    %v3517 = vunpack.c.l.b16 %v3330
    %v3518 = vunpack.c.h.b16 %v3330
    %v3519 = vunpack.c.l.b16 %v3331
    %v3520 = vunpack.c.h.b16 %v3331
    %v3521 = vunpack.c.l.b16 %v3332
    %v3522 = vunpack.c.h.b16 %v3332
    %v3523 = vunpack.c.l.b16 %v3333
    %v3524 = vunpack.c.h.b16 %v3333
    %v3525 = vunpack.c.l.b16 %v3334
    %v3526 = vunpack.c.h.b16 %v3334
    %v3527 = vpack.c.b16 %v3403, %v3399
    %v3528 = vpack.c.b16 %v3404, %v3400
    %v3529 = vpack.c.b16 %v3405, %v3401
    %v3530 = vpack.c.b16 %v3406, %v3402
    %v3531 = vpack.c.b16 %v3411, %v3407
    %v3532 = vpack.c.b16 %v3412, %v3408
    %v3533 = vpack.c.b16 %v3413, %v3409
    %v3534 = vpack.c.b16 %v3414, %v3410
    %v3535 = vpack.c.b16 %v3419, %v3415
    %v3536 = vpack.c.b16 %v3420, %v3416
    %v3537 = vpack.c.b16 %v3421, %v3417
    %v3538 = vpack.c.b16 %v3422, %v3418
    %v3539 = vpack.c.b16 %v3427, %v3423
    %v3540 = vpack.c.b16 %v3428, %v3424
    %v3541 = vpack.c.b16 %v3429, %v3425
    %v3542 = vpack.c.b16 %v3430, %v3426
    %v3543 = vpack.c.b16 %v3435, %v3431
    %v3544 = vpack.c.b16 %v3436, %v3432
    %v3545 = vpack.c.b16 %v3437, %v3433
    %v3546 = vpack.c.b16 %v3438, %v3434
    %v3547 = vpack.c.b16 %v3443, %v3439
    %v3548 = vpack.c.b16 %v3444, %v3440
    %v3549 = vpack.c.b16 %v3445, %v3441
    %v3550 = vpack.c.b16 %v3446, %v3442
    %v3551 = vpack.c.b16 %v3451, %v3447
    %v3552 = vpack.c.b16 %v3452, %v3448
    %v3553 = vpack.c.b16 %v3453, %v3449
    %v3554 = vpack.c.b16 %v3454, %v3450
    %v3555 = vpack.c.b16 %v3459, %v3455
    %v3556 = vpack.c.b16 %v3460, %v3456
    %v3557 = vpack.c.b16 %v3461, %v3457
    %v3558 = vpack.c.b16 %v3462, %v3458
    %v3559 = vpack.c.b16 %v3467, %v3463
    %v3560 = vpack.c.b16 %v3468, %v3464
    %v3561 = vpack.c.b16 %v3469, %v3465
    %v3562 = vpack.c.b16 %v3470, %v3466
    %v3563 = vpack.c.b16 %v3475, %v3471
    %v3564 = vpack.c.b16 %v3476, %v3472
    %v3565 = vpack.c.b16 %v3477, %v3473
    %v3566 = vpack.c.b16 %v3478, %v3474
    %v3567 = vpack.c.b16 %v3483, %v3479
    %v3568 = vpack.c.b16 %v3484, %v3480
    %v3569 = vpack.c.b16 %v3485, %v3481
    %v3570 = vpack.c.b16 %v3486, %v3482
    %v3571 = vpack.c.b16 %v3491, %v3487
    %v3572 = vpack.c.b16 %v3492, %v3488
    %v3573 = vpack.c.b16 %v3493, %v3489
    %v3574 = vpack.c.b16 %v3494, %v3490
    %v3575 = vpack.c.b16 %v3499, %v3495
    %v3576 = vpack.c.b16 %v3500, %v3496
    %v3577 = vpack.c.b16 %v3501, %v3497
    %v3578 = vpack.c.b16 %v3502, %v3498
    %v3579 = vpack.c.b16 %v3507, %v3503
    %v3580 = vpack.c.b16 %v3508, %v3504
    %v3581 = vpack.c.b16 %v3509, %v3505
    %v3582 = vpack.c.b16 %v3510, %v3506
    %v3583 = vpack.c.b16 %v3515, %v3511
    %v3584 = vpack.c.b16 %v3516, %v3512
    %v3585 = vpack.c.b16 %v3517, %v3513
    %v3586 = vpack.c.b16 %v3518, %v3514
    %v3587 = vpack.c.b16 %v3523, %v3519
    %v3588 = vpack.c.b16 %v3524, %v3520
    %v3589 = vpack.c.b16 %v3525, %v3521
    %v3590 = vpack.c.b16 %v3526, %v3522
    %3655 = vmatprep.subr.bf16.mxu0 %v3556
    %3656 = vmatpush1.bf16.msra.mxu0 %v3555
    %3657 = vmatprep.subr.bf16.mxu0 %v3552
    %3658 = vmatpush1.bf16.msra.mxu0 %v3551
    %3659 = vmatprep.subr.bf16.mxu0 %v3548
    %3660 = vmatpush1.bf16.msra.mxu0 %v3547
    %3661 = vmatprep.subr.bf16.mxu0 %v3544
    %3662 = vmatpush1.bf16.msra.mxu0 %v3543
    %3663 = vmatprep.subr.bf16.mxu0 %v3540
    %3664 = vmatpush1.bf16.msra.mxu0 %v3539
    %3665 = vmatprep.subr.bf16.mxu0 %v3536
    %3666 = vmatpush1.bf16.msra.mxu0 %v3535
    %3667 = vmatprep.subr.bf16.mxu0 %v3532
    %3668 = vmatpush1.bf16.msra.mxu0 %v3531
    %3669 = vmatprep.subr.bf16.mxu0 %v3528
    %3670 = vmatpush1.bf16.msra.mxu0 %v3527
    %3671 = vmatprep.subr.bf16.mxu0 %v3588
    %3672 = vmatpush2.bf16.msra.mxu0 %v3587
    %3673 = vmatprep.subr.bf16.mxu0 %v3584
    %3674 = vmatpush2.bf16.msra.mxu0 %v3583
    %3675 = vmatprep.subr.bf16.mxu0 %v3580
    %3676 = vmatpush2.bf16.msra.mxu0 %v3579
    %3677 = vmatprep.subr.bf16.mxu0 %v3576
    %3678 = vmatpush2.bf16.msra.mxu0 %v3575
    %3679 = vmatprep.subr.bf16.mxu0 %v3572
    %3680 = vmatpush2.bf16.msra.mxu0 %v3571
    %3681 = vmatprep.subr.bf16.mxu0 %v3568
    %3682 = vmatpush2.bf16.msra.mxu0 %v3567
    %3683 = vmatprep.subr.bf16.mxu0 %v3564
    %3684 = vmatpush2.bf16.msra.mxu0 %v3563
    %3685 = vmatprep.subr.bf16.mxu0 %v3560
    %3686 = vmatpush2.bf16.msra.mxu0 %v3559
    %3687 = vmatprep.mubr.bf16.mxu0 %v3261
    %3688 = vmatmul.mubr.bf16.gmra.mxu0 %v3259
    %v3689 = vpop.f32.mrf.mxu0
    %v3690 = vadd.f32 0.0, %v3689
    %v3691 = vpop.f32.mrf.mxu0
    %v3692 = vadd.f32 0.0, %v3691
    %v3693 = vpop.f32.mrf.mxu0
    %v3694 = vadd.f32 0.0, %v3693
    %v3695 = vpop.f32.mrf.mxu0
    %v3696 = vadd.f32 0.0, %v3695
    %3697 = vmatprep.mubr.bf16.mxu0 %v3265
    %3698 = vmatmul.mubr.bf16.gmra.mxu0 %v3263
    %v3699 = vpop.f32.mrf.mxu0
    %v3700 = vadd.f32 0.0, %v3699
    %v3701 = vpop.f32.mrf.mxu0
    %v3702 = vadd.f32 0.0, %v3701
    %v3703 = vpop.f32.mrf.mxu0
    %v3704 = vadd.f32 0.0, %v3703
    %v3705 = vpop.f32.mrf.mxu0
    %v3706 = vadd.f32 0.0, %v3705
    %3707 = vdwg.mxu0
    %3708 = vmatprep.subr.bf16.mxu0 %v3558
    %3709 = vmatpush1.bf16.msra.mxu0 %v3557
    %3710 = vmatprep.subr.bf16.mxu0 %v3554
    %3711 = vmatpush1.bf16.msra.mxu0 %v3553
    %3712 = vmatprep.subr.bf16.mxu0 %v3550
    %3713 = vmatpush1.bf16.msra.mxu0 %v3549
    %3714 = vmatprep.subr.bf16.mxu0 %v3546
    %3715 = vmatpush1.bf16.msra.mxu0 %v3545
    %3716 = vmatprep.subr.bf16.mxu0 %v3542
    %3717 = vmatpush1.bf16.msra.mxu0 %v3541
    %3718 = vmatprep.subr.bf16.mxu0 %v3538
    %3719 = vmatpush1.bf16.msra.mxu0 %v3537
    %3720 = vmatprep.subr.bf16.mxu0 %v3534
    %3721 = vmatpush1.bf16.msra.mxu0 %v3533
    %3722 = vmatprep.subr.bf16.mxu0 %v3530
    %3723 = vmatpush1.bf16.msra.mxu0 %v3529
    %3724 = vmatprep.subr.bf16.mxu0 %v3590
    %3725 = vmatpush2.bf16.msra.mxu0 %v3589
    %3726 = vmatprep.subr.bf16.mxu0 %v3586
    %3727 = vmatpush2.bf16.msra.mxu0 %v3585
    %3728 = vmatprep.subr.bf16.mxu0 %v3582
    %3729 = vmatpush2.bf16.msra.mxu0 %v3581
    %3730 = vmatprep.subr.bf16.mxu0 %v3578
    %3731 = vmatpush2.bf16.msra.mxu0 %v3577
    %3732 = vmatprep.subr.bf16.mxu0 %v3574
    %3733 = vmatpush2.bf16.msra.mxu0 %v3573
    %3734 = vmatprep.subr.bf16.mxu0 %v3570
    %3735 = vmatpush2.bf16.msra.mxu0 %v3569
    %3736 = vmatprep.subr.bf16.mxu0 %v3566
    %3737 = vmatpush2.bf16.msra.mxu0 %v3565
    %3738 = vmatprep.subr.bf16.mxu0 %v3562
    %3739 = vmatpush2.bf16.msra.mxu0 %v3561
    %3740 = vmatprep.mubr.bf16.mxu0 %v3261
    %3741 = vmatmul.mubr.bf16.gmra.mxu0 %v3259
    %v3742 = vpop.f32.mrf.mxu0
    %v3743 = vadd.f32 0.0, %v3742
    %v3744 = vpop.f32.mrf.mxu0
    %v3745 = vadd.f32 0.0, %v3744
    %v3746 = vpop.f32.mrf.mxu0
    %v3747 = vadd.f32 0.0, %v3746
    %v3748 = vpop.f32.mrf.mxu0
    %v3749 = vadd.f32 0.0, %v3748
    %3750 = vmatprep.mubr.bf16.mxu0 %v3265
    %3751 = vmatmul.mubr.bf16.gmra.mxu0 %v3263
    %v3752 = vpop.f32.mrf.mxu0
    %v3753 = vadd.f32 0.0, %v3752
    %v3754 = vpop.f32.mrf.mxu0
    %v3755 = vadd.f32 0.0, %v3754
    %v3756 = vpop.f32.mrf.mxu0
    %v3757 = vadd.f32 0.0, %v3756
    %v3758 = vpop.f32.mrf.mxu0
    %v3759 = vadd.f32 0.0, %v3758
    %3760 = vdwg.mxu0
    %v3761 = vadd.f32 %v3238, %v3690
    %v3762 = vadd.f32 %v3239, %v3692
    %v3763 = vadd.f32 %v3240, %v3743
    %v3764 = vadd.f32 %v3241, %v3745
    %v3765 = vadd.f32 %v3242, %v3694
    %v3766 = vadd.f32 %v3243, %v3696
    %v3767 = vadd.f32 %v3244, %v3747
    %v3768 = vadd.f32 %v3245, %v3749
    %v3769 = vadd.f32 %v3246, %v3700
    %v3770 = vadd.f32 %v3247, %v3702
    %v3771 = vadd.f32 %v3248, %v3753
    %v3772 = vadd.f32 %v3249, %v3755
    %v3773 = vadd.f32 %v3250, %v3704
    %v3774 = vadd.f32 %v3251, %v3706
    %v3775 = vadd.f32 %v3252, %v3757
    %v3776 = vadd.f32 %v3253, %v3759
    %vm3777 = vcmp.gt.f32.partialorder %v3761, 0.0
    %vm3778 = vcmp.gt.f32.partialorder %v3762, 0.0
    %vm3779 = vcmp.gt.f32.partialorder %v3763, 0.0
    %vm3780 = vcmp.gt.f32.partialorder %v3764, 0.0
    %vm3781 = vcmp.gt.f32.partialorder %v3765, 0.0
    %vm3782 = vcmp.gt.f32.partialorder %v3766, 0.0
    %vm3783 = vcmp.gt.f32.partialorder %v3767, 0.0
    %vm3784 = vcmp.gt.f32.partialorder %v3768, 0.0
    %vm3785 = vcmp.gt.f32.partialorder %v3769, 0.0
    %vm3786 = vcmp.gt.f32.partialorder %v3770, 0.0
    %vm3787 = vcmp.gt.f32.partialorder %v3771, 0.0
    %vm3788 = vcmp.gt.f32.partialorder %v3772, 0.0
    %vm3789 = vcmp.gt.f32.partialorder %v3773, 0.0
    %vm3790 = vcmp.gt.f32.partialorder %v3774, 0.0
    %vm3791 = vcmp.gt.f32.partialorder %v3775, 0.0
    %vm3792 = vcmp.gt.f32.partialorder %v3776, 0.0
    %v3793 = vmul.f32 %v581, %v3761
    %v3794 = vmul.f32 %v581, %v3762
    %v3795 = vmul.f32 %v581, %v3763
    %v3796 = vmul.f32 %v581, %v3764
    %v3797 = vmul.f32 %v581, %v3765
    %v3798 = vmul.f32 %v581, %v3766
    %v3799 = vmul.f32 %v581, %v3767
    %v3800 = vmul.f32 %v581, %v3768
    %v3801 = vmul.f32 %v581, %v3769
    %v3802 = vmul.f32 %v581, %v3770
    %v3803 = vmul.f32 %v581, %v3771
    %v3804 = vmul.f32 %v581, %v3772
    %v3805 = vmul.f32 %v581, %v3773
    %v3806 = vmul.f32 %v581, %v3774
    %v3807 = vmul.f32 %v581, %v3775
    %v3808 = vmul.f32 %v581, %v3776
    %v3809 = vsel %vm3777, %v3761, %v3793
    %v3810 = vsel %vm3778, %v3762, %v3794
    %v3811 = vsel %vm3779, %v3763, %v3795
    %v3812 = vsel %vm3780, %v3764, %v3796
    %v3813 = vsel %vm3781, %v3765, %v3797
    %v3814 = vsel %vm3782, %v3766, %v3798
    %v3815 = vsel %vm3783, %v3767, %v3799
    %v3816 = vsel %vm3784, %v3768, %v3800
    %v3817 = vsel %vm3785, %v3769, %v3801
    %v3818 = vsel %vm3786, %v3770, %v3802
    %v3819 = vsel %vm3787, %v3771, %v3803
    %v3820 = vsel %vm3788, %v3772, %v3804
    %v3821 = vsel %vm3789, %v3773, %v3805
    %v3822 = vsel %vm3790, %v3774, %v3806
    %v3823 = vsel %vm3791, %v3775, %v3807
    %v3824 = vsel %vm3792, %v3776, %v3808
    %v3825 = vpack.c.bf16 %v3813, %v3809
    %v3826 = vpack.c.bf16 %v3814, %v3810
    %v3827 = vpack.c.bf16 %v3815, %v3811
    %v3828 = vpack.c.bf16 %v3816, %v3812
    %v3829 = vpack.c.bf16 %v3821, %v3817
    %v3830 = vpack.c.bf16 %v3822, %v3818
    %v3831 = vpack.c.bf16 %v3823, %v3819
    %v3832 = vpack.c.bf16 %v3824, %v3820
    %v3841 = vrot.slane %v3825, 7
    %v3842 = vrot.slane %v3826, 7
    %v3843 = vrot.slane %v3827, 7
    %v3844 = vrot.slane %v3828, 7
    %v3845 = vrot.slane %v3829, 7
    %v3846 = vrot.slane %v3830, 7
    %v3847 = vrot.slane %v3831, 7
    %v3848 = vrot.slane %v3832, 7
    %v3850 = vsel %vm275, 0, %v3841
    %v3852 = vsel %vm275, 0, %v3842
    %v3854 = vsel %vm275, 0, %v3843
    %v3856 = vsel %vm275, 0, %v3844
    %v3858 = vsel %vm275, 0, %v3845
    %v3860 = vsel %vm275, 0, %v3846
    %v3862 = vsel %vm275, 0, %v3847
    %v3864 = vsel %vm275, 0, %v3848
    %v3865 = vsel %vm2174, %v3850, 0
    %v3867 = vsel %vm2174, %v3852, 0
    %v3869 = vsel %vm2174, %v3854, 0
    %v3871 = vsel %vm2174, %v3856, 0
    %v3873 = vsel %vm2174, %v3858, 0
    %v3875 = vsel %vm2174, %v3860, 0
    %v3877 = vsel %vm2174, %v3862, 0
    %v3879 = vsel %vm2174, %v3864, 0
    %v3881 = vld [vmem:[#allocation17] sm:$0x3]
    %v3882 = vld [vmem:[#allocation15] sm:$0xff]
    %v3883 = vld [vmem:[#allocation15 + $0x8] sm:$0xff]
    %v3884 = vld [vmem:[#allocation15 + $0x10] sm:$0xff]
    %v3885 = vld [vmem:[#allocation15 + $0x18] sm:$0xff]
    %v3886 = vld [vmem:[#allocation15 + $0x20] sm:$0xff]
    %v3887 = vld [vmem:[#allocation15 + $0x28] sm:$0xff]
    %v3888 = vld [vmem:[#allocation15 + $0x30] sm:$0xff]
    %v3889 = vld [vmem:[#allocation15 + $0x38] sm:$0xff]
    %v3890 = vld [vmem:[#allocation15 + $0x40] sm:$0xff]
    %v3891 = vld [vmem:[#allocation15 + $0x48] sm:$0xff]
    %v3892 = vld [vmem:[#allocation15 + $0x50] sm:$0xff]
    %v3893 = vld [vmem:[#allocation15 + $0x58] sm:$0xff]
    %v3894 = vld [vmem:[#allocation15 + $0x60] sm:$0xff]
    %v3895 = vld [vmem:[#allocation15 + $0x68] sm:$0xff]
    %v3896 = vld [vmem:[#allocation15 + $0x70] sm:$0xff]
    %v3897 = vld [vmem:[#allocation15 + $0x78] sm:$0xff]
    %v3898 = vld [vmem:[#allocation15 + $0x80] sm:$0xff]
    %v3899 = vld [vmem:[#allocation15 + $0x88] sm:$0xff]
    %v3900 = vld [vmem:[#allocation15 + $0x90] sm:$0xff]
    %v3901 = vld [vmem:[#allocation15 + $0x98] sm:$0xff]
    %v3902 = vld [vmem:[#allocation15 + $0xa0] sm:$0xff]
    %v3903 = vld [vmem:[#allocation15 + $0xa8] sm:$0xff]
    %v3904 = vld [vmem:[#allocation15 + $0xb0] sm:$0xff]
    %v3905 = vld [vmem:[#allocation15 + $0xb8] sm:$0xff]
    %v3906 = vld [vmem:[#allocation15 + $0xc0] sm:$0xff]
    %v3907 = vld [vmem:[#allocation15 + $0xc8] sm:$0xff]
    %v3908 = vld [vmem:[#allocation15 + $0xd0] sm:$0xff]
    %v3909 = vld [vmem:[#allocation15 + $0xd8] sm:$0xff]
    %v3910 = vld [vmem:[#allocation15 + $0xe0] sm:$0xff]
    %v3911 = vld [vmem:[#allocation15 + $0xe8] sm:$0xff]
    %v3912 = vld [vmem:[#allocation15 + $0xf0] sm:$0xff]
    %v3913 = vld [vmem:[#allocation15 + $0xf8] sm:$0xff]
    %v3914 = vld [vmem:[#allocation15 + $0x100] sm:$0xff]
    %v3915 = vld [vmem:[#allocation15 + $0x108] sm:$0xff]
    %v3916 = vld [vmem:[#allocation15 + $0x110] sm:$0xff]
    %v3917 = vld [vmem:[#allocation15 + $0x118] sm:$0xff]
    %v3918 = vld [vmem:[#allocation15 + $0x120] sm:$0xff]
    %v3919 = vld [vmem:[#allocation15 + $0x128] sm:$0xff]
    %v3920 = vld [vmem:[#allocation15 + $0x130] sm:$0xff]
    %v3921 = vld [vmem:[#allocation15 + $0x138] sm:$0xff]
    %v3922 = vld [vmem:[#allocation15 + $0x140] sm:$0xff]
    %v3923 = vld [vmem:[#allocation15 + $0x148] sm:$0xff]
    %v3924 = vld [vmem:[#allocation15 + $0x150] sm:$0xff]
    %v3925 = vld [vmem:[#allocation15 + $0x158] sm:$0xff]
    %v3926 = vld [vmem:[#allocation15 + $0x160] sm:$0xff]
    %v3927 = vld [vmem:[#allocation15 + $0x168] sm:$0xff]
    %v3928 = vld [vmem:[#allocation15 + $0x170] sm:$0xff]
    %v3929 = vld [vmem:[#allocation15 + $0x178] sm:$0xff]
    %v3930 = vld [vmem:[#allocation15 + $0x180] sm:$0xff]
    %v3931 = vld [vmem:[#allocation15 + $0x188] sm:$0xff]
    %v3932 = vld [vmem:[#allocation15 + $0x190] sm:$0xff]
    %v3933 = vld [vmem:[#allocation15 + $0x198] sm:$0xff]
    %v3934 = vld [vmem:[#allocation15 + $0x1a0] sm:$0xff]
    %v3935 = vld [vmem:[#allocation15 + $0x1a8] sm:$0xff]
    %v3936 = vld [vmem:[#allocation15 + $0x1b0] sm:$0xff]
    %v3937 = vld [vmem:[#allocation15 + $0x1b8] sm:$0xff]
    %v3938 = vld [vmem:[#allocation15 + $0x1c0] sm:$0xff]
    %v3939 = vld [vmem:[#allocation15 + $0x1c8] sm:$0xff]
    %v3940 = vld [vmem:[#allocation15 + $0x1d0] sm:$0xff]
    %v3941 = vld [vmem:[#allocation15 + $0x1d8] sm:$0xff]
    %v3942 = vld [vmem:[#allocation15 + $0x1e0] sm:$0xff]
    %v3943 = vld [vmem:[#allocation15 + $0x1e8] sm:$0xff]
    %v3944 = vld [vmem:[#allocation15 + $0x1f0] sm:$0xff]
    %v3945 = vld [vmem:[#allocation15 + $0x1f8] sm:$0xff]
    %v4010 = vunpack.c.l.b16 %v3882
    %v4011 = vunpack.c.h.b16 %v3882
    %v4012 = vunpack.c.l.b16 %v3883
    %v4013 = vunpack.c.h.b16 %v3883
    %v4014 = vunpack.c.l.b16 %v3884
    %v4015 = vunpack.c.h.b16 %v3884
    %v4016 = vunpack.c.l.b16 %v3885
    %v4017 = vunpack.c.h.b16 %v3885
    %v4018 = vunpack.c.l.b16 %v3886
    %v4019 = vunpack.c.h.b16 %v3886
    %v4020 = vunpack.c.l.b16 %v3887
    %v4021 = vunpack.c.h.b16 %v3887
    %v4022 = vunpack.c.l.b16 %v3888
    %v4023 = vunpack.c.h.b16 %v3888
    %v4024 = vunpack.c.l.b16 %v3889
    %v4025 = vunpack.c.h.b16 %v3889
    %v4026 = vunpack.c.l.b16 %v3890
    %v4027 = vunpack.c.h.b16 %v3890
    %v4028 = vunpack.c.l.b16 %v3891
    %v4029 = vunpack.c.h.b16 %v3891
    %v4030 = vunpack.c.l.b16 %v3892
    %v4031 = vunpack.c.h.b16 %v3892
    %v4032 = vunpack.c.l.b16 %v3893
    %v4033 = vunpack.c.h.b16 %v3893
    %v4034 = vunpack.c.l.b16 %v3894
    %v4035 = vunpack.c.h.b16 %v3894
    %v4036 = vunpack.c.l.b16 %v3895
    %v4037 = vunpack.c.h.b16 %v3895
    %v4038 = vunpack.c.l.b16 %v3896
    %v4039 = vunpack.c.h.b16 %v3896
    %v4040 = vunpack.c.l.b16 %v3897
    %v4041 = vunpack.c.h.b16 %v3897
    %v4042 = vunpack.c.l.b16 %v3898
    %v4043 = vunpack.c.h.b16 %v3898
    %v4044 = vunpack.c.l.b16 %v3899
    %v4045 = vunpack.c.h.b16 %v3899
    %v4046 = vunpack.c.l.b16 %v3900
    %v4047 = vunpack.c.h.b16 %v3900
    %v4048 = vunpack.c.l.b16 %v3901
    %v4049 = vunpack.c.h.b16 %v3901
    %v4050 = vunpack.c.l.b16 %v3902
    %v4051 = vunpack.c.h.b16 %v3902
    %v4052 = vunpack.c.l.b16 %v3903
    %v4053 = vunpack.c.h.b16 %v3903
    %v4054 = vunpack.c.l.b16 %v3904
    %v4055 = vunpack.c.h.b16 %v3904
    %v4056 = vunpack.c.l.b16 %v3905
    %v4057 = vunpack.c.h.b16 %v3905
    %v4058 = vunpack.c.l.b16 %v3906
    %v4059 = vunpack.c.h.b16 %v3906
    %v4060 = vunpack.c.l.b16 %v3907
    %v4061 = vunpack.c.h.b16 %v3907
    %v4062 = vunpack.c.l.b16 %v3908
    %v4063 = vunpack.c.h.b16 %v3908
    %v4064 = vunpack.c.l.b16 %v3909
    %v4065 = vunpack.c.h.b16 %v3909
    %v4066 = vunpack.c.l.b16 %v3910
    %v4067 = vunpack.c.h.b16 %v3910
    %v4068 = vunpack.c.l.b16 %v3911
    %v4069 = vunpack.c.h.b16 %v3911
    %v4070 = vunpack.c.l.b16 %v3912
    %v4071 = vunpack.c.h.b16 %v3912
    %v4072 = vunpack.c.l.b16 %v3913
    %v4073 = vunpack.c.h.b16 %v3913
    %v4074 = vunpack.c.l.b16 %v3914
    %v4075 = vunpack.c.h.b16 %v3914
    %v4076 = vunpack.c.l.b16 %v3915
    %v4077 = vunpack.c.h.b16 %v3915
    %v4078 = vunpack.c.l.b16 %v3916
    %v4079 = vunpack.c.h.b16 %v3916
    %v4080 = vunpack.c.l.b16 %v3917
    %v4081 = vunpack.c.h.b16 %v3917
    %v4082 = vunpack.c.l.b16 %v3918
    %v4083 = vunpack.c.h.b16 %v3918
    %v4084 = vunpack.c.l.b16 %v3919
    %v4085 = vunpack.c.h.b16 %v3919
    %v4086 = vunpack.c.l.b16 %v3920
    %v4087 = vunpack.c.h.b16 %v3920
    %v4088 = vunpack.c.l.b16 %v3921
    %v4089 = vunpack.c.h.b16 %v3921
    %v4090 = vunpack.c.l.b16 %v3922
    %v4091 = vunpack.c.h.b16 %v3922
    %v4092 = vunpack.c.l.b16 %v3923
    %v4093 = vunpack.c.h.b16 %v3923
    %v4094 = vunpack.c.l.b16 %v3924
    %v4095 = vunpack.c.h.b16 %v3924
    %v4096 = vunpack.c.l.b16 %v3925
    %v4097 = vunpack.c.h.b16 %v3925
    %v4098 = vunpack.c.l.b16 %v3926
    %v4099 = vunpack.c.h.b16 %v3926
    %v4100 = vunpack.c.l.b16 %v3927
    %v4101 = vunpack.c.h.b16 %v3927
    %v4102 = vunpack.c.l.b16 %v3928
    %v4103 = vunpack.c.h.b16 %v3928
    %v4104 = vunpack.c.l.b16 %v3929
    %v4105 = vunpack.c.h.b16 %v3929
    %v4106 = vunpack.c.l.b16 %v3930
    %v4107 = vunpack.c.h.b16 %v3930
    %v4108 = vunpack.c.l.b16 %v3931
    %v4109 = vunpack.c.h.b16 %v3931
    %v4110 = vunpack.c.l.b16 %v3932
    %v4111 = vunpack.c.h.b16 %v3932
    %v4112 = vunpack.c.l.b16 %v3933
    %v4113 = vunpack.c.h.b16 %v3933
    %v4114 = vunpack.c.l.b16 %v3934
    %v4115 = vunpack.c.h.b16 %v3934
    %v4116 = vunpack.c.l.b16 %v3935
    %v4117 = vunpack.c.h.b16 %v3935
    %v4118 = vunpack.c.l.b16 %v3936
    %v4119 = vunpack.c.h.b16 %v3936
    %v4120 = vunpack.c.l.b16 %v3937
    %v4121 = vunpack.c.h.b16 %v3937
    %v4122 = vunpack.c.l.b16 %v3938
    %v4123 = vunpack.c.h.b16 %v3938
    %v4124 = vunpack.c.l.b16 %v3939
    %v4125 = vunpack.c.h.b16 %v3939
    %v4126 = vunpack.c.l.b16 %v3940
    %v4127 = vunpack.c.h.b16 %v3940
    %v4128 = vunpack.c.l.b16 %v3941
    %v4129 = vunpack.c.h.b16 %v3941
    %v4130 = vunpack.c.l.b16 %v3942
    %v4131 = vunpack.c.h.b16 %v3942
    %v4132 = vunpack.c.l.b16 %v3943
    %v4133 = vunpack.c.h.b16 %v3943
    %v4134 = vunpack.c.l.b16 %v3944
    %v4135 = vunpack.c.h.b16 %v3944
    %v4136 = vunpack.c.l.b16 %v3945
    %v4137 = vunpack.c.h.b16 %v3945
    %v4138 = vpack.c.b16 %v4012, %v4010
    %v4139 = vpack.c.b16 %v4013, %v4011
    %v4140 = vpack.c.b16 %v4016, %v4014
    %v4141 = vpack.c.b16 %v4017, %v4015
    %v4142 = vpack.c.b16 %v4020, %v4018
    %v4143 = vpack.c.b16 %v4021, %v4019
    %v4144 = vpack.c.b16 %v4024, %v4022
    %v4145 = vpack.c.b16 %v4025, %v4023
    %v4146 = vpack.c.b16 %v4028, %v4026
    %v4147 = vpack.c.b16 %v4029, %v4027
    %v4148 = vpack.c.b16 %v4032, %v4030
    %v4149 = vpack.c.b16 %v4033, %v4031
    %v4150 = vpack.c.b16 %v4036, %v4034
    %v4151 = vpack.c.b16 %v4037, %v4035
    %v4152 = vpack.c.b16 %v4040, %v4038
    %v4153 = vpack.c.b16 %v4041, %v4039
    %v4154 = vpack.c.b16 %v4044, %v4042
    %v4155 = vpack.c.b16 %v4045, %v4043
    %v4156 = vpack.c.b16 %v4048, %v4046
    %v4157 = vpack.c.b16 %v4049, %v4047
    %v4158 = vpack.c.b16 %v4052, %v4050
    %v4159 = vpack.c.b16 %v4053, %v4051
    %v4160 = vpack.c.b16 %v4056, %v4054
    %v4161 = vpack.c.b16 %v4057, %v4055
    %v4162 = vpack.c.b16 %v4060, %v4058
    %v4163 = vpack.c.b16 %v4061, %v4059
    %v4164 = vpack.c.b16 %v4064, %v4062
    %v4165 = vpack.c.b16 %v4065, %v4063
    %v4166 = vpack.c.b16 %v4068, %v4066
    %v4167 = vpack.c.b16 %v4069, %v4067
    %v4168 = vpack.c.b16 %v4072, %v4070
    %v4169 = vpack.c.b16 %v4073, %v4071
    %v4170 = vpack.c.b16 %v4076, %v4074
    %v4171 = vpack.c.b16 %v4077, %v4075
    %v4172 = vpack.c.b16 %v4080, %v4078
    %v4173 = vpack.c.b16 %v4081, %v4079
    %v4174 = vpack.c.b16 %v4084, %v4082
    %v4175 = vpack.c.b16 %v4085, %v4083
    %v4176 = vpack.c.b16 %v4088, %v4086
    %v4177 = vpack.c.b16 %v4089, %v4087
    %v4178 = vpack.c.b16 %v4092, %v4090
    %v4179 = vpack.c.b16 %v4093, %v4091
    %v4180 = vpack.c.b16 %v4096, %v4094
    %v4181 = vpack.c.b16 %v4097, %v4095
    %v4182 = vpack.c.b16 %v4100, %v4098
    %v4183 = vpack.c.b16 %v4101, %v4099
    %v4184 = vpack.c.b16 %v4104, %v4102
    %v4185 = vpack.c.b16 %v4105, %v4103
    %v4186 = vpack.c.b16 %v4108, %v4106
    %v4187 = vpack.c.b16 %v4109, %v4107
    %v4188 = vpack.c.b16 %v4112, %v4110
    %v4189 = vpack.c.b16 %v4113, %v4111
    %v4190 = vpack.c.b16 %v4116, %v4114
    %v4191 = vpack.c.b16 %v4117, %v4115
    %v4192 = vpack.c.b16 %v4120, %v4118
    %v4193 = vpack.c.b16 %v4121, %v4119
    %v4194 = vpack.c.b16 %v4124, %v4122
    %v4195 = vpack.c.b16 %v4125, %v4123
    %v4196 = vpack.c.b16 %v4128, %v4126
    %v4197 = vpack.c.b16 %v4129, %v4127
    %v4198 = vpack.c.b16 %v4132, %v4130
    %v4199 = vpack.c.b16 %v4133, %v4131
    %v4200 = vpack.c.b16 %v4136, %v4134
    %v4201 = vpack.c.b16 %v4137, %v4135
    %4266 = vmatprep.subr.bf16.mxu0 %v4153
    %4267 = vmatpush1.bf16.msra.mxu0 %v4152
    %4268 = vmatprep.subr.bf16.mxu0 %v4151
    %4269 = vmatpush1.bf16.msra.mxu0 %v4150
    %4270 = vmatprep.subr.bf16.mxu0 %v4149
    %4271 = vmatpush1.bf16.msra.mxu0 %v4148
    %4272 = vmatprep.subr.bf16.mxu0 %v4147
    %4273 = vmatpush1.bf16.msra.mxu0 %v4146
    %4274 = vmatprep.subr.bf16.mxu0 %v4145
    %4275 = vmatpush1.bf16.msra.mxu0 %v4144
    %4276 = vmatprep.subr.bf16.mxu0 %v4143
    %4277 = vmatpush1.bf16.msra.mxu0 %v4142
    %4278 = vmatprep.subr.bf16.mxu0 %v4141
    %4279 = vmatpush1.bf16.msra.mxu0 %v4140
    %4280 = vmatprep.subr.bf16.mxu0 %v4139
    %4281 = vmatpush1.bf16.msra.mxu0 %v4138
    %4282 = vmatprep.subr.bf16.mxu0 %v4169
    %4283 = vmatpush2.bf16.msra.mxu0 %v4168
    %4284 = vmatprep.subr.bf16.mxu0 %v4167
    %4285 = vmatpush2.bf16.msra.mxu0 %v4166
    %4286 = vmatprep.subr.bf16.mxu0 %v4165
    %4287 = vmatpush2.bf16.msra.mxu0 %v4164
    %4288 = vmatprep.subr.bf16.mxu0 %v4163
    %4289 = vmatpush2.bf16.msra.mxu0 %v4162
    %4290 = vmatprep.subr.bf16.mxu0 %v4161
    %4291 = vmatpush2.bf16.msra.mxu0 %v4160
    %4292 = vmatprep.subr.bf16.mxu0 %v4159
    %4293 = vmatpush2.bf16.msra.mxu0 %v4158
    %4294 = vmatprep.subr.bf16.mxu0 %v4157
    %4295 = vmatpush2.bf16.msra.mxu0 %v4156
    %4296 = vmatprep.subr.bf16.mxu0 %v4155
    %4297 = vmatpush2.bf16.msra.mxu0 %v4154
    %4298 = vmatprep.mubr.bf16.mxu0 %v3867
    %4299 = vmatmul.mubr.bf16.gmra.mxu0 %v3865
    %v4300 = vpop.f32.mrf.mxu0
    %v4301 = vadd.f32 0.0, %v4300
    %v4302 = vpop.f32.mrf.mxu0
    %v4303 = vadd.f32 0.0, %v4302
    %v4304 = vpop.f32.mrf.mxu0
    %v4305 = vadd.f32 0.0, %v4304
    %v4306 = vpop.f32.mrf.mxu0
    %v4307 = vadd.f32 0.0, %v4306
    %4308 = vmatprep.mubr.bf16.mxu0 %v3875
    %4309 = vmatmul.mubr.bf16.gmra.mxu0 %v3873
    %v4310 = vpop.f32.mrf.mxu0
    %v4311 = vadd.f32 0.0, %v4310
    %v4312 = vpop.f32.mrf.mxu0
    %v4313 = vadd.f32 0.0, %v4312
    %v4314 = vpop.f32.mrf.mxu0
    %v4315 = vadd.f32 0.0, %v4314
    %v4316 = vpop.f32.mrf.mxu0
    %v4317 = vadd.f32 0.0, %v4316
    %4318 = vdwg.mxu0
    %4319 = vmatprep.subr.bf16.mxu0 %v4185
    %4320 = vmatpush1.bf16.msra.mxu0 %v4184
    %4321 = vmatprep.subr.bf16.mxu0 %v4183
    %4322 = vmatpush1.bf16.msra.mxu0 %v4182
    %4323 = vmatprep.subr.bf16.mxu0 %v4181
    %4324 = vmatpush1.bf16.msra.mxu0 %v4180
    %4325 = vmatprep.subr.bf16.mxu0 %v4179
    %4326 = vmatpush1.bf16.msra.mxu0 %v4178
    %4327 = vmatprep.subr.bf16.mxu0 %v4177
    %4328 = vmatpush1.bf16.msra.mxu0 %v4176
    %4329 = vmatprep.subr.bf16.mxu0 %v4175
    %4330 = vmatpush1.bf16.msra.mxu0 %v4174
    %4331 = vmatprep.subr.bf16.mxu0 %v4173
    %4332 = vmatpush1.bf16.msra.mxu0 %v4172
    %4333 = vmatprep.subr.bf16.mxu0 %v4171
    %4334 = vmatpush1.bf16.msra.mxu0 %v4170
    %4335 = vmatprep.subr.bf16.mxu0 %v4201
    %4336 = vmatpush2.bf16.msra.mxu0 %v4200
    %4337 = vmatprep.subr.bf16.mxu0 %v4199
    %4338 = vmatpush2.bf16.msra.mxu0 %v4198
    %4339 = vmatprep.subr.bf16.mxu0 %v4197
    %4340 = vmatpush2.bf16.msra.mxu0 %v4196
    %4341 = vmatprep.subr.bf16.mxu0 %v4195
    %4342 = vmatpush2.bf16.msra.mxu0 %v4194
    %4343 = vmatprep.subr.bf16.mxu0 %v4193
    %4344 = vmatpush2.bf16.msra.mxu0 %v4192
    %4345 = vmatprep.subr.bf16.mxu0 %v4191
    %4346 = vmatpush2.bf16.msra.mxu0 %v4190
    %4347 = vmatprep.subr.bf16.mxu0 %v4189
    %4348 = vmatpush2.bf16.msra.mxu0 %v4188
    %4349 = vmatprep.subr.bf16.mxu0 %v4187
    %4350 = vmatpush2.bf16.msra.mxu0 %v4186
    %4351 = vmatprep.mubr.bf16.mxu0 %v3871
    %4352 = vmatmul.mubr.bf16.gmra.mxu0 %v3869
    %v4353 = vpop.f32.mrf.mxu0
    %v4354 = vadd.f32 %v4301, %v4353
    %v4355 = vpop.f32.mrf.mxu0
    %v4356 = vadd.f32 %v4303, %v4355
    %v4357 = vpop.f32.mrf.mxu0
    %v4358 = vadd.f32 %v4305, %v4357
    %v4359 = vpop.f32.mrf.mxu0
    %v4360 = vadd.f32 %v4307, %v4359
    %4361 = vmatprep.mubr.bf16.mxu0 %v3879
    %4362 = vmatmul.mubr.bf16.gmra.mxu0 %v3877
    %v4363 = vpop.f32.mrf.mxu0
    %v4364 = vadd.f32 %v4311, %v4363
    %v4365 = vpop.f32.mrf.mxu0
    %v4366 = vadd.f32 %v4313, %v4365
    %v4367 = vpop.f32.mrf.mxu0
    %v4368 = vadd.f32 %v4315, %v4367
    %v4369 = vpop.f32.mrf.mxu0
    %v4370 = vadd.f32 %v4317, %v4369
    %4371 = vdwg.mxu0
    %v4373 = vlaneseq
    %v4374 = vshrl.u32 %v4373, 7
    %v4375 = vsub.s32 0, %v4374
    %v4376 = vrot.slane %v3881, %v4375
    %v4377 = vlaneseq
    %v4378 = vshrl.u32 %v4377, 7
    %v4379 = vsub.s32 1, %v4378
    %v4380 = vrot.slane %v3881, %v4379
    %v4383 = vadd.f32 %v4376, %v4354
    %v4384 = vadd.f32 %v4380, %v4356
    %v4385 = vadd.f32 %v4376, %v4358
    %v4386 = vadd.f32 %v4380, %v4360
    %v4387 = vadd.f32 %v4376, %v4364
    %v4388 = vadd.f32 %v4380, %v4366
    %v4389 = vadd.f32 %v4376, %v4368
    %v4390 = vadd.f32 %v4380, %v4370
    %v4391 = vshrl.u32 %v3865, 16
    %v4393 = vshll.u32 %v3865, 16
    %v4395 = vrot.slane %v4393, 1
    %v4396 = vor.u32 %v4391, %v4395
    %v4397 = vsel %vm356, %v4396, %v372
    %v4398 = vshrl.u32 %v3867, 16
    %v4400 = vshll.u32 %v3867, 16
    %v4402 = vrot.slane %v4400, 1
    %v4403 = vor.u32 %v4398, %v4402
    %v4404 = vsel %vm356, %v4403, %v372
    %v4405 = vshrl.u32 %v3869, 16
    %v4407 = vshll.u32 %v3869, 16
    %v4409 = vrot.slane %v4407, 1
    %v4410 = vor.u32 %v4405, %v4409
    %v4411 = vsel %vm356, %v4410, %v372
    %v4412 = vshrl.u32 %v3871, 16
    %v4414 = vshll.u32 %v3871, 16
    %v4416 = vrot.slane %v4414, 1
    %v4417 = vor.u32 %v4412, %v4416
    %v4418 = vsel %vm356, %v4417, %v372
    %v4419 = vshrl.u32 %v3873, 16
    %v4421 = vshll.u32 %v3873, 16
    %v4423 = vrot.slane %v4421, 1
    %v4424 = vor.u32 %v4419, %v4423
    %v4425 = vsel %vm356, %v4424, %v372
    %v4426 = vshrl.u32 %v3875, 16
    %v4428 = vshll.u32 %v3875, 16
    %v4430 = vrot.slane %v4428, 1
    %v4431 = vor.u32 %v4426, %v4430
    %v4432 = vsel %vm356, %v4431, %v372
    %v4433 = vshrl.u32 %v3877, 16
    %v4435 = vshll.u32 %v3877, 16
    %v4437 = vrot.slane %v4435, 1
    %v4438 = vor.u32 %v4433, %v4437
    %v4439 = vsel %vm356, %v4438, %v372
    %v4440 = vshrl.u32 %v3879, 16
    %v4442 = vshll.u32 %v3879, 16
    %v4444 = vrot.slane %v4442, 1
    %v4445 = vor.u32 %v4440, %v4444
    %v4446 = vsel %vm356, %v4445, %v372
    %s4455 = scalar_lea.vmem [#allocation15], 512
    %v4456 = vld [vmem:[%s4455] sm:$0xff]
    %v4457 = vld [vmem:[%s4455 + $0x8] sm:$0xff]
    %v4458 = vld [vmem:[%s4455 + $0x10] sm:$0xff]
    %v4459 = vld [vmem:[%s4455 + $0x18] sm:$0xff]
    %v4460 = vld [vmem:[%s4455 + $0x20] sm:$0xff]
    %v4461 = vld [vmem:[%s4455 + $0x28] sm:$0xff]
    %v4462 = vld [vmem:[%s4455 + $0x30] sm:$0xff]
    %v4463 = vld [vmem:[%s4455 + $0x38] sm:$0xff]
    %v4464 = vld [vmem:[%s4455 + $0x40] sm:$0xff]
    %v4465 = vld [vmem:[%s4455 + $0x48] sm:$0xff]
    %v4466 = vld [vmem:[%s4455 + $0x50] sm:$0xff]
    %v4467 = vld [vmem:[%s4455 + $0x58] sm:$0xff]
    %v4468 = vld [vmem:[%s4455 + $0x60] sm:$0xff]
    %v4469 = vld [vmem:[%s4455 + $0x68] sm:$0xff]
    %v4470 = vld [vmem:[%s4455 + $0x70] sm:$0xff]
    %v4471 = vld [vmem:[%s4455 + $0x78] sm:$0xff]
    %v4472 = vld [vmem:[%s4455 + $0x80] sm:$0xff]
    %v4473 = vld [vmem:[%s4455 + $0x88] sm:$0xff]
    %v4474 = vld [vmem:[%s4455 + $0x90] sm:$0xff]
    %v4475 = vld [vmem:[%s4455 + $0x98] sm:$0xff]
    %v4476 = vld [vmem:[%s4455 + $0xa0] sm:$0xff]
    %v4477 = vld [vmem:[%s4455 + $0xa8] sm:$0xff]
    %v4478 = vld [vmem:[%s4455 + $0xb0] sm:$0xff]
    %v4479 = vld [vmem:[%s4455 + $0xb8] sm:$0xff]
    %v4480 = vld [vmem:[%s4455 + $0xc0] sm:$0xff]
    %v4481 = vld [vmem:[%s4455 + $0xc8] sm:$0xff]
    %v4482 = vld [vmem:[%s4455 + $0xd0] sm:$0xff]
    %v4483 = vld [vmem:[%s4455 + $0xd8] sm:$0xff]
    %v4484 = vld [vmem:[%s4455 + $0xe0] sm:$0xff]
    %v4485 = vld [vmem:[%s4455 + $0xe8] sm:$0xff]
    %v4486 = vld [vmem:[%s4455 + $0xf0] sm:$0xff]
    %v4487 = vld [vmem:[%s4455 + $0xf8] sm:$0xff]
    %v4488 = vld [vmem:[%s4455 + $0x100] sm:$0xff]
    %v4489 = vld [vmem:[%s4455 + $0x108] sm:$0xff]
    %v4490 = vld [vmem:[%s4455 + $0x110] sm:$0xff]
    %v4491 = vld [vmem:[%s4455 + $0x118] sm:$0xff]
    %v4492 = vld [vmem:[%s4455 + $0x120] sm:$0xff]
    %v4493 = vld [vmem:[%s4455 + $0x128] sm:$0xff]
    %v4494 = vld [vmem:[%s4455 + $0x130] sm:$0xff]
    %v4495 = vld [vmem:[%s4455 + $0x138] sm:$0xff]
    %v4496 = vld [vmem:[%s4455 + $0x140] sm:$0xff]
    %v4497 = vld [vmem:[%s4455 + $0x148] sm:$0xff]
    %v4498 = vld [vmem:[%s4455 + $0x150] sm:$0xff]
    %v4499 = vld [vmem:[%s4455 + $0x158] sm:$0xff]
    %v4500 = vld [vmem:[%s4455 + $0x160] sm:$0xff]
    %v4501 = vld [vmem:[%s4455 + $0x168] sm:$0xff]
    %v4502 = vld [vmem:[%s4455 + $0x170] sm:$0xff]
    %v4503 = vld [vmem:[%s4455 + $0x178] sm:$0xff]
    %v4504 = vld [vmem:[%s4455 + $0x180] sm:$0xff]
    %v4505 = vld [vmem:[%s4455 + $0x188] sm:$0xff]
    %v4506 = vld [vmem:[%s4455 + $0x190] sm:$0xff]
    %v4507 = vld [vmem:[%s4455 + $0x198] sm:$0xff]
    %v4508 = vld [vmem:[%s4455 + $0x1a0] sm:$0xff]
    %v4509 = vld [vmem:[%s4455 + $0x1a8] sm:$0xff]
    %v4510 = vld [vmem:[%s4455 + $0x1b0] sm:$0xff]
    %v4511 = vld [vmem:[%s4455 + $0x1b8] sm:$0xff]
    %v4512 = vld [vmem:[%s4455 + $0x1c0] sm:$0xff]
    %v4513 = vld [vmem:[%s4455 + $0x1c8] sm:$0xff]
    %v4514 = vld [vmem:[%s4455 + $0x1d0] sm:$0xff]
    %v4515 = vld [vmem:[%s4455 + $0x1d8] sm:$0xff]
    %v4516 = vld [vmem:[%s4455 + $0x1e0] sm:$0xff]
    %v4517 = vld [vmem:[%s4455 + $0x1e8] sm:$0xff]
    %v4518 = vld [vmem:[%s4455 + $0x1f0] sm:$0xff]
    %v4519 = vld [vmem:[%s4455 + $0x1f8] sm:$0xff]
    %v4584 = vunpack.c.l.b16 %v4456
    %v4585 = vunpack.c.h.b16 %v4456
    %v4586 = vunpack.c.l.b16 %v4457
    %v4587 = vunpack.c.h.b16 %v4457
    %v4588 = vunpack.c.l.b16 %v4458
    %v4589 = vunpack.c.h.b16 %v4458
    %v4590 = vunpack.c.l.b16 %v4459
    %v4591 = vunpack.c.h.b16 %v4459
    %v4592 = vunpack.c.l.b16 %v4460
    %v4593 = vunpack.c.h.b16 %v4460
    %v4594 = vunpack.c.l.b16 %v4461
    %v4595 = vunpack.c.h.b16 %v4461
    %v4596 = vunpack.c.l.b16 %v4462
    %v4597 = vunpack.c.h.b16 %v4462
    %v4598 = vunpack.c.l.b16 %v4463
    %v4599 = vunpack.c.h.b16 %v4463
    %v4600 = vunpack.c.l.b16 %v4464
    %v4601 = vunpack.c.h.b16 %v4464
    %v4602 = vunpack.c.l.b16 %v4465
    %v4603 = vunpack.c.h.b16 %v4465
    %v4604 = vunpack.c.l.b16 %v4466
    %v4605 = vunpack.c.h.b16 %v4466
    %v4606 = vunpack.c.l.b16 %v4467
    %v4607 = vunpack.c.h.b16 %v4467
    %v4608 = vunpack.c.l.b16 %v4468
    %v4609 = vunpack.c.h.b16 %v4468
    %v4610 = vunpack.c.l.b16 %v4469
    %v4611 = vunpack.c.h.b16 %v4469
    %v4612 = vunpack.c.l.b16 %v4470
    %v4613 = vunpack.c.h.b16 %v4470
    %v4614 = vunpack.c.l.b16 %v4471
    %v4615 = vunpack.c.h.b16 %v4471
    %v4616 = vunpack.c.l.b16 %v4472
    %v4617 = vunpack.c.h.b16 %v4472
    %v4618 = vunpack.c.l.b16 %v4473
    %v4619 = vunpack.c.h.b16 %v4473
    %v4620 = vunpack.c.l.b16 %v4474
    %v4621 = vunpack.c.h.b16 %v4474
    %v4622 = vunpack.c.l.b16 %v4475
    %v4623 = vunpack.c.h.b16 %v4475
    %v4624 = vunpack.c.l.b16 %v4476
    %v4625 = vunpack.c.h.b16 %v4476
    %v4626 = vunpack.c.l.b16 %v4477
    %v4627 = vunpack.c.h.b16 %v4477
    %v4628 = vunpack.c.l.b16 %v4478
    %v4629 = vunpack.c.h.b16 %v4478
    %v4630 = vunpack.c.l.b16 %v4479
    %v4631 = vunpack.c.h.b16 %v4479
    %v4632 = vunpack.c.l.b16 %v4480
    %v4633 = vunpack.c.h.b16 %v4480
    %v4634 = vunpack.c.l.b16 %v4481
    %v4635 = vunpack.c.h.b16 %v4481
    %v4636 = vunpack.c.l.b16 %v4482
    %v4637 = vunpack.c.h.b16 %v4482
    %v4638 = vunpack.c.l.b16 %v4483
    %v4639 = vunpack.c.h.b16 %v4483
    %v4640 = vunpack.c.l.b16 %v4484
    %v4641 = vunpack.c.h.b16 %v4484
    %v4642 = vunpack.c.l.b16 %v4485
    %v4643 = vunpack.c.h.b16 %v4485
    %v4644 = vunpack.c.l.b16 %v4486
    %v4645 = vunpack.c.h.b16 %v4486
    %v4646 = vunpack.c.l.b16 %v4487
    %v4647 = vunpack.c.h.b16 %v4487
    %v4648 = vunpack.c.l.b16 %v4488
    %v4649 = vunpack.c.h.b16 %v4488
    %v4650 = vunpack.c.l.b16 %v4489
    %v4651 = vunpack.c.h.b16 %v4489
    %v4652 = vunpack.c.l.b16 %v4490
    %v4653 = vunpack.c.h.b16 %v4490
    %v4654 = vunpack.c.l.b16 %v4491
    %v4655 = vunpack.c.h.b16 %v4491
    %v4656 = vunpack.c.l.b16 %v4492
    %v4657 = vunpack.c.h.b16 %v4492
    %v4658 = vunpack.c.l.b16 %v4493
    %v4659 = vunpack.c.h.b16 %v4493
    %v4660 = vunpack.c.l.b16 %v4494
    %v4661 = vunpack.c.h.b16 %v4494
    %v4662 = vunpack.c.l.b16 %v4495
    %v4663 = vunpack.c.h.b16 %v4495
    %v4664 = vunpack.c.l.b16 %v4496
    %v4665 = vunpack.c.h.b16 %v4496
    %v4666 = vunpack.c.l.b16 %v4497
    %v4667 = vunpack.c.h.b16 %v4497
    %v4668 = vunpack.c.l.b16 %v4498
    %v4669 = vunpack.c.h.b16 %v4498
    %v4670 = vunpack.c.l.b16 %v4499
    %v4671 = vunpack.c.h.b16 %v4499
    %v4672 = vunpack.c.l.b16 %v4500
    %v4673 = vunpack.c.h.b16 %v4500
    %v4674 = vunpack.c.l.b16 %v4501
    %v4675 = vunpack.c.h.b16 %v4501
    %v4676 = vunpack.c.l.b16 %v4502
    %v4677 = vunpack.c.h.b16 %v4502
    %v4678 = vunpack.c.l.b16 %v4503
    %v4679 = vunpack.c.h.b16 %v4503
    %v4680 = vunpack.c.l.b16 %v4504
    %v4681 = vunpack.c.h.b16 %v4504
    %v4682 = vunpack.c.l.b16 %v4505
    %v4683 = vunpack.c.h.b16 %v4505
    %v4684 = vunpack.c.l.b16 %v4506
    %v4685 = vunpack.c.h.b16 %v4506
    %v4686 = vunpack.c.l.b16 %v4507
    %v4687 = vunpack.c.h.b16 %v4507
    %v4688 = vunpack.c.l.b16 %v4508
    %v4689 = vunpack.c.h.b16 %v4508
    %v4690 = vunpack.c.l.b16 %v4509
    %v4691 = vunpack.c.h.b16 %v4509
    %v4692 = vunpack.c.l.b16 %v4510
    %v4693 = vunpack.c.h.b16 %v4510
    %v4694 = vunpack.c.l.b16 %v4511
    %v4695 = vunpack.c.h.b16 %v4511
    %v4696 = vunpack.c.l.b16 %v4512
    %v4697 = vunpack.c.h.b16 %v4512
    %v4698 = vunpack.c.l.b16 %v4513
    %v4699 = vunpack.c.h.b16 %v4513
    %v4700 = vunpack.c.l.b16 %v4514
    %v4701 = vunpack.c.h.b16 %v4514
    %v4702 = vunpack.c.l.b16 %v4515
    %v4703 = vunpack.c.h.b16 %v4515
    %v4704 = vunpack.c.l.b16 %v4516
    %v4705 = vunpack.c.h.b16 %v4516
    %v4706 = vunpack.c.l.b16 %v4517
    %v4707 = vunpack.c.h.b16 %v4517
    %v4708 = vunpack.c.l.b16 %v4518
    %v4709 = vunpack.c.h.b16 %v4518
    %v4710 = vunpack.c.l.b16 %v4519
    %v4711 = vunpack.c.h.b16 %v4519
    %v4712 = vpack.c.b16 %v4586, %v4584
    %v4713 = vpack.c.b16 %v4587, %v4585
    %v4714 = vpack.c.b16 %v4590, %v4588
    %v4715 = vpack.c.b16 %v4591, %v4589
    %v4716 = vpack.c.b16 %v4594, %v4592
    %v4717 = vpack.c.b16 %v4595, %v4593
    %v4718 = vpack.c.b16 %v4598, %v4596
    %v4719 = vpack.c.b16 %v4599, %v4597
    %v4720 = vpack.c.b16 %v4602, %v4600
    %v4721 = vpack.c.b16 %v4603, %v4601
    %v4722 = vpack.c.b16 %v4606, %v4604
    %v4723 = vpack.c.b16 %v4607, %v4605
    %v4724 = vpack.c.b16 %v4610, %v4608
    %v4725 = vpack.c.b16 %v4611, %v4609
    %v4726 = vpack.c.b16 %v4614, %v4612
    %v4727 = vpack.c.b16 %v4615, %v4613
    %v4728 = vpack.c.b16 %v4618, %v4616
    %v4729 = vpack.c.b16 %v4619, %v4617
    %v4730 = vpack.c.b16 %v4622, %v4620
    %v4731 = vpack.c.b16 %v4623, %v4621
    %v4732 = vpack.c.b16 %v4626, %v4624
    %v4733 = vpack.c.b16 %v4627, %v4625
    %v4734 = vpack.c.b16 %v4630, %v4628
    %v4735 = vpack.c.b16 %v4631, %v4629
    %v4736 = vpack.c.b16 %v4634, %v4632
    %v4737 = vpack.c.b16 %v4635, %v4633
    %v4738 = vpack.c.b16 %v4638, %v4636
    %v4739 = vpack.c.b16 %v4639, %v4637
    %v4740 = vpack.c.b16 %v4642, %v4640
    %v4741 = vpack.c.b16 %v4643, %v4641
    %v4742 = vpack.c.b16 %v4646, %v4644
    %v4743 = vpack.c.b16 %v4647, %v4645
    %v4744 = vpack.c.b16 %v4650, %v4648
    %v4745 = vpack.c.b16 %v4651, %v4649
    %v4746 = vpack.c.b16 %v4654, %v4652
    %v4747 = vpack.c.b16 %v4655, %v4653
    %v4748 = vpack.c.b16 %v4658, %v4656
    %v4749 = vpack.c.b16 %v4659, %v4657
    %v4750 = vpack.c.b16 %v4662, %v4660
    %v4751 = vpack.c.b16 %v4663, %v4661
    %v4752 = vpack.c.b16 %v4666, %v4664
    %v4753 = vpack.c.b16 %v4667, %v4665
    %v4754 = vpack.c.b16 %v4670, %v4668
    %v4755 = vpack.c.b16 %v4671, %v4669
    %v4756 = vpack.c.b16 %v4674, %v4672
    %v4757 = vpack.c.b16 %v4675, %v4673
    %v4758 = vpack.c.b16 %v4678, %v4676
    %v4759 = vpack.c.b16 %v4679, %v4677
    %v4760 = vpack.c.b16 %v4682, %v4680
    %v4761 = vpack.c.b16 %v4683, %v4681
    %v4762 = vpack.c.b16 %v4686, %v4684
    %v4763 = vpack.c.b16 %v4687, %v4685
    %v4764 = vpack.c.b16 %v4690, %v4688
    %v4765 = vpack.c.b16 %v4691, %v4689
    %v4766 = vpack.c.b16 %v4694, %v4692
    %v4767 = vpack.c.b16 %v4695, %v4693
    %v4768 = vpack.c.b16 %v4698, %v4696
    %v4769 = vpack.c.b16 %v4699, %v4697
    %v4770 = vpack.c.b16 %v4702, %v4700
    %v4771 = vpack.c.b16 %v4703, %v4701
    %v4772 = vpack.c.b16 %v4706, %v4704
    %v4773 = vpack.c.b16 %v4707, %v4705
    %v4774 = vpack.c.b16 %v4710, %v4708
    %v4775 = vpack.c.b16 %v4711, %v4709
    %4840 = vmatprep.subr.bf16.mxu0 %v4727
    %4841 = vmatpush1.bf16.msra.mxu0 %v4726
    %4842 = vmatprep.subr.bf16.mxu0 %v4725
    %4843 = vmatpush1.bf16.msra.mxu0 %v4724
    %4844 = vmatprep.subr.bf16.mxu0 %v4723
    %4845 = vmatpush1.bf16.msra.mxu0 %v4722
    %4846 = vmatprep.subr.bf16.mxu0 %v4721
    %4847 = vmatpush1.bf16.msra.mxu0 %v4720
    %4848 = vmatprep.subr.bf16.mxu0 %v4719
    %4849 = vmatpush1.bf16.msra.mxu0 %v4718
    %4850 = vmatprep.subr.bf16.mxu0 %v4717
    %4851 = vmatpush1.bf16.msra.mxu0 %v4716
    %4852 = vmatprep.subr.bf16.mxu0 %v4715
    %4853 = vmatpush1.bf16.msra.mxu0 %v4714
    %4854 = vmatprep.subr.bf16.mxu0 %v4713
    %4855 = vmatpush1.bf16.msra.mxu0 %v4712
    %4856 = vmatprep.subr.bf16.mxu0 %v4743
    %4857 = vmatpush2.bf16.msra.mxu0 %v4742
    %4858 = vmatprep.subr.bf16.mxu0 %v4741
    %4859 = vmatpush2.bf16.msra.mxu0 %v4740
    %4860 = vmatprep.subr.bf16.mxu0 %v4739
    %4861 = vmatpush2.bf16.msra.mxu0 %v4738
    %4862 = vmatprep.subr.bf16.mxu0 %v4737
    %4863 = vmatpush2.bf16.msra.mxu0 %v4736
    %4864 = vmatprep.subr.bf16.mxu0 %v4735
    %4865 = vmatpush2.bf16.msra.mxu0 %v4734
    %4866 = vmatprep.subr.bf16.mxu0 %v4733
    %4867 = vmatpush2.bf16.msra.mxu0 %v4732
    %4868 = vmatprep.subr.bf16.mxu0 %v4731
    %4869 = vmatpush2.bf16.msra.mxu0 %v4730
    %4870 = vmatprep.subr.bf16.mxu0 %v4729
    %4871 = vmatpush2.bf16.msra.mxu0 %v4728
    %4872 = vmatprep.mubr.bf16.mxu0 %v4404
    %4873 = vmatmul.mubr.bf16.gmra.mxu0 %v4397
    %v4874 = vpop.f32.mrf.mxu0
    %v4875 = vadd.f32 0.0, %v4874
    %v4876 = vpop.f32.mrf.mxu0
    %v4877 = vadd.f32 0.0, %v4876
    %v4878 = vpop.f32.mrf.mxu0
    %v4879 = vadd.f32 0.0, %v4878
    %v4880 = vpop.f32.mrf.mxu0
    %v4881 = vadd.f32 0.0, %v4880
    %4882 = vmatprep.mubr.bf16.mxu0 %v4432
    %4883 = vmatmul.mubr.bf16.gmra.mxu0 %v4425
    %v4884 = vpop.f32.mrf.mxu0
    %v4885 = vadd.f32 0.0, %v4884
    %v4886 = vpop.f32.mrf.mxu0
    %v4887 = vadd.f32 0.0, %v4886
    %v4888 = vpop.f32.mrf.mxu0
    %v4889 = vadd.f32 0.0, %v4888
    %v4890 = vpop.f32.mrf.mxu0
    %v4891 = vadd.f32 0.0, %v4890
    %4892 = vdwg.mxu0
    %4893 = vmatprep.subr.bf16.mxu0 %v4759
    %4894 = vmatpush1.bf16.msra.mxu0 %v4758
    %4895 = vmatprep.subr.bf16.mxu0 %v4757
    %4896 = vmatpush1.bf16.msra.mxu0 %v4756
    %4897 = vmatprep.subr.bf16.mxu0 %v4755
    %4898 = vmatpush1.bf16.msra.mxu0 %v4754
    %4899 = vmatprep.subr.bf16.mxu0 %v4753
    %4900 = vmatpush1.bf16.msra.mxu0 %v4752
    %4901 = vmatprep.subr.bf16.mxu0 %v4751
    %4902 = vmatpush1.bf16.msra.mxu0 %v4750
    %4903 = vmatprep.subr.bf16.mxu0 %v4749
    %4904 = vmatpush1.bf16.msra.mxu0 %v4748
    %4905 = vmatprep.subr.bf16.mxu0 %v4747
    %4906 = vmatpush1.bf16.msra.mxu0 %v4746
    %4907 = vmatprep.subr.bf16.mxu0 %v4745
    %4908 = vmatpush1.bf16.msra.mxu0 %v4744
    %4909 = vmatprep.subr.bf16.mxu0 %v4775
    %4910 = vmatpush2.bf16.msra.mxu0 %v4774
    %4911 = vmatprep.subr.bf16.mxu0 %v4773
    %4912 = vmatpush2.bf16.msra.mxu0 %v4772
    %4913 = vmatprep.subr.bf16.mxu0 %v4771
    %4914 = vmatpush2.bf16.msra.mxu0 %v4770
    %4915 = vmatprep.subr.bf16.mxu0 %v4769
    %4916 = vmatpush2.bf16.msra.mxu0 %v4768
    %4917 = vmatprep.subr.bf16.mxu0 %v4767
    %4918 = vmatpush2.bf16.msra.mxu0 %v4766
    %4919 = vmatprep.subr.bf16.mxu0 %v4765
    %4920 = vmatpush2.bf16.msra.mxu0 %v4764
    %4921 = vmatprep.subr.bf16.mxu0 %v4763
    %4922 = vmatpush2.bf16.msra.mxu0 %v4762
    %4923 = vmatprep.subr.bf16.mxu0 %v4761
    %4924 = vmatpush2.bf16.msra.mxu0 %v4760
    %4925 = vmatprep.mubr.bf16.mxu0 %v4418
    %4926 = vmatmul.mubr.bf16.gmra.mxu0 %v4411
    %v4927 = vpop.f32.mrf.mxu0
    %v4928 = vadd.f32 %v4875, %v4927
    %v4929 = vpop.f32.mrf.mxu0
    %v4930 = vadd.f32 %v4877, %v4929
    %v4931 = vpop.f32.mrf.mxu0
    %v4932 = vadd.f32 %v4879, %v4931
    %v4933 = vpop.f32.mrf.mxu0
    %v4934 = vadd.f32 %v4881, %v4933
    %4935 = vmatprep.mubr.bf16.mxu0 %v4446
    %4936 = vmatmul.mubr.bf16.gmra.mxu0 %v4439
    %v4937 = vpop.f32.mrf.mxu0
    %v4938 = vadd.f32 %v4885, %v4937
    %v4939 = vpop.f32.mrf.mxu0
    %v4940 = vadd.f32 %v4887, %v4939
    %v4941 = vpop.f32.mrf.mxu0
    %v4942 = vadd.f32 %v4889, %v4941
    %v4943 = vpop.f32.mrf.mxu0
    %v4944 = vadd.f32 %v4891, %v4943
    %4945 = vdwg.mxu0
    %v4946 = vadd.f32 %v4383, %v4928
    %v4947 = vadd.f32 %v4384, %v4930
    %v4948 = vadd.f32 %v4385, %v4932
    %v4949 = vadd.f32 %v4386, %v4934
    %v4950 = vadd.f32 %v4387, %v4938
    %v4951 = vadd.f32 %v4388, %v4940
    %v4952 = vadd.f32 %v4389, %v4942
    %v4953 = vadd.f32 %v4390, %v4944
    %v4962 = vrot.slane %v3865, 1
    %v4963 = vsel %vm479, %v4962, %v483
    %v4964 = vrot.slane %v3867, 1
    %v4965 = vsel %vm479, %v4964, %v483
    %v4966 = vrot.slane %v3869, 1
    %v4967 = vsel %vm479, %v4966, %v483
    %v4968 = vrot.slane %v3871, 1
    %v4969 = vsel %vm479, %v4968, %v483
    %v4970 = vrot.slane %v3873, 1
    %v4971 = vsel %vm479, %v4970, %v483
    %v4972 = vrot.slane %v3875, 1
    %v4973 = vsel %vm479, %v4972, %v483
    %v4974 = vrot.slane %v3877, 1
    %v4975 = vsel %vm479, %v4974, %v483
    %v4976 = vrot.slane %v3879, 1
    %v4977 = vsel %vm479, %v4976, %v483
    %s4986 = scalar_lea.vmem [#allocation15], 1024
    %v4987 = vld [vmem:[%s4986] sm:$0xff]
    %v4988 = vld [vmem:[%s4986 + $0x8] sm:$0xff]
    %v4989 = vld [vmem:[%s4986 + $0x10] sm:$0xff]
    %v4990 = vld [vmem:[%s4986 + $0x18] sm:$0xff]
    %v4991 = vld [vmem:[%s4986 + $0x20] sm:$0xff]
    %v4992 = vld [vmem:[%s4986 + $0x28] sm:$0xff]
    %v4993 = vld [vmem:[%s4986 + $0x30] sm:$0xff]
    %v4994 = vld [vmem:[%s4986 + $0x38] sm:$0xff]
    %v4995 = vld [vmem:[%s4986 + $0x40] sm:$0xff]
    %v4996 = vld [vmem:[%s4986 + $0x48] sm:$0xff]
    %v4997 = vld [vmem:[%s4986 + $0x50] sm:$0xff]
    %v4998 = vld [vmem:[%s4986 + $0x58] sm:$0xff]
    %v4999 = vld [vmem:[%s4986 + $0x60] sm:$0xff]
    %v5000 = vld [vmem:[%s4986 + $0x68] sm:$0xff]
    %v5001 = vld [vmem:[%s4986 + $0x70] sm:$0xff]
    %v5002 = vld [vmem:[%s4986 + $0x78] sm:$0xff]
    %v5003 = vld [vmem:[%s4986 + $0x80] sm:$0xff]
    %v5004 = vld [vmem:[%s4986 + $0x88] sm:$0xff]
    %v5005 = vld [vmem:[%s4986 + $0x90] sm:$0xff]
    %v5006 = vld [vmem:[%s4986 + $0x98] sm:$0xff]
    %v5007 = vld [vmem:[%s4986 + $0xa0] sm:$0xff]
    %v5008 = vld [vmem:[%s4986 + $0xa8] sm:$0xff]
    %v5009 = vld [vmem:[%s4986 + $0xb0] sm:$0xff]
    %v5010 = vld [vmem:[%s4986 + $0xb8] sm:$0xff]
    %v5011 = vld [vmem:[%s4986 + $0xc0] sm:$0xff]
    %v5012 = vld [vmem:[%s4986 + $0xc8] sm:$0xff]
    %v5013 = vld [vmem:[%s4986 + $0xd0] sm:$0xff]
    %v5014 = vld [vmem:[%s4986 + $0xd8] sm:$0xff]
    %v5015 = vld [vmem:[%s4986 + $0xe0] sm:$0xff]
    %v5016 = vld [vmem:[%s4986 + $0xe8] sm:$0xff]
    %v5017 = vld [vmem:[%s4986 + $0xf0] sm:$0xff]
    %v5018 = vld [vmem:[%s4986 + $0xf8] sm:$0xff]
    %v5019 = vld [vmem:[%s4986 + $0x100] sm:$0xff]
    %v5020 = vld [vmem:[%s4986 + $0x108] sm:$0xff]
    %v5021 = vld [vmem:[%s4986 + $0x110] sm:$0xff]
    %v5022 = vld [vmem:[%s4986 + $0x118] sm:$0xff]
    %v5023 = vld [vmem:[%s4986 + $0x120] sm:$0xff]
    %v5024 = vld [vmem:[%s4986 + $0x128] sm:$0xff]
    %v5025 = vld [vmem:[%s4986 + $0x130] sm:$0xff]
    %v5026 = vld [vmem:[%s4986 + $0x138] sm:$0xff]
    %v5027 = vld [vmem:[%s4986 + $0x140] sm:$0xff]
    %v5028 = vld [vmem:[%s4986 + $0x148] sm:$0xff]
    %v5029 = vld [vmem:[%s4986 + $0x150] sm:$0xff]
    %v5030 = vld [vmem:[%s4986 + $0x158] sm:$0xff]
    %v5031 = vld [vmem:[%s4986 + $0x160] sm:$0xff]
    %v5032 = vld [vmem:[%s4986 + $0x168] sm:$0xff]
    %v5033 = vld [vmem:[%s4986 + $0x170] sm:$0xff]
    %v5034 = vld [vmem:[%s4986 + $0x178] sm:$0xff]
    %v5035 = vld [vmem:[%s4986 + $0x180] sm:$0xff]
    %v5036 = vld [vmem:[%s4986 + $0x188] sm:$0xff]
    %v5037 = vld [vmem:[%s4986 + $0x190] sm:$0xff]
    %v5038 = vld [vmem:[%s4986 + $0x198] sm:$0xff]
    %v5039 = vld [vmem:[%s4986 + $0x1a0] sm:$0xff]
    %v5040 = vld [vmem:[%s4986 + $0x1a8] sm:$0xff]
    %v5041 = vld [vmem:[%s4986 + $0x1b0] sm:$0xff]
    %v5042 = vld [vmem:[%s4986 + $0x1b8] sm:$0xff]
    %v5043 = vld [vmem:[%s4986 + $0x1c0] sm:$0xff]
    %v5044 = vld [vmem:[%s4986 + $0x1c8] sm:$0xff]
    %v5045 = vld [vmem:[%s4986 + $0x1d0] sm:$0xff]
    %v5046 = vld [vmem:[%s4986 + $0x1d8] sm:$0xff]
    %v5047 = vld [vmem:[%s4986 + $0x1e0] sm:$0xff]
    %v5048 = vld [vmem:[%s4986 + $0x1e8] sm:$0xff]
    %v5049 = vld [vmem:[%s4986 + $0x1f0] sm:$0xff]
    %v5050 = vld [vmem:[%s4986 + $0x1f8] sm:$0xff]
    %v5115 = vunpack.c.l.b16 %v4987
    %v5116 = vunpack.c.h.b16 %v4987
    %v5117 = vunpack.c.l.b16 %v4988
    %v5118 = vunpack.c.h.b16 %v4988
    %v5119 = vunpack.c.l.b16 %v4989
    %v5120 = vunpack.c.h.b16 %v4989
    %v5121 = vunpack.c.l.b16 %v4990
    %v5122 = vunpack.c.h.b16 %v4990
    %v5123 = vunpack.c.l.b16 %v4991
    %v5124 = vunpack.c.h.b16 %v4991
    %v5125 = vunpack.c.l.b16 %v4992
    %v5126 = vunpack.c.h.b16 %v4992
    %v5127 = vunpack.c.l.b16 %v4993
    %v5128 = vunpack.c.h.b16 %v4993
    %v5129 = vunpack.c.l.b16 %v4994
    %v5130 = vunpack.c.h.b16 %v4994
    %v5131 = vunpack.c.l.b16 %v4995
    %v5132 = vunpack.c.h.b16 %v4995
    %v5133 = vunpack.c.l.b16 %v4996
    %v5134 = vunpack.c.h.b16 %v4996
    %v5135 = vunpack.c.l.b16 %v4997
    %v5136 = vunpack.c.h.b16 %v4997
    %v5137 = vunpack.c.l.b16 %v4998
    %v5138 = vunpack.c.h.b16 %v4998
    %v5139 = vunpack.c.l.b16 %v4999
    %v5140 = vunpack.c.h.b16 %v4999
    %v5141 = vunpack.c.l.b16 %v5000
    %v5142 = vunpack.c.h.b16 %v5000
    %v5143 = vunpack.c.l.b16 %v5001
    %v5144 = vunpack.c.h.b16 %v5001
    %v5145 = vunpack.c.l.b16 %v5002
    %v5146 = vunpack.c.h.b16 %v5002
    %v5147 = vunpack.c.l.b16 %v5003
    %v5148 = vunpack.c.h.b16 %v5003
    %v5149 = vunpack.c.l.b16 %v5004
    %v5150 = vunpack.c.h.b16 %v5004
    %v5151 = vunpack.c.l.b16 %v5005
    %v5152 = vunpack.c.h.b16 %v5005
    %v5153 = vunpack.c.l.b16 %v5006
    %v5154 = vunpack.c.h.b16 %v5006
    %v5155 = vunpack.c.l.b16 %v5007
    %v5156 = vunpack.c.h.b16 %v5007
    %v5157 = vunpack.c.l.b16 %v5008
    %v5158 = vunpack.c.h.b16 %v5008
    %v5159 = vunpack.c.l.b16 %v5009
    %v5160 = vunpack.c.h.b16 %v5009
    %v5161 = vunpack.c.l.b16 %v5010
    %v5162 = vunpack.c.h.b16 %v5010
    %v5163 = vunpack.c.l.b16 %v5011
    %v5164 = vunpack.c.h.b16 %v5011
    %v5165 = vunpack.c.l.b16 %v5012
    %v5166 = vunpack.c.h.b16 %v5012
    %v5167 = vunpack.c.l.b16 %v5013
    %v5168 = vunpack.c.h.b16 %v5013
    %v5169 = vunpack.c.l.b16 %v5014
    %v5170 = vunpack.c.h.b16 %v5014
    %v5171 = vunpack.c.l.b16 %v5015
    %v5172 = vunpack.c.h.b16 %v5015
    %v5173 = vunpack.c.l.b16 %v5016
    %v5174 = vunpack.c.h.b16 %v5016
    %v5175 = vunpack.c.l.b16 %v5017
    %v5176 = vunpack.c.h.b16 %v5017
    %v5177 = vunpack.c.l.b16 %v5018
    %v5178 = vunpack.c.h.b16 %v5018
    %v5179 = vunpack.c.l.b16 %v5019
    %v5180 = vunpack.c.h.b16 %v5019
    %v5181 = vunpack.c.l.b16 %v5020
    %v5182 = vunpack.c.h.b16 %v5020
    %v5183 = vunpack.c.l.b16 %v5021
    %v5184 = vunpack.c.h.b16 %v5021
    %v5185 = vunpack.c.l.b16 %v5022
    %v5186 = vunpack.c.h.b16 %v5022
    %v5187 = vunpack.c.l.b16 %v5023
    %v5188 = vunpack.c.h.b16 %v5023
    %v5189 = vunpack.c.l.b16 %v5024
    %v5190 = vunpack.c.h.b16 %v5024
    %v5191 = vunpack.c.l.b16 %v5025
    %v5192 = vunpack.c.h.b16 %v5025
    %v5193 = vunpack.c.l.b16 %v5026
    %v5194 = vunpack.c.h.b16 %v5026
    %v5195 = vunpack.c.l.b16 %v5027
    %v5196 = vunpack.c.h.b16 %v5027
    %v5197 = vunpack.c.l.b16 %v5028
    %v5198 = vunpack.c.h.b16 %v5028
    %v5199 = vunpack.c.l.b16 %v5029
    %v5200 = vunpack.c.h.b16 %v5029
    %v5201 = vunpack.c.l.b16 %v5030
    %v5202 = vunpack.c.h.b16 %v5030
    %v5203 = vunpack.c.l.b16 %v5031
    %v5204 = vunpack.c.h.b16 %v5031
    %v5205 = vunpack.c.l.b16 %v5032
    %v5206 = vunpack.c.h.b16 %v5032
    %v5207 = vunpack.c.l.b16 %v5033
    %v5208 = vunpack.c.h.b16 %v5033
    %v5209 = vunpack.c.l.b16 %v5034
    %v5210 = vunpack.c.h.b16 %v5034
    %v5211 = vunpack.c.l.b16 %v5035
    %v5212 = vunpack.c.h.b16 %v5035
    %v5213 = vunpack.c.l.b16 %v5036
    %v5214 = vunpack.c.h.b16 %v5036
    %v5215 = vunpack.c.l.b16 %v5037
    %v5216 = vunpack.c.h.b16 %v5037
    %v5217 = vunpack.c.l.b16 %v5038
    %v5218 = vunpack.c.h.b16 %v5038
    %v5219 = vunpack.c.l.b16 %v5039
    %v5220 = vunpack.c.h.b16 %v5039
    %v5221 = vunpack.c.l.b16 %v5040
    %v5222 = vunpack.c.h.b16 %v5040
    %v5223 = vunpack.c.l.b16 %v5041
    %v5224 = vunpack.c.h.b16 %v5041
    %v5225 = vunpack.c.l.b16 %v5042
    %v5226 = vunpack.c.h.b16 %v5042
    %v5227 = vunpack.c.l.b16 %v5043
    %v5228 = vunpack.c.h.b16 %v5043
    %v5229 = vunpack.c.l.b16 %v5044
    %v5230 = vunpack.c.h.b16 %v5044
    %v5231 = vunpack.c.l.b16 %v5045
    %v5232 = vunpack.c.h.b16 %v5045
    %v5233 = vunpack.c.l.b16 %v5046
    %v5234 = vunpack.c.h.b16 %v5046
    %v5235 = vunpack.c.l.b16 %v5047
    %v5236 = vunpack.c.h.b16 %v5047
    %v5237 = vunpack.c.l.b16 %v5048
    %v5238 = vunpack.c.h.b16 %v5048
    %v5239 = vunpack.c.l.b16 %v5049
    %v5240 = vunpack.c.h.b16 %v5049
    %v5241 = vunpack.c.l.b16 %v5050
    %v5242 = vunpack.c.h.b16 %v5050
    %v5243 = vpack.c.b16 %v5117, %v5115
    %v5244 = vpack.c.b16 %v5118, %v5116
    %v5245 = vpack.c.b16 %v5121, %v5119
    %v5246 = vpack.c.b16 %v5122, %v5120
    %v5247 = vpack.c.b16 %v5125, %v5123
    %v5248 = vpack.c.b16 %v5126, %v5124
    %v5249 = vpack.c.b16 %v5129, %v5127
    %v5250 = vpack.c.b16 %v5130, %v5128
    %v5251 = vpack.c.b16 %v5133, %v5131
    %v5252 = vpack.c.b16 %v5134, %v5132
    %v5253 = vpack.c.b16 %v5137, %v5135
    %v5254 = vpack.c.b16 %v5138, %v5136
    %v5255 = vpack.c.b16 %v5141, %v5139
    %v5256 = vpack.c.b16 %v5142, %v5140
    %v5257 = vpack.c.b16 %v5145, %v5143
    %v5258 = vpack.c.b16 %v5146, %v5144
    %v5259 = vpack.c.b16 %v5149, %v5147
    %v5260 = vpack.c.b16 %v5150, %v5148
    %v5261 = vpack.c.b16 %v5153, %v5151
    %v5262 = vpack.c.b16 %v5154, %v5152
    %v5263 = vpack.c.b16 %v5157, %v5155
    %v5264 = vpack.c.b16 %v5158, %v5156
    %v5265 = vpack.c.b16 %v5161, %v5159
    %v5266 = vpack.c.b16 %v5162, %v5160
    %v5267 = vpack.c.b16 %v5165, %v5163
    %v5268 = vpack.c.b16 %v5166, %v5164
    %v5269 = vpack.c.b16 %v5169, %v5167
    %v5270 = vpack.c.b16 %v5170, %v5168
    %v5271 = vpack.c.b16 %v5173, %v5171
    %v5272 = vpack.c.b16 %v5174, %v5172
    %v5273 = vpack.c.b16 %v5177, %v5175
    %v5274 = vpack.c.b16 %v5178, %v5176
    %v5275 = vpack.c.b16 %v5181, %v5179
    %v5276 = vpack.c.b16 %v5182, %v5180
    %v5277 = vpack.c.b16 %v5185, %v5183
    %v5278 = vpack.c.b16 %v5186, %v5184
    %v5279 = vpack.c.b16 %v5189, %v5187
    %v5280 = vpack.c.b16 %v5190, %v5188
    %v5281 = vpack.c.b16 %v5193, %v5191
    %v5282 = vpack.c.b16 %v5194, %v5192
    %v5283 = vpack.c.b16 %v5197, %v5195
    %v5284 = vpack.c.b16 %v5198, %v5196
    %v5285 = vpack.c.b16 %v5201, %v5199
    %v5286 = vpack.c.b16 %v5202, %v5200
    %v5287 = vpack.c.b16 %v5205, %v5203
    %v5288 = vpack.c.b16 %v5206, %v5204
    %v5289 = vpack.c.b16 %v5209, %v5207
    %v5290 = vpack.c.b16 %v5210, %v5208
    %v5291 = vpack.c.b16 %v5213, %v5211
    %v5292 = vpack.c.b16 %v5214, %v5212
    %v5293 = vpack.c.b16 %v5217, %v5215
    %v5294 = vpack.c.b16 %v5218, %v5216
    %v5295 = vpack.c.b16 %v5221, %v5219
    %v5296 = vpack.c.b16 %v5222, %v5220
    %v5297 = vpack.c.b16 %v5225, %v5223
    %v5298 = vpack.c.b16 %v5226, %v5224
    %v5299 = vpack.c.b16 %v5229, %v5227
    %v5300 = vpack.c.b16 %v5230, %v5228
    %v5301 = vpack.c.b16 %v5233, %v5231
    %v5302 = vpack.c.b16 %v5234, %v5232
    %v5303 = vpack.c.b16 %v5237, %v5235
    %v5304 = vpack.c.b16 %v5238, %v5236
    %v5305 = vpack.c.b16 %v5241, %v5239
    %v5306 = vpack.c.b16 %v5242, %v5240
    %5371 = vmatprep.subr.bf16.mxu0 %v5258
    %5372 = vmatpush1.bf16.msra.mxu0 %v5257
    %5373 = vmatprep.subr.bf16.mxu0 %v5256
    %5374 = vmatpush1.bf16.msra.mxu0 %v5255
    %5375 = vmatprep.subr.bf16.mxu0 %v5254
    %5376 = vmatpush1.bf16.msra.mxu0 %v5253
    %5377 = vmatprep.subr.bf16.mxu0 %v5252
    %5378 = vmatpush1.bf16.msra.mxu0 %v5251
    %5379 = vmatprep.subr.bf16.mxu0 %v5250
    %5380 = vmatpush1.bf16.msra.mxu0 %v5249
    %5381 = vmatprep.subr.bf16.mxu0 %v5248
    %5382 = vmatpush1.bf16.msra.mxu0 %v5247
    %5383 = vmatprep.subr.bf16.mxu0 %v5246
    %5384 = vmatpush1.bf16.msra.mxu0 %v5245
    %5385 = vmatprep.subr.bf16.mxu0 %v5244
    %5386 = vmatpush1.bf16.msra.mxu0 %v5243
    %5387 = vmatprep.subr.bf16.mxu0 %v5274
    %5388 = vmatpush2.bf16.msra.mxu0 %v5273
    %5389 = vmatprep.subr.bf16.mxu0 %v5272
    %5390 = vmatpush2.bf16.msra.mxu0 %v5271
    %5391 = vmatprep.subr.bf16.mxu0 %v5270
    %5392 = vmatpush2.bf16.msra.mxu0 %v5269
    %5393 = vmatprep.subr.bf16.mxu0 %v5268
    %5394 = vmatpush2.bf16.msra.mxu0 %v5267
    %5395 = vmatprep.subr.bf16.mxu0 %v5266
    %5396 = vmatpush2.bf16.msra.mxu0 %v5265
    %5397 = vmatprep.subr.bf16.mxu0 %v5264
    %5398 = vmatpush2.bf16.msra.mxu0 %v5263
    %5399 = vmatprep.subr.bf16.mxu0 %v5262
    %5400 = vmatpush2.bf16.msra.mxu0 %v5261
    %5401 = vmatprep.subr.bf16.mxu0 %v5260
    %5402 = vmatpush2.bf16.msra.mxu0 %v5259
    %5403 = vmatprep.mubr.bf16.mxu0 %v4965
    %5404 = vmatmul.mubr.bf16.gmra.mxu0 %v4963
    %v5405 = vpop.f32.mrf.mxu0
    %v5406 = vadd.f32 0.0, %v5405
    %v5407 = vpop.f32.mrf.mxu0
    %v5408 = vadd.f32 0.0, %v5407
    %v5409 = vpop.f32.mrf.mxu0
    %v5410 = vadd.f32 0.0, %v5409
    %v5411 = vpop.f32.mrf.mxu0
    %v5412 = vadd.f32 0.0, %v5411
    %5413 = vmatprep.mubr.bf16.mxu0 %v4973
    %5414 = vmatmul.mubr.bf16.gmra.mxu0 %v4971
    %v5415 = vpop.f32.mrf.mxu0
    %v5416 = vadd.f32 0.0, %v5415
    %v5417 = vpop.f32.mrf.mxu0
    %v5418 = vadd.f32 0.0, %v5417
    %v5419 = vpop.f32.mrf.mxu0
    %v5420 = vadd.f32 0.0, %v5419
    %v5421 = vpop.f32.mrf.mxu0
    %v5422 = vadd.f32 0.0, %v5421
    %5423 = vdwg.mxu0
    %5424 = vmatprep.subr.bf16.mxu0 %v5290
    %5425 = vmatpush1.bf16.msra.mxu0 %v5289
    %5426 = vmatprep.subr.bf16.mxu0 %v5288
    %5427 = vmatpush1.bf16.msra.mxu0 %v5287
    %5428 = vmatprep.subr.bf16.mxu0 %v5286
    %5429 = vmatpush1.bf16.msra.mxu0 %v5285
    %5430 = vmatprep.subr.bf16.mxu0 %v5284
    %5431 = vmatpush1.bf16.msra.mxu0 %v5283
    %5432 = vmatprep.subr.bf16.mxu0 %v5282
    %5433 = vmatpush1.bf16.msra.mxu0 %v5281
    %5434 = vmatprep.subr.bf16.mxu0 %v5280
    %5435 = vmatpush1.bf16.msra.mxu0 %v5279
    %5436 = vmatprep.subr.bf16.mxu0 %v5278
    %5437 = vmatpush1.bf16.msra.mxu0 %v5277
    %5438 = vmatprep.subr.bf16.mxu0 %v5276
    %5439 = vmatpush1.bf16.msra.mxu0 %v5275
    %5440 = vmatprep.subr.bf16.mxu0 %v5306
    %5441 = vmatpush2.bf16.msra.mxu0 %v5305
    %5442 = vmatprep.subr.bf16.mxu0 %v5304
    %5443 = vmatpush2.bf16.msra.mxu0 %v5303
    %5444 = vmatprep.subr.bf16.mxu0 %v5302
    %5445 = vmatpush2.bf16.msra.mxu0 %v5301
    %5446 = vmatprep.subr.bf16.mxu0 %v5300
    %5447 = vmatpush2.bf16.msra.mxu0 %v5299
    %5448 = vmatprep.subr.bf16.mxu0 %v5298
    %5449 = vmatpush2.bf16.msra.mxu0 %v5297
    %5450 = vmatprep.subr.bf16.mxu0 %v5296
    %5451 = vmatpush2.bf16.msra.mxu0 %v5295
    %5452 = vmatprep.subr.bf16.mxu0 %v5294
    %5453 = vmatpush2.bf16.msra.mxu0 %v5293
    %5454 = vmatprep.subr.bf16.mxu0 %v5292
    %5455 = vmatpush2.bf16.msra.mxu0 %v5291
    %5456 = vmatprep.mubr.bf16.mxu0 %v4969
    %5457 = vmatmul.mubr.bf16.gmra.mxu0 %v4967
    %v5458 = vpop.f32.mrf.mxu0
    %v5459 = vadd.f32 %v5406, %v5458
    %v5460 = vpop.f32.mrf.mxu0
    %v5461 = vadd.f32 %v5408, %v5460
    %v5462 = vpop.f32.mrf.mxu0
    %v5463 = vadd.f32 %v5410, %v5462
    %v5464 = vpop.f32.mrf.mxu0
    %v5465 = vadd.f32 %v5412, %v5464
    %5466 = vmatprep.mubr.bf16.mxu0 %v4977
    %5467 = vmatmul.mubr.bf16.gmra.mxu0 %v4975
    %v5468 = vpop.f32.mrf.mxu0
    %v5469 = vadd.f32 %v5416, %v5468
    %v5470 = vpop.f32.mrf.mxu0
    %v5471 = vadd.f32 %v5418, %v5470
    %v5472 = vpop.f32.mrf.mxu0
    %v5473 = vadd.f32 %v5420, %v5472
    %v5474 = vpop.f32.mrf.mxu0
    %v5475 = vadd.f32 %v5422, %v5474
    %5476 = vdwg.mxu0
    %v5477 = vadd.f32 %v4946, %v5459
    %v5478 = vadd.f32 %v4947, %v5461
    %v5479 = vadd.f32 %v4948, %v5463
    %v5480 = vadd.f32 %v4949, %v5465
    %v5481 = vadd.f32 %v4950, %v5469
    %v5482 = vadd.f32 %v4951, %v5471
    %v5483 = vadd.f32 %v4952, %v5473
    %v5484 = vadd.f32 %v4953, %v5475
    %vm5485 = vcmp.gt.f32.partialorder %v5477, 0.0
    %vm5486 = vcmp.gt.f32.partialorder %v5478, 0.0
    %vm5487 = vcmp.gt.f32.partialorder %v5479, 0.0
    %vm5488 = vcmp.gt.f32.partialorder %v5480, 0.0
    %vm5489 = vcmp.gt.f32.partialorder %v5481, 0.0
    %vm5490 = vcmp.gt.f32.partialorder %v5482, 0.0
    %vm5491 = vcmp.gt.f32.partialorder %v5483, 0.0
    %vm5492 = vcmp.gt.f32.partialorder %v5484, 0.0
    %v5493 = vmul.f32 %v581, %v5477
    %v5494 = vmul.f32 %v581, %v5478
    %v5495 = vmul.f32 %v581, %v5479
    %v5496 = vmul.f32 %v581, %v5480
    %v5497 = vmul.f32 %v581, %v5481
    %v5498 = vmul.f32 %v581, %v5482
    %v5499 = vmul.f32 %v581, %v5483
    %v5500 = vmul.f32 %v581, %v5484
    %v5501 = vsel %vm5485, %v5477, %v5493
    %v5502 = vsel %vm5486, %v5478, %v5494
    %v5503 = vsel %vm5487, %v5479, %v5495
    %v5504 = vsel %vm5488, %v5480, %v5496
    %v5505 = vsel %vm5489, %v5481, %v5497
    %v5506 = vsel %vm5490, %v5482, %v5498
    %v5507 = vsel %vm5491, %v5483, %v5499
    %v5508 = vsel %vm5492, %v5484, %v5500
    %v5509 = vadd.f32 %v5501, %v2162
    %v5510 = vadd.f32 %v5502, %v2163
    %v5511 = vadd.f32 %v5503, %v2164
    %v5512 = vadd.f32 %v5504, %v2165
    %v5513 = vadd.f32 %v5505, %v2166
    %v5514 = vadd.f32 %v5506, %v2167
    %v5515 = vadd.f32 %v5507, %v2168
    %v5516 = vadd.f32 %v5508, %v2169
    %v5517 = vpack.c.bf16 %v5511, %v5509
    %v5518 = vpack.c.bf16 %v5512, %v5510
    %v5519 = vpack.c.bf16 %v5515, %v5513
    %v5520 = vpack.c.bf16 %v5516, %v5514
    %v5525 = vrot.slane %v5517, 7
    %v5526 = vrot.slane %v5518, 7
    %v5527 = vrot.slane %v5519, 7
    %v5528 = vrot.slane %v5520, 7
    %v5530 = vsel %vm275, 0, %v5525
    %v5533 = vsel %vm275, 0, %v5526
    %v5536 = vsel %vm275, 0, %v5527
    %v5539 = vsel %vm275, 0, %v5528
    %v5541 = vld [vmem:[#allocation20] sm:$0x1]
    %v5542 = vld [vmem:[#allocation18] sm:$0xf]
    %v5543 = vld [vmem:[#allocation18 + $0x4] sm:$0xf]
    %v5544 = vld [vmem:[#allocation18 + $0x8] sm:$0xf]
    %v5545 = vld [vmem:[#allocation18 + $0xc] sm:$0xf]
    %v5546 = vld [vmem:[#allocation18 + $0x10] sm:$0xf]
    %v5547 = vld [vmem:[#allocation18 + $0x14] sm:$0xf]
    %v5548 = vld [vmem:[#allocation18 + $0x18] sm:$0xf]
    %v5549 = vld [vmem:[#allocation18 + $0x1c] sm:$0xf]
    %v5550 = vld [vmem:[#allocation18 + $0x20] sm:$0xf]
    %v5551 = vld [vmem:[#allocation18 + $0x24] sm:$0xf]
    %v5552 = vld [vmem:[#allocation18 + $0x28] sm:$0xf]
    %v5553 = vld [vmem:[#allocation18 + $0x2c] sm:$0xf]
    %v5554 = vld [vmem:[#allocation18 + $0x30] sm:$0xf]
    %v5555 = vld [vmem:[#allocation18 + $0x34] sm:$0xf]
    %v5556 = vld [vmem:[#allocation18 + $0x38] sm:$0xf]
    %v5557 = vld [vmem:[#allocation18 + $0x3c] sm:$0xf]
    %v5558 = vld [vmem:[#allocation18 + $0x40] sm:$0xf]
    %v5559 = vld [vmem:[#allocation18 + $0x44] sm:$0xf]
    %v5560 = vld [vmem:[#allocation18 + $0x48] sm:$0xf]
    %v5561 = vld [vmem:[#allocation18 + $0x4c] sm:$0xf]
    %v5562 = vld [vmem:[#allocation18 + $0x50] sm:$0xf]
    %v5563 = vld [vmem:[#allocation18 + $0x54] sm:$0xf]
    %v5564 = vld [vmem:[#allocation18 + $0x58] sm:$0xf]
    %v5565 = vld [vmem:[#allocation18 + $0x5c] sm:$0xf]
    %v5566 = vld [vmem:[#allocation18 + $0x60] sm:$0xf]
    %v5567 = vld [vmem:[#allocation18 + $0x64] sm:$0xf]
    %v5568 = vld [vmem:[#allocation18 + $0x68] sm:$0xf]
    %v5569 = vld [vmem:[#allocation18 + $0x6c] sm:$0xf]
    %v5570 = vld [vmem:[#allocation18 + $0x70] sm:$0xf]
    %v5571 = vld [vmem:[#allocation18 + $0x74] sm:$0xf]
    %v5572 = vld [vmem:[#allocation18 + $0x78] sm:$0xf]
    %v5573 = vld [vmem:[#allocation18 + $0x7c] sm:$0xf]
    %v5606 = vunpack.c.l.b16 %v5542
    %v5607 = vunpack.c.l.b16 %v5543
    %v5608 = vunpack.c.l.b16 %v5544
    %v5609 = vunpack.c.l.b16 %v5545
    %v5610 = vunpack.c.l.b16 %v5546
    %v5611 = vunpack.c.l.b16 %v5547
    %v5612 = vunpack.c.l.b16 %v5548
    %v5613 = vunpack.c.l.b16 %v5549
    %v5614 = vunpack.c.l.b16 %v5550
    %v5615 = vunpack.c.l.b16 %v5551
    %v5616 = vunpack.c.l.b16 %v5552
    %v5617 = vunpack.c.l.b16 %v5553
    %v5618 = vunpack.c.l.b16 %v5554
    %v5619 = vunpack.c.l.b16 %v5555
    %v5620 = vunpack.c.l.b16 %v5556
    %v5621 = vunpack.c.l.b16 %v5557
    %v5622 = vunpack.c.l.b16 %v5558
    %v5623 = vunpack.c.l.b16 %v5559
    %v5624 = vunpack.c.l.b16 %v5560
    %v5625 = vunpack.c.l.b16 %v5561
    %v5626 = vunpack.c.l.b16 %v5562
    %v5627 = vunpack.c.l.b16 %v5563
    %v5628 = vunpack.c.l.b16 %v5564
    %v5629 = vunpack.c.l.b16 %v5565
    %v5630 = vunpack.c.l.b16 %v5566
    %v5631 = vunpack.c.l.b16 %v5567
    %v5632 = vunpack.c.l.b16 %v5568
    %v5633 = vunpack.c.l.b16 %v5569
    %v5634 = vunpack.c.l.b16 %v5570
    %v5635 = vunpack.c.l.b16 %v5571
    %v5636 = vunpack.c.l.b16 %v5572
    %v5637 = vunpack.c.l.b16 %v5573
    %v5638 = vpack.c.b16 %v5607, %v5606
    %v5639 = vpack.c.b16 %v5609, %v5608
    %v5640 = vpack.c.b16 %v5611, %v5610
    %v5641 = vpack.c.b16 %v5613, %v5612
    %v5642 = vpack.c.b16 %v5615, %v5614
    %v5643 = vpack.c.b16 %v5617, %v5616
    %v5644 = vpack.c.b16 %v5619, %v5618
    %v5645 = vpack.c.b16 %v5621, %v5620
    %v5646 = vpack.c.b16 %v5623, %v5622
    %v5647 = vpack.c.b16 %v5625, %v5624
    %v5648 = vpack.c.b16 %v5627, %v5626
    %v5649 = vpack.c.b16 %v5629, %v5628
    %v5650 = vpack.c.b16 %v5631, %v5630
    %v5651 = vpack.c.b16 %v5633, %v5632
    %v5652 = vpack.c.b16 %v5635, %v5634
    %v5653 = vpack.c.b16 %v5637, %v5636
    %5670 = vmatprep.subr.bf16.mxu0 0
    %5671 = vmatpush1.bf16.msra.mxu0 %v5645
    %5672 = vmatprep.subr.bf16.mxu0 0
    %5673 = vmatpush1.bf16.msra.mxu0 %v5644
    %5674 = vmatprep.subr.bf16.mxu0 0
    %5675 = vmatpush1.bf16.msra.mxu0 %v5643
    %5676 = vmatprep.subr.bf16.mxu0 0
    %5677 = vmatpush1.bf16.msra.mxu0 %v5642
    %5678 = vmatprep.subr.bf16.mxu0 0
    %5679 = vmatpush1.bf16.msra.mxu0 %v5641
    %5680 = vmatprep.subr.bf16.mxu0 0
    %5681 = vmatpush1.bf16.msra.mxu0 %v5640
    %5682 = vmatprep.subr.bf16.mxu0 0
    %5683 = vmatpush1.bf16.msra.mxu0 %v5639
    %5684 = vmatprep.subr.bf16.mxu0 0
    %5685 = vmatpush1.bf16.msra.mxu0 %v5638
    %5686 = vmatprep.subr.bf16.mxu0 0
    %5687 = vmatpush2.bf16.msra.mxu0 %v5653
    %5688 = vmatprep.subr.bf16.mxu0 0
    %5689 = vmatpush2.bf16.msra.mxu0 %v5652
    %5690 = vmatprep.subr.bf16.mxu0 0
    %5691 = vmatpush2.bf16.msra.mxu0 %v5651
    %5692 = vmatprep.subr.bf16.mxu0 0
    %5693 = vmatpush2.bf16.msra.mxu0 %v5650
    %5694 = vmatprep.subr.bf16.mxu0 0
    %5695 = vmatpush2.bf16.msra.mxu0 %v5649
    %5696 = vmatprep.subr.bf16.mxu0 0
    %5697 = vmatpush2.bf16.msra.mxu0 %v5648
    %5698 = vmatprep.subr.bf16.mxu0 0
    %5699 = vmatpush2.bf16.msra.mxu0 %v5647
    %5700 = vmatprep.subr.bf16.mxu0 0
    %5701 = vmatpush2.bf16.msra.mxu0 %v5646
    %5702 = vmatprep.mubr.bf16.mxu0 %v5533
    %5703 = vmatmul.mubr.bf16.gmra.mxu0 %v5530
    %v5704 = vpop.f32.mrf.mxu0
    %v5705 = vadd.f32 0.0, %v5704
    %v5706 = vpop.f32.mrf.mxu0
    %v5707 = vpop.f32.mrf.mxu0
    %v5708 = vadd.f32 0.0, %v5707
    %v5709 = vpop.f32.mrf.mxu0
    %5710 = vmatprep.mubr.bf16.mxu0 %v5539
    %5711 = vmatmul.mubr.bf16.gmra.mxu0 %v5536
    %v5712 = vpop.f32.mrf.mxu0
    %v5713 = vadd.f32 0.0, %v5712
    %v5714 = vpop.f32.mrf.mxu0
    %v5715 = vpop.f32.mrf.mxu0
    %v5716 = vadd.f32 0.0, %v5715
    %v5717 = vpop.f32.mrf.mxu0
    %5718 = vdwg.mxu0
    %v5720 = vlaneseq
    %v5721 = vshrl.u32 %v5720, 7
    %v5722 = vsub.s32 0, %v5721
    %v5723 = vrot.slane %v5541, %v5722
    %v5725 = vadd.f32 %v5723, %v5705
    %v5726 = vadd.f32 %v5723, %v5708
    %v5727 = vadd.f32 %v5723, %v5713
    %v5728 = vadd.f32 %v5723, %v5716
    %v5729 = vshrl.u32 %v5530, 16
    %v5731 = vshll.u32 %v5530, 16
    %v5733 = vrot.slane %v5731, 1
    %v5734 = vor.u32 %v5729, %v5733
    %v5735 = vsel %vm356, %v5734, %v372
    %v5736 = vshrl.u32 %v5533, 16
    %v5738 = vshll.u32 %v5533, 16
    %v5740 = vrot.slane %v5738, 1
    %v5741 = vor.u32 %v5736, %v5740
    %v5742 = vsel %vm356, %v5741, %v372
    %v5743 = vshrl.u32 %v5536, 16
    %v5745 = vshll.u32 %v5536, 16
    %v5747 = vrot.slane %v5745, 1
    %v5748 = vor.u32 %v5743, %v5747
    %v5749 = vsel %vm356, %v5748, %v372
    %v5750 = vshrl.u32 %v5539, 16
    %v5752 = vshll.u32 %v5539, 16
    %v5754 = vrot.slane %v5752, 1
    %v5755 = vor.u32 %v5750, %v5754
    %v5756 = vsel %vm356, %v5755, %v372
    %s5761 = scalar_lea.vmem [#allocation18], 128
    %v5762 = vld [vmem:[%s5761] sm:$0xf]
    %v5763 = vld [vmem:[%s5761 + $0x4] sm:$0xf]
    %v5764 = vld [vmem:[%s5761 + $0x8] sm:$0xf]
    %v5765 = vld [vmem:[%s5761 + $0xc] sm:$0xf]
    %v5766 = vld [vmem:[%s5761 + $0x10] sm:$0xf]
    %v5767 = vld [vmem:[%s5761 + $0x14] sm:$0xf]
    %v5768 = vld [vmem:[%s5761 + $0x18] sm:$0xf]
    %v5769 = vld [vmem:[%s5761 + $0x1c] sm:$0xf]
    %v5770 = vld [vmem:[%s5761 + $0x20] sm:$0xf]
    %v5771 = vld [vmem:[%s5761 + $0x24] sm:$0xf]
    %v5772 = vld [vmem:[%s5761 + $0x28] sm:$0xf]
    %v5773 = vld [vmem:[%s5761 + $0x2c] sm:$0xf]
    %v5774 = vld [vmem:[%s5761 + $0x30] sm:$0xf]
    %v5775 = vld [vmem:[%s5761 + $0x34] sm:$0xf]
    %v5776 = vld [vmem:[%s5761 + $0x38] sm:$0xf]
    %v5777 = vld [vmem:[%s5761 + $0x3c] sm:$0xf]
    %v5778 = vld [vmem:[%s5761 + $0x40] sm:$0xf]
    %v5779 = vld [vmem:[%s5761 + $0x44] sm:$0xf]
    %v5780 = vld [vmem:[%s5761 + $0x48] sm:$0xf]
    %v5781 = vld [vmem:[%s5761 + $0x4c] sm:$0xf]
    %v5782 = vld [vmem:[%s5761 + $0x50] sm:$0xf]
    %v5783 = vld [vmem:[%s5761 + $0x54] sm:$0xf]
    %v5784 = vld [vmem:[%s5761 + $0x58] sm:$0xf]
    %v5785 = vld [vmem:[%s5761 + $0x5c] sm:$0xf]
    %v5786 = vld [vmem:[%s5761 + $0x60] sm:$0xf]
    %v5787 = vld [vmem:[%s5761 + $0x64] sm:$0xf]
    %v5788 = vld [vmem:[%s5761 + $0x68] sm:$0xf]
    %v5789 = vld [vmem:[%s5761 + $0x6c] sm:$0xf]
    %v5790 = vld [vmem:[%s5761 + $0x70] sm:$0xf]
    %v5791 = vld [vmem:[%s5761 + $0x74] sm:$0xf]
    %v5792 = vld [vmem:[%s5761 + $0x78] sm:$0xf]
    %v5793 = vld [vmem:[%s5761 + $0x7c] sm:$0xf]
    %v5826 = vunpack.c.l.b16 %v5762
    %v5827 = vunpack.c.l.b16 %v5763
    %v5828 = vunpack.c.l.b16 %v5764
    %v5829 = vunpack.c.l.b16 %v5765
    %v5830 = vunpack.c.l.b16 %v5766
    %v5831 = vunpack.c.l.b16 %v5767
    %v5832 = vunpack.c.l.b16 %v5768
    %v5833 = vunpack.c.l.b16 %v5769
    %v5834 = vunpack.c.l.b16 %v5770
    %v5835 = vunpack.c.l.b16 %v5771
    %v5836 = vunpack.c.l.b16 %v5772
    %v5837 = vunpack.c.l.b16 %v5773
    %v5838 = vunpack.c.l.b16 %v5774
    %v5839 = vunpack.c.l.b16 %v5775
    %v5840 = vunpack.c.l.b16 %v5776
    %v5841 = vunpack.c.l.b16 %v5777
    %v5842 = vunpack.c.l.b16 %v5778
    %v5843 = vunpack.c.l.b16 %v5779
    %v5844 = vunpack.c.l.b16 %v5780
    %v5845 = vunpack.c.l.b16 %v5781
    %v5846 = vunpack.c.l.b16 %v5782
    %v5847 = vunpack.c.l.b16 %v5783
    %v5848 = vunpack.c.l.b16 %v5784
    %v5849 = vunpack.c.l.b16 %v5785
    %v5850 = vunpack.c.l.b16 %v5786
    %v5851 = vunpack.c.l.b16 %v5787
    %v5852 = vunpack.c.l.b16 %v5788
    %v5853 = vunpack.c.l.b16 %v5789
    %v5854 = vunpack.c.l.b16 %v5790
    %v5855 = vunpack.c.l.b16 %v5791
    %v5856 = vunpack.c.l.b16 %v5792
    %v5857 = vunpack.c.l.b16 %v5793
    %v5858 = vpack.c.b16 %v5827, %v5826
    %v5859 = vpack.c.b16 %v5829, %v5828
    %v5860 = vpack.c.b16 %v5831, %v5830
    %v5861 = vpack.c.b16 %v5833, %v5832
    %v5862 = vpack.c.b16 %v5835, %v5834
    %v5863 = vpack.c.b16 %v5837, %v5836
    %v5864 = vpack.c.b16 %v5839, %v5838
    %v5865 = vpack.c.b16 %v5841, %v5840
    %v5866 = vpack.c.b16 %v5843, %v5842
    %v5867 = vpack.c.b16 %v5845, %v5844
    %v5868 = vpack.c.b16 %v5847, %v5846
    %v5869 = vpack.c.b16 %v5849, %v5848
    %v5870 = vpack.c.b16 %v5851, %v5850
    %v5871 = vpack.c.b16 %v5853, %v5852
    %v5872 = vpack.c.b16 %v5855, %v5854
    %v5873 = vpack.c.b16 %v5857, %v5856
    %5890 = vmatprep.subr.bf16.mxu0 0
    %5891 = vmatpush1.bf16.msra.mxu0 %v5865
    %5892 = vmatprep.subr.bf16.mxu0 0
    %5893 = vmatpush1.bf16.msra.mxu0 %v5864
    %5894 = vmatprep.subr.bf16.mxu0 0
    %5895 = vmatpush1.bf16.msra.mxu0 %v5863
    %5896 = vmatprep.subr.bf16.mxu0 0
    %5897 = vmatpush1.bf16.msra.mxu0 %v5862
    %5898 = vmatprep.subr.bf16.mxu0 0
    %5899 = vmatpush1.bf16.msra.mxu0 %v5861
    %5900 = vmatprep.subr.bf16.mxu0 0
    %5901 = vmatpush1.bf16.msra.mxu0 %v5860
    %5902 = vmatprep.subr.bf16.mxu0 0
    %5903 = vmatpush1.bf16.msra.mxu0 %v5859
    %5904 = vmatprep.subr.bf16.mxu0 0
    %5905 = vmatpush1.bf16.msra.mxu0 %v5858
    %5906 = vmatprep.subr.bf16.mxu0 0
    %5907 = vmatpush2.bf16.msra.mxu0 %v5873
    %5908 = vmatprep.subr.bf16.mxu0 0
    %5909 = vmatpush2.bf16.msra.mxu0 %v5872
    %5910 = vmatprep.subr.bf16.mxu0 0
    %5911 = vmatpush2.bf16.msra.mxu0 %v5871
    %5912 = vmatprep.subr.bf16.mxu0 0
    %5913 = vmatpush2.bf16.msra.mxu0 %v5870
    %5914 = vmatprep.subr.bf16.mxu0 0
    %5915 = vmatpush2.bf16.msra.mxu0 %v5869
    %5916 = vmatprep.subr.bf16.mxu0 0
    %5917 = vmatpush2.bf16.msra.mxu0 %v5868
    %5918 = vmatprep.subr.bf16.mxu0 0
    %5919 = vmatpush2.bf16.msra.mxu0 %v5867
    %5920 = vmatprep.subr.bf16.mxu0 0
    %5921 = vmatpush2.bf16.msra.mxu0 %v5866
    %5922 = vmatprep.mubr.bf16.mxu0 %v5742
    %5923 = vmatmul.mubr.bf16.gmra.mxu0 %v5735
    %v5924 = vpop.f32.mrf.mxu0
    %v5925 = vadd.f32 0.0, %v5924
    %v5926 = vpop.f32.mrf.mxu0
    %v5927 = vpop.f32.mrf.mxu0
    %v5928 = vadd.f32 0.0, %v5927
    %v5929 = vpop.f32.mrf.mxu0
    %5930 = vmatprep.mubr.bf16.mxu0 %v5756
    %5931 = vmatmul.mubr.bf16.gmra.mxu0 %v5749
    %v5932 = vpop.f32.mrf.mxu0
    %v5933 = vadd.f32 0.0, %v5932
    %v5934 = vpop.f32.mrf.mxu0
    %v5935 = vpop.f32.mrf.mxu0
    %v5936 = vadd.f32 0.0, %v5935
    %v5937 = vpop.f32.mrf.mxu0
    %5938 = vdwg.mxu0
    %v5939 = vadd.f32 %v5725, %v5925
    %v5940 = vadd.f32 %v5726, %v5928
    %v5941 = vadd.f32 %v5727, %v5933
    %v5942 = vadd.f32 %v5728, %v5936
    %v5947 = vrot.slane %v5530, 1
    %v5948 = vsel %vm479, %v5947, %v483
    %v5949 = vrot.slane %v5533, 1
    %v5950 = vsel %vm479, %v5949, %v483
    %v5951 = vrot.slane %v5536, 1
    %v5952 = vsel %vm479, %v5951, %v483
    %v5953 = vrot.slane %v5539, 1
    %v5954 = vsel %vm479, %v5953, %v483
    %s5959 = scalar_lea.vmem [#allocation18], 256
    %v5960 = vld [vmem:[%s5959] sm:$0xf]
    %v5961 = vld [vmem:[%s5959 + $0x4] sm:$0xf]
    %v5962 = vld [vmem:[%s5959 + $0x8] sm:$0xf]
    %v5963 = vld [vmem:[%s5959 + $0xc] sm:$0xf]
    %v5964 = vld [vmem:[%s5959 + $0x10] sm:$0xf]
    %v5965 = vld [vmem:[%s5959 + $0x14] sm:$0xf]
    %v5966 = vld [vmem:[%s5959 + $0x18] sm:$0xf]
    %v5967 = vld [vmem:[%s5959 + $0x1c] sm:$0xf]
    %v5968 = vld [vmem:[%s5959 + $0x20] sm:$0xf]
    %v5969 = vld [vmem:[%s5959 + $0x24] sm:$0xf]
    %v5970 = vld [vmem:[%s5959 + $0x28] sm:$0xf]
    %v5971 = vld [vmem:[%s5959 + $0x2c] sm:$0xf]
    %v5972 = vld [vmem:[%s5959 + $0x30] sm:$0xf]
    %v5973 = vld [vmem:[%s5959 + $0x34] sm:$0xf]
    %v5974 = vld [vmem:[%s5959 + $0x38] sm:$0xf]
    %v5975 = vld [vmem:[%s5959 + $0x3c] sm:$0xf]
    %v5976 = vld [vmem:[%s5959 + $0x40] sm:$0xf]
    %v5977 = vld [vmem:[%s5959 + $0x44] sm:$0xf]
    %v5978 = vld [vmem:[%s5959 + $0x48] sm:$0xf]
    %v5979 = vld [vmem:[%s5959 + $0x4c] sm:$0xf]
    %v5980 = vld [vmem:[%s5959 + $0x50] sm:$0xf]
    %v5981 = vld [vmem:[%s5959 + $0x54] sm:$0xf]
    %v5982 = vld [vmem:[%s5959 + $0x58] sm:$0xf]
    %v5983 = vld [vmem:[%s5959 + $0x5c] sm:$0xf]
    %v5984 = vld [vmem:[%s5959 + $0x60] sm:$0xf]
    %v5985 = vld [vmem:[%s5959 + $0x64] sm:$0xf]
    %v5986 = vld [vmem:[%s5959 + $0x68] sm:$0xf]
    %v5987 = vld [vmem:[%s5959 + $0x6c] sm:$0xf]
    %v5988 = vld [vmem:[%s5959 + $0x70] sm:$0xf]
    %v5989 = vld [vmem:[%s5959 + $0x74] sm:$0xf]
    %v5990 = vld [vmem:[%s5959 + $0x78] sm:$0xf]
    %v5991 = vld [vmem:[%s5959 + $0x7c] sm:$0xf]
    %v6024 = vunpack.c.l.b16 %v5960
    %v6025 = vunpack.c.l.b16 %v5961
    %v6026 = vunpack.c.l.b16 %v5962
    %v6027 = vunpack.c.l.b16 %v5963
    %v6028 = vunpack.c.l.b16 %v5964
    %v6029 = vunpack.c.l.b16 %v5965
    %v6030 = vunpack.c.l.b16 %v5966
    %v6031 = vunpack.c.l.b16 %v5967
    %v6032 = vunpack.c.l.b16 %v5968
    %v6033 = vunpack.c.l.b16 %v5969
    %v6034 = vunpack.c.l.b16 %v5970
    %v6035 = vunpack.c.l.b16 %v5971
    %v6036 = vunpack.c.l.b16 %v5972
    %v6037 = vunpack.c.l.b16 %v5973
    %v6038 = vunpack.c.l.b16 %v5974
    %v6039 = vunpack.c.l.b16 %v5975
    %v6040 = vunpack.c.l.b16 %v5976
    %v6041 = vunpack.c.l.b16 %v5977
    %v6042 = vunpack.c.l.b16 %v5978
    %v6043 = vunpack.c.l.b16 %v5979
    %v6044 = vunpack.c.l.b16 %v5980
    %v6045 = vunpack.c.l.b16 %v5981
    %v6046 = vunpack.c.l.b16 %v5982
    %v6047 = vunpack.c.l.b16 %v5983
    %v6048 = vunpack.c.l.b16 %v5984
    %v6049 = vunpack.c.l.b16 %v5985
    %v6050 = vunpack.c.l.b16 %v5986
    %v6051 = vunpack.c.l.b16 %v5987
    %v6052 = vunpack.c.l.b16 %v5988
    %v6053 = vunpack.c.l.b16 %v5989
    %v6054 = vunpack.c.l.b16 %v5990
    %v6055 = vunpack.c.l.b16 %v5991
    %v6056 = vpack.c.b16 %v6025, %v6024
    %v6057 = vpack.c.b16 %v6027, %v6026
    %v6058 = vpack.c.b16 %v6029, %v6028
    %v6059 = vpack.c.b16 %v6031, %v6030
    %v6060 = vpack.c.b16 %v6033, %v6032
    %v6061 = vpack.c.b16 %v6035, %v6034
    %v6062 = vpack.c.b16 %v6037, %v6036
    %v6063 = vpack.c.b16 %v6039, %v6038
    %v6064 = vpack.c.b16 %v6041, %v6040
    %v6065 = vpack.c.b16 %v6043, %v6042
    %v6066 = vpack.c.b16 %v6045, %v6044
    %v6067 = vpack.c.b16 %v6047, %v6046
    %v6068 = vpack.c.b16 %v6049, %v6048
    %v6069 = vpack.c.b16 %v6051, %v6050
    %v6070 = vpack.c.b16 %v6053, %v6052
    %v6071 = vpack.c.b16 %v6055, %v6054
    %6088 = vmatprep.subr.bf16.mxu0 0
    %6089 = vmatpush1.bf16.msra.mxu0 %v6063
    %6090 = vmatprep.subr.bf16.mxu0 0
    %6091 = vmatpush1.bf16.msra.mxu0 %v6062
    %6092 = vmatprep.subr.bf16.mxu0 0
    %6093 = vmatpush1.bf16.msra.mxu0 %v6061
    %6094 = vmatprep.subr.bf16.mxu0 0
    %6095 = vmatpush1.bf16.msra.mxu0 %v6060
    %6096 = vmatprep.subr.bf16.mxu0 0
    %6097 = vmatpush1.bf16.msra.mxu0 %v6059
    %6098 = vmatprep.subr.bf16.mxu0 0
    %6099 = vmatpush1.bf16.msra.mxu0 %v6058
    %6100 = vmatprep.subr.bf16.mxu0 0
    %6101 = vmatpush1.bf16.msra.mxu0 %v6057
    %6102 = vmatprep.subr.bf16.mxu0 0
    %6103 = vmatpush1.bf16.msra.mxu0 %v6056
    %6104 = vmatprep.subr.bf16.mxu0 0
    %6105 = vmatpush2.bf16.msra.mxu0 %v6071
    %6106 = vmatprep.subr.bf16.mxu0 0
    %6107 = vmatpush2.bf16.msra.mxu0 %v6070
    %6108 = vmatprep.subr.bf16.mxu0 0
    %6109 = vmatpush2.bf16.msra.mxu0 %v6069
    %6110 = vmatprep.subr.bf16.mxu0 0
    %6111 = vmatpush2.bf16.msra.mxu0 %v6068
    %6112 = vmatprep.subr.bf16.mxu0 0
    %6113 = vmatpush2.bf16.msra.mxu0 %v6067
    %6114 = vmatprep.subr.bf16.mxu0 0
    %6115 = vmatpush2.bf16.msra.mxu0 %v6066
    %6116 = vmatprep.subr.bf16.mxu0 0
    %6117 = vmatpush2.bf16.msra.mxu0 %v6065
    %6118 = vmatprep.subr.bf16.mxu0 0
    %6119 = vmatpush2.bf16.msra.mxu0 %v6064
    %6120 = vmatprep.mubr.bf16.mxu0 %v5950
    %6121 = vmatmul.mubr.bf16.gmra.mxu0 %v5948
    %v6122 = vpop.f32.mrf.mxu0
    %v6123 = vadd.f32 0.0, %v6122
    %v6124 = vpop.f32.mrf.mxu0
    %v6125 = vpop.f32.mrf.mxu0
    %v6126 = vadd.f32 0.0, %v6125
    %v6127 = vpop.f32.mrf.mxu0
    %6128 = vmatprep.mubr.bf16.mxu0 %v5954
    %6129 = vmatmul.mubr.bf16.gmra.mxu0 %v5952
    %v6130 = vpop.f32.mrf.mxu0
    %v6131 = vadd.f32 0.0, %v6130
    %v6132 = vpop.f32.mrf.mxu0
    %v6133 = vpop.f32.mrf.mxu0
    %v6134 = vadd.f32 0.0, %v6133
    %v6135 = vpop.f32.mrf.mxu0
    %6136 = vdwg.mxu0
    %v6137 = vadd.f32 %v5939, %v6123
    %v6138 = vadd.f32 %v5940, %v6126
    %v6139 = vadd.f32 %v5941, %v6131
    %v6140 = vadd.f32 %v5942, %v6134
    %vm6141 = vcmp.gt.f32.partialorder %v6137, 0.0
    %vm6142 = vcmp.gt.f32.partialorder %v6138, 0.0
    %vm6143 = vcmp.gt.f32.partialorder %v6139, 0.0
    %vm6144 = vcmp.gt.f32.partialorder %v6140, 0.0
    %v6145 = vmul.f32 %v581, %v6137
    %v6146 = vmul.f32 %v581, %v6138
    %v6147 = vmul.f32 %v581, %v6139
    %v6148 = vmul.f32 %v581, %v6140
    %v6149 = vsel %vm6141, %v6137, %v6145
    %v6150 = vsel %vm6142, %v6138, %v6146
    %v6151 = vsel %vm6143, %v6139, %v6147
    %v6152 = vsel %vm6144, %v6140, %v6148
    %v6153 = vadd.f32 %v6149, %v1629
    %v6154 = vadd.f32 %v6150, %v1630
    %v6155 = vadd.f32 %v6151, %v1631
    %v6156 = vadd.f32 %v6152, %v1632
    %v6157 = vpack.c.bf16 %v6154, %v6153
    %v6158 = vpack.c.bf16 %v6156, %v6155
    %v6161 = vrot.slane %v6157, 7
    %v6162 = vrot.slane %v6158, 7
    %v6164 = vsel %vm275, 0, %v6161
    %v6167 = vsel %vm275, 0, %v6162
    %v6169 = vsel %vm275, %v6161, 0
    %v6171 = vsel %vm275, %v6162, 0
    %v6173 = vld [vmem:[#allocation21] sm:$0x1]
    %v6174 = vld [vmem:[%s18] sm:$0xf]
    %v6175 = vld [vmem:[%s18 + $0x4] sm:$0xf]
    %v6176 = vld [vmem:[%s18 + $0x8] sm:$0xf]
    %v6177 = vld [vmem:[%s18 + $0xc] sm:$0xf]
    %v6178 = vld [vmem:[%s18 + $0x10] sm:$0xf]
    %v6179 = vld [vmem:[%s18 + $0x14] sm:$0xf]
    %v6180 = vld [vmem:[%s18 + $0x18] sm:$0xf]
    %v6181 = vld [vmem:[%s18 + $0x1c] sm:$0xf]
    %v6182 = vld [vmem:[%s18 + $0x20] sm:$0xf]
    %v6183 = vld [vmem:[%s18 + $0x24] sm:$0xf]
    %v6184 = vld [vmem:[%s18 + $0x28] sm:$0xf]
    %v6185 = vld [vmem:[%s18 + $0x2c] sm:$0xf]
    %v6186 = vld [vmem:[%s18 + $0x30] sm:$0xf]
    %v6187 = vld [vmem:[%s18 + $0x34] sm:$0xf]
    %v6188 = vld [vmem:[%s18 + $0x38] sm:$0xf]
    %v6189 = vld [vmem:[%s18 + $0x3c] sm:$0xf]
    %v6206 = vunpack.c.l.b16 %v6174
    %v6207 = vunpack.c.l.b16 %v6175
    %v6208 = vunpack.c.l.b16 %v6176
    %v6209 = vunpack.c.l.b16 %v6177
    %v6210 = vunpack.c.l.b16 %v6178
    %v6211 = vunpack.c.l.b16 %v6179
    %v6212 = vunpack.c.l.b16 %v6180
    %v6213 = vunpack.c.l.b16 %v6181
    %v6214 = vunpack.c.l.b16 %v6182
    %v6215 = vunpack.c.l.b16 %v6183
    %v6216 = vunpack.c.l.b16 %v6184
    %v6217 = vunpack.c.l.b16 %v6185
    %v6218 = vunpack.c.l.b16 %v6186
    %v6219 = vunpack.c.l.b16 %v6187
    %v6220 = vunpack.c.l.b16 %v6188
    %v6221 = vunpack.c.l.b16 %v6189
    %v6222 = vpack.c.b16 %v6207, %v6206
    %v6223 = vpack.c.b16 %v6209, %v6208
    %v6224 = vpack.c.b16 %v6211, %v6210
    %v6225 = vpack.c.b16 %v6213, %v6212
    %v6226 = vpack.c.b16 %v6215, %v6214
    %v6227 = vpack.c.b16 %v6217, %v6216
    %v6228 = vpack.c.b16 %v6219, %v6218
    %v6229 = vpack.c.b16 %v6221, %v6220
    %6238 = vmatprep.subr.bf16.mxu0 0
    %6239 = vmatpush1.bf16.msra.mxu0 %v6229
    %6240 = vmatprep.subr.bf16.mxu0 0
    %6241 = vmatpush1.bf16.msra.mxu0 %v6228
    %6242 = vmatprep.subr.bf16.mxu0 0
    %6243 = vmatpush1.bf16.msra.mxu0 %v6227
    %6244 = vmatprep.subr.bf16.mxu0 0
    %6245 = vmatpush1.bf16.msra.mxu0 %v6226
    %6246 = vmatprep.subr.bf16.mxu0 0
    %6247 = vmatpush1.bf16.msra.mxu0 %v6225
    %6248 = vmatprep.subr.bf16.mxu0 0
    %6249 = vmatpush1.bf16.msra.mxu0 %v6224
    %6250 = vmatprep.subr.bf16.mxu0 0
    %6251 = vmatpush1.bf16.msra.mxu0 %v6223
    %6252 = vmatprep.subr.bf16.mxu0 0
    %6253 = vmatpush1.bf16.msra.mxu0 %v6222
    %6254 = vmatprep.subr.bf16.mxu0 0
    %6255 = vmatpush2.bf16.msra.mxu0 0
    %6256 = vmatprep.subr.bf16.mxu0 0
    %6257 = vmatpush2.bf16.msra.mxu0 0
    %6258 = vmatprep.subr.bf16.mxu0 0
    %6259 = vmatpush2.bf16.msra.mxu0 0
    %6260 = vmatprep.subr.bf16.mxu0 0
    %6261 = vmatpush2.bf16.msra.mxu0 0
    %6262 = vmatprep.subr.bf16.mxu0 0
    %6263 = vmatpush2.bf16.msra.mxu0 0
    %6264 = vmatprep.subr.bf16.mxu0 0
    %6265 = vmatpush2.bf16.msra.mxu0 0
    %6266 = vmatprep.subr.bf16.mxu0 0
    %6267 = vmatpush2.bf16.msra.mxu0 0
    %6268 = vmatprep.subr.bf16.mxu0 0
    %6269 = vmatpush2.bf16.msra.mxu0 0
    %6270 = vmatprep.mubr.bf16.mxu0 0
    %6271 = vmatmul.mubr.bf16.gmra.mxu0 %v6164
    %v6272 = vpop.f32.mrf.mxu0
    %v6273 = vadd.f32 0.0, %v6272
    %v6274 = vpop.f32.mrf.mxu0
    %v6275 = vpop.f32.mrf.mxu0
    %v6276 = vadd.f32 0.0, %v6275
    %v6277 = vpop.f32.mrf.mxu0
    %6278 = vmatprep.mubr.bf16.mxu0 0
    %6279 = vmatmul.mubr.bf16.gmra.mxu0 %v6169
    %v6280 = vpop.f32.mrf.mxu0
    %v6281 = vadd.f32 0.0, %v6280
    %v6282 = vpop.f32.mrf.mxu0
    %v6283 = vpop.f32.mrf.mxu0
    %v6284 = vpop.f32.mrf.mxu0
    %6285 = vmatprep.mubr.bf16.mxu0 0
    %6286 = vmatmul.mubr.bf16.gmra.mxu0 %v6167
    %v6287 = vpop.f32.mrf.mxu0
    %v6288 = vadd.f32 0.0, %v6287
    %v6289 = vpop.f32.mrf.mxu0
    %v6290 = vpop.f32.mrf.mxu0
    %v6291 = vadd.f32 0.0, %v6290
    %v6292 = vpop.f32.mrf.mxu0
    %6293 = vmatprep.mubr.bf16.mxu0 0
    %6294 = vmatmul.mubr.bf16.gmra.mxu0 %v6171
    %v6295 = vpop.f32.mrf.mxu0
    %v6296 = vadd.f32 0.0, %v6295
    %v6297 = vpop.f32.mrf.mxu0
    %v6298 = vpop.f32.mrf.mxu0
    %v6299 = vpop.f32.mrf.mxu0
    %6300 = vdwg.mxu0
    %v6302 = vlaneseq
    %v6303 = vshrl.u32 %v6302, 7
    %v6304 = vsub.s32 0, %v6303
    %v6305 = vrot.slane %v6173, %v6304
    %v6307 = vadd.f32 %v6305, %v6273
    %v6308 = vadd.f32 %v6305, %v6276
    %v6309 = vadd.f32 %v6305, %v6281
    %v6310 = vadd.f32 %v6305, %v6288
    %v6311 = vadd.f32 %v6305, %v6291
    %v6312 = vadd.f32 %v6305, %v6296
    %v6313 = vshrl.u32 %v6164, 16
    %v6315 = vshll.u32 %v6164, 16
    %v6317 = vrot.slane %v6315, 1
    %v6318 = vor.u32 %v6313, %v6317
    %v6319 = vshll.u32 %v6169, 16
    %v6321 = vrot.slane %v6319, 1
    %v6322 = vsel %vm356, %v6318, %v6321
    %v6323 = vshrl.u32 %v6169, 16
    %v6325 = vor.u32 %v6323, %v6321
    %v6326 = vsel %vm356, %v6325, %v372
    %v6327 = vshrl.u32 %v6167, 16
    %v6329 = vshll.u32 %v6167, 16
    %v6331 = vrot.slane %v6329, 1
    %v6332 = vor.u32 %v6327, %v6331
    %v6333 = vshll.u32 %v6171, 16
    %v6335 = vrot.slane %v6333, 1
    %v6336 = vsel %vm356, %v6332, %v6335
    %v6337 = vshrl.u32 %v6171, 16
    %v6339 = vor.u32 %v6337, %v6335
    %v6340 = vsel %vm356, %v6339, %v372
    %s6345 = scalar_lea.vmem %s18, 64
    %v6346 = vld [vmem:[%s6345] sm:$0xf]
    %v6347 = vld [vmem:[%s6345 + $0x4] sm:$0xf]
    %v6348 = vld [vmem:[%s6345 + $0x8] sm:$0xf]
    %v6349 = vld [vmem:[%s6345 + $0xc] sm:$0xf]
    %v6350 = vld [vmem:[%s6345 + $0x10] sm:$0xf]
    %v6351 = vld [vmem:[%s6345 + $0x14] sm:$0xf]
    %v6352 = vld [vmem:[%s6345 + $0x18] sm:$0xf]
    %v6353 = vld [vmem:[%s6345 + $0x1c] sm:$0xf]
    %v6354 = vld [vmem:[%s6345 + $0x20] sm:$0xf]
    %v6355 = vld [vmem:[%s6345 + $0x24] sm:$0xf]
    %v6356 = vld [vmem:[%s6345 + $0x28] sm:$0xf]
    %v6357 = vld [vmem:[%s6345 + $0x2c] sm:$0xf]
    %v6358 = vld [vmem:[%s6345 + $0x30] sm:$0xf]
    %v6359 = vld [vmem:[%s6345 + $0x34] sm:$0xf]
    %v6360 = vld [vmem:[%s6345 + $0x38] sm:$0xf]
    %v6361 = vld [vmem:[%s6345 + $0x3c] sm:$0xf]
    %v6378 = vunpack.c.l.b16 %v6346
    %v6379 = vunpack.c.l.b16 %v6347
    %v6380 = vunpack.c.l.b16 %v6348
    %v6381 = vunpack.c.l.b16 %v6349
    %v6382 = vunpack.c.l.b16 %v6350
    %v6383 = vunpack.c.l.b16 %v6351
    %v6384 = vunpack.c.l.b16 %v6352
    %v6385 = vunpack.c.l.b16 %v6353
    %v6386 = vunpack.c.l.b16 %v6354
    %v6387 = vunpack.c.l.b16 %v6355
    %v6388 = vunpack.c.l.b16 %v6356
    %v6389 = vunpack.c.l.b16 %v6357
    %v6390 = vunpack.c.l.b16 %v6358
    %v6391 = vunpack.c.l.b16 %v6359
    %v6392 = vunpack.c.l.b16 %v6360
    %v6393 = vunpack.c.l.b16 %v6361
    %v6394 = vpack.c.b16 %v6379, %v6378
    %v6395 = vpack.c.b16 %v6381, %v6380
    %v6396 = vpack.c.b16 %v6383, %v6382
    %v6397 = vpack.c.b16 %v6385, %v6384
    %v6398 = vpack.c.b16 %v6387, %v6386
    %v6399 = vpack.c.b16 %v6389, %v6388
    %v6400 = vpack.c.b16 %v6391, %v6390
    %v6401 = vpack.c.b16 %v6393, %v6392
    %6410 = vmatprep.subr.bf16.mxu0 0
    %6411 = vmatpush1.bf16.msra.mxu0 %v6401
    %6412 = vmatprep.subr.bf16.mxu0 0
    %6413 = vmatpush1.bf16.msra.mxu0 %v6400
    %6414 = vmatprep.subr.bf16.mxu0 0
    %6415 = vmatpush1.bf16.msra.mxu0 %v6399
    %6416 = vmatprep.subr.bf16.mxu0 0
    %6417 = vmatpush1.bf16.msra.mxu0 %v6398
    %6418 = vmatprep.subr.bf16.mxu0 0
    %6419 = vmatpush1.bf16.msra.mxu0 %v6397
    %6420 = vmatprep.subr.bf16.mxu0 0
    %6421 = vmatpush1.bf16.msra.mxu0 %v6396
    %6422 = vmatprep.subr.bf16.mxu0 0
    %6423 = vmatpush1.bf16.msra.mxu0 %v6395
    %6424 = vmatprep.subr.bf16.mxu0 0
    %6425 = vmatpush1.bf16.msra.mxu0 %v6394
    %6426 = vmatprep.subr.bf16.mxu0 0
    %6427 = vmatpush2.bf16.msra.mxu0 0
    %6428 = vmatprep.subr.bf16.mxu0 0
    %6429 = vmatpush2.bf16.msra.mxu0 0
    %6430 = vmatprep.subr.bf16.mxu0 0
    %6431 = vmatpush2.bf16.msra.mxu0 0
    %6432 = vmatprep.subr.bf16.mxu0 0
    %6433 = vmatpush2.bf16.msra.mxu0 0
    %6434 = vmatprep.subr.bf16.mxu0 0
    %6435 = vmatpush2.bf16.msra.mxu0 0
    %6436 = vmatprep.subr.bf16.mxu0 0
    %6437 = vmatpush2.bf16.msra.mxu0 0
    %6438 = vmatprep.subr.bf16.mxu0 0
    %6439 = vmatpush2.bf16.msra.mxu0 0
    %6440 = vmatprep.subr.bf16.mxu0 0
    %6441 = vmatpush2.bf16.msra.mxu0 0
    %6442 = vmatprep.mubr.bf16.mxu0 0
    %6443 = vmatmul.mubr.bf16.gmra.mxu0 %v6322
    %v6444 = vpop.f32.mrf.mxu0
    %v6445 = vadd.f32 0.0, %v6444
    %v6446 = vpop.f32.mrf.mxu0
    %v6447 = vpop.f32.mrf.mxu0
    %v6448 = vadd.f32 0.0, %v6447
    %v6449 = vpop.f32.mrf.mxu0
    %6450 = vmatprep.mubr.bf16.mxu0 0
    %6451 = vmatmul.mubr.bf16.gmra.mxu0 %v6326
    %v6452 = vpop.f32.mrf.mxu0
    %v6453 = vadd.f32 0.0, %v6452
    %v6454 = vpop.f32.mrf.mxu0
    %v6455 = vpop.f32.mrf.mxu0
    %v6456 = vpop.f32.mrf.mxu0
    %6457 = vmatprep.mubr.bf16.mxu0 0
    %6458 = vmatmul.mubr.bf16.gmra.mxu0 %v6336
    %v6459 = vpop.f32.mrf.mxu0
    %v6460 = vadd.f32 0.0, %v6459
    %v6461 = vpop.f32.mrf.mxu0
    %v6462 = vpop.f32.mrf.mxu0
    %v6463 = vadd.f32 0.0, %v6462
    %v6464 = vpop.f32.mrf.mxu0
    %6465 = vmatprep.mubr.bf16.mxu0 0
    %6466 = vmatmul.mubr.bf16.gmra.mxu0 %v6340
    %v6467 = vpop.f32.mrf.mxu0
    %v6468 = vadd.f32 0.0, %v6467
    %v6469 = vpop.f32.mrf.mxu0
    %v6470 = vpop.f32.mrf.mxu0
    %v6471 = vpop.f32.mrf.mxu0
    %6472 = vdwg.mxu0
    %v6473 = vadd.f32 %v6307, %v6445
    %v6474 = vadd.f32 %v6308, %v6448
    %v6475 = vadd.f32 %v6309, %v6453
    %v6476 = vadd.f32 %v6310, %v6460
    %v6477 = vadd.f32 %v6311, %v6463
    %v6478 = vadd.f32 %v6312, %v6468
    %v6483 = vrot.slane %v6164, 1
    %v6484 = vrot.slane %v6169, 1
    %v6485 = vsel %vm479, %v6483, %v6484
    %v6486 = vsel %vm479, %v6484, %v483
    %v6487 = vrot.slane %v6167, 1
    %v6488 = vrot.slane %v6171, 1
    %v6489 = vsel %vm479, %v6487, %v6488
    %v6490 = vsel %vm479, %v6488, %v483
    %s6495 = scalar_lea.vmem %s18, 128
    %v6496 = vld [vmem:[%s6495] sm:$0xf]
    %v6497 = vld [vmem:[%s6495 + $0x4] sm:$0xf]
    %v6498 = vld [vmem:[%s6495 + $0x8] sm:$0xf]
    %v6499 = vld [vmem:[%s6495 + $0xc] sm:$0xf]
    %v6500 = vld [vmem:[%s6495 + $0x10] sm:$0xf]
    %v6501 = vld [vmem:[%s6495 + $0x14] sm:$0xf]
    %v6502 = vld [vmem:[%s6495 + $0x18] sm:$0xf]
    %v6503 = vld [vmem:[%s6495 + $0x1c] sm:$0xf]
    %v6504 = vld [vmem:[%s6495 + $0x20] sm:$0xf]
    %v6505 = vld [vmem:[%s6495 + $0x24] sm:$0xf]
    %v6506 = vld [vmem:[%s6495 + $0x28] sm:$0xf]
    %v6507 = vld [vmem:[%s6495 + $0x2c] sm:$0xf]
    %v6508 = vld [vmem:[%s6495 + $0x30] sm:$0xf]
    %v6509 = vld [vmem:[%s6495 + $0x34] sm:$0xf]
    %v6510 = vld [vmem:[%s6495 + $0x38] sm:$0xf]
    %v6511 = vld [vmem:[%s6495 + $0x3c] sm:$0xf]
    %v6528 = vunpack.c.l.b16 %v6496
    %v6529 = vunpack.c.l.b16 %v6497
    %v6530 = vunpack.c.l.b16 %v6498
    %v6531 = vunpack.c.l.b16 %v6499
    %v6532 = vunpack.c.l.b16 %v6500
    %v6533 = vunpack.c.l.b16 %v6501
    %v6534 = vunpack.c.l.b16 %v6502
    %v6535 = vunpack.c.l.b16 %v6503
    %v6536 = vunpack.c.l.b16 %v6504
    %v6537 = vunpack.c.l.b16 %v6505
    %v6538 = vunpack.c.l.b16 %v6506
    %v6539 = vunpack.c.l.b16 %v6507
    %v6540 = vunpack.c.l.b16 %v6508
    %v6541 = vunpack.c.l.b16 %v6509
    %v6542 = vunpack.c.l.b16 %v6510
    %v6543 = vunpack.c.l.b16 %v6511
    %v6544 = vpack.c.b16 %v6529, %v6528
    %v6545 = vpack.c.b16 %v6531, %v6530
    %v6546 = vpack.c.b16 %v6533, %v6532
    %v6547 = vpack.c.b16 %v6535, %v6534
    %v6548 = vpack.c.b16 %v6537, %v6536
    %v6549 = vpack.c.b16 %v6539, %v6538
    %v6550 = vpack.c.b16 %v6541, %v6540
    %v6551 = vpack.c.b16 %v6543, %v6542
    %6560 = vmatprep.subr.bf16.mxu0 0
    %6561 = vmatpush1.bf16.msra.mxu0 %v6551
    %6562 = vmatprep.subr.bf16.mxu0 0
    %6563 = vmatpush1.bf16.msra.mxu0 %v6550
    %6564 = vmatprep.subr.bf16.mxu0 0
    %6565 = vmatpush1.bf16.msra.mxu0 %v6549
    %6566 = vmatprep.subr.bf16.mxu0 0
    %6567 = vmatpush1.bf16.msra.mxu0 %v6548
    %6568 = vmatprep.subr.bf16.mxu0 0
    %6569 = vmatpush1.bf16.msra.mxu0 %v6547
    %6570 = vmatprep.subr.bf16.mxu0 0
    %6571 = vmatpush1.bf16.msra.mxu0 %v6546
    %6572 = vmatprep.subr.bf16.mxu0 0
    %6573 = vmatpush1.bf16.msra.mxu0 %v6545
    %6574 = vmatprep.subr.bf16.mxu0 0
    %6575 = vmatpush1.bf16.msra.mxu0 %v6544
    %6576 = vmatprep.subr.bf16.mxu0 0
    %6577 = vmatpush2.bf16.msra.mxu0 0
    %6578 = vmatprep.subr.bf16.mxu0 0
    %6579 = vmatpush2.bf16.msra.mxu0 0
    %6580 = vmatprep.subr.bf16.mxu0 0
    %6581 = vmatpush2.bf16.msra.mxu0 0
    %6582 = vmatprep.subr.bf16.mxu0 0
    %6583 = vmatpush2.bf16.msra.mxu0 0
    %6584 = vmatprep.subr.bf16.mxu0 0
    %6585 = vmatpush2.bf16.msra.mxu0 0
    %6586 = vmatprep.subr.bf16.mxu0 0
    %6587 = vmatpush2.bf16.msra.mxu0 0
    %6588 = vmatprep.subr.bf16.mxu0 0
    %6589 = vmatpush2.bf16.msra.mxu0 0
    %6590 = vmatprep.subr.bf16.mxu0 0
    %6591 = vmatpush2.bf16.msra.mxu0 0
    %6592 = vmatprep.mubr.bf16.mxu0 0
    %6593 = vmatmul.mubr.bf16.gmra.mxu0 %v6485
    %v6594 = vpop.f32.mrf.mxu0
    %v6595 = vadd.f32 0.0, %v6594
    %v6596 = vpop.f32.mrf.mxu0
    %v6597 = vpop.f32.mrf.mxu0
    %v6598 = vadd.f32 0.0, %v6597
    %v6599 = vpop.f32.mrf.mxu0
    %6600 = vmatprep.mubr.bf16.mxu0 0
    %6601 = vmatmul.mubr.bf16.gmra.mxu0 %v6486
    %v6602 = vpop.f32.mrf.mxu0
    %v6603 = vadd.f32 0.0, %v6602
    %v6604 = vpop.f32.mrf.mxu0
    %v6605 = vpop.f32.mrf.mxu0
    %v6606 = vpop.f32.mrf.mxu0
    %6607 = vmatprep.mubr.bf16.mxu0 0
    %6608 = vmatmul.mubr.bf16.gmra.mxu0 %v6489
    %v6609 = vpop.f32.mrf.mxu0
    %v6610 = vadd.f32 0.0, %v6609
    %v6611 = vpop.f32.mrf.mxu0
    %v6612 = vpop.f32.mrf.mxu0
    %v6613 = vadd.f32 0.0, %v6612
    %v6614 = vpop.f32.mrf.mxu0
    %6615 = vmatprep.mubr.bf16.mxu0 0
    %6616 = vmatmul.mubr.bf16.gmra.mxu0 %v6490
    %v6617 = vpop.f32.mrf.mxu0
    %v6618 = vadd.f32 0.0, %v6617
    %v6619 = vpop.f32.mrf.mxu0
    %v6620 = vpop.f32.mrf.mxu0
    %v6621 = vpop.f32.mrf.mxu0
    %6622 = vdwg.mxu0
    %v6623 = vadd.f32 %v6473, %v6595
    %v6624 = vadd.f32 %v6474, %v6598
    %v6625 = vadd.f32 %v6475, %v6603
    %v6626 = vadd.f32 %v6476, %v6610
    %v6627 = vadd.f32 %v6477, %v6613
    %v6628 = vadd.f32 %v6478, %v6618
    %vm6629 = vcmp.gt.f32.partialorder %v6623, 0.0
    %vm6630 = vcmp.gt.f32.partialorder %v6624, 0.0
    %vm6631 = vcmp.gt.f32.partialorder %v6625, 0.0
    %vm6632 = vcmp.gt.f32.partialorder %v6626, 0.0
    %vm6633 = vcmp.gt.f32.partialorder %v6627, 0.0
    %vm6634 = vcmp.gt.f32.partialorder %v6628, 0.0
    %v6635 = vmul.f32 %v581, %v6623
    %v6636 = vmul.f32 %v581, %v6624
    %v6637 = vmul.f32 %v581, %v6625
    %v6638 = vmul.f32 %v581, %v6626
    %v6639 = vmul.f32 %v581, %v6627
    %v6640 = vmul.f32 %v581, %v6628
    %v6641 = vsel %vm6629, %v6623, %v6635
    %v6642 = vsel %vm6630, %v6624, %v6636
    %v6643 = vsel %vm6631, %v6625, %v6637
    %v6644 = vsel %vm6632, %v6626, %v6638
    %v6645 = vsel %vm6633, %v6627, %v6639
    %v6646 = vsel %vm6634, %v6628, %v6640
    %v6647 = vadd.f32 %v6641, %v1296
    %v6648 = vadd.f32 %v6642, %v1297
    %v6649 = vadd.f32 %v6643, %v1298
    %v6650 = vadd.f32 %v6644, %v1299
    %v6651 = vadd.f32 %v6645, %v1300
    %v6652 = vadd.f32 %v6646, %v1301
    %v6653 = vpack.c.bf16 %v6648, %v6647
    %v6654 = vpack.c.bf16 %v6649, %v6649
    %v6655 = vpack.c.bf16 %v6651, %v6650
    %v6656 = vpack.c.bf16 %v6652, %v6652
    %vm6661 = vcmask 1040384
    %v6662 = vrot.slane %v6653, 7
    %v6663 = vrot.slane %v6654, 7
    %v6664 = vsel %vm6661, %v6662, %v6663
    %v6665 = vrot.slane %v6655, 7
    %v6666 = vrot.slane %v6656, 7
    %v6667 = vsel %vm6661, %v6665, %v6666
    %v6669 = vsel %vm275, 0, %v6662
    %v6671 = vsel %vm275, 0, %v6665
    %v6673 = vsel %vm940, %v6664, 0
    %v6675 = vsel %vm940, %v6667, 0
    %v6676 = vld [vmem:[#allocation23] sm:$0x1]
    %v6677 = vld [vmem:[%s20] sm:$0xf]
    %v6678 = vld [vmem:[%s20 + $0x4] sm:$0xf]
    %v6679 = vld [vmem:[%s20 + $0x8] sm:$0xf]
    %v6680 = vld [vmem:[%s20 + $0xc] sm:$0xf]
    %v6681 = vld [vmem:[%s20 + $0x10] sm:$0xf]
    %v6682 = vld [vmem:[%s20 + $0x14] sm:$0xf]
    %v6683 = vld [vmem:[%s20 + $0x18] sm:$0xf]
    %v6684 = vld [vmem:[%s20 + $0x1c] sm:$0xf]
    %v6693 = vunpack.c.l.b16 %v6677
    %v6694 = vunpack.c.l.b16 %v6678
    %v6695 = vunpack.c.l.b16 %v6679
    %v6696 = vunpack.c.l.b16 %v6680
    %v6697 = vunpack.c.l.b16 %v6681
    %v6698 = vunpack.c.l.b16 %v6682
    %v6699 = vunpack.c.l.b16 %v6683
    %v6700 = vunpack.c.l.b16 %v6684
    %v6701 = vpack.c.b16 %v6694, %v6693
    %v6702 = vpack.c.b16 %v6696, %v6695
    %v6703 = vpack.c.b16 %v6698, %v6697
    %v6704 = vpack.c.b16 %v6700, %v6699
    %v6709 = vsel %vm1339, %v6669, 0
    %v6711 = vsel %vm1339, %v6673, 0
    %v6713 = vsel %vm1339, %v6671, 0
    %v6715 = vsel %vm1339, %v6675, 0
    %6717 = vmatprep.subr.bf16.mxu0 0
    %6718 = vmatpush1.bf16.msra.mxu0 0
    %6719 = vmatprep.subr.bf16.mxu0 0
    %6720 = vmatpush1.bf16.msra.mxu0 0
    %6721 = vmatprep.subr.bf16.mxu0 0
    %6722 = vmatpush1.bf16.msra.mxu0 0
    %6723 = vmatprep.subr.bf16.mxu0 0
    %6724 = vmatpush1.bf16.msra.mxu0 0
    %6725 = vmatprep.subr.bf16.mxu0 0
    %6726 = vmatpush1.bf16.msra.mxu0 %v6704
    %6727 = vmatprep.subr.bf16.mxu0 0
    %6728 = vmatpush1.bf16.msra.mxu0 %v6703
    %6729 = vmatprep.subr.bf16.mxu0 0
    %6730 = vmatpush1.bf16.msra.mxu0 %v6702
    %6731 = vmatprep.subr.bf16.mxu0 0
    %6732 = vmatpush1.bf16.msra.mxu0 %v6701
    %6733 = vmatprep.subr.bf16.mxu0 0
    %6734 = vmatpush2.bf16.msra.mxu0 0
    %6735 = vmatprep.subr.bf16.mxu0 0
    %6736 = vmatpush2.bf16.msra.mxu0 0
    %6737 = vmatprep.subr.bf16.mxu0 0
    %6738 = vmatpush2.bf16.msra.mxu0 0
    %6739 = vmatprep.subr.bf16.mxu0 0
    %6740 = vmatpush2.bf16.msra.mxu0 0
    %6741 = vmatprep.subr.bf16.mxu0 0
    %6742 = vmatpush2.bf16.msra.mxu0 0
    %6743 = vmatprep.subr.bf16.mxu0 0
    %6744 = vmatpush2.bf16.msra.mxu0 0
    %6745 = vmatprep.subr.bf16.mxu0 0
    %6746 = vmatpush2.bf16.msra.mxu0 0
    %6747 = vmatprep.subr.bf16.mxu0 0
    %6748 = vmatpush2.bf16.msra.mxu0 0
    %6749 = vmatprep.mubr.bf16.mxu0 0
    %6750 = vmatmul.mubr.bf16.gmra.mxu0 %v6709
    %v6751 = vpop.f32.mrf.mxu0
    %v6752 = vadd.f32 0.0, %v6751
    %v6753 = vpop.f32.mrf.mxu0
    %v6754 = vpop.f32.mrf.mxu0
    %v6755 = vadd.f32 0.0, %v6754
    %v6756 = vpop.f32.mrf.mxu0
    %6757 = vmatprep.mubr.bf16.mxu0 0
    %6758 = vmatmul.mubr.bf16.gmra.mxu0 %v6711
    %v6759 = vpop.f32.mrf.mxu0
    %v6760 = vadd.f32 0.0, %v6759
    %v6761 = vpop.f32.mrf.mxu0
    %v6762 = vpop.f32.mrf.mxu0
    %v6763 = vpop.f32.mrf.mxu0
    %6764 = vmatprep.mubr.bf16.mxu0 0
    %6765 = vmatmul.mubr.bf16.gmra.mxu0 %v6713
    %v6766 = vpop.f32.mrf.mxu0
    %v6767 = vadd.f32 0.0, %v6766
    %v6768 = vpop.f32.mrf.mxu0
    %v6769 = vpop.f32.mrf.mxu0
    %v6770 = vadd.f32 0.0, %v6769
    %v6771 = vpop.f32.mrf.mxu0
    %6772 = vmatprep.mubr.bf16.mxu0 0
    %6773 = vmatmul.mubr.bf16.gmra.mxu0 %v6715
    %v6774 = vpop.f32.mrf.mxu0
    %v6775 = vadd.f32 0.0, %v6774
    %v6776 = vpop.f32.mrf.mxu0
    %v6777 = vpop.f32.mrf.mxu0
    %v6778 = vpop.f32.mrf.mxu0
    %6779 = vdwg.mxu0
    %v6781 = vlaneseq
    %v6782 = vshrl.u32 %v6781, 7
    %v6783 = vsub.s32 0, %v6782
    %v6784 = vrot.slane %v6676, %v6783
    %v6786 = vadd.f32 %v6784, %v6752
    %v6787 = vadd.f32 %v6784, %v6755
    %v6788 = vadd.f32 %v6784, %v6760
    %v6789 = vadd.f32 %v6784, %v6767
    %v6790 = vadd.f32 %v6784, %v6770
    %v6791 = vadd.f32 %v6784, %v6775
    %v6792 = vshrl.u32 %v6669, 16
    %v6794 = vshll.u32 %v6669, 16
    %v6796 = vrot.slane %v6794, 1
    %v6797 = vor.u32 %v6792, %v6796
    %v6798 = vshll.u32 %v6673, 16
    %v6800 = vrot.slane %v6798, 1
    %v6801 = vsel %vm356, %v6797, %v6800
    %v6802 = vshrl.u32 %v6673, 16
    %v6804 = vor.u32 %v6802, %v6800
    %v6805 = vsel %vm356, %v6804, %v372
    %v6806 = vshrl.u32 %v6671, 16
    %v6808 = vshll.u32 %v6671, 16
    %v6810 = vrot.slane %v6808, 1
    %v6811 = vor.u32 %v6806, %v6810
    %v6812 = vshll.u32 %v6675, 16
    %v6814 = vrot.slane %v6812, 1
    %v6815 = vsel %vm356, %v6811, %v6814
    %v6816 = vshrl.u32 %v6675, 16
    %v6818 = vor.u32 %v6816, %v6814
    %v6819 = vsel %vm356, %v6818, %v372
    %s6820 = scalar_lea.vmem %s20, 32
    %v6821 = vld [vmem:[%s6820] sm:$0xf]
    %v6822 = vld [vmem:[%s6820 + $0x4] sm:$0xf]
    %v6823 = vld [vmem:[%s6820 + $0x8] sm:$0xf]
    %v6824 = vld [vmem:[%s6820 + $0xc] sm:$0xf]
    %v6825 = vld [vmem:[%s6820 + $0x10] sm:$0xf]
    %v6826 = vld [vmem:[%s6820 + $0x14] sm:$0xf]
    %v6827 = vld [vmem:[%s6820 + $0x18] sm:$0xf]
    %v6828 = vld [vmem:[%s6820 + $0x1c] sm:$0xf]
    %v6837 = vunpack.c.l.b16 %v6821
    %v6838 = vunpack.c.l.b16 %v6822
    %v6839 = vunpack.c.l.b16 %v6823
    %v6840 = vunpack.c.l.b16 %v6824
    %v6841 = vunpack.c.l.b16 %v6825
    %v6842 = vunpack.c.l.b16 %v6826
    %v6843 = vunpack.c.l.b16 %v6827
    %v6844 = vunpack.c.l.b16 %v6828
    %v6845 = vpack.c.b16 %v6838, %v6837
    %v6846 = vpack.c.b16 %v6840, %v6839
    %v6847 = vpack.c.b16 %v6842, %v6841
    %v6848 = vpack.c.b16 %v6844, %v6843
    %v6854 = vsel %vm1339, %v6801, 0
    %v6857 = vsel %vm1339, %v6805, 0
    %v6860 = vsel %vm1339, %v6815, 0
    %v6863 = vsel %vm1339, %v6819, 0
    %6865 = vmatprep.subr.bf16.mxu0 0
    %6866 = vmatpush1.bf16.msra.mxu0 0
    %6867 = vmatprep.subr.bf16.mxu0 0
    %6868 = vmatpush1.bf16.msra.mxu0 0
    %6869 = vmatprep.subr.bf16.mxu0 0
    %6870 = vmatpush1.bf16.msra.mxu0 0
    %6871 = vmatprep.subr.bf16.mxu0 0
    %6872 = vmatpush1.bf16.msra.mxu0 0
    %6873 = vmatprep.subr.bf16.mxu0 0
    %6874 = vmatpush1.bf16.msra.mxu0 %v6848
    %6875 = vmatprep.subr.bf16.mxu0 0
    %6876 = vmatpush1.bf16.msra.mxu0 %v6847
    %6877 = vmatprep.subr.bf16.mxu0 0
    %6878 = vmatpush1.bf16.msra.mxu0 %v6846
    %6879 = vmatprep.subr.bf16.mxu0 0
    %6880 = vmatpush1.bf16.msra.mxu0 %v6845
    %6881 = vmatprep.subr.bf16.mxu0 0
    %6882 = vmatpush2.bf16.msra.mxu0 0
    %6883 = vmatprep.subr.bf16.mxu0 0
    %6884 = vmatpush2.bf16.msra.mxu0 0
    %6885 = vmatprep.subr.bf16.mxu0 0
    %6886 = vmatpush2.bf16.msra.mxu0 0
    %6887 = vmatprep.subr.bf16.mxu0 0
    %6888 = vmatpush2.bf16.msra.mxu0 0
    %6889 = vmatprep.subr.bf16.mxu0 0
    %6890 = vmatpush2.bf16.msra.mxu0 0
    %6891 = vmatprep.subr.bf16.mxu0 0
    %6892 = vmatpush2.bf16.msra.mxu0 0
    %6893 = vmatprep.subr.bf16.mxu0 0
    %6894 = vmatpush2.bf16.msra.mxu0 0
    %6895 = vmatprep.subr.bf16.mxu0 0
    %6896 = vmatpush2.bf16.msra.mxu0 0
    %6897 = vmatprep.mubr.bf16.mxu0 0
    %6898 = vmatmul.mubr.bf16.gmra.mxu0 %v6854
    %v6899 = vpop.f32.mrf.mxu0
    %v6900 = vadd.f32 0.0, %v6899
    %v6901 = vpop.f32.mrf.mxu0
    %v6902 = vpop.f32.mrf.mxu0
    %v6903 = vadd.f32 0.0, %v6902
    %v6904 = vpop.f32.mrf.mxu0
    %6905 = vmatprep.mubr.bf16.mxu0 0
    %6906 = vmatmul.mubr.bf16.gmra.mxu0 %v6857
    %v6907 = vpop.f32.mrf.mxu0
    %v6908 = vadd.f32 0.0, %v6907
    %v6909 = vpop.f32.mrf.mxu0
    %v6910 = vpop.f32.mrf.mxu0
    %v6911 = vpop.f32.mrf.mxu0
    %6912 = vmatprep.mubr.bf16.mxu0 0
    %6913 = vmatmul.mubr.bf16.gmra.mxu0 %v6860
    %v6914 = vpop.f32.mrf.mxu0
    %v6915 = vadd.f32 0.0, %v6914
    %v6916 = vpop.f32.mrf.mxu0
    %v6917 = vpop.f32.mrf.mxu0
    %v6918 = vadd.f32 0.0, %v6917
    %v6919 = vpop.f32.mrf.mxu0
    %6920 = vmatprep.mubr.bf16.mxu0 0
    %6921 = vmatmul.mubr.bf16.gmra.mxu0 %v6863
    %v6922 = vpop.f32.mrf.mxu0
    %v6923 = vadd.f32 0.0, %v6922
    %v6924 = vpop.f32.mrf.mxu0
    %v6925 = vpop.f32.mrf.mxu0
    %v6926 = vpop.f32.mrf.mxu0
    %6927 = vdwg.mxu0
    %v6928 = vadd.f32 %v6786, %v6900
    %v6929 = vadd.f32 %v6787, %v6903
    %v6930 = vadd.f32 %v6788, %v6908
    %v6931 = vadd.f32 %v6789, %v6915
    %v6932 = vadd.f32 %v6790, %v6918
    %v6933 = vadd.f32 %v6791, %v6923
    %v6938 = vrot.slane %v6669, 1
    %v6939 = vrot.slane %v6673, 1
    %v6940 = vsel %vm479, %v6938, %v6939
    %v6941 = vsel %vm479, %v6939, %v483
    %v6942 = vrot.slane %v6671, 1
    %v6943 = vrot.slane %v6675, 1
    %v6944 = vsel %vm479, %v6942, %v6943
    %v6945 = vsel %vm479, %v6943, %v483
    %s6946 = scalar_lea.vmem %s20, 64
    %v6947 = vld [vmem:[%s6946] sm:$0xf]
    %v6948 = vld [vmem:[%s6946 + $0x4] sm:$0xf]
    %v6949 = vld [vmem:[%s6946 + $0x8] sm:$0xf]
    %v6950 = vld [vmem:[%s6946 + $0xc] sm:$0xf]
    %v6951 = vld [vmem:[%s6946 + $0x10] sm:$0xf]
    %v6952 = vld [vmem:[%s6946 + $0x14] sm:$0xf]
    %v6953 = vld [vmem:[%s6946 + $0x18] sm:$0xf]
    %v6954 = vld [vmem:[%s6946 + $0x1c] sm:$0xf]
    %v6963 = vunpack.c.l.b16 %v6947
    %v6964 = vunpack.c.l.b16 %v6948
    %v6965 = vunpack.c.l.b16 %v6949
    %v6966 = vunpack.c.l.b16 %v6950
    %v6967 = vunpack.c.l.b16 %v6951
    %v6968 = vunpack.c.l.b16 %v6952
    %v6969 = vunpack.c.l.b16 %v6953
    %v6970 = vunpack.c.l.b16 %v6954
    %v6971 = vpack.c.b16 %v6964, %v6963
    %v6972 = vpack.c.b16 %v6966, %v6965
    %v6973 = vpack.c.b16 %v6968, %v6967
    %v6974 = vpack.c.b16 %v6970, %v6969
    %v6980 = vsel %vm1339, %v6940, 0
    %v6983 = vsel %vm1339, %v6941, 0
    %v6986 = vsel %vm1339, %v6944, 0
    %v6989 = vsel %vm1339, %v6945, 0
    %6991 = vmatprep.subr.bf16.mxu0 0
    %6992 = vmatpush1.bf16.msra.mxu0 0
    %6993 = vmatprep.subr.bf16.mxu0 0
    %6994 = vmatpush1.bf16.msra.mxu0 0
    %6995 = vmatprep.subr.bf16.mxu0 0
    %6996 = vmatpush1.bf16.msra.mxu0 0
    %6997 = vmatprep.subr.bf16.mxu0 0
    %6998 = vmatpush1.bf16.msra.mxu0 0
    %6999 = vmatprep.subr.bf16.mxu0 0
    %7000 = vmatpush1.bf16.msra.mxu0 %v6974
    %7001 = vmatprep.subr.bf16.mxu0 0
    %7002 = vmatpush1.bf16.msra.mxu0 %v6973
    %7003 = vmatprep.subr.bf16.mxu0 0
    %7004 = vmatpush1.bf16.msra.mxu0 %v6972
    %7005 = vmatprep.subr.bf16.mxu0 0
    %7006 = vmatpush1.bf16.msra.mxu0 %v6971
    %7007 = vmatprep.subr.bf16.mxu0 0
    %7008 = vmatpush2.bf16.msra.mxu0 0
    %7009 = vmatprep.subr.bf16.mxu0 0
    %7010 = vmatpush2.bf16.msra.mxu0 0
    %7011 = vmatprep.subr.bf16.mxu0 0
    %7012 = vmatpush2.bf16.msra.mxu0 0
    %7013 = vmatprep.subr.bf16.mxu0 0
    %7014 = vmatpush2.bf16.msra.mxu0 0
    %7015 = vmatprep.subr.bf16.mxu0 0
    %7016 = vmatpush2.bf16.msra.mxu0 0
    %7017 = vmatprep.subr.bf16.mxu0 0
    %7018 = vmatpush2.bf16.msra.mxu0 0
    %7019 = vmatprep.subr.bf16.mxu0 0
    %7020 = vmatpush2.bf16.msra.mxu0 0
    %7021 = vmatprep.subr.bf16.mxu0 0
    %7022 = vmatpush2.bf16.msra.mxu0 0
    %7023 = vmatprep.mubr.bf16.mxu0 0
    %7024 = vmatmul.mubr.bf16.gmra.mxu0 %v6980
    %v7025 = vpop.f32.mrf.mxu0
    %v7026 = vadd.f32 0.0, %v7025
    %v7027 = vpop.f32.mrf.mxu0
    %v7028 = vpop.f32.mrf.mxu0
    %v7029 = vadd.f32 0.0, %v7028
    %v7030 = vpop.f32.mrf.mxu0
    %7031 = vmatprep.mubr.bf16.mxu0 0
    %7032 = vmatmul.mubr.bf16.gmra.mxu0 %v6983
    %v7033 = vpop.f32.mrf.mxu0
    %v7034 = vadd.f32 0.0, %v7033
    %v7035 = vpop.f32.mrf.mxu0
    %v7036 = vpop.f32.mrf.mxu0
    %v7037 = vpop.f32.mrf.mxu0
    %7038 = vmatprep.mubr.bf16.mxu0 0
    %7039 = vmatmul.mubr.bf16.gmra.mxu0 %v6986
    %v7040 = vpop.f32.mrf.mxu0
    %v7041 = vadd.f32 0.0, %v7040
    %v7042 = vpop.f32.mrf.mxu0
    %v7043 = vpop.f32.mrf.mxu0
    %v7044 = vadd.f32 0.0, %v7043
    %v7045 = vpop.f32.mrf.mxu0
    %7046 = vmatprep.mubr.bf16.mxu0 0
    %7047 = vmatmul.mubr.bf16.gmra.mxu0 %v6989
    %v7048 = vpop.f32.mrf.mxu0
    %v7049 = vadd.f32 0.0, %v7048
    %v7050 = vpop.f32.mrf.mxu0
    %v7051 = vpop.f32.mrf.mxu0
    %v7052 = vpop.f32.mrf.mxu0
    %7053 = vdwg.mxu0
    %v7054 = vadd.f32 %v6928, %v7026
    %v7055 = vadd.f32 %v6929, %v7029
    %v7056 = vadd.f32 %v6930, %v7034
    %v7057 = vadd.f32 %v6931, %v7041
    %v7058 = vadd.f32 %v6932, %v7044
    %v7059 = vadd.f32 %v6933, %v7049
    %vm7060 = vcmp.gt.f32.partialorder %v7054, 0.0
    %vm7061 = vcmp.gt.f32.partialorder %v7055, 0.0
    %vm7062 = vcmp.gt.f32.partialorder %v7056, 0.0
    %vm7063 = vcmp.gt.f32.partialorder %v7057, 0.0
    %vm7064 = vcmp.gt.f32.partialorder %v7058, 0.0
    %vm7065 = vcmp.gt.f32.partialorder %v7059, 0.0
    %v7066 = vmul.f32 %v581, %v7054
    %v7067 = vmul.f32 %v581, %v7055
    %v7068 = vmul.f32 %v581, %v7056
    %v7069 = vmul.f32 %v581, %v7057
    %v7070 = vmul.f32 %v581, %v7058
    %v7071 = vmul.f32 %v581, %v7059
    %v7072 = vsel %vm7060, %v7054, %v7066
    %v7073 = vsel %vm7061, %v7055, %v7067
    %v7074 = vsel %vm7062, %v7056, %v7068
    %v7075 = vsel %vm7063, %v7057, %v7069
    %v7076 = vsel %vm7064, %v7058, %v7070
    %v7077 = vsel %vm7065, %v7059, %v7071
    %v7078 = vadd.f32 %v7072, %v930
    %v7079 = vadd.f32 %v7073, %v931
    %v7080 = vadd.f32 %v7074, %v932
    %v7081 = vadd.f32 %v7075, %v933
    %v7082 = vadd.f32 %v7076, %v934
    %v7083 = vadd.f32 %v7077, %v935
    %v7084 = vpack.c.bf16 %v7079, %v7078
    %v7085 = vpack.c.bf16 %v7080, %v7080
    %v7086 = vpack.c.bf16 %v7082, %v7081
    %v7087 = vpack.c.bf16 %v7083, %v7083
    %v7092 = vrot.slane %v7084, 7
    %v7093 = vrot.slane %v7085, 7
    %v7094 = vsel %vm6661, %v7092, %v7093
    %v7095 = vrot.slane %v7086, 7
    %v7096 = vrot.slane %v7087, 7
    %v7097 = vsel %vm6661, %v7095, %v7096
    %v7099 = vsel %vm275, 0, %v7092
    %v7101 = vsel %vm275, 0, %v7095
    %v7103 = vsel %vm598, %v7094, 0
    %v7105 = vsel %vm598, %v7097, 0
    %v7106 = vld [vmem:[%s23] sm:$0x1]
    %v7107 = vld [vmem:[%s22] sm:$0xf]
    %v7108 = vld [vmem:[%s22 + $0x4] sm:$0xf]
    %v7109 = vld [vmem:[%s22 + $0x8] sm:$0xf]
    %v7110 = vld [vmem:[%s22 + $0xc] sm:$0xf]
    %v7115 = vunpack.c.l.b16 %v7107
    %v7116 = vunpack.c.l.b16 %v7108
    %v7117 = vunpack.c.l.b16 %v7109
    %v7118 = vunpack.c.l.b16 %v7110
    %v7119 = vpack.c.b16 %v7116, %v7115
    %v7120 = vpack.c.b16 %v7118, %v7117
    %v7123 = vsel %vm962, %v7099, 0
    %v7125 = vsel %vm962, %v7103, 0
    %v7127 = vsel %vm962, %v7101, 0
    %v7129 = vsel %vm962, %v7105, 0
    %7131 = vmatprep.subr.bf16.mxu0 0
    %7132 = vmatpush1.bf16.msra.mxu0 0
    %7133 = vmatprep.subr.bf16.mxu0 0
    %7134 = vmatpush1.bf16.msra.mxu0 0
    %7135 = vmatprep.subr.bf16.mxu0 0
    %7136 = vmatpush1.bf16.msra.mxu0 0
    %7137 = vmatprep.subr.bf16.mxu0 0
    %7138 = vmatpush1.bf16.msra.mxu0 0
    %7139 = vmatprep.subr.bf16.mxu0 0
    %7140 = vmatpush1.bf16.msra.mxu0 0
    %7141 = vmatprep.subr.bf16.mxu0 0
    %7142 = vmatpush1.bf16.msra.mxu0 0
    %7143 = vmatprep.subr.bf16.mxu0 0
    %7144 = vmatpush1.bf16.msra.mxu0 %v7120
    %7145 = vmatprep.subr.bf16.mxu0 0
    %7146 = vmatpush1.bf16.msra.mxu0 %v7119
    %7147 = vmatprep.subr.bf16.mxu0 0
    %7148 = vmatpush2.bf16.msra.mxu0 0
    %7149 = vmatprep.subr.bf16.mxu0 0
    %7150 = vmatpush2.bf16.msra.mxu0 0
    %7151 = vmatprep.subr.bf16.mxu0 0
    %7152 = vmatpush2.bf16.msra.mxu0 0
    %7153 = vmatprep.subr.bf16.mxu0 0
    %7154 = vmatpush2.bf16.msra.mxu0 0
    %7155 = vmatprep.subr.bf16.mxu0 0
    %7156 = vmatpush2.bf16.msra.mxu0 0
    %7157 = vmatprep.subr.bf16.mxu0 0
    %7158 = vmatpush2.bf16.msra.mxu0 0
    %7159 = vmatprep.subr.bf16.mxu0 0
    %7160 = vmatpush2.bf16.msra.mxu0 0
    %7161 = vmatprep.subr.bf16.mxu0 0
    %7162 = vmatpush2.bf16.msra.mxu0 0
    %7163 = vmatprep.mubr.bf16.mxu0 0
    %7164 = vmatmul.mubr.bf16.gmra.mxu0 %v7123
    %v7165 = vpop.f32.mrf.mxu0
    %v7166 = vadd.f32 0.0, %v7165
    %v7167 = vpop.f32.mrf.mxu0
    %v7168 = vpop.f32.mrf.mxu0
    %v7169 = vadd.f32 0.0, %v7168
    %v7170 = vpop.f32.mrf.mxu0
    %7171 = vmatprep.mubr.bf16.mxu0 0
    %7172 = vmatmul.mubr.bf16.gmra.mxu0 %v7125
    %v7173 = vpop.f32.mrf.mxu0
    %v7174 = vadd.f32 0.0, %v7173
    %v7175 = vpop.f32.mrf.mxu0
    %v7176 = vpop.f32.mrf.mxu0
    %v7177 = vpop.f32.mrf.mxu0
    %7178 = vmatprep.mubr.bf16.mxu0 0
    %7179 = vmatmul.mubr.bf16.gmra.mxu0 %v7127
    %v7180 = vpop.f32.mrf.mxu0
    %v7181 = vadd.f32 0.0, %v7180
    %v7182 = vpop.f32.mrf.mxu0
    %v7183 = vpop.f32.mrf.mxu0
    %v7184 = vadd.f32 0.0, %v7183
    %v7185 = vpop.f32.mrf.mxu0
    %7186 = vmatprep.mubr.bf16.mxu0 0
    %7187 = vmatmul.mubr.bf16.gmra.mxu0 %v7129
    %v7188 = vpop.f32.mrf.mxu0
    %v7189 = vadd.f32 0.0, %v7188
    %v7190 = vpop.f32.mrf.mxu0
    %v7191 = vpop.f32.mrf.mxu0
    %v7192 = vpop.f32.mrf.mxu0
    %7193 = vdwg.mxu0
    %v7195 = vlaneseq
    %v7196 = vshrl.u32 %v7195, 7
    %v7197 = vsub.s32 0, %v7196
    %v7198 = vrot.slane %v7106, %v7197
    %v7200 = vadd.f32 %v7198, %v7166
    %v7201 = vadd.f32 %v7198, %v7169
    %v7202 = vadd.f32 %v7198, %v7174
    %v7203 = vadd.f32 %v7198, %v7181
    %v7204 = vadd.f32 %v7198, %v7184
    %v7205 = vadd.f32 %v7198, %v7189
    %v7206 = vshrl.u32 %v7099, 16
    %v7208 = vshll.u32 %v7099, 16
    %v7210 = vrot.slane %v7208, 1
    %v7211 = vor.u32 %v7206, %v7210
    %v7212 = vshll.u32 %v7103, 16
    %v7214 = vrot.slane %v7212, 1
    %v7215 = vsel %vm356, %v7211, %v7214
    %v7216 = vshrl.u32 %v7103, 16
    %v7218 = vor.u32 %v7216, %v7214
    %v7219 = vsel %vm356, %v7218, %v372
    %v7220 = vshrl.u32 %v7101, 16
    %v7222 = vshll.u32 %v7101, 16
    %v7224 = vrot.slane %v7222, 1
    %v7225 = vor.u32 %v7220, %v7224
    %v7226 = vshll.u32 %v7105, 16
    %v7228 = vrot.slane %v7226, 1
    %v7229 = vsel %vm356, %v7225, %v7228
    %v7230 = vshrl.u32 %v7105, 16
    %v7232 = vor.u32 %v7230, %v7228
    %v7233 = vsel %vm356, %v7232, %v372
    %s7234 = scalar_lea.vmem %s22, 16
    %v7235 = vld [vmem:[%s7234] sm:$0xf]
    %v7236 = vld [vmem:[%s7234 + $0x4] sm:$0xf]
    %v7237 = vld [vmem:[%s7234 + $0x8] sm:$0xf]
    %v7238 = vld [vmem:[%s7234 + $0xc] sm:$0xf]
    %v7243 = vunpack.c.l.b16 %v7235
    %v7244 = vunpack.c.l.b16 %v7236
    %v7245 = vunpack.c.l.b16 %v7237
    %v7246 = vunpack.c.l.b16 %v7238
    %v7247 = vpack.c.b16 %v7244, %v7243
    %v7248 = vpack.c.b16 %v7246, %v7245
    %v7252 = vsel %vm962, %v7215, 0
    %v7255 = vsel %vm962, %v7219, 0
    %v7258 = vsel %vm962, %v7229, 0
    %v7261 = vsel %vm962, %v7233, 0
    %7263 = vmatprep.subr.bf16.mxu0 0
    %7264 = vmatpush1.bf16.msra.mxu0 0
    %7265 = vmatprep.subr.bf16.mxu0 0
    %7266 = vmatpush1.bf16.msra.mxu0 0
    %7267 = vmatprep.subr.bf16.mxu0 0
    %7268 = vmatpush1.bf16.msra.mxu0 0
    %7269 = vmatprep.subr.bf16.mxu0 0
    %7270 = vmatpush1.bf16.msra.mxu0 0
    %7271 = vmatprep.subr.bf16.mxu0 0
    %7272 = vmatpush1.bf16.msra.mxu0 0
    %7273 = vmatprep.subr.bf16.mxu0 0
    %7274 = vmatpush1.bf16.msra.mxu0 0
    %7275 = vmatprep.subr.bf16.mxu0 0
    %7276 = vmatpush1.bf16.msra.mxu0 %v7248
    %7277 = vmatprep.subr.bf16.mxu0 0
    %7278 = vmatpush1.bf16.msra.mxu0 %v7247
    %7279 = vmatprep.subr.bf16.mxu0 0
    %7280 = vmatpush2.bf16.msra.mxu0 0
    %7281 = vmatprep.subr.bf16.mxu0 0
    %7282 = vmatpush2.bf16.msra.mxu0 0
    %7283 = vmatprep.subr.bf16.mxu0 0
    %7284 = vmatpush2.bf16.msra.mxu0 0
    %7285 = vmatprep.subr.bf16.mxu0 0
    %7286 = vmatpush2.bf16.msra.mxu0 0
    %7287 = vmatprep.subr.bf16.mxu0 0
    %7288 = vmatpush2.bf16.msra.mxu0 0
    %7289 = vmatprep.subr.bf16.mxu0 0
    %7290 = vmatpush2.bf16.msra.mxu0 0
    %7291 = vmatprep.subr.bf16.mxu0 0
    %7292 = vmatpush2.bf16.msra.mxu0 0
    %7293 = vmatprep.subr.bf16.mxu0 0
    %7294 = vmatpush2.bf16.msra.mxu0 0
    %7295 = vmatprep.mubr.bf16.mxu0 0
    %7296 = vmatmul.mubr.bf16.gmra.mxu0 %v7252
    %v7297 = vpop.f32.mrf.mxu0
    %v7298 = vadd.f32 0.0, %v7297
    %v7299 = vpop.f32.mrf.mxu0
    %v7300 = vpop.f32.mrf.mxu0
    %v7301 = vadd.f32 0.0, %v7300
    %v7302 = vpop.f32.mrf.mxu0
    %7303 = vmatprep.mubr.bf16.mxu0 0
    %7304 = vmatmul.mubr.bf16.gmra.mxu0 %v7255
    %v7305 = vpop.f32.mrf.mxu0
    %v7306 = vadd.f32 0.0, %v7305
    %v7307 = vpop.f32.mrf.mxu0
    %v7308 = vpop.f32.mrf.mxu0
    %v7309 = vpop.f32.mrf.mxu0
    %7310 = vmatprep.mubr.bf16.mxu0 0
    %7311 = vmatmul.mubr.bf16.gmra.mxu0 %v7258
    %v7312 = vpop.f32.mrf.mxu0
    %v7313 = vadd.f32 0.0, %v7312
    %v7314 = vpop.f32.mrf.mxu0
    %v7315 = vpop.f32.mrf.mxu0
    %v7316 = vadd.f32 0.0, %v7315
    %v7317 = vpop.f32.mrf.mxu0
    %7318 = vmatprep.mubr.bf16.mxu0 0
    %7319 = vmatmul.mubr.bf16.gmra.mxu0 %v7261
    %v7320 = vpop.f32.mrf.mxu0
    %v7321 = vadd.f32 0.0, %v7320
    %v7322 = vpop.f32.mrf.mxu0
    %v7323 = vpop.f32.mrf.mxu0
    %v7324 = vpop.f32.mrf.mxu0
    %7325 = vdwg.mxu0
    %v7326 = vadd.f32 %v7200, %v7298
    %v7327 = vadd.f32 %v7201, %v7301
    %v7328 = vadd.f32 %v7202, %v7306
    %v7329 = vadd.f32 %v7203, %v7313
    %v7330 = vadd.f32 %v7204, %v7316
    %v7331 = vadd.f32 %v7205, %v7321
    %v7336 = vrot.slane %v7099, 1
    %v7337 = vrot.slane %v7103, 1
    %v7338 = vsel %vm479, %v7336, %v7337
    %v7339 = vsel %vm479, %v7337, %v483
    %v7340 = vrot.slane %v7101, 1
    %v7341 = vrot.slane %v7105, 1
    %v7342 = vsel %vm479, %v7340, %v7341
    %v7343 = vsel %vm479, %v7341, %v483
    %s7344 = scalar_lea.vmem %s22, 32
    %v7345 = vld [vmem:[%s7344] sm:$0xf]
    %v7346 = vld [vmem:[%s7344 + $0x4] sm:$0xf]
    %v7347 = vld [vmem:[%s7344 + $0x8] sm:$0xf]
    %v7348 = vld [vmem:[%s7344 + $0xc] sm:$0xf]
    %v7353 = vunpack.c.l.b16 %v7345
    %v7354 = vunpack.c.l.b16 %v7346
    %v7355 = vunpack.c.l.b16 %v7347
    %v7356 = vunpack.c.l.b16 %v7348
    %v7357 = vpack.c.b16 %v7354, %v7353
    %v7358 = vpack.c.b16 %v7356, %v7355
    %v7362 = vsel %vm962, %v7338, 0
    %v7365 = vsel %vm962, %v7339, 0
    %v7368 = vsel %vm962, %v7342, 0
    %v7371 = vsel %vm962, %v7343, 0
    %7373 = vmatprep.subr.bf16.mxu0 0
    %7374 = vmatpush1.bf16.msra.mxu0 0
    %7375 = vmatprep.subr.bf16.mxu0 0
    %7376 = vmatpush1.bf16.msra.mxu0 0
    %7377 = vmatprep.subr.bf16.mxu0 0
    %7378 = vmatpush1.bf16.msra.mxu0 0
    %7379 = vmatprep.subr.bf16.mxu0 0
    %7380 = vmatpush1.bf16.msra.mxu0 0
    %7381 = vmatprep.subr.bf16.mxu0 0
    %7382 = vmatpush1.bf16.msra.mxu0 0
    %7383 = vmatprep.subr.bf16.mxu0 0
    %7384 = vmatpush1.bf16.msra.mxu0 0
    %7385 = vmatprep.subr.bf16.mxu0 0
    %7386 = vmatpush1.bf16.msra.mxu0 %v7358
    %7387 = vmatprep.subr.bf16.mxu0 0
    %7388 = vmatpush1.bf16.msra.mxu0 %v7357
    %7389 = vmatprep.subr.bf16.mxu0 0
    %7390 = vmatpush2.bf16.msra.mxu0 0
    %7391 = vmatprep.subr.bf16.mxu0 0
    %7392 = vmatpush2.bf16.msra.mxu0 0
    %7393 = vmatprep.subr.bf16.mxu0 0
    %7394 = vmatpush2.bf16.msra.mxu0 0
    %7395 = vmatprep.subr.bf16.mxu0 0
    %7396 = vmatpush2.bf16.msra.mxu0 0
    %7397 = vmatprep.subr.bf16.mxu0 0
    %7398 = vmatpush2.bf16.msra.mxu0 0
    %7399 = vmatprep.subr.bf16.mxu0 0
    %7400 = vmatpush2.bf16.msra.mxu0 0
    %7401 = vmatprep.subr.bf16.mxu0 0
    %7402 = vmatpush2.bf16.msra.mxu0 0
    %7403 = vmatprep.subr.bf16.mxu0 0
    %7404 = vmatpush2.bf16.msra.mxu0 0
    %7405 = vmatprep.mubr.bf16.mxu0 0
    %7406 = vmatmul.mubr.bf16.gmra.mxu0 %v7362
    %v7407 = vpop.f32.mrf.mxu0
    %v7408 = vadd.f32 0.0, %v7407
    %v7409 = vpop.f32.mrf.mxu0
    %v7410 = vpop.f32.mrf.mxu0
    %v7411 = vadd.f32 0.0, %v7410
    %v7412 = vpop.f32.mrf.mxu0
    %7413 = vmatprep.mubr.bf16.mxu0 0
    %7414 = vmatmul.mubr.bf16.gmra.mxu0 %v7365
    %v7415 = vpop.f32.mrf.mxu0
    %v7416 = vadd.f32 0.0, %v7415
    %v7417 = vpop.f32.mrf.mxu0
    %v7418 = vpop.f32.mrf.mxu0
    %v7419 = vpop.f32.mrf.mxu0
    %7420 = vmatprep.mubr.bf16.mxu0 0
    %7421 = vmatmul.mubr.bf16.gmra.mxu0 %v7368
    %v7422 = vpop.f32.mrf.mxu0
    %v7423 = vadd.f32 0.0, %v7422
    %v7424 = vpop.f32.mrf.mxu0
    %v7425 = vpop.f32.mrf.mxu0
    %v7426 = vadd.f32 0.0, %v7425
    %v7427 = vpop.f32.mrf.mxu0
    %7428 = vmatprep.mubr.bf16.mxu0 0
    %7429 = vmatmul.mubr.bf16.gmra.mxu0 %v7371
    %v7430 = vpop.f32.mrf.mxu0
    %v7431 = vadd.f32 0.0, %v7430
    %v7432 = vpop.f32.mrf.mxu0
    %v7433 = vpop.f32.mrf.mxu0
    %v7434 = vpop.f32.mrf.mxu0
    %7435 = vdwg.mxu0
    %v7436 = vadd.f32 %v7326, %v7408
    %v7437 = vadd.f32 %v7327, %v7411
    %v7438 = vadd.f32 %v7328, %v7416
    %v7439 = vadd.f32 %v7329, %v7423
    %v7440 = vadd.f32 %v7330, %v7426
    %v7441 = vadd.f32 %v7331, %v7431
    %vm7442 = vcmp.gt.f32.partialorder %v7436, 0.0
    %vm7443 = vcmp.gt.f32.partialorder %v7437, 0.0
    %vm7444 = vcmp.gt.f32.partialorder %v7438, 0.0
    %vm7445 = vcmp.gt.f32.partialorder %v7439, 0.0
    %vm7446 = vcmp.gt.f32.partialorder %v7440, 0.0
    %vm7447 = vcmp.gt.f32.partialorder %v7441, 0.0
    %v7448 = vmul.f32 %v581, %v7436
    %v7449 = vmul.f32 %v581, %v7437
    %v7450 = vmul.f32 %v581, %v7438
    %v7451 = vmul.f32 %v581, %v7439
    %v7452 = vmul.f32 %v581, %v7440
    %v7453 = vmul.f32 %v581, %v7441
    %v7454 = vsel %vm7442, %v7436, %v7448
    %v7455 = vsel %vm7443, %v7437, %v7449
    %v7456 = vsel %vm7444, %v7438, %v7450
    %v7457 = vsel %vm7445, %v7439, %v7451
    %v7458 = vsel %vm7446, %v7440, %v7452
    %v7459 = vsel %vm7447, %v7441, %v7453
    %v7460 = vadd.f32 %v7454, %v588
    %v7461 = vadd.f32 %v7455, %v589
    %v7462 = vadd.f32 %v7456, %v590
    %v7463 = vadd.f32 %v7457, %v591
    %v7464 = vadd.f32 %v7458, %v592
    %v7465 = vadd.f32 %v7459, %v593
    %v7466 = vpack.c.bf16 %v7461, %v7460
    %v7467 = vpack.c.bf16 %v7462, %v7462
    %v7468 = vpack.c.bf16 %v7464, %v7463
    %v7469 = vpack.c.bf16 %v7465, %v7465
    %v7474 = vrot.slane %v7466, 7
    %v7475 = vrot.slane %v7467, 7
    %v7476 = vsel %vm6661, %v7474, %v7475
    %v7477 = vrot.slane %v7468, 7
    %v7478 = vrot.slane %v7469, 7
    %v7479 = vsel %vm6661, %v7477, %v7478
    %v7481 = vsel %vm275, 0, %v7474
    %v7483 = vsel %vm275, 0, %v7477
    %v7485 = vsel %vm256, %v7476, 0
    %v7487 = vsel %vm256, %v7479, 0
    %v7488 = vld [vmem:[#allocation3] sm:$0x1]
    %v7489 = vld [vmem:[%s24] sm:$0xf]
    %v7490 = vld [vmem:[%s24 + $0x4] sm:$0xf]
    %v7493 = vunpack.c.l.b16 %v7489
    %v7494 = vunpack.c.l.b16 %v7490
    %v7495 = vpack.c.b16 %v7494, %v7493
    %v7497 = vsel %vm612, %v7481, 0
    %v7499 = vsel %vm612, %v7485, 0
    %v7501 = vsel %vm612, %v7483, 0
    %v7503 = vsel %vm612, %v7487, 0
    %7505 = vmatprep.subr.bf16.mxu0 0
    %7506 = vmatpush1.bf16.msra.mxu0 0
    %7507 = vmatprep.subr.bf16.mxu0 0
    %7508 = vmatpush1.bf16.msra.mxu0 0
    %7509 = vmatprep.subr.bf16.mxu0 0
    %7510 = vmatpush1.bf16.msra.mxu0 0
    %7511 = vmatprep.subr.bf16.mxu0 0
    %7512 = vmatpush1.bf16.msra.mxu0 0
    %7513 = vmatprep.subr.bf16.mxu0 0
    %7514 = vmatpush1.bf16.msra.mxu0 0
    %7515 = vmatprep.subr.bf16.mxu0 0
    %7516 = vmatpush1.bf16.msra.mxu0 0
    %7517 = vmatprep.subr.bf16.mxu0 0
    %7518 = vmatpush1.bf16.msra.mxu0 0
    %7519 = vmatprep.subr.bf16.mxu0 0
    %7520 = vmatpush1.bf16.msra.mxu0 %v7495
    %7521 = vmatprep.subr.bf16.mxu0 0
    %7522 = vmatpush2.bf16.msra.mxu0 0
    %7523 = vmatprep.subr.bf16.mxu0 0
    %7524 = vmatpush2.bf16.msra.mxu0 0
    %7525 = vmatprep.subr.bf16.mxu0 0
    %7526 = vmatpush2.bf16.msra.mxu0 0
    %7527 = vmatprep.subr.bf16.mxu0 0
    %7528 = vmatpush2.bf16.msra.mxu0 0
    %7529 = vmatprep.subr.bf16.mxu0 0
    %7530 = vmatpush2.bf16.msra.mxu0 0
    %7531 = vmatprep.subr.bf16.mxu0 0
    %7532 = vmatpush2.bf16.msra.mxu0 0
    %7533 = vmatprep.subr.bf16.mxu0 0
    %7534 = vmatpush2.bf16.msra.mxu0 0
    %7535 = vmatprep.subr.bf16.mxu0 0
    %7536 = vmatpush2.bf16.msra.mxu0 0
    %7537 = vmatprep.mubr.bf16.mxu0 0
    %7538 = vmatmul.mubr.bf16.gmra.mxu0 %v7497
    %v7539 = vpop.f32.mrf.mxu0
    %v7540 = vadd.f32 0.0, %v7539
    %v7541 = vpop.f32.mrf.mxu0
    %v7542 = vpop.f32.mrf.mxu0
    %v7543 = vadd.f32 0.0, %v7542
    %v7544 = vpop.f32.mrf.mxu0
    %7545 = vmatprep.mubr.bf16.mxu0 0
    %7546 = vmatmul.mubr.bf16.gmra.mxu0 %v7499
    %v7547 = vpop.f32.mrf.mxu0
    %v7548 = vadd.f32 0.0, %v7547
    %v7549 = vpop.f32.mrf.mxu0
    %v7550 = vpop.f32.mrf.mxu0
    %v7551 = vpop.f32.mrf.mxu0
    %7552 = vmatprep.mubr.bf16.mxu0 0
    %7553 = vmatmul.mubr.bf16.gmra.mxu0 %v7501
    %v7554 = vpop.f32.mrf.mxu0
    %v7555 = vadd.f32 0.0, %v7554
    %v7556 = vpop.f32.mrf.mxu0
    %v7557 = vpop.f32.mrf.mxu0
    %v7558 = vadd.f32 0.0, %v7557
    %v7559 = vpop.f32.mrf.mxu0
    %7560 = vmatprep.mubr.bf16.mxu0 0
    %7561 = vmatmul.mubr.bf16.gmra.mxu0 %v7503
    %v7562 = vpop.f32.mrf.mxu0
    %v7563 = vadd.f32 0.0, %v7562
    %v7564 = vpop.f32.mrf.mxu0
    %v7565 = vpop.f32.mrf.mxu0
    %v7566 = vpop.f32.mrf.mxu0
    %7567 = vdwg.mxu0
    %v7569 = vlaneseq
    %v7570 = vshrl.u32 %v7569, 7
    %v7571 = vsub.s32 0, %v7570
    %v7572 = vrot.slane %v7488, %v7571
    %v7574 = vadd.f32 %v7572, %v7540
    %v7575 = vadd.f32 %v7572, %v7543
    %v7576 = vadd.f32 %v7572, %v7548
    %v7577 = vadd.f32 %v7572, %v7555
    %v7578 = vadd.f32 %v7572, %v7558
    %v7579 = vadd.f32 %v7572, %v7563
    %v7580 = vshrl.u32 %v7481, 16
    %v7582 = vshll.u32 %v7481, 16
    %v7584 = vrot.slane %v7582, 1
    %v7585 = vor.u32 %v7580, %v7584
    %v7586 = vshll.u32 %v7485, 16
    %v7588 = vrot.slane %v7586, 1
    %v7589 = vsel %vm356, %v7585, %v7588
    %v7590 = vshrl.u32 %v7485, 16
    %v7592 = vor.u32 %v7590, %v7588
    %v7593 = vsel %vm356, %v7592, %v372
    %v7594 = vshrl.u32 %v7483, 16
    %v7596 = vshll.u32 %v7483, 16
    %v7598 = vrot.slane %v7596, 1
    %v7599 = vor.u32 %v7594, %v7598
    %v7600 = vshll.u32 %v7487, 16
    %v7602 = vrot.slane %v7600, 1
    %v7603 = vsel %vm356, %v7599, %v7602
    %v7604 = vshrl.u32 %v7487, 16
    %v7606 = vor.u32 %v7604, %v7602
    %v7607 = vsel %vm356, %v7606, %v372
    %s7608 = scalar_lea.vmem %s24, 8
    %v7609 = vld [vmem:[%s7608] sm:$0xf]
    %v7610 = vld [vmem:[%s7608 + $0x4] sm:$0xf]
    %v7613 = vunpack.c.l.b16 %v7609
    %v7614 = vunpack.c.l.b16 %v7610
    %v7615 = vpack.c.b16 %v7614, %v7613
    %v7618 = vsel %vm612, %v7589, 0
    %v7621 = vsel %vm612, %v7593, 0
    %v7624 = vsel %vm612, %v7603, 0
    %v7627 = vsel %vm612, %v7607, 0
    %7629 = vmatprep.subr.bf16.mxu0 0
    %7630 = vmatpush1.bf16.msra.mxu0 0
    %7631 = vmatprep.subr.bf16.mxu0 0
    %7632 = vmatpush1.bf16.msra.mxu0 0
    %7633 = vmatprep.subr.bf16.mxu0 0
    %7634 = vmatpush1.bf16.msra.mxu0 0
    %7635 = vmatprep.subr.bf16.mxu0 0
    %7636 = vmatpush1.bf16.msra.mxu0 0
    %7637 = vmatprep.subr.bf16.mxu0 0
    %7638 = vmatpush1.bf16.msra.mxu0 0
    %7639 = vmatprep.subr.bf16.mxu0 0
    %7640 = vmatpush1.bf16.msra.mxu0 0
    %7641 = vmatprep.subr.bf16.mxu0 0
    %7642 = vmatpush1.bf16.msra.mxu0 0
    %7643 = vmatprep.subr.bf16.mxu0 0
    %7644 = vmatpush1.bf16.msra.mxu0 %v7615
    %7645 = vmatprep.subr.bf16.mxu0 0
    %7646 = vmatpush2.bf16.msra.mxu0 0
    %7647 = vmatprep.subr.bf16.mxu0 0
    %7648 = vmatpush2.bf16.msra.mxu0 0
    %7649 = vmatprep.subr.bf16.mxu0 0
    %7650 = vmatpush2.bf16.msra.mxu0 0
    %7651 = vmatprep.subr.bf16.mxu0 0
    %7652 = vmatpush2.bf16.msra.mxu0 0
    %7653 = vmatprep.subr.bf16.mxu0 0
    %7654 = vmatpush2.bf16.msra.mxu0 0
    %7655 = vmatprep.subr.bf16.mxu0 0
    %7656 = vmatpush2.bf16.msra.mxu0 0
    %7657 = vmatprep.subr.bf16.mxu0 0
    %7658 = vmatpush2.bf16.msra.mxu0 0
    %7659 = vmatprep.subr.bf16.mxu0 0
    %7660 = vmatpush2.bf16.msra.mxu0 0
    %7661 = vmatprep.mubr.bf16.mxu0 0
    %7662 = vmatmul.mubr.bf16.gmra.mxu0 %v7618
    %v7663 = vpop.f32.mrf.mxu0
    %v7664 = vadd.f32 0.0, %v7663
    %v7665 = vpop.f32.mrf.mxu0
    %v7666 = vpop.f32.mrf.mxu0
    %v7667 = vadd.f32 0.0, %v7666
    %v7668 = vpop.f32.mrf.mxu0
    %7669 = vmatprep.mubr.bf16.mxu0 0
    %7670 = vmatmul.mubr.bf16.gmra.mxu0 %v7621
    %v7671 = vpop.f32.mrf.mxu0
    %v7672 = vadd.f32 0.0, %v7671
    %v7673 = vpop.f32.mrf.mxu0
    %v7674 = vpop.f32.mrf.mxu0
    %v7675 = vpop.f32.mrf.mxu0
    %7676 = vmatprep.mubr.bf16.mxu0 0
    %7677 = vmatmul.mubr.bf16.gmra.mxu0 %v7624
    %v7678 = vpop.f32.mrf.mxu0
    %v7679 = vadd.f32 0.0, %v7678
    %v7680 = vpop.f32.mrf.mxu0
    %v7681 = vpop.f32.mrf.mxu0
    %v7682 = vadd.f32 0.0, %v7681
    %v7683 = vpop.f32.mrf.mxu0
    %7684 = vmatprep.mubr.bf16.mxu0 0
    %7685 = vmatmul.mubr.bf16.gmra.mxu0 %v7627
    %v7686 = vpop.f32.mrf.mxu0
    %v7687 = vadd.f32 0.0, %v7686
    %v7688 = vpop.f32.mrf.mxu0
    %v7689 = vpop.f32.mrf.mxu0
    %v7690 = vpop.f32.mrf.mxu0
    %7691 = vdwg.mxu0
    %v7692 = vadd.f32 %v7574, %v7664
    %v7693 = vadd.f32 %v7575, %v7667
    %v7694 = vadd.f32 %v7576, %v7672
    %v7695 = vadd.f32 %v7577, %v7679
    %v7696 = vadd.f32 %v7578, %v7682
    %v7697 = vadd.f32 %v7579, %v7687
    %v7702 = vrot.slane %v7481, 1
    %v7703 = vrot.slane %v7485, 1
    %v7704 = vsel %vm479, %v7702, %v7703
    %v7705 = vsel %vm479, %v7703, %v483
    %v7706 = vrot.slane %v7483, 1
    %v7707 = vrot.slane %v7487, 1
    %v7708 = vsel %vm479, %v7706, %v7707
    %v7709 = vsel %vm479, %v7707, %v483
    %s7710 = scalar_lea.vmem %s24, 16
    %v7711 = vld [vmem:[%s7710] sm:$0xf]
    %v7712 = vld [vmem:[%s7710 + $0x4] sm:$0xf]
    %v7715 = vunpack.c.l.b16 %v7711
    %v7716 = vunpack.c.l.b16 %v7712
    %v7717 = vpack.c.b16 %v7716, %v7715
    %v7720 = vsel %vm612, %v7704, 0
    %v7723 = vsel %vm612, %v7705, 0
    %v7726 = vsel %vm612, %v7708, 0
    %v7729 = vsel %vm612, %v7709, 0
    %7731 = vmatprep.subr.bf16.mxu0 0
    %7732 = vmatpush1.bf16.msra.mxu0 0
    %7733 = vmatprep.subr.bf16.mxu0 0
    %7734 = vmatpush1.bf16.msra.mxu0 0
    %7735 = vmatprep.subr.bf16.mxu0 0
    %7736 = vmatpush1.bf16.msra.mxu0 0
    %7737 = vmatprep.subr.bf16.mxu0 0
    %7738 = vmatpush1.bf16.msra.mxu0 0
    %7739 = vmatprep.subr.bf16.mxu0 0
    %7740 = vmatpush1.bf16.msra.mxu0 0
    %7741 = vmatprep.subr.bf16.mxu0 0
    %7742 = vmatpush1.bf16.msra.mxu0 0
    %7743 = vmatprep.subr.bf16.mxu0 0
    %7744 = vmatpush1.bf16.msra.mxu0 0
    %7745 = vmatprep.subr.bf16.mxu0 0
    %7746 = vmatpush1.bf16.msra.mxu0 %v7717
    %7747 = vmatprep.subr.bf16.mxu0 0
    %7748 = vmatpush2.bf16.msra.mxu0 0
    %7749 = vmatprep.subr.bf16.mxu0 0
    %7750 = vmatpush2.bf16.msra.mxu0 0
    %7751 = vmatprep.subr.bf16.mxu0 0
    %7752 = vmatpush2.bf16.msra.mxu0 0
    %7753 = vmatprep.subr.bf16.mxu0 0
    %7754 = vmatpush2.bf16.msra.mxu0 0
    %7755 = vmatprep.subr.bf16.mxu0 0
    %7756 = vmatpush2.bf16.msra.mxu0 0
    %7757 = vmatprep.subr.bf16.mxu0 0
    %7758 = vmatpush2.bf16.msra.mxu0 0
    %7759 = vmatprep.subr.bf16.mxu0 0
    %7760 = vmatpush2.bf16.msra.mxu0 0
    %7761 = vmatprep.subr.bf16.mxu0 0
    %7762 = vmatpush2.bf16.msra.mxu0 0
    %7763 = vmatprep.mubr.bf16.mxu0 0
    %7764 = vmatmul.mubr.bf16.gmra.mxu0 %v7720
    %v7765 = vpop.f32.mrf.mxu0
    %v7766 = vadd.f32 0.0, %v7765
    %v7767 = vpop.f32.mrf.mxu0
    %v7768 = vpop.f32.mrf.mxu0
    %v7769 = vadd.f32 0.0, %v7768
    %v7770 = vpop.f32.mrf.mxu0
    %7771 = vmatprep.mubr.bf16.mxu0 0
    %7772 = vmatmul.mubr.bf16.gmra.mxu0 %v7723
    %v7773 = vpop.f32.mrf.mxu0
    %v7774 = vadd.f32 0.0, %v7773
    %v7775 = vpop.f32.mrf.mxu0
    %v7776 = vpop.f32.mrf.mxu0
    %v7777 = vpop.f32.mrf.mxu0
    %7778 = vmatprep.mubr.bf16.mxu0 0
    %7779 = vmatmul.mubr.bf16.gmra.mxu0 %v7726
    %v7780 = vpop.f32.mrf.mxu0
    %v7781 = vadd.f32 0.0, %v7780
    %v7782 = vpop.f32.mrf.mxu0
    %v7783 = vpop.f32.mrf.mxu0
    %v7784 = vadd.f32 0.0, %v7783
    %v7785 = vpop.f32.mrf.mxu0
    %7786 = vmatprep.mubr.bf16.mxu0 0
    %7787 = vmatmul.mubr.bf16.gmra.mxu0 %v7729
    %v7788 = vpop.f32.mrf.mxu0
    %v7789 = vadd.f32 0.0, %v7788
    %v7790 = vpop.f32.mrf.mxu0
    %v7791 = vpop.f32.mrf.mxu0
    %v7792 = vpop.f32.mrf.mxu0
    %7793 = vdwg.mxu0
    %v7794 = vadd.f32 %v7692, %v7766
    %v7795 = vadd.f32 %v7693, %v7769
    %v7796 = vadd.f32 %v7694, %v7774
    %v7797 = vadd.f32 %v7695, %v7781
    %v7798 = vadd.f32 %v7696, %v7784
    %v7799 = vadd.f32 %v7697, %v7789
    %v7800 = vtanh.pop %v7794
    %v7801 = vtanh.pop %v7795
    %v7802 = vtanh.pop %v7796
    %v7803 = vtanh.pop %v7797
    %v7804 = vtanh.pop %v7798
    %v7805 = vtanh.pop %v7799
    %7806 = vst.msk [vmem:[%s26] sm:$0xff] %vm264, %v7800
    %7807 = vst.msk [vmem:[%s26 + $0x8] sm:$0xff] %vm264, %v7801
    %7808 = vst.msk [vmem:[%s26 + $0x10] sm:$0xff] %vm264, %v7802
    %7809 = vst.msk [vmem:[%s26 + $0x18] sm:$0xff] %vm264, %v7803
    %7810 = vst.msk [vmem:[%s26 + $0x20] sm:$0xff] %vm264, %v7804
    %7811 = vst.msk [vmem:[%s26 + $0x28] sm:$0xff] %vm264, %v7805
    // Predicated region
    $region158: #{generator_forward.1} parent=1 // pred_check
      _
    $region159: #{generator_forward.1} parent=1 // pred_check_branch
      %7813 = sbr.rel (0) target = $region161
    $region160: #{generator_forward.1} parent=1 // pred_region
      _
    $region161: #{generator_forward.1} parent=1 // pred_fallthru
      _
    // Predicated region
    $region162: #{generator_forward.1} parent=1 // pred_check
      _
    $region163: #{generator_forward.1} parent=1 // pred_check_branch
      %7815 = sbr.rel (0) target = $region165
    $region164: #{generator_forward.1} parent=1 // pred_region
      _
    $region165: #{generator_forward.1} parent=1 // pred_fallthru
      _
    %7816 = vsyncpa [#allocation5], 1
    %7817 = vsyncpa [#allocation7], 1
    %7818 = vsyncpa [#allocation10], 1
    %7819 = vsyncpa [#allocation13], 1
    %7820 = vsyncpa [#allocation16], 1
    %7821 = vsyncpa [#allocation19], 1
    %7822 = vsyncpa [#allocation22], 1

</llo_original>
